<compile_context>
chip_gen: v6e
topology: v6e:2x2x1
jax: 0.10.0
libtpu: 0.0.40
codegen_flags: <defaults>
</compile_context>

<pallas_src>
import functools

import jax
import jax.numpy as jnp
from jax import lax
from jax.experimental import pallas as pl
from jax.experimental.pallas import tpu as pltpu

SELU_ALPHA = 1.6732632423543772
SELU_SCALE = 1.0507009873554805
BN_EPS = 1e-5
LANE = 128


def _selu(x):
    neg = SELU_ALPHA * (jnp.exp(jnp.minimum(x, 0.0)) - 1.0)
    return SELU_SCALE * jnp.where(x > 0, x, neg)


def _round_up(v, m):
    return ((v + m - 1) // m) * m


def _vmem_cap_bytes():
    # Per-generation budget: ~85% of physical VMEM (64 MiB on v7x, 128 MiB on
    # v5e/v6e), never above ~112 MiB.
    try:
        cap = int(pltpu.get_tpu_info().vmem_capacity_bytes)
    except Exception:
        cap = 64 << 20  # conservative (v7x per-TensorCore)
    return min(int(cap * 0.85), 112 << 20)


def _vmem_limit(needed_bytes):
    return int(min(needed_bytes + (8 << 20), _vmem_cap_bytes()))


def _largest_divisor_leq(n, cap):
    cap = max(1, min(n, int(cap)))
    for d in range(cap, 0, -1):
        if n % d == 0:
            return d
    return 1


# ---------------------------------------------------------------------------
# Kernel for both conv stages:
#   [affine (folded BN) ->] 3x3 conv via bf16 im2col + single MXU matmul
#   -> bias -> SELU, plus per-channel sum / sum-of-squares accumulated across
#   the grid (constant-index outputs).
# ---------------------------------------------------------------------------
def _conv_selu_kernel(*refs, H, W, Cin, Cin_p, Cout_p, Bt, apply_affine):
    if apply_affine:
        (x_ref, sc_ref, sh_ref, w_ref, b_ref,
         y_ref, sum_ref, ssq_ref, pad_ref, col_ref) = refs
    else:
        (x_ref, w_ref, b_ref,
         y_ref, sum_ref, ssq_ref, pad_ref, col_ref) = refs

    first = pl.program_id(0) == 0
    M = Bt * H * W

    # Zero the padded scratch once; the 1-pixel halo and the lane-padded
    # channels then stay zero for every later grid step (axis is "arbitrary",
    # i.e. sequential on one core, and scratch persists across steps).
    @pl.when(first)
    def _():
        pad_ref[...] = jnp.zeros_like(pad_ref)

    x = x_ref[...]                                        # (Bt, H, W, Cin) f32
    if apply_affine:
        x = x * sc_ref[...] + sh_ref[...]                 # folded BN of prev stage
    # single f32 -> bf16 cast; spatial / channel zero-pad lives in the scratch
    pad_ref[:, 1:H + 1, 1:W + 1, 0:Cin] = x.astype(jnp.bfloat16)

    # im2col slab: one explicit copy pass, destinations lane-aligned
    # (column offsets are multiples of Cin_p = 128).
    for ky in range(3):
        for kx in range(3):
            t = ky * 3 + kx
            patch = pad_ref[:, ky:ky + H, kx:kx + W, :]   # (Bt, H, W, Cin_p) bf16
            col_ref[:, t * Cin_p:(t + 1) * Cin_p] = patch.reshape(M, Cin_p)

    # one deep-K MXU matmul (K = 9*Cin_p), f32 accumulation in registers
    acc = jnp.dot(col_ref[...], w_ref[...], preferred_element_type=jnp.float32)
    y = _selu(acc + b_ref[...])                           # (M, Cout_p) f32
    y_ref[...] = y.reshape(Bt, H, W, Cout_p)

    # partial BN statistics, accumulated across the grid into the
    # constant-index (1, Cout_p) outputs
    ps = jnp.sum(y, axis=0, keepdims=True)
    pq = jnp.sum(y * y, axis=0, keepdims=True)

    @pl.when(first)
    def _():
        sum_ref[...] = ps
        ssq_ref[...] = pq

    @pl.when(jnp.logical_not(first))
    def _():
        sum_ref[...] += ps
        ssq_ref[...] += pq


def _conv_selu(x, w_flat, bias, scale, shift, *, Cin, Cin_p, Cout_p,
               apply_affine, bt_max=16):
    N, H, W, _ = x.shape

    # per-image VMEM working set (lane-padded, double-buffered I/O blocks)
    per_image = (2 * H * W * Cin_p * 4                    # x block (f32)
                 + 2 * H * W * Cout_p * 4                 # y block (f32)
                 + (H + 2) * _round_up(W + 2, 8) * Cin_p * 2   # padded scratch
                 + H * W * 9 * Cin_p * 2)                 # im2col slab (bf16)
    resident = 2 * 9 * Cin_p * Cout_p * 2 + 8 * Cout_p * 4
    budget = _vmem_cap_bytes() - resident - (8 << 20)
    Bt = _largest_divisor_leq(N, min(bt_max, max(1, budget // max(per_image, 1))))
    needed = resident + Bt * per_image

    kernel = functools.partial(_conv_selu_kernel, H=H, W=W, Cin=Cin,
                               Cin_p=Cin_p, Cout_p=Cout_p, Bt=Bt,
                               apply_affine=apply_affine)

    in_specs = [pl.BlockSpec((Bt, H, W, Cin), lambda n: (n, 0, 0, 0))]
    args = [x]
    if apply_affine:
        in_specs += [pl.BlockSpec((1, Cin), lambda n: (0, 0)),
                     pl.BlockSpec((1, Cin), lambda n: (0, 0))]
        args += [scale, shift]
    in_specs += [pl.BlockSpec((9 * Cin_p, Cout_p), lambda n: (0, 0)),
                 pl.BlockSpec((1, Cout_p), lambda n: (0, 0))]
    args += [w_flat, bias]

    return pl.pallas_call(
        kernel,
        grid=(N // Bt,),
        in_specs=in_specs,
        out_specs=[
            pl.BlockSpec((Bt, H, W, Cout_p), lambda n: (n, 0, 0, 0)),
            pl.BlockSpec((1, Cout_p), lambda n: (0, 0)),
            pl.BlockSpec((1, Cout_p), lambda n: (0, 0)),
        ],
        out_shape=(
            jax.ShapeDtypeStruct((N, H, W, Cout_p), jnp.float32),
            jax.ShapeDtypeStruct((1, Cout_p), jnp.float32),
            jax.ShapeDtypeStruct((1, Cout_p), jnp.float32),
        ),
        scratch_shapes=[
            pltpu.VMEM((Bt, H + 2, W + 2, Cin_p), jnp.bfloat16),
            pltpu.VMEM((Bt * H * W, 9 * Cin_p), jnp.bfloat16),
        ],
        compiler_params=pltpu.CompilerParams(
            # "arbitrary": the zero-once padded scratch and the BN-stats
            # accumulator outputs must persist across grid steps.
            dimension_semantics=("arbitrary",),
            vmem_limit_bytes=_vmem_limit(needed)),
    )(*args)


# ---------------------------------------------------------------------------
# Final kernel: BN2 apply (+ residual add of pre-BN x0) on a 2-D (rows, C)
# view with large lane-dense tiles.
# ---------------------------------------------------------------------------
def _bn_residual_kernel(*refs, residual):
    if residual:
        x0_ref, x2_ref, sc_ref, sh_ref, o_ref = refs
    else:
        x2_ref, sc_ref, sh_ref, o_ref = refs
    y2 = x2_ref[...] * sc_ref[...] + sh_ref[...]
    o_ref[...] = (x0_ref[...] + y2) if residual else y2


def _bn_residual(x0, x2, scale, shift, *, residual):
    R, C = x2.shape
    Rt = R if R <= 4096 else 4096                 # full rows, or big 8-aligned tile
    n_bufs = (3 if residual else 2) + 1
    needed = 2 * n_bufs * Rt * C * 4 + 4 * C * 4

    kernel = functools.partial(_bn_residual_kernel, residual=residual)
    row_spec = pl.BlockSpec((Rt, C), lambda i: (i, 0))
    vec_spec = pl.BlockSpec((1, C), lambda i: (0, 0))
    if residual:
        in_specs = [row_spec, row_spec, vec_spec, vec_spec]
        args = (x0, x2, scale, shift)
    else:
        in_specs = [row_spec, vec_spec, vec_spec]
        args = (x2, scale, shift)

    return pl.pallas_call(
        kernel,
        grid=(pl.cdiv(R, Rt),),
        in_specs=in_specs,
        out_specs=row_spec,
        out_shape=jax.ShapeDtypeStruct((R, C), jnp.float32),
        compiler_params=pltpu.CompilerParams(
            dimension_semantics=("parallel",),
            vmem_limit_bytes=_vmem_limit(needed)),
    )(*args)


# ---------------------------------------------------------------------------
# BN finalize (tiny, per-channel, plain JAX) and parameter plumbing
# ---------------------------------------------------------------------------
def _bn_affine_params(s, q, gamma_p, beta_p, count):
    # s, q, gamma_p, beta_p: (1, C)
    mean = s / count
    # TODO(synk): E[x^2]-E[x]^2 in f32 can cancel for very large N*H*W.
    var = jnp.maximum(q / count - mean * mean, 0.0)       # biased variance
    rstd = lax.rsqrt(var + BN_EPS)
    scale = gamma_p * rstd
    shift = beta_p - mean * scale
    return scale, shift


def _flat_weight(w, cin_p, cout_p):
    # (Cout, Cin, 3, 3) -> (9*Cin_p, Cout_p), rows ordered (ky, kx, ci), bf16
    co, ci, kh, kw = w.shape
    wt = jnp.transpose(w, (2, 3, 1, 0)).astype(jnp.float32)   # (3,3,Cin,Cout)
    wt = jnp.pad(wt, ((0, 0), (0, 0), (0, cin_p - ci), (0, cout_p - co)))
    return wt.reshape(kh * kw * cin_p, cout_p).astype(jnp.bfloat16)


def _pad_vec(v, cp):
    v = jnp.asarray(v, jnp.float32).reshape(-1)
    return jnp.pad(v, (0, cp - v.shape[0])).reshape(1, cp)


def conv_unit_forward(x_nchw, params, mode='residual'):
    """ConvUnit forward. x_nchw: (N, Cin, H, W) float32 -> (N, Cout, H, W)."""
    N, Cin, H, W = x_nchw.shape
    Cout = params['w1'].shape[0]
    Cin_p = _round_up(Cin, LANE)
    Cp = _round_up(Cout, LANE)
    count = float(N * H * W)

    # NCHW -> NHWC (lane-dense channel axis); channel pad is done in-kernel.
    x = jnp.transpose(x_nchw, (0, 2, 3, 1)).astype(jnp.float32)

    w1 = _flat_weight(params['w1'], Cin_p, Cp)
    w2 = _flat_weight(params['w2'], Cp, Cp)
    b1 = _pad_vec(params['b1'], Cp)
    b2 = _pad_vec(params['b2'], Cp)
    g1 = _pad_vec(params['gamma1'], Cp)     # zero-padded -> dead channels stay 0
    be1 = _pad_vec(params['beta1'], Cp)
    g2 = _pad_vec(params['gamma2'], Cp)
    be2 = _pad_vec(params['beta2'], Cp)

    # conv1 + SELU (no input affine), BN1 statistics
    x0, s1, q1 = _conv_selu(x, w1, b1, None, None, Cin=Cin, Cin_p=Cin_p,
                            Cout_p=Cp, apply_affine=False)
    sc1, sh1 = _bn_affine_params(s1, q1, g1, be1, count)

    # BN1 (folded affine) + conv2 + SELU, BN2 statistics
    x2, s2, q2 = _conv_selu(x0, w2, b2, sc1, sh1, Cin=Cp, Cin_p=Cp,
                            Cout_p=Cp, apply_affine=True)
    sc2, sh2 = _bn_affine_params(s2, q2, g2, be2, count)

    # BN2 apply (+ residual add of pre-BN x0), on a 2-D (N*H*W, Cp) view
    out2d = _bn_residual(x0.reshape(N * H * W, Cp), x2.reshape(N * H * W, Cp),
                         sc2, sh2, residual=(mode == 'residual'))
    out = out2d.reshape(N, H, W, Cp)[:, :, :, :Cout]
    return jnp.transpose(out, (0, 3, 1, 2))


# ---------------------------------------------------------------------------
# Pure-JAX (XLA) reference in NCHW for correctness checking.  conv_dtype lets
# the reference use the same MXU operand precision (bf16 operands, f32
# accumulation) as the Pallas kernels.
# ---------------------------------------------------------------------------
def conv_unit_reference(x, params, mode='residual', conv_dtype=jnp.float32):
    def conv(inp, w, b):
        y = lax.conv_general_dilated(
            inp.astype(conv_dtype), w.astype(conv_dtype), (1, 1), 'SAME',
            dimension_numbers=('NCHW', 'OIHW', 'NCHW'),
            preferred_element_type=jnp.float32)
        return y + b.reshape(1, -1, 1, 1)

    def bn(v, g, b):
        mean = jnp.mean(v, axis=(0, 2, 3), keepdims=True)
        var = jnp.mean((v - mean) ** 2, axis=(0, 2, 3), keepdims=True)
        return (v - mean) * lax.rsqrt(var + BN_EPS) * g.reshape(1, -1, 1, 1) \
            + b.reshape(1, -1, 1, 1)

    x0 = _selu(conv(x, params['w1'], params['b1']))
    xx = bn(x0, params['gamma1'], params['beta1'])
    xx = _selu(conv(xx, params['w2'], params['b2']))
    xx = bn(xx, params['gamma2'], params['beta2'])
    return x0 + xx if mode == 'residual' else xx


if __name__ == "__main__":
    N, Cin, Cout, H, W = 2, 4, 8, 16, 16

    key = jax.random.PRNGKey(0)
    ks = jax.random.split(key, 9)
    params = dict(
        w1=0.1 * jax.random.normal(ks[0], (Cout, Cin, 3, 3), jnp.float32),
        b1=0.1 * jax.random.normal(ks[1], (Cout,), jnp.float32),
        w2=0.1 * jax.random.normal(ks[2], (Cout, Cout, 3, 3), jnp.float32),
        b2=0.1 * jax.random.normal(ks[3], (Cout,), jnp.float32),
        gamma1=1.0 + 0.1 * jax.random.normal(ks[4], (Cout,), jnp.float32),
        beta1=0.1 * jax.random.normal(ks[5], (Cout,), jnp.float32),
        gamma2=1.0 + 0.1 * jax.random.normal(ks[6], (Cout,), jnp.float32),
        beta2=0.1 * jax.random.normal(ks[7], (Cout,), jnp.float32),
    )
    x = jax.random.normal(ks[8], (N, Cin, H, W), jnp.float32)

    out = jax.block_until_ready(conv_unit_forward(x, params, mode='residual'))
    # reference with matched MXU operand precision (bf16 inputs, f32 accum)
    ref = jax.block_until_ready(
        conv_unit_reference(x, params, mode='residual', conv_dtype=jnp.bfloat16))

    assert out.shape == (N, Cout, H, W), out.shape
    max_err = float(jnp.max(jnp.abs(out - ref)))
    assert jnp.allclose(out, ref, atol=5e-3, rtol=5e-3), f"max_err={max_err}"
    print("KERNEL_OK")
</pallas_src>

<mosaic_0001>
module attributes {stable_mosaic.version = 11 : i64} {
  func.func @_conv_selu_kernel(%arg0: i32, %arg1: memref<2x16x16x4xf32, #tpu.memory_space<vmem>>, %arg2: memref<1152x128xbf16, #tpu.memory_space<vmem>>, %arg3: memref<1x128xf32, #tpu.memory_space<vmem>>, %arg4: memref<2x16x16x128xf32, #tpu.memory_space<vmem>>, %arg5: memref<1x128xf32, #tpu.memory_space<vmem>>, %arg6: memref<1x128xf32, #tpu.memory_space<vmem>>, %arg7: memref<2x18x18x128xbf16, #tpu.memory_space<vmem>>, %arg8: memref<512x1152xbf16, #tpu.memory_space<vmem>>) attributes {dimension_semantics = [#tpu.dimension_semantics<arbitrary>], iteration_bounds = array<i64: 1>, scalar_prefetch = 0 : i64, scratch_operands = 2 : i64, tpu.core_type = #tpu.core_type<tc>, window_params = [{transform_indices = @transform_0, window_bounds = array<i64: 2, 16, 16, 4>}, {pipeline_mode = #tpu.pipeline_mode<synchronous>, transform_indices = @transform_1, window_bounds = array<i64: 1152, 128>}, {pipeline_mode = #tpu.pipeline_mode<synchronous>, transform_indices = @transform_2, window_bounds = array<i64: 1, 128>}, {transform_indices = @transform_3, window_bounds = array<i64: 2, 16, 16, 128>}, {pipeline_mode = #tpu.pipeline_mode<synchronous>, transform_indices = @transform_4, window_bounds = array<i64: 1, 128>}, {pipeline_mode = #tpu.pipeline_mode<synchronous>, transform_indices = @transform_5, window_bounds = array<i64: 1, 128>}]} {
    %c0_i32 = arith.constant 0 : i32
    %0 = arith.cmpi eq, %arg0, %c0_i32 : i32
    %1 = arith.extui %0 : i1 to i32
    %c0_i32_0 = arith.constant 0 : i32
    %2 = arith.cmpi ne, %1, %c0_i32_0 : i32
    scf.if %2 {
      %cst_71 = arith.constant 0.000000e+00 : bf16
      %63 = vector.broadcast %cst_71 : bf16 to vector<2x18x18x128xbf16>
      %c0_72 = arith.constant 0 : index
      %c0_73 = arith.constant 0 : index
      %c0_74 = arith.constant 0 : index
      %c0_75 = arith.constant 0 : index
      %64 = vector.load %arg7[%c0_72, %c0_73, %c0_74, %c0_75] : memref<2x18x18x128xbf16, #tpu.memory_space<vmem>>, vector<2x18x18x128xbf16>
      tpu.vector_store %arg7[%c0_72, %c0_73, %c0_74, %c0_75], %63 {strides = array<i32>} : memref<2x18x18x128xbf16, #tpu.memory_space<vmem>>, vector<2x18x18x128xbf16>,
    } else {
    }
    %c0 = arith.constant 0 : index
    %c0_1 = arith.constant 0 : index
    %c0_2 = arith.constant 0 : index
    %c0_3 = arith.constant 0 : index
    %3 = vector.load %arg1[%c0, %c0_1, %c0_2, %c0_3] : memref<2x16x16x4xf32, #tpu.memory_space<vmem>>, vector<2x16x16x4xf32>
    %4 = arith.truncf %3 : vector<2x16x16x4xf32> to vector<2x16x16x4xbf16>
    %c0_4 = arith.constant 0 : index
    %c1 = arith.constant 1 : index
    %c1_5 = arith.constant 1 : index
    %c0_6 = arith.constant 0 : index
    %5 = vector.load %arg7[%c0_4, %c1, %c1_5, %c0_6] : memref<2x18x18x128xbf16, #tpu.memory_space<vmem>>, vector<2x16x16x4xbf16>
    tpu.vector_store %arg7[%c0_4, %c1, %c1_5, %c0_6], %4 {strides = array<i32>} : memref<2x18x18x128xbf16, #tpu.memory_space<vmem>>, vector<2x16x16x4xbf16>,
    %c0_7 = arith.constant 0 : index
    %c0_8 = arith.constant 0 : index
    %c0_9 = arith.constant 0 : index
    %c0_10 = arith.constant 0 : index
    %6 = vector.load %arg7[%c0_7, %c0_8, %c0_9, %c0_10] : memref<2x18x18x128xbf16, #tpu.memory_space<vmem>>, vector<2x16x16x128xbf16>
    %7 = vector.shape_cast %6 : vector<2x16x16x128xbf16> to vector<512x128xbf16>
    %c0_11 = arith.constant 0 : index
    %c0_12 = arith.constant 0 : index
    %8 = vector.load %arg8[%c0_11, %c0_12] : memref<512x1152xbf16, #tpu.memory_space<vmem>>, vector<512x128xbf16>
    tpu.vector_store %arg8[%c0_11, %c0_12], %7 {strides = array<i32>} : memref<512x1152xbf16, #tpu.memory_space<vmem>>, vector<512x128xbf16>,
    %c0_13 = arith.constant 0 : index
    %c0_14 = arith.constant 0 : index
    %c1_15 = arith.constant 1 : index
    %c0_16 = arith.constant 0 : index
    %9 = vector.load %arg7[%c0_13, %c0_14, %c1_15, %c0_16] : memref<2x18x18x128xbf16, #tpu.memory_space<vmem>>, vector<2x16x16x128xbf16>
    %10 = vector.shape_cast %9 : vector<2x16x16x128xbf16> to vector<512x128xbf16>
    %c0_17 = arith.constant 0 : index
    %c128 = arith.constant 128 : index
    %11 = vector.load %arg8[%c0_17, %c128] : memref<512x1152xbf16, #tpu.memory_space<vmem>>, vector<512x128xbf16>
    tpu.vector_store %arg8[%c0_17, %c128], %10 {strides = array<i32>} : memref<512x1152xbf16, #tpu.memory_space<vmem>>, vector<512x128xbf16>,
    %c0_18 = arith.constant 0 : index
    %c0_19 = arith.constant 0 : index
    %c2 = arith.constant 2 : index
    %c0_20 = arith.constant 0 : index
    %12 = vector.load %arg7[%c0_18, %c0_19, %c2, %c0_20] : memref<2x18x18x128xbf16, #tpu.memory_space<vmem>>, vector<2x16x16x128xbf16>
    %13 = vector.shape_cast %12 : vector<2x16x16x128xbf16> to vector<512x128xbf16>
    %c0_21 = arith.constant 0 : index
    %c256 = arith.constant 256 : index
    %14 = vector.load %arg8[%c0_21, %c256] : memref<512x1152xbf16, #tpu.memory_space<vmem>>, vector<512x128xbf16>
    tpu.vector_store %arg8[%c0_21, %c256], %13 {strides = array<i32>} : memref<512x1152xbf16, #tpu.memory_space<vmem>>, vector<512x128xbf16>,
    %c0_22 = arith.constant 0 : index
    %c1_23 = arith.constant 1 : index
    %c0_24 = arith.constant 0 : index
    %c0_25 = arith.constant 0 : index
    %15 = vector.load %arg7[%c0_22, %c1_23, %c0_24, %c0_25] : memref<2x18x18x128xbf16, #tpu.memory_space<vmem>>, vector<2x16x16x128xbf16>
    %16 = vector.shape_cast %15 : vector<2x16x16x128xbf16> to vector<512x128xbf16>
    %c0_26 = arith.constant 0 : index
    %c384 = arith.constant 384 : index
    %17 = vector.load %arg8[%c0_26, %c384] : memref<512x1152xbf16, #tpu.memory_space<vmem>>, vector<512x128xbf16>
    tpu.vector_store %arg8[%c0_26, %c384], %16 {strides = array<i32>} : memref<512x1152xbf16, #tpu.memory_space<vmem>>, vector<512x128xbf16>,
    %c0_27 = arith.constant 0 : index
    %c1_28 = arith.constant 1 : index
    %c1_29 = arith.constant 1 : index
    %c0_30 = arith.constant 0 : index
    %18 = vector.load %arg7[%c0_27, %c1_28, %c1_29, %c0_30] : memref<2x18x18x128xbf16, #tpu.memory_space<vmem>>, vector<2x16x16x128xbf16>
    %19 = vector.shape_cast %18 : vector<2x16x16x128xbf16> to vector<512x128xbf16>
    %c0_31 = arith.constant 0 : index
    %c512 = arith.constant 512 : index
    %20 = vector.load %arg8[%c0_31, %c512] : memref<512x1152xbf16, #tpu.memory_space<vmem>>, vector<512x128xbf16>
    tpu.vector_store %arg8[%c0_31, %c512], %19 {strides = array<i32>} : memref<512x1152xbf16, #tpu.memory_space<vmem>>, vector<512x128xbf16>,
    %c0_32 = arith.constant 0 : index
    %c1_33 = arith.constant 1 : index
    %c2_34 = arith.constant 2 : index
    %c0_35 = arith.constant 0 : index
    %21 = vector.load %arg7[%c0_32, %c1_33, %c2_34, %c0_35] : memref<2x18x18x128xbf16, #tpu.memory_space<vmem>>, vector<2x16x16x128xbf16>
    %22 = vector.shape_cast %21 : vector<2x16x16x128xbf16> to vector<512x128xbf16>
    %c0_36 = arith.constant 0 : index
    %c640 = arith.constant 640 : index
    %23 = vector.load %arg8[%c0_36, %c640] : memref<512x1152xbf16, #tpu.memory_space<vmem>>, vector<512x128xbf16>
    tpu.vector_store %arg8[%c0_36, %c640], %22 {strides = array<i32>} : memref<512x1152xbf16, #tpu.memory_space<vmem>>, vector<512x128xbf16>,
    %c0_37 = arith.constant 0 : index
    %c2_38 = arith.constant 2 : index
    %c0_39 = arith.constant 0 : index
    %c0_40 = arith.constant 0 : index
    %24 = vector.load %arg7[%c0_37, %c2_38, %c0_39, %c0_40] : memref<2x18x18x128xbf16, #tpu.memory_space<vmem>>, vector<2x16x16x128xbf16>
    %25 = vector.shape_cast %24 : vector<2x16x16x128xbf16> to vector<512x128xbf16>
    %c0_41 = arith.constant 0 : index
    %c768 = arith.constant 768 : index
    %26 = vector.load %arg8[%c0_41, %c768] : memref<512x1152xbf16, #tpu.memory_space<vmem>>, vector<512x128xbf16>
    tpu.vector_store %arg8[%c0_41, %c768], %25 {strides = array<i32>} : memref<512x1152xbf16, #tpu.memory_space<vmem>>, vector<512x128xbf16>,
    %c0_42 = arith.constant 0 : index
    %c2_43 = arith.constant 2 : index
    %c1_44 = arith.constant 1 : index
    %c0_45 = arith.constant 0 : index
    %27 = vector.load %arg7[%c0_42, %c2_43, %c1_44, %c0_45] : memref<2x18x18x128xbf16, #tpu.memory_space<vmem>>, vector<2x16x16x128xbf16>
    %28 = vector.shape_cast %27 : vector<2x16x16x128xbf16> to vector<512x128xbf16>
    %c0_46 = arith.constant 0 : index
    %c896 = arith.constant 896 : index
    %29 = vector.load %arg8[%c0_46, %c896] : memref<512x1152xbf16, #tpu.memory_space<vmem>>, vector<512x128xbf16>
    tpu.vector_store %arg8[%c0_46, %c896], %28 {strides = array<i32>} : memref<512x1152xbf16, #tpu.memory_space<vmem>>, vector<512x128xbf16>,
    %c0_47 = arith.constant 0 : index
    %c2_48 = arith.constant 2 : index
    %c2_49 = arith.constant 2 : index
    %c0_50 = arith.constant 0 : index
    %30 = vector.load %arg7[%c0_47, %c2_48, %c2_49, %c0_50] : memref<2x18x18x128xbf16, #tpu.memory_space<vmem>>, vector<2x16x16x128xbf16>
    %31 = vector.shape_cast %30 : vector<2x16x16x128xbf16> to vector<512x128xbf16>
    %c0_51 = arith.constant 0 : index
    %c1024 = arith.constant 1024 : index
    %32 = vector.load %arg8[%c0_51, %c1024] : memref<512x1152xbf16, #tpu.memory_space<vmem>>, vector<512x128xbf16>
    tpu.vector_store %arg8[%c0_51, %c1024], %31 {strides = array<i32>} : memref<512x1152xbf16, #tpu.memory_space<vmem>>, vector<512x128xbf16>,
    %c0_52 = arith.constant 0 : index
    %c0_53 = arith.constant 0 : index
    %33 = vector.load %arg8[%c0_52, %c0_53] : memref<512x1152xbf16, #tpu.memory_space<vmem>>, vector<512x1152xbf16>
    %c0_54 = arith.constant 0 : index
    %c0_55 = arith.constant 0 : index
    %34 = vector.load %arg2[%c0_54, %c0_55] : memref<1152x128xbf16, #tpu.memory_space<vmem>>, vector<1152x128xbf16>
    %cst = arith.constant dense<0.000000e+00> : vector<512x128xf32>
    %35 = tpu.matmul %33, %34, %cst {dimension_numbers = #tpu.dot_dimension_numbers<[1], [0], [0], [1], [0, 0, 1, 1], [], []>} : vector<512x1152xbf16>, vector<1152x128xbf16>, vector<512x128xf32> -> vector<512x128xf32>
    %c0_56 = arith.constant 0 : index
    %c0_57 = arith.constant 0 : index
    %36 = vector.load %arg3[%c0_56, %c0_57] : memref<1x128xf32, #tpu.memory_space<vmem>>, vector<1x128xf32>
    %37 = vector.broadcast %36 : vector<1x128xf32> to vector<512x128xf32>
    %38 = arith.addf %35, %37 : vector<512x128xf32>
    %cst_58 = arith.constant 0.000000e+00 : f32
    %39 = vector.broadcast %cst_58 : f32 to vector<512x128xf32>
    %40 = arith.minimumf %38, %39 : vector<512x128xf32>
    %41 = math.exp %40 : vector<512x128xf32>
    %cst_59 = arith.constant 1.000000e+00 : f32
    %42 = vector.broadcast %cst_59 : f32 to vector<512x128xf32>
    %43 = arith.subf %41, %42 : vector<512x128xf32>
    %cst_60 = arith.constant 1.67326319 : f32
    %44 = vector.broadcast %cst_60 : f32 to vector<512x128xf32>
    %45 = arith.mulf %44, %43 : vector<512x128xf32>
    %cst_61 = arith.constant 0.000000e+00 : f32
    %46 = vector.broadcast %cst_61 : f32 to vector<512x128xf32>
    %47 = arith.cmpf ogt, %38, %46 : vector<512x128xf32>
    %48 = arith.select %47, %38, %45 : vector<512x128xi1>, vector<512x128xf32>
    %cst_62 = arith.constant 1.05070102 : f32
    %49 = vector.broadcast %cst_62 : f32 to vector<512x128xf32>
    %50 = arith.mulf %49, %48 : vector<512x128xf32>
    %51 = vector.shape_cast %50 : vector<512x128xf32> to vector<2x16x16x128xf32>
    %c0_63 = arith.constant 0 : index
    %c0_64 = arith.constant 0 : index
    %c0_65 = arith.constant 0 : index
    %c0_66 = arith.constant 0 : index
    %52 = vector.load %arg4[%c0_63, %c0_64, %c0_65, %c0_66] : memref<2x16x16x128xf32, #tpu.memory_space<vmem>>, vector<2x16x16x128xf32>
    tpu.vector_store %arg4[%c0_63, %c0_64, %c0_65, %c0_66], %51 {strides = array<i32>} : memref<2x16x16x128xf32, #tpu.memory_space<vmem>>, vector<2x16x16x128xf32>,
    %cst_67 = arith.constant dense<0.000000e+00> : vector<128xf32>
    %53 = vector.multi_reduction <add>, %50, %cst_67 [0] : vector<512x128xf32> to vector<128xf32>
    %54 = vector.shape_cast %53 : vector<128xf32> to vector<1x128xf32>
    %55 = arith.mulf %50, %50 : vector<512x128xf32>
    %cst_68 = arith.constant dense<0.000000e+00> : vector<128xf32>
    %56 = vector.multi_reduction <add>, %55, %cst_68 [0] : vector<512x128xf32> to vector<128xf32>
    %57 = vector.shape_cast %56 : vector<128xf32> to vector<1x128xf32>
    %58 = arith.extui %0 : i1 to i32
    %c0_i32_69 = arith.constant 0 : i32
    %59 = arith.cmpi ne, %58, %c0_i32_69 : i32
    scf.if %59 {
      %c0_71 = arith.constant 0 : index
      %c0_72 = arith.constant 0 : index
      %63 = vector.load %arg5[%c0_71, %c0_72] : memref<1x128xf32, #tpu.memory_space<vmem>>, vector<1x128xf32>
      tpu.vector_store %arg5[%c0_71, %c0_72], %54 {strides = array<i32>} : memref<1x128xf32, #tpu.memory_space<vmem>>, vector<1x128xf32>,
      %c0_73 = arith.constant 0 : index
      %c0_74 = arith.constant 0 : index
      %64 = vector.load %arg6[%c0_73, %c0_74] : memref<1x128xf32, #tpu.memory_space<vmem>>, vector<1x128xf32>
      tpu.vector_store %arg6[%c0_73, %c0_74], %57 {strides = array<i32>} : memref<1x128xf32, #tpu.memory_space<vmem>>, vector<1x128xf32>,
    } else {
    }
    %true = arith.constant true
    %60 = arith.xori %0, %true : i1
    %61 = arith.extui %60 : i1 to i32
    %c0_i32_70 = arith.constant 0 : i32
    %62 = arith.cmpi ne, %61, %c0_i32_70 : i32
    scf.if %62 {
      %c0_71 = arith.constant 0 : index
      %c0_72 = arith.constant 0 : index
      %63 = vector.load %arg5[%c0_71, %c0_72] : memref<1x128xf32, #tpu.memory_space<vmem>>, vector<1x128xf32>
      %64 = arith.addf %63, %54 : vector<1x128xf32>
      %c0_73 = arith.constant 0 : index
      %c0_74 = arith.constant 0 : index
      %65 = vector.load %arg5[%c0_73, %c0_74] : memref<1x128xf32, #tpu.memory_space<vmem>>, vector<1x128xf32>
      tpu.vector_store %arg5[%c0_73, %c0_74], %64 {strides = array<i32>} : memref<1x128xf32, #tpu.memory_space<vmem>>, vector<1x128xf32>,
      %c0_75 = arith.constant 0 : index
      %c0_76 = arith.constant 0 : index
      %66 = vector.load %arg6[%c0_75, %c0_76] : memref<1x128xf32, #tpu.memory_space<vmem>>, vector<1x128xf32>
      %67 = arith.addf %66, %57 : vector<1x128xf32>
      %c0_77 = arith.constant 0 : index
      %c0_78 = arith.constant 0 : index
      %68 = vector.load %arg6[%c0_77, %c0_78] : memref<1x128xf32, #tpu.memory_space<vmem>>, vector<1x128xf32>
      tpu.vector_store %arg6[%c0_77, %c0_78], %67 {strides = array<i32>} : memref<1x128xf32, #tpu.memory_space<vmem>>, vector<1x128xf32>,
    } else {
    }
    return
  }
  func.func @transform_0(%arg0: i32) -> (i32, i32, i32, i32) {
    %c0_i32 = arith.constant 0 : i32
    %c0_i32_0 = arith.constant 0 : i32
    %c0_i32_1 = arith.constant 0 : i32
    %c0_i32_2 = arith.constant 0 : i32
    return %arg0, %c0_i32, %c0_i32_0, %c0_i32_1 : i32, i32, i32, i32
  }
  func.func @transform_1(%arg0: i32) -> (i32, i32) {
    %c0_i32 = arith.constant 0 : i32
    %c0_i32_0 = arith.constant 0 : i32
    %c0_i32_1 = arith.constant 0 : i32
    return %c0_i32, %c0_i32_0 : i32, i32
  }
  func.func @transform_2(%arg0: i32) -> (i32, i32) {
    %c0_i32 = arith.constant 0 : i32
    %c0_i32_0 = arith.constant 0 : i32
    %c0_i32_1 = arith.constant 0 : i32
    return %c0_i32, %c0_i32_0 : i32, i32
  }
  func.func @transform_3(%arg0: i32) -> (i32, i32, i32, i32) {
    %c0_i32 = arith.constant 0 : i32
    %c0_i32_0 = arith.constant 0 : i32
    %c0_i32_1 = arith.constant 0 : i32
    %c0_i32_2 = arith.constant 0 : i32
    return %arg0, %c0_i32, %c0_i32_0, %c0_i32_1 : i32, i32, i32, i32
  }
  func.func @transform_4(%arg0: i32) -> (i32, i32) {
    %c0_i32 = arith.constant 0 : i32
    %c0_i32_0 = arith.constant 0 : i32
    %c0_i32_1 = arith.constant 0 : i32
    return %c0_i32, %c0_i32_0 : i32, i32
  }
  func.func @transform_5(%arg0: i32) -> (i32, i32) {
    %c0_i32 = arith.constant 0 : i32
    %c0_i32_0 = arith.constant 0 : i32
    %c0_i32_1 = arith.constant 0 : i32
    return %c0_i32, %c0_i32_0 : i32, i32
  }
}

</mosaic_0001>

<llo_original>
// kernel: tpu_custom_call.1
$region0: #{tpu_custom_call.1}
  #allocation0 [shape = 'u32[]', space=smem, size = 0x4, offset = 0x4, fixed_abs, tag = 'smem constant byte address 0x4 - core index']
  #allocation1 [shape = 'u32[144,128]{1,0:T(1,128)}', space=vmem, size = 0x12000, scoped, tag = 'internal scratch']
  #allocation2 [shape = 'bf16[2,18,18,128]{3,2,1,0:T(8,128)(2,1)}', space=vmem, size = 0x36000, scoped, tag = 'scratch operand']
  #allocation3 [shape = 'bf16[512,1152]{1,0:T(8,128)(2,1)}', space=vmem, size = 0x120000, scoped, tag = 'scratch operand']
  %s0 = inlined_call_operand.vmem [shape: f32[2,16,16,4], index: 0, kind: input, shape index: {}]
  %s1 = inlined_call_operand.vmem [shape: bf16[1152,128], index: 1, kind: input, shape index: {}]
  %s2 = inlined_call_operand.vmem [shape: f32[1,128], index: 2, kind: input, shape index: {}]
  %s3 = inlined_call_operand.hbm [shape: f32[2,16,16,128], index: 3, kind: output, shape index: {0}]
  %s4 = inlined_call_operand.hbm [shape: f32[1,128], index: 4, kind: output, shape index: {1}]
  %s5 = inlined_call_operand.hbm [shape: f32[1,128], index: 5, kind: output, shape index: {2}]
  %6 = xla_tuple %s3, %s4, %s5
  %s7 = sld [smem:[#allocation0]]
  $region50: #{tpu_custom_call.1} parent=0
    _
  %s9 = ssub.s32 1, %s7
  %s10 = scalar_select 0, %s9, %s7
  $region1: #{tpu_custom_call.1} parent=0
    #allocation4 [shape = 'u8[262144]{0}', space=vmem, size = 0x40000, scoped, tag = 'output window, operand 0, single buffered']
    #allocation5 [shape = 's32[1]{0}', space=sflag, size = 0x4, scoped, tag = 'scoped memory for tpu_custom_call.1']
    #allocation6 [shape = 'u8[512]{0}', space=vmem, size = 0x400, scoped, tag = 'output window, operand 1, single buffered']
    #allocation7 [shape = 's32[1]{0}', space=sflag, size = 0x4, scoped, tag = 'scoped memory for tpu_custom_call.1']
    #allocation8 [shape = 'u8[512]{0}', space=vmem, size = 0x400, scoped, tag = 'output window, operand 2, single buffered']
    %11 = vsyncpa [#allocation5], 0
    %12 = vsyncpa [#allocation7], 0
    // Predicated region
    $region2: #{tpu_custom_call.1} parent=1 // pred_check
      _
    $region3: #{tpu_custom_call.1} parent=1 // pred_check_branch
      %14 = sbr.rel (0) target = $region5
    $region4: #{tpu_custom_call.1} parent=1 // pred_region
      _
    $region5: #{tpu_custom_call.1} parent=1 // pred_fallthru
      _
    // Predicated region
    $region6: #{tpu_custom_call.1} parent=1 // pred_check
      _
    $region7: #{tpu_custom_call.1} parent=1 // pred_check_branch
      %16 = sbr.rel (0) target = $region9
    $region8: #{tpu_custom_call.1} parent=1 // pred_region
      _
    $region9: #{tpu_custom_call.1} parent=1 // pred_fallthru
      _
    // Predicated region
    $region10: #{tpu_custom_call.1} parent=1 // pred_check
      _
    $region11: #{tpu_custom_call.1} parent=1 // pred_check_branch
      %18 = sbr.rel (0) target = $region13
    $region12: #{tpu_custom_call.1} parent=1 // pred_region
      _
    $region13: #{tpu_custom_call.1} parent=1 // pred_fallthru
      _
    %p20 = scmp.eq.s32.totalorder 0, 0
    // Predicated region
    $region14: #{tpu_custom_call.1} parent=1 // pred_check
      %p21 = pneg %p20
    $region15: #{tpu_custom_call.1} parent=1 // pred_check_branch
      %23 = sbr.rel (%p21) target = $region17
    $region16: #{tpu_custom_call.1} parent=1 // pred_region
      %24 = vst [vmem:[#allocation2] sm:$0xf] 0
      %25 = vst [vmem:[#allocation2 + $0x4] sm:$0xf] 0
      %26 = vst [vmem:[#allocation2 + $0x8] sm:$0x1] 0
      %27 = vst [vmem:[#allocation2 + $0xc] sm:$0xf] 0
      %28 = vst [vmem:[#allocation2 + $0x10] sm:$0xf] 0
      %29 = vst [vmem:[#allocation2 + $0x14] sm:$0x1] 0
      %30 = vst [vmem:[#allocation2 + $0x18] sm:$0xf] 0
      %31 = vst [vmem:[#allocation2 + $0x1c] sm:$0xf] 0
      %32 = vst [vmem:[#allocation2 + $0x20] sm:$0x1] 0
      %33 = vst [vmem:[#allocation2 + $0x24] sm:$0xf] 0
      %34 = vst [vmem:[#allocation2 + $0x28] sm:$0xf] 0
      %35 = vst [vmem:[#allocation2 + $0x2c] sm:$0x1] 0
      %36 = vst [vmem:[#allocation2 + $0x30] sm:$0xf] 0
      %37 = vst [vmem:[#allocation2 + $0x34] sm:$0xf] 0
      %38 = vst [vmem:[#allocation2 + $0x38] sm:$0x1] 0
      %39 = vst [vmem:[#allocation2 + $0x3c] sm:$0xf] 0
      %40 = vst [vmem:[#allocation2 + $0x40] sm:$0xf] 0
      %41 = vst [vmem:[#allocation2 + $0x44] sm:$0x1] 0
      %42 = vst [vmem:[#allocation2 + $0x48] sm:$0xf] 0
      %43 = vst [vmem:[#allocation2 + $0x4c] sm:$0xf] 0
      %44 = vst [vmem:[#allocation2 + $0x50] sm:$0x1] 0
      %45 = vst [vmem:[#allocation2 + $0x54] sm:$0xf] 0
      %46 = vst [vmem:[#allocation2 + $0x58] sm:$0xf] 0
      %47 = vst [vmem:[#allocation2 + $0x5c] sm:$0x1] 0
      %48 = vst [vmem:[#allocation2 + $0x60] sm:$0xf] 0
      %49 = vst [vmem:[#allocation2 + $0x64] sm:$0xf] 0
      %50 = vst [vmem:[#allocation2 + $0x68] sm:$0x1] 0
      %51 = vst [vmem:[#allocation2 + $0x6c] sm:$0xf] 0
      %52 = vst [vmem:[#allocation2 + $0x70] sm:$0xf] 0
      %53 = vst [vmem:[#allocation2 + $0x74] sm:$0x1] 0
      %54 = vst [vmem:[#allocation2 + $0x78] sm:$0xf] 0
      %55 = vst [vmem:[#allocation2 + $0x7c] sm:$0xf] 0
      %56 = vst [vmem:[#allocation2 + $0x80] sm:$0x1] 0
      %57 = vst [vmem:[#allocation2 + $0x84] sm:$0xf] 0
      %58 = vst [vmem:[#allocation2 + $0x88] sm:$0xf] 0
      %59 = vst [vmem:[#allocation2 + $0x8c] sm:$0x1] 0
      %60 = vst [vmem:[#allocation2 + $0x90] sm:$0xf] 0
      %61 = vst [vmem:[#allocation2 + $0x94] sm:$0xf] 0
      %62 = vst [vmem:[#allocation2 + $0x98] sm:$0x1] 0
      %63 = vst [vmem:[#allocation2 + $0x9c] sm:$0xf] 0
      %64 = vst [vmem:[#allocation2 + $0xa0] sm:$0xf] 0
      %65 = vst [vmem:[#allocation2 + $0xa4] sm:$0x1] 0
      %66 = vst [vmem:[#allocation2 + $0xa8] sm:$0xf] 0
      %67 = vst [vmem:[#allocation2 + $0xac] sm:$0xf] 0
      %68 = vst [vmem:[#allocation2 + $0xb0] sm:$0x1] 0
      %69 = vst [vmem:[#allocation2 + $0xb4] sm:$0xf] 0
      %70 = vst [vmem:[#allocation2 + $0xb8] sm:$0xf] 0
      %71 = vst [vmem:[#allocation2 + $0xbc] sm:$0x1] 0
      %72 = vst [vmem:[#allocation2 + $0xc0] sm:$0xf] 0
      %73 = vst [vmem:[#allocation2 + $0xc4] sm:$0xf] 0
      %74 = vst [vmem:[#allocation2 + $0xc8] sm:$0x1] 0
      %75 = vst [vmem:[#allocation2 + $0xcc] sm:$0xf] 0
      %76 = vst [vmem:[#allocation2 + $0xd0] sm:$0xf] 0
      %77 = vst [vmem:[#allocation2 + $0xd4] sm:$0x1] 0
      %78 = vst [vmem:[#allocation2 + $0xd8] sm:$0xf] 0
      %79 = vst [vmem:[#allocation2 + $0xdc] sm:$0xf] 0
      %80 = vst [vmem:[#allocation2 + $0xe0] sm:$0x1] 0
      %81 = vst [vmem:[#allocation2 + $0xe4] sm:$0xf] 0
      %82 = vst [vmem:[#allocation2 + $0xe8] sm:$0xf] 0
      %83 = vst [vmem:[#allocation2 + $0xec] sm:$0x1] 0
      %84 = vst [vmem:[#allocation2 + $0xf0] sm:$0xf] 0
      %85 = vst [vmem:[#allocation2 + $0xf4] sm:$0xf] 0
      %86 = vst [vmem:[#allocation2 + $0xf8] sm:$0x1] 0
      %87 = vst [vmem:[#allocation2 + $0xfc] sm:$0xf] 0
      %88 = vst [vmem:[#allocation2 + $0x100] sm:$0xf] 0
      %89 = vst [vmem:[#allocation2 + $0x104] sm:$0x1] 0
      %90 = vst [vmem:[#allocation2 + $0x108] sm:$0xf] 0
      %91 = vst [vmem:[#allocation2 + $0x10c] sm:$0xf] 0
      %92 = vst [vmem:[#allocation2 + $0x110] sm:$0x1] 0
      %93 = vst [vmem:[#allocation2 + $0x114] sm:$0xf] 0
      %94 = vst [vmem:[#allocation2 + $0x118] sm:$0xf] 0
      %95 = vst [vmem:[#allocation2 + $0x11c] sm:$0x1] 0
      %96 = vst [vmem:[#allocation2 + $0x120] sm:$0xf] 0
      %97 = vst [vmem:[#allocation2 + $0x124] sm:$0xf] 0
      %98 = vst [vmem:[#allocation2 + $0x128] sm:$0x1] 0
      %99 = vst [vmem:[#allocation2 + $0x12c] sm:$0xf] 0
      %100 = vst [vmem:[#allocation2 + $0x130] sm:$0xf] 0
      %101 = vst [vmem:[#allocation2 + $0x134] sm:$0x1] 0
      %102 = vst [vmem:[#allocation2 + $0x138] sm:$0xf] 0
      %103 = vst [vmem:[#allocation2 + $0x13c] sm:$0xf] 0
      %104 = vst [vmem:[#allocation2 + $0x140] sm:$0x1] 0
      %105 = vst [vmem:[#allocation2 + $0x144] sm:$0xf] 0
      %106 = vst [vmem:[#allocation2 + $0x148] sm:$0xf] 0
      %107 = vst [vmem:[#allocation2 + $0x14c] sm:$0x1] 0
      %108 = vst [vmem:[#allocation2 + $0x150] sm:$0xf] 0
      %109 = vst [vmem:[#allocation2 + $0x154] sm:$0xf] 0
      %110 = vst [vmem:[#allocation2 + $0x158] sm:$0x1] 0
      %111 = vst [vmem:[#allocation2 + $0x15c] sm:$0xf] 0
      %112 = vst [vmem:[#allocation2 + $0x160] sm:$0xf] 0
      %113 = vst [vmem:[#allocation2 + $0x164] sm:$0x1] 0
      %114 = vst [vmem:[#allocation2 + $0x168] sm:$0xf] 0
      %115 = vst [vmem:[#allocation2 + $0x16c] sm:$0xf] 0
      %116 = vst [vmem:[#allocation2 + $0x170] sm:$0x1] 0
      %117 = vst [vmem:[#allocation2 + $0x174] sm:$0xf] 0
      %118 = vst [vmem:[#allocation2 + $0x178] sm:$0xf] 0
      %119 = vst [vmem:[#allocation2 + $0x17c] sm:$0x1] 0
      %120 = vst [vmem:[#allocation2 + $0x180] sm:$0xf] 0
      %121 = vst [vmem:[#allocation2 + $0x184] sm:$0xf] 0
      %122 = vst [vmem:[#allocation2 + $0x188] sm:$0x1] 0
      %123 = vst [vmem:[#allocation2 + $0x18c] sm:$0xf] 0
      %124 = vst [vmem:[#allocation2 + $0x190] sm:$0xf] 0
      %125 = vst [vmem:[#allocation2 + $0x194] sm:$0x1] 0
      %126 = vst [vmem:[#allocation2 + $0x198] sm:$0xf] 0
      %127 = vst [vmem:[#allocation2 + $0x19c] sm:$0xf] 0
      %128 = vst [vmem:[#allocation2 + $0x1a0] sm:$0x1] 0
      %129 = vst [vmem:[#allocation2 + $0x1a4] sm:$0xf] 0
      %130 = vst [vmem:[#allocation2 + $0x1a8] sm:$0xf] 0
      %131 = vst [vmem:[#allocation2 + $0x1ac] sm:$0x1] 0
    $region17: #{tpu_custom_call.1} parent=1 // pred_fallthru
      _
    %v132 = vld [vmem:[%s0] sm:$0xff]
    %v133 = vld [vmem:[%s0 + $0x8] sm:$0xff]
    %v134 = vld [vmem:[%s0 + $0x10] sm:$0xff]
    %v135 = vld [vmem:[%s0 + $0x18] sm:$0xff]
    %v136 = vld [vmem:[%s0 + $0x20] sm:$0xff]
    %v137 = vld [vmem:[%s0 + $0x28] sm:$0xff]
    %v138 = vld [vmem:[%s0 + $0x30] sm:$0xff]
    %v139 = vld [vmem:[%s0 + $0x38] sm:$0xff]
    %v140 = vld [vmem:[%s0 + $0x40] sm:$0xff]
    %v141 = vld [vmem:[%s0 + $0x48] sm:$0xff]
    %v142 = vld [vmem:[%s0 + $0x50] sm:$0xff]
    %v143 = vld [vmem:[%s0 + $0x58] sm:$0xff]
    %v144 = vld [vmem:[%s0 + $0x60] sm:$0xff]
    %v145 = vld [vmem:[%s0 + $0x68] sm:$0xff]
    %v146 = vld [vmem:[%s0 + $0x70] sm:$0xff]
    %v147 = vld [vmem:[%s0 + $0x78] sm:$0xff]
    %v148 = vld [vmem:[%s0 + $0x80] sm:$0xff]
    %v149 = vld [vmem:[%s0 + $0x88] sm:$0xff]
    %v150 = vld [vmem:[%s0 + $0x90] sm:$0xff]
    %v151 = vld [vmem:[%s0 + $0x98] sm:$0xff]
    %v152 = vld [vmem:[%s0 + $0xa0] sm:$0xff]
    %v153 = vld [vmem:[%s0 + $0xa8] sm:$0xff]
    %v154 = vld [vmem:[%s0 + $0xb0] sm:$0xff]
    %v155 = vld [vmem:[%s0 + $0xb8] sm:$0xff]
    %v156 = vld [vmem:[%s0 + $0xc0] sm:$0xff]
    %v157 = vld [vmem:[%s0 + $0xc8] sm:$0xff]
    %v158 = vld [vmem:[%s0 + $0xd0] sm:$0xff]
    %v159 = vld [vmem:[%s0 + $0xd8] sm:$0xff]
    %v160 = vld [vmem:[%s0 + $0xe0] sm:$0xff]
    %v161 = vld [vmem:[%s0 + $0xe8] sm:$0xff]
    %v162 = vld [vmem:[%s0 + $0xf0] sm:$0xff]
    %v163 = vld [vmem:[%s0 + $0xf8] sm:$0xff]
    %v164 = vld [vmem:[%s0 + $0x100] sm:$0xff]
    %v165 = vld [vmem:[%s0 + $0x108] sm:$0xff]
    %v166 = vld [vmem:[%s0 + $0x110] sm:$0xff]
    %v167 = vld [vmem:[%s0 + $0x118] sm:$0xff]
    %v168 = vld [vmem:[%s0 + $0x120] sm:$0xff]
    %v169 = vld [vmem:[%s0 + $0x128] sm:$0xff]
    %v170 = vld [vmem:[%s0 + $0x130] sm:$0xff]
    %v171 = vld [vmem:[%s0 + $0x138] sm:$0xff]
    %v172 = vld [vmem:[%s0 + $0x140] sm:$0xff]
    %v173 = vld [vmem:[%s0 + $0x148] sm:$0xff]
    %v174 = vld [vmem:[%s0 + $0x150] sm:$0xff]
    %v175 = vld [vmem:[%s0 + $0x158] sm:$0xff]
    %v176 = vld [vmem:[%s0 + $0x160] sm:$0xff]
    %v177 = vld [vmem:[%s0 + $0x168] sm:$0xff]
    %v178 = vld [vmem:[%s0 + $0x170] sm:$0xff]
    %v179 = vld [vmem:[%s0 + $0x178] sm:$0xff]
    %v180 = vld [vmem:[%s0 + $0x180] sm:$0xff]
    %v181 = vld [vmem:[%s0 + $0x188] sm:$0xff]
    %v182 = vld [vmem:[%s0 + $0x190] sm:$0xff]
    %v183 = vld [vmem:[%s0 + $0x198] sm:$0xff]
    %v184 = vld [vmem:[%s0 + $0x1a0] sm:$0xff]
    %v185 = vld [vmem:[%s0 + $0x1a8] sm:$0xff]
    %v186 = vld [vmem:[%s0 + $0x1b0] sm:$0xff]
    %v187 = vld [vmem:[%s0 + $0x1b8] sm:$0xff]
    %v188 = vld [vmem:[%s0 + $0x1c0] sm:$0xff]
    %v189 = vld [vmem:[%s0 + $0x1c8] sm:$0xff]
    %v190 = vld [vmem:[%s0 + $0x1d0] sm:$0xff]
    %v191 = vld [vmem:[%s0 + $0x1d8] sm:$0xff]
    %v192 = vld [vmem:[%s0 + $0x1e0] sm:$0xff]
    %v193 = vld [vmem:[%s0 + $0x1e8] sm:$0xff]
    %v194 = vld [vmem:[%s0 + $0x1f0] sm:$0xff]
    %v195 = vld [vmem:[%s0 + $0x1f8] sm:$0xff]
    %v196 = vpack.c.bf16 %v133, %v132
    %v197 = vpack.c.bf16 %v135, %v134
    %v198 = vpack.c.bf16 %v137, %v136
    %v199 = vpack.c.bf16 %v139, %v138
    %v200 = vpack.c.bf16 %v141, %v140
    %v201 = vpack.c.bf16 %v143, %v142
    %v202 = vpack.c.bf16 %v145, %v144
    %v203 = vpack.c.bf16 %v147, %v146
    %v204 = vpack.c.bf16 %v149, %v148
    %v205 = vpack.c.bf16 %v151, %v150
    %v206 = vpack.c.bf16 %v153, %v152
    %v207 = vpack.c.bf16 %v155, %v154
    %v208 = vpack.c.bf16 %v157, %v156
    %v209 = vpack.c.bf16 %v159, %v158
    %v210 = vpack.c.bf16 %v161, %v160
    %v211 = vpack.c.bf16 %v163, %v162
    %v212 = vpack.c.bf16 %v165, %v164
    %v213 = vpack.c.bf16 %v167, %v166
    %v214 = vpack.c.bf16 %v169, %v168
    %v215 = vpack.c.bf16 %v171, %v170
    %v216 = vpack.c.bf16 %v173, %v172
    %v217 = vpack.c.bf16 %v175, %v174
    %v218 = vpack.c.bf16 %v177, %v176
    %v219 = vpack.c.bf16 %v179, %v178
    %v220 = vpack.c.bf16 %v181, %v180
    %v221 = vpack.c.bf16 %v183, %v182
    %v222 = vpack.c.bf16 %v185, %v184
    %v223 = vpack.c.bf16 %v187, %v186
    %v224 = vpack.c.bf16 %v189, %v188
    %v225 = vpack.c.bf16 %v191, %v190
    %v226 = vpack.c.bf16 %v193, %v192
    %v227 = vpack.c.bf16 %v195, %v194
    %v260 = vunpack.c.l.b16 %v196
    %v261 = vunpack.c.h.b16 %v196
    %v262 = vunpack.c.l.b16 %v197
    %v263 = vunpack.c.h.b16 %v197
    %v264 = vunpack.c.l.b16 %v198
    %v265 = vunpack.c.h.b16 %v198
    %v266 = vunpack.c.l.b16 %v199
    %v267 = vunpack.c.h.b16 %v199
    %v268 = vunpack.c.l.b16 %v200
    %v269 = vunpack.c.h.b16 %v200
    %v270 = vunpack.c.l.b16 %v201
    %v271 = vunpack.c.h.b16 %v201
    %v272 = vunpack.c.l.b16 %v202
    %v273 = vunpack.c.h.b16 %v202
    %v274 = vunpack.c.l.b16 %v203
    %v275 = vunpack.c.h.b16 %v203
    %v276 = vunpack.c.l.b16 %v204
    %v277 = vunpack.c.h.b16 %v204
    %v278 = vunpack.c.l.b16 %v205
    %v279 = vunpack.c.h.b16 %v205
    %v280 = vunpack.c.l.b16 %v206
    %v281 = vunpack.c.h.b16 %v206
    %v282 = vunpack.c.l.b16 %v207
    %v283 = vunpack.c.h.b16 %v207
    %v284 = vunpack.c.l.b16 %v208
    %v285 = vunpack.c.h.b16 %v208
    %v286 = vunpack.c.l.b16 %v209
    %v287 = vunpack.c.h.b16 %v209
    %v288 = vunpack.c.l.b16 %v210
    %v289 = vunpack.c.h.b16 %v210
    %v290 = vunpack.c.l.b16 %v211
    %v291 = vunpack.c.h.b16 %v211
    %v292 = vunpack.c.l.b16 %v212
    %v293 = vunpack.c.h.b16 %v212
    %v294 = vunpack.c.l.b16 %v213
    %v295 = vunpack.c.h.b16 %v213
    %v296 = vunpack.c.l.b16 %v214
    %v297 = vunpack.c.h.b16 %v214
    %v298 = vunpack.c.l.b16 %v215
    %v299 = vunpack.c.h.b16 %v215
    %v300 = vunpack.c.l.b16 %v216
    %v301 = vunpack.c.h.b16 %v216
    %v302 = vunpack.c.l.b16 %v217
    %v303 = vunpack.c.h.b16 %v217
    %v304 = vunpack.c.l.b16 %v218
    %v305 = vunpack.c.h.b16 %v218
    %v306 = vunpack.c.l.b16 %v219
    %v307 = vunpack.c.h.b16 %v219
    %v308 = vunpack.c.l.b16 %v220
    %v309 = vunpack.c.h.b16 %v220
    %v310 = vunpack.c.l.b16 %v221
    %v311 = vunpack.c.h.b16 %v221
    %v312 = vunpack.c.l.b16 %v222
    %v313 = vunpack.c.h.b16 %v222
    %v314 = vunpack.c.l.b16 %v223
    %v315 = vunpack.c.h.b16 %v223
    %v316 = vunpack.c.l.b16 %v224
    %v317 = vunpack.c.h.b16 %v224
    %v318 = vunpack.c.l.b16 %v225
    %v319 = vunpack.c.h.b16 %v225
    %v320 = vunpack.c.l.b16 %v226
    %v321 = vunpack.c.h.b16 %v226
    %v322 = vunpack.c.l.b16 %v227
    %v323 = vunpack.c.h.b16 %v227
    %v324 = vpack.c.b16 %v260, %v260
    %v325 = vpack.c.b16 %v261, %v261
    %v326 = vpack.c.b16 %v262, %v262
    %v327 = vpack.c.b16 %v263, %v263
    %v328 = vpack.c.b16 %v264, %v264
    %v329 = vpack.c.b16 %v265, %v265
    %v330 = vpack.c.b16 %v266, %v266
    %v331 = vpack.c.b16 %v267, %v267
    %v332 = vpack.c.b16 %v268, %v268
    %v333 = vpack.c.b16 %v269, %v269
    %v334 = vpack.c.b16 %v270, %v270
    %v335 = vpack.c.b16 %v271, %v271
    %v336 = vpack.c.b16 %v272, %v272
    %v337 = vpack.c.b16 %v273, %v273
    %v338 = vpack.c.b16 %v274, %v274
    %v339 = vpack.c.b16 %v275, %v275
    %v340 = vpack.c.b16 %v276, %v276
    %v341 = vpack.c.b16 %v277, %v277
    %v342 = vpack.c.b16 %v278, %v278
    %v343 = vpack.c.b16 %v279, %v279
    %v344 = vpack.c.b16 %v280, %v280
    %v345 = vpack.c.b16 %v281, %v281
    %v346 = vpack.c.b16 %v282, %v282
    %v347 = vpack.c.b16 %v283, %v283
    %v348 = vpack.c.b16 %v284, %v284
    %v349 = vpack.c.b16 %v285, %v285
    %v350 = vpack.c.b16 %v286, %v286
    %v351 = vpack.c.b16 %v287, %v287
    %v352 = vpack.c.b16 %v288, %v288
    %v353 = vpack.c.b16 %v289, %v289
    %v354 = vpack.c.b16 %v290, %v290
    %v355 = vpack.c.b16 %v291, %v291
    %v356 = vpack.c.b16 %v292, %v292
    %v357 = vpack.c.b16 %v293, %v293
    %v358 = vpack.c.b16 %v294, %v294
    %v359 = vpack.c.b16 %v295, %v295
    %v360 = vpack.c.b16 %v296, %v296
    %v361 = vpack.c.b16 %v297, %v297
    %v362 = vpack.c.b16 %v298, %v298
    %v363 = vpack.c.b16 %v299, %v299
    %v364 = vpack.c.b16 %v300, %v300
    %v365 = vpack.c.b16 %v301, %v301
    %v366 = vpack.c.b16 %v302, %v302
    %v367 = vpack.c.b16 %v303, %v303
    %v368 = vpack.c.b16 %v304, %v304
    %v369 = vpack.c.b16 %v305, %v305
    %v370 = vpack.c.b16 %v306, %v306
    %v371 = vpack.c.b16 %v307, %v307
    %v372 = vpack.c.b16 %v308, %v308
    %v373 = vpack.c.b16 %v309, %v309
    %v374 = vpack.c.b16 %v310, %v310
    %v375 = vpack.c.b16 %v311, %v311
    %v376 = vpack.c.b16 %v312, %v312
    %v377 = vpack.c.b16 %v313, %v313
    %v378 = vpack.c.b16 %v314, %v314
    %v379 = vpack.c.b16 %v315, %v315
    %v380 = vpack.c.b16 %v316, %v316
    %v381 = vpack.c.b16 %v317, %v317
    %v382 = vpack.c.b16 %v318, %v318
    %v383 = vpack.c.b16 %v319, %v319
    %v384 = vpack.c.b16 %v320, %v320
    %v385 = vpack.c.b16 %v321, %v321
    %v386 = vpack.c.b16 %v322, %v322
    %v387 = vpack.c.b16 %v323, %v323
    %vm388 = vsmask.f32 256
    %vm389 = vsmask.f32 4368
    %vm390 = vmor %vm388, %vm389
    %v392 = vshrl.u32 %v324, 16
    %v394 = vrot.slane %v392, 7
    %v395 = vshll.u32 %v324, 16
    %v397 = vor.u32 %v394, %v395
    %v398 = vrot.slane %v394, 4
    %v400 = vshrl.u32 %v325, 16
    %v402 = vrot.slane %v400, 7
    %v403 = vshll.u32 %v325, 16
    %v405 = vor.u32 %v402, %v403
    %v406 = vsel %vm390, %v398, %v405
    %v407 = vrot.slane %v402, 4
    %v409 = vshrl.u32 %v326, 16
    %v411 = vrot.slane %v409, 7
    %v412 = vshll.u32 %v326, 16
    %v414 = vor.u32 %v411, %v412
    %v415 = vrot.slane %v411, 4
    %v417 = vshrl.u32 %v327, 16
    %v419 = vrot.slane %v417, 7
    %v420 = vshll.u32 %v327, 16
    %v422 = vor.u32 %v419, %v420
    %v423 = vsel %vm390, %v415, %v422
    %v424 = vrot.slane %v419, 4
    %v426 = vshrl.u32 %v328, 16
    %v428 = vrot.slane %v426, 7
    %v429 = vshll.u32 %v328, 16
    %v431 = vor.u32 %v428, %v429
    %v432 = vrot.slane %v428, 4
    %v434 = vshrl.u32 %v329, 16
    %v436 = vrot.slane %v434, 7
    %v437 = vshll.u32 %v329, 16
    %v439 = vor.u32 %v436, %v437
    %v440 = vsel %vm390, %v432, %v439
    %v441 = vrot.slane %v436, 4
    %v443 = vshrl.u32 %v330, 16
    %v445 = vrot.slane %v443, 7
    %v446 = vshll.u32 %v330, 16
    %v448 = vor.u32 %v445, %v446
    %v449 = vrot.slane %v445, 4
    %v451 = vshrl.u32 %v331, 16
    %v453 = vrot.slane %v451, 7
    %v454 = vshll.u32 %v331, 16
    %v456 = vor.u32 %v453, %v454
    %v457 = vsel %vm390, %v449, %v456
    %v458 = vrot.slane %v453, 4
    %v460 = vshrl.u32 %v332, 16
    %v462 = vrot.slane %v460, 7
    %v463 = vshll.u32 %v332, 16
    %v465 = vor.u32 %v462, %v463
    %v466 = vrot.slane %v462, 4
    %v468 = vshrl.u32 %v333, 16
    %v470 = vrot.slane %v468, 7
    %v471 = vshll.u32 %v333, 16
    %v473 = vor.u32 %v470, %v471
    %v474 = vsel %vm390, %v466, %v473
    %v475 = vrot.slane %v470, 4
    %v477 = vshrl.u32 %v334, 16
    %v479 = vrot.slane %v477, 7
    %v480 = vshll.u32 %v334, 16
    %v482 = vor.u32 %v479, %v480
    %v483 = vrot.slane %v479, 4
    %v485 = vshrl.u32 %v335, 16
    %v487 = vrot.slane %v485, 7
    %v488 = vshll.u32 %v335, 16
    %v490 = vor.u32 %v487, %v488
    %v491 = vsel %vm390, %v483, %v490
    %v492 = vrot.slane %v487, 4
    %v494 = vshrl.u32 %v336, 16
    %v496 = vrot.slane %v494, 7
    %v497 = vshll.u32 %v336, 16
    %v499 = vor.u32 %v496, %v497
    %v500 = vrot.slane %v496, 4
    %v502 = vshrl.u32 %v337, 16
    %v504 = vrot.slane %v502, 7
    %v505 = vshll.u32 %v337, 16
    %v507 = vor.u32 %v504, %v505
    %v508 = vsel %vm390, %v500, %v507
    %v509 = vrot.slane %v504, 4
    %v511 = vshrl.u32 %v338, 16
    %v513 = vrot.slane %v511, 7
    %v514 = vshll.u32 %v338, 16
    %v516 = vor.u32 %v513, %v514
    %v517 = vrot.slane %v513, 4
    %v519 = vshrl.u32 %v339, 16
    %v521 = vrot.slane %v519, 7
    %v522 = vshll.u32 %v339, 16
    %v524 = vor.u32 %v521, %v522
    %v525 = vsel %vm390, %v517, %v524
    %v526 = vrot.slane %v521, 4
    %v528 = vshrl.u32 %v340, 16
    %v530 = vrot.slane %v528, 7
    %v531 = vshll.u32 %v340, 16
    %v533 = vor.u32 %v530, %v531
    %v534 = vrot.slane %v530, 4
    %v536 = vshrl.u32 %v341, 16
    %v538 = vrot.slane %v536, 7
    %v539 = vshll.u32 %v341, 16
    %v541 = vor.u32 %v538, %v539
    %v542 = vsel %vm390, %v534, %v541
    %v543 = vrot.slane %v538, 4
    %v545 = vshrl.u32 %v342, 16
    %v547 = vrot.slane %v545, 7
    %v548 = vshll.u32 %v342, 16
    %v550 = vor.u32 %v547, %v548
    %v551 = vrot.slane %v547, 4
    %v553 = vshrl.u32 %v343, 16
    %v555 = vrot.slane %v553, 7
    %v556 = vshll.u32 %v343, 16
    %v558 = vor.u32 %v555, %v556
    %v559 = vsel %vm390, %v551, %v558
    %v560 = vrot.slane %v555, 4
    %v562 = vshrl.u32 %v344, 16
    %v564 = vrot.slane %v562, 7
    %v565 = vshll.u32 %v344, 16
    %v567 = vor.u32 %v564, %v565
    %v568 = vrot.slane %v564, 4
    %v570 = vshrl.u32 %v345, 16
    %v572 = vrot.slane %v570, 7
    %v573 = vshll.u32 %v345, 16
    %v575 = vor.u32 %v572, %v573
    %v576 = vsel %vm390, %v568, %v575
    %v577 = vrot.slane %v572, 4
    %v579 = vshrl.u32 %v346, 16
    %v581 = vrot.slane %v579, 7
    %v582 = vshll.u32 %v346, 16
    %v584 = vor.u32 %v581, %v582
    %v585 = vrot.slane %v581, 4
    %v587 = vshrl.u32 %v347, 16
    %v589 = vrot.slane %v587, 7
    %v590 = vshll.u32 %v347, 16
    %v592 = vor.u32 %v589, %v590
    %v593 = vsel %vm390, %v585, %v592
    %v594 = vrot.slane %v589, 4
    %v596 = vshrl.u32 %v348, 16
    %v598 = vrot.slane %v596, 7
    %v599 = vshll.u32 %v348, 16
    %v601 = vor.u32 %v598, %v599
    %v602 = vrot.slane %v598, 4
    %v604 = vshrl.u32 %v349, 16
    %v606 = vrot.slane %v604, 7
    %v607 = vshll.u32 %v349, 16
    %v609 = vor.u32 %v606, %v607
    %v610 = vsel %vm390, %v602, %v609
    %v611 = vrot.slane %v606, 4
    %v613 = vshrl.u32 %v350, 16
    %v615 = vrot.slane %v613, 7
    %v616 = vshll.u32 %v350, 16
    %v618 = vor.u32 %v615, %v616
    %v619 = vrot.slane %v615, 4
    %v621 = vshrl.u32 %v351, 16
    %v623 = vrot.slane %v621, 7
    %v624 = vshll.u32 %v351, 16
    %v626 = vor.u32 %v623, %v624
    %v627 = vsel %vm390, %v619, %v626
    %v628 = vrot.slane %v623, 4
    %v630 = vshrl.u32 %v352, 16
    %v632 = vrot.slane %v630, 7
    %v633 = vshll.u32 %v352, 16
    %v635 = vor.u32 %v632, %v633
    %v636 = vrot.slane %v632, 4
    %v638 = vshrl.u32 %v353, 16
    %v640 = vrot.slane %v638, 7
    %v641 = vshll.u32 %v353, 16
    %v643 = vor.u32 %v640, %v641
    %v644 = vsel %vm390, %v636, %v643
    %v645 = vrot.slane %v640, 4
    %v647 = vshrl.u32 %v354, 16
    %v649 = vrot.slane %v647, 7
    %v650 = vshll.u32 %v354, 16
    %v652 = vor.u32 %v649, %v650
    %v653 = vrot.slane %v649, 4
    %v655 = vshrl.u32 %v355, 16
    %v657 = vrot.slane %v655, 7
    %v658 = vshll.u32 %v355, 16
    %v660 = vor.u32 %v657, %v658
    %v661 = vsel %vm390, %v653, %v660
    %v662 = vrot.slane %v657, 4
    %v664 = vshrl.u32 %v356, 16
    %v666 = vrot.slane %v664, 7
    %v667 = vshll.u32 %v356, 16
    %v669 = vor.u32 %v666, %v667
    %v670 = vrot.slane %v666, 4
    %v672 = vshrl.u32 %v357, 16
    %v674 = vrot.slane %v672, 7
    %v675 = vshll.u32 %v357, 16
    %v677 = vor.u32 %v674, %v675
    %v678 = vsel %vm390, %v670, %v677
    %v679 = vrot.slane %v674, 4
    %v681 = vshrl.u32 %v358, 16
    %v683 = vrot.slane %v681, 7
    %v684 = vshll.u32 %v358, 16
    %v686 = vor.u32 %v683, %v684
    %v687 = vrot.slane %v683, 4
    %v689 = vshrl.u32 %v359, 16
    %v691 = vrot.slane %v689, 7
    %v692 = vshll.u32 %v359, 16
    %v694 = vor.u32 %v691, %v692
    %v695 = vsel %vm390, %v687, %v694
    %v696 = vrot.slane %v691, 4
    %v698 = vshrl.u32 %v360, 16
    %v700 = vrot.slane %v698, 7
    %v701 = vshll.u32 %v360, 16
    %v703 = vor.u32 %v700, %v701
    %v704 = vrot.slane %v700, 4
    %v706 = vshrl.u32 %v361, 16
    %v708 = vrot.slane %v706, 7
    %v709 = vshll.u32 %v361, 16
    %v711 = vor.u32 %v708, %v709
    %v712 = vsel %vm390, %v704, %v711
    %v713 = vrot.slane %v708, 4
    %v715 = vshrl.u32 %v362, 16
    %v717 = vrot.slane %v715, 7
    %v718 = vshll.u32 %v362, 16
    %v720 = vor.u32 %v717, %v718
    %v721 = vrot.slane %v717, 4
    %v723 = vshrl.u32 %v363, 16
    %v725 = vrot.slane %v723, 7
    %v726 = vshll.u32 %v363, 16
    %v728 = vor.u32 %v725, %v726
    %v729 = vsel %vm390, %v721, %v728
    %v730 = vrot.slane %v725, 4
    %v732 = vshrl.u32 %v364, 16
    %v734 = vrot.slane %v732, 7
    %v735 = vshll.u32 %v364, 16
    %v737 = vor.u32 %v734, %v735
    %v738 = vrot.slane %v734, 4
    %v740 = vshrl.u32 %v365, 16
    %v742 = vrot.slane %v740, 7
    %v743 = vshll.u32 %v365, 16
    %v745 = vor.u32 %v742, %v743
    %v746 = vsel %vm390, %v738, %v745
    %v747 = vrot.slane %v742, 4
    %v749 = vshrl.u32 %v366, 16
    %v751 = vrot.slane %v749, 7
    %v752 = vshll.u32 %v366, 16
    %v754 = vor.u32 %v751, %v752
    %v755 = vrot.slane %v751, 4
    %v757 = vshrl.u32 %v367, 16
    %v759 = vrot.slane %v757, 7
    %v760 = vshll.u32 %v367, 16
    %v762 = vor.u32 %v759, %v760
    %v763 = vsel %vm390, %v755, %v762
    %v764 = vrot.slane %v759, 4
    %v766 = vshrl.u32 %v368, 16
    %v768 = vrot.slane %v766, 7
    %v769 = vshll.u32 %v368, 16
    %v771 = vor.u32 %v768, %v769
    %v772 = vrot.slane %v768, 4
    %v774 = vshrl.u32 %v369, 16
    %v776 = vrot.slane %v774, 7
    %v777 = vshll.u32 %v369, 16
    %v779 = vor.u32 %v776, %v777
    %v780 = vsel %vm390, %v772, %v779
    %v781 = vrot.slane %v776, 4
    %v783 = vshrl.u32 %v370, 16
    %v785 = vrot.slane %v783, 7
    %v786 = vshll.u32 %v370, 16
    %v788 = vor.u32 %v785, %v786
    %v789 = vrot.slane %v785, 4
    %v791 = vshrl.u32 %v371, 16
    %v793 = vrot.slane %v791, 7
    %v794 = vshll.u32 %v371, 16
    %v796 = vor.u32 %v793, %v794
    %v797 = vsel %vm390, %v789, %v796
    %v798 = vrot.slane %v793, 4
    %v800 = vshrl.u32 %v372, 16
    %v802 = vrot.slane %v800, 7
    %v803 = vshll.u32 %v372, 16
    %v805 = vor.u32 %v802, %v803
    %v806 = vrot.slane %v802, 4
    %v808 = vshrl.u32 %v373, 16
    %v810 = vrot.slane %v808, 7
    %v811 = vshll.u32 %v373, 16
    %v813 = vor.u32 %v810, %v811
    %v814 = vsel %vm390, %v806, %v813
    %v815 = vrot.slane %v810, 4
    %v817 = vshrl.u32 %v374, 16
    %v819 = vrot.slane %v817, 7
    %v820 = vshll.u32 %v374, 16
    %v822 = vor.u32 %v819, %v820
    %v823 = vrot.slane %v819, 4
    %v825 = vshrl.u32 %v375, 16
    %v827 = vrot.slane %v825, 7
    %v828 = vshll.u32 %v375, 16
    %v830 = vor.u32 %v827, %v828
    %v831 = vsel %vm390, %v823, %v830
    %v832 = vrot.slane %v827, 4
    %v834 = vshrl.u32 %v376, 16
    %v836 = vrot.slane %v834, 7
    %v837 = vshll.u32 %v376, 16
    %v839 = vor.u32 %v836, %v837
    %v840 = vrot.slane %v836, 4
    %v842 = vshrl.u32 %v377, 16
    %v844 = vrot.slane %v842, 7
    %v845 = vshll.u32 %v377, 16
    %v847 = vor.u32 %v844, %v845
    %v848 = vsel %vm390, %v840, %v847
    %v849 = vrot.slane %v844, 4
    %v851 = vshrl.u32 %v378, 16
    %v853 = vrot.slane %v851, 7
    %v854 = vshll.u32 %v378, 16
    %v856 = vor.u32 %v853, %v854
    %v857 = vrot.slane %v853, 4
    %v859 = vshrl.u32 %v379, 16
    %v861 = vrot.slane %v859, 7
    %v862 = vshll.u32 %v379, 16
    %v864 = vor.u32 %v861, %v862
    %v865 = vsel %vm390, %v857, %v864
    %v866 = vrot.slane %v861, 4
    %v868 = vshrl.u32 %v380, 16
    %v870 = vrot.slane %v868, 7
    %v871 = vshll.u32 %v380, 16
    %v873 = vor.u32 %v870, %v871
    %v874 = vrot.slane %v870, 4
    %v876 = vshrl.u32 %v381, 16
    %v878 = vrot.slane %v876, 7
    %v879 = vshll.u32 %v381, 16
    %v881 = vor.u32 %v878, %v879
    %v882 = vsel %vm390, %v874, %v881
    %v883 = vrot.slane %v878, 4
    %v885 = vshrl.u32 %v382, 16
    %v887 = vrot.slane %v885, 7
    %v888 = vshll.u32 %v382, 16
    %v890 = vor.u32 %v887, %v888
    %v891 = vrot.slane %v887, 4
    %v893 = vshrl.u32 %v383, 16
    %v895 = vrot.slane %v893, 7
    %v896 = vshll.u32 %v383, 16
    %v898 = vor.u32 %v895, %v896
    %v899 = vsel %vm390, %v891, %v898
    %v900 = vrot.slane %v895, 4
    %v902 = vshrl.u32 %v384, 16
    %v904 = vrot.slane %v902, 7
    %v905 = vshll.u32 %v384, 16
    %v907 = vor.u32 %v904, %v905
    %v908 = vrot.slane %v904, 4
    %v910 = vshrl.u32 %v385, 16
    %v912 = vrot.slane %v910, 7
    %v913 = vshll.u32 %v385, 16
    %v915 = vor.u32 %v912, %v913
    %v916 = vsel %vm390, %v908, %v915
    %v917 = vrot.slane %v912, 4
    %v919 = vshrl.u32 %v386, 16
    %v921 = vrot.slane %v919, 7
    %v922 = vshll.u32 %v386, 16
    %v924 = vor.u32 %v921, %v922
    %v925 = vrot.slane %v921, 4
    %v927 = vshrl.u32 %v387, 16
    %v929 = vrot.slane %v927, 7
    %v930 = vshll.u32 %v387, 16
    %v932 = vor.u32 %v929, %v930
    %v933 = vsel %vm390, %v925, %v932
    %v934 = vrot.slane %v929, 4
    %s1031 = scalar_lea.vmem [#allocation2], 12
    %vm1032 = vcmask 27648
    %vm1033 = vsmask.f32 7938
    %vm1034 = vmand %vm1032, %vm1033
    %v1035 = vld [vmem:[%s1031] sm:$0xf]
    %v1036 = vsel %vm1034, %v397, %v1035
    %1037 = vst [vmem:[%s1031] sm:$0xf] %v1036
    %vm1038 = vcmask 27648
    %1039 = vst.msk [vmem:[%s1031 + $0x4] sm:$0xf] %vm1038, %v406
    %vm1040 = vcmask 24576
    %vm1041 = vmand %vm1040, %vm388
    %v1042 = vld [vmem:[%s1031 + $0x8] sm:$0x1]
    %v1043 = vsel %vm1041, %v407, %v1042
    %1044 = vst [vmem:[%s1031 + $0x8] sm:$0x1] %v1043
    %v1045 = vld [vmem:[%s1031 + $0xc] sm:$0xf]
    %v1046 = vsel %vm1034, %v414, %v1045
    %1047 = vst [vmem:[%s1031 + $0xc] sm:$0xf] %v1046
    %1048 = vst.msk [vmem:[%s1031 + $0x10] sm:$0xf] %vm1038, %v423
    %v1049 = vld [vmem:[%s1031 + $0x14] sm:$0x1]
    %v1050 = vsel %vm1041, %v424, %v1049
    %1051 = vst [vmem:[%s1031 + $0x14] sm:$0x1] %v1050
    %v1052 = vld [vmem:[%s1031 + $0x18] sm:$0xf]
    %v1053 = vsel %vm1034, %v431, %v1052
    %1054 = vst [vmem:[%s1031 + $0x18] sm:$0xf] %v1053
    %1055 = vst.msk [vmem:[%s1031 + $0x1c] sm:$0xf] %vm1038, %v440
    %v1056 = vld [vmem:[%s1031 + $0x20] sm:$0x1]
    %v1057 = vsel %vm1041, %v441, %v1056
    %1058 = vst [vmem:[%s1031 + $0x20] sm:$0x1] %v1057
    %v1059 = vld [vmem:[%s1031 + $0x24] sm:$0xf]
    %v1060 = vsel %vm1034, %v448, %v1059
    %1061 = vst [vmem:[%s1031 + $0x24] sm:$0xf] %v1060
    %1062 = vst.msk [vmem:[%s1031 + $0x28] sm:$0xf] %vm1038, %v457
    %v1063 = vld [vmem:[%s1031 + $0x2c] sm:$0x1]
    %v1064 = vsel %vm1041, %v458, %v1063
    %1065 = vst [vmem:[%s1031 + $0x2c] sm:$0x1] %v1064
    %v1066 = vld [vmem:[%s1031 + $0x30] sm:$0xf]
    %v1067 = vsel %vm1034, %v465, %v1066
    %1068 = vst [vmem:[%s1031 + $0x30] sm:$0xf] %v1067
    %1069 = vst.msk [vmem:[%s1031 + $0x34] sm:$0xf] %vm1038, %v474
    %v1070 = vld [vmem:[%s1031 + $0x38] sm:$0x1]
    %v1071 = vsel %vm1041, %v475, %v1070
    %1072 = vst [vmem:[%s1031 + $0x38] sm:$0x1] %v1071
    %v1073 = vld [vmem:[%s1031 + $0x3c] sm:$0xf]
    %v1074 = vsel %vm1034, %v482, %v1073
    %1075 = vst [vmem:[%s1031 + $0x3c] sm:$0xf] %v1074
    %1076 = vst.msk [vmem:[%s1031 + $0x40] sm:$0xf] %vm1038, %v491
    %v1077 = vld [vmem:[%s1031 + $0x44] sm:$0x1]
    %v1078 = vsel %vm1041, %v492, %v1077
    %1079 = vst [vmem:[%s1031 + $0x44] sm:$0x1] %v1078
    %v1080 = vld [vmem:[%s1031 + $0x48] sm:$0xf]
    %v1081 = vsel %vm1034, %v499, %v1080
    %1082 = vst [vmem:[%s1031 + $0x48] sm:$0xf] %v1081
    %1083 = vst.msk [vmem:[%s1031 + $0x4c] sm:$0xf] %vm1038, %v508
    %v1084 = vld [vmem:[%s1031 + $0x50] sm:$0x1]
    %v1085 = vsel %vm1041, %v509, %v1084
    %1086 = vst [vmem:[%s1031 + $0x50] sm:$0x1] %v1085
    %v1087 = vld [vmem:[%s1031 + $0x54] sm:$0xf]
    %v1088 = vsel %vm1034, %v516, %v1087
    %1089 = vst [vmem:[%s1031 + $0x54] sm:$0xf] %v1088
    %1090 = vst.msk [vmem:[%s1031 + $0x58] sm:$0xf] %vm1038, %v525
    %v1091 = vld [vmem:[%s1031 + $0x5c] sm:$0x1]
    %v1092 = vsel %vm1041, %v526, %v1091
    %1093 = vst [vmem:[%s1031 + $0x5c] sm:$0x1] %v1092
    %v1094 = vld [vmem:[%s1031 + $0x60] sm:$0xf]
    %v1095 = vsel %vm1034, %v533, %v1094
    %1096 = vst [vmem:[%s1031 + $0x60] sm:$0xf] %v1095
    %1097 = vst.msk [vmem:[%s1031 + $0x64] sm:$0xf] %vm1038, %v542
    %v1098 = vld [vmem:[%s1031 + $0x68] sm:$0x1]
    %v1099 = vsel %vm1041, %v543, %v1098
    %1100 = vst [vmem:[%s1031 + $0x68] sm:$0x1] %v1099
    %v1101 = vld [vmem:[%s1031 + $0x6c] sm:$0xf]
    %v1102 = vsel %vm1034, %v550, %v1101
    %1103 = vst [vmem:[%s1031 + $0x6c] sm:$0xf] %v1102
    %1104 = vst.msk [vmem:[%s1031 + $0x70] sm:$0xf] %vm1038, %v559
    %v1105 = vld [vmem:[%s1031 + $0x74] sm:$0x1]
    %v1106 = vsel %vm1041, %v560, %v1105
    %1107 = vst [vmem:[%s1031 + $0x74] sm:$0x1] %v1106
    %v1108 = vld [vmem:[%s1031 + $0x78] sm:$0xf]
    %v1109 = vsel %vm1034, %v567, %v1108
    %1110 = vst [vmem:[%s1031 + $0x78] sm:$0xf] %v1109
    %1111 = vst.msk [vmem:[%s1031 + $0x7c] sm:$0xf] %vm1038, %v576
    %v1112 = vld [vmem:[%s1031 + $0x80] sm:$0x1]
    %v1113 = vsel %vm1041, %v577, %v1112
    %1114 = vst [vmem:[%s1031 + $0x80] sm:$0x1] %v1113
    %v1115 = vld [vmem:[%s1031 + $0x84] sm:$0xf]
    %v1116 = vsel %vm1034, %v584, %v1115
    %1117 = vst [vmem:[%s1031 + $0x84] sm:$0xf] %v1116
    %1118 = vst.msk [vmem:[%s1031 + $0x88] sm:$0xf] %vm1038, %v593
    %v1119 = vld [vmem:[%s1031 + $0x8c] sm:$0x1]
    %v1120 = vsel %vm1041, %v594, %v1119
    %1121 = vst [vmem:[%s1031 + $0x8c] sm:$0x1] %v1120
    %v1122 = vld [vmem:[%s1031 + $0x90] sm:$0xf]
    %v1123 = vsel %vm1034, %v601, %v1122
    %1124 = vst [vmem:[%s1031 + $0x90] sm:$0xf] %v1123
    %1125 = vst.msk [vmem:[%s1031 + $0x94] sm:$0xf] %vm1038, %v610
    %v1126 = vld [vmem:[%s1031 + $0x98] sm:$0x1]
    %v1127 = vsel %vm1041, %v611, %v1126
    %1128 = vst [vmem:[%s1031 + $0x98] sm:$0x1] %v1127
    %v1129 = vld [vmem:[%s1031 + $0x9c] sm:$0xf]
    %v1130 = vsel %vm1034, %v618, %v1129
    %1131 = vst [vmem:[%s1031 + $0x9c] sm:$0xf] %v1130
    %1132 = vst.msk [vmem:[%s1031 + $0xa0] sm:$0xf] %vm1038, %v627
    %v1133 = vld [vmem:[%s1031 + $0xa4] sm:$0x1]
    %v1134 = vsel %vm1041, %v628, %v1133
    %1135 = vst [vmem:[%s1031 + $0xa4] sm:$0x1] %v1134
    %v1136 = vld [vmem:[%s1031 + $0xa8] sm:$0xf]
    %v1137 = vsel %vm1034, %v635, %v1136
    %1138 = vst [vmem:[%s1031 + $0xa8] sm:$0xf] %v1137
    %1139 = vst.msk [vmem:[%s1031 + $0xac] sm:$0xf] %vm1038, %v644
    %v1140 = vld [vmem:[%s1031 + $0xb0] sm:$0x1]
    %v1141 = vsel %vm1041, %v645, %v1140
    %1142 = vst [vmem:[%s1031 + $0xb0] sm:$0x1] %v1141
    %v1143 = vld [vmem:[%s1031 + $0xb4] sm:$0xf]
    %v1144 = vsel %vm1034, %v652, %v1143
    %1145 = vst [vmem:[%s1031 + $0xb4] sm:$0xf] %v1144
    %1146 = vst.msk [vmem:[%s1031 + $0xb8] sm:$0xf] %vm1038, %v661
    %v1147 = vld [vmem:[%s1031 + $0xbc] sm:$0x1]
    %v1148 = vsel %vm1041, %v662, %v1147
    %1149 = vst [vmem:[%s1031 + $0xbc] sm:$0x1] %v1148
    %v1150 = vld [vmem:[%s1031 + $0xd8] sm:$0xf]
    %v1151 = vsel %vm1034, %v669, %v1150
    %1152 = vst [vmem:[%s1031 + $0xd8] sm:$0xf] %v1151
    %1153 = vst.msk [vmem:[%s1031 + $0xdc] sm:$0xf] %vm1038, %v678
    %v1154 = vld [vmem:[%s1031 + $0xe0] sm:$0x1]
    %v1155 = vsel %vm1041, %v679, %v1154
    %1156 = vst [vmem:[%s1031 + $0xe0] sm:$0x1] %v1155
    %v1157 = vld [vmem:[%s1031 + $0xe4] sm:$0xf]
    %v1158 = vsel %vm1034, %v686, %v1157
    %1159 = vst [vmem:[%s1031 + $0xe4] sm:$0xf] %v1158
    %1160 = vst.msk [vmem:[%s1031 + $0xe8] sm:$0xf] %vm1038, %v695
    %v1161 = vld [vmem:[%s1031 + $0xec] sm:$0x1]
    %v1162 = vsel %vm1041, %v696, %v1161
    %1163 = vst [vmem:[%s1031 + $0xec] sm:$0x1] %v1162
    %v1164 = vld [vmem:[%s1031 + $0xf0] sm:$0xf]
    %v1165 = vsel %vm1034, %v703, %v1164
    %1166 = vst [vmem:[%s1031 + $0xf0] sm:$0xf] %v1165
    %1167 = vst.msk [vmem:[%s1031 + $0xf4] sm:$0xf] %vm1038, %v712
    %v1168 = vld [vmem:[%s1031 + $0xf8] sm:$0x1]
    %v1169 = vsel %vm1041, %v713, %v1168
    %1170 = vst [vmem:[%s1031 + $0xf8] sm:$0x1] %v1169
    %v1171 = vld [vmem:[%s1031 + $0xfc] sm:$0xf]
    %v1172 = vsel %vm1034, %v720, %v1171
    %1173 = vst [vmem:[%s1031 + $0xfc] sm:$0xf] %v1172
    %1174 = vst.msk [vmem:[%s1031 + $0x100] sm:$0xf] %vm1038, %v729
    %v1175 = vld [vmem:[%s1031 + $0x104] sm:$0x1]
    %v1176 = vsel %vm1041, %v730, %v1175
    %1177 = vst [vmem:[%s1031 + $0x104] sm:$0x1] %v1176
    %v1178 = vld [vmem:[%s1031 + $0x108] sm:$0xf]
    %v1179 = vsel %vm1034, %v737, %v1178
    %1180 = vst [vmem:[%s1031 + $0x108] sm:$0xf] %v1179
    %1181 = vst.msk [vmem:[%s1031 + $0x10c] sm:$0xf] %vm1038, %v746
    %v1182 = vld [vmem:[%s1031 + $0x110] sm:$0x1]
    %v1183 = vsel %vm1041, %v747, %v1182
    %1184 = vst [vmem:[%s1031 + $0x110] sm:$0x1] %v1183
    %v1185 = vld [vmem:[%s1031 + $0x114] sm:$0xf]
    %v1186 = vsel %vm1034, %v754, %v1185
    %1187 = vst [vmem:[%s1031 + $0x114] sm:$0xf] %v1186
    %1188 = vst.msk [vmem:[%s1031 + $0x118] sm:$0xf] %vm1038, %v763
    %v1189 = vld [vmem:[%s1031 + $0x11c] sm:$0x1]
    %v1190 = vsel %vm1041, %v764, %v1189
    %1191 = vst [vmem:[%s1031 + $0x11c] sm:$0x1] %v1190
    %v1192 = vld [vmem:[%s1031 + $0x120] sm:$0xf]
    %v1193 = vsel %vm1034, %v771, %v1192
    %1194 = vst [vmem:[%s1031 + $0x120] sm:$0xf] %v1193
    %1195 = vst.msk [vmem:[%s1031 + $0x124] sm:$0xf] %vm1038, %v780
    %v1196 = vld [vmem:[%s1031 + $0x128] sm:$0x1]
    %v1197 = vsel %vm1041, %v781, %v1196
    %1198 = vst [vmem:[%s1031 + $0x128] sm:$0x1] %v1197
    %v1199 = vld [vmem:[%s1031 + $0x12c] sm:$0xf]
    %v1200 = vsel %vm1034, %v788, %v1199
    %1201 = vst [vmem:[%s1031 + $0x12c] sm:$0xf] %v1200
    %1202 = vst.msk [vmem:[%s1031 + $0x130] sm:$0xf] %vm1038, %v797
    %v1203 = vld [vmem:[%s1031 + $0x134] sm:$0x1]
    %v1204 = vsel %vm1041, %v798, %v1203
    %1205 = vst [vmem:[%s1031 + $0x134] sm:$0x1] %v1204
    %v1206 = vld [vmem:[%s1031 + $0x138] sm:$0xf]
    %v1207 = vsel %vm1034, %v805, %v1206
    %1208 = vst [vmem:[%s1031 + $0x138] sm:$0xf] %v1207
    %1209 = vst.msk [vmem:[%s1031 + $0x13c] sm:$0xf] %vm1038, %v814
    %v1210 = vld [vmem:[%s1031 + $0x140] sm:$0x1]
    %v1211 = vsel %vm1041, %v815, %v1210
    %1212 = vst [vmem:[%s1031 + $0x140] sm:$0x1] %v1211
    %v1213 = vld [vmem:[%s1031 + $0x144] sm:$0xf]
    %v1214 = vsel %vm1034, %v822, %v1213
    %1215 = vst [vmem:[%s1031 + $0x144] sm:$0xf] %v1214
    %1216 = vst.msk [vmem:[%s1031 + $0x148] sm:$0xf] %vm1038, %v831
    %v1217 = vld [vmem:[%s1031 + $0x14c] sm:$0x1]
    %v1218 = vsel %vm1041, %v832, %v1217
    %1219 = vst [vmem:[%s1031 + $0x14c] sm:$0x1] %v1218
    %v1220 = vld [vmem:[%s1031 + $0x150] sm:$0xf]
    %v1221 = vsel %vm1034, %v839, %v1220
    %1222 = vst [vmem:[%s1031 + $0x150] sm:$0xf] %v1221
    %1223 = vst.msk [vmem:[%s1031 + $0x154] sm:$0xf] %vm1038, %v848
    %v1224 = vld [vmem:[%s1031 + $0x158] sm:$0x1]
    %v1225 = vsel %vm1041, %v849, %v1224
    %1226 = vst [vmem:[%s1031 + $0x158] sm:$0x1] %v1225
    %v1227 = vld [vmem:[%s1031 + $0x15c] sm:$0xf]
    %v1228 = vsel %vm1034, %v856, %v1227
    %1229 = vst [vmem:[%s1031 + $0x15c] sm:$0xf] %v1228
    %1230 = vst.msk [vmem:[%s1031 + $0x160] sm:$0xf] %vm1038, %v865
    %v1231 = vld [vmem:[%s1031 + $0x164] sm:$0x1]
    %v1232 = vsel %vm1041, %v866, %v1231
    %1233 = vst [vmem:[%s1031 + $0x164] sm:$0x1] %v1232
    %v1234 = vld [vmem:[%s1031 + $0x168] sm:$0xf]
    %v1235 = vsel %vm1034, %v873, %v1234
    %1236 = vst [vmem:[%s1031 + $0x168] sm:$0xf] %v1235
    %1237 = vst.msk [vmem:[%s1031 + $0x16c] sm:$0xf] %vm1038, %v882
    %v1238 = vld [vmem:[%s1031 + $0x170] sm:$0x1]
    %v1239 = vsel %vm1041, %v883, %v1238
    %1240 = vst [vmem:[%s1031 + $0x170] sm:$0x1] %v1239
    %v1241 = vld [vmem:[%s1031 + $0x174] sm:$0xf]
    %v1242 = vsel %vm1034, %v890, %v1241
    %1243 = vst [vmem:[%s1031 + $0x174] sm:$0xf] %v1242
    %1244 = vst.msk [vmem:[%s1031 + $0x178] sm:$0xf] %vm1038, %v899
    %v1245 = vld [vmem:[%s1031 + $0x17c] sm:$0x1]
    %v1246 = vsel %vm1041, %v900, %v1245
    %1247 = vst [vmem:[%s1031 + $0x17c] sm:$0x1] %v1246
    %v1248 = vld [vmem:[%s1031 + $0x180] sm:$0xf]
    %v1249 = vsel %vm1034, %v907, %v1248
    %1250 = vst [vmem:[%s1031 + $0x180] sm:$0xf] %v1249
    %1251 = vst.msk [vmem:[%s1031 + $0x184] sm:$0xf] %vm1038, %v916
    %v1252 = vld [vmem:[%s1031 + $0x188] sm:$0x1]
    %v1253 = vsel %vm1041, %v917, %v1252
    %1254 = vst [vmem:[%s1031 + $0x188] sm:$0x1] %v1253
    %v1255 = vld [vmem:[%s1031 + $0x18c] sm:$0xf]
    %v1256 = vsel %vm1034, %v924, %v1255
    %1257 = vst [vmem:[%s1031 + $0x18c] sm:$0xf] %v1256
    %1258 = vst.msk [vmem:[%s1031 + $0x190] sm:$0xf] %vm1038, %v933
    %v1259 = vld [vmem:[%s1031 + $0x194] sm:$0x1]
    %v1260 = vsel %vm1041, %v934, %v1259
    %1261 = vst [vmem:[%s1031 + $0x194] sm:$0x1] %v1260
    %v1262 = vld [vmem:[#allocation2] sm:$0xf]
    %v1263 = vld [vmem:[#allocation2 + $0x4] sm:$0xf]
    %v1264 = vld [vmem:[#allocation2 + $0xc] sm:$0xf]
    %v1265 = vld [vmem:[#allocation2 + $0x10] sm:$0xf]
    %v1266 = vld [vmem:[#allocation2 + $0x18] sm:$0xf]
    %v1267 = vld [vmem:[#allocation2 + $0x1c] sm:$0xf]
    %v1268 = vld [vmem:[#allocation2 + $0x24] sm:$0xf]
    %v1269 = vld [vmem:[#allocation2 + $0x28] sm:$0xf]
    %v1270 = vld [vmem:[#allocation2 + $0x30] sm:$0xf]
    %v1271 = vld [vmem:[#allocation2 + $0x34] sm:$0xf]
    %v1272 = vld [vmem:[#allocation2 + $0x3c] sm:$0xf]
    %v1273 = vld [vmem:[#allocation2 + $0x40] sm:$0xf]
    %v1274 = vld [vmem:[#allocation2 + $0x48] sm:$0xf]
    %v1275 = vld [vmem:[#allocation2 + $0x4c] sm:$0xf]
    %v1276 = vld [vmem:[#allocation2 + $0x54] sm:$0xf]
    %v1277 = vld [vmem:[#allocation2 + $0x58] sm:$0xf]
    %v1278 = vld [vmem:[#allocation2 + $0x60] sm:$0xf]
    %v1279 = vld [vmem:[#allocation2 + $0x64] sm:$0xf]
    %v1280 = vld [vmem:[#allocation2 + $0x6c] sm:$0xf]
    %v1281 = vld [vmem:[#allocation2 + $0x70] sm:$0xf]
    %v1282 = vld [vmem:[#allocation2 + $0x78] sm:$0xf]
    %v1283 = vld [vmem:[#allocation2 + $0x7c] sm:$0xf]
    %v1284 = vld [vmem:[#allocation2 + $0x84] sm:$0xf]
    %v1285 = vld [vmem:[#allocation2 + $0x88] sm:$0xf]
    %v1286 = vld [vmem:[#allocation2 + $0x90] sm:$0xf]
    %v1287 = vld [vmem:[#allocation2 + $0x94] sm:$0xf]
    %v1288 = vld [vmem:[#allocation2 + $0x9c] sm:$0xf]
    %v1289 = vld [vmem:[#allocation2 + $0xa0] sm:$0xf]
    %v1290 = vld [vmem:[#allocation2 + $0xa8] sm:$0xf]
    %v1291 = vld [vmem:[#allocation2 + $0xac] sm:$0xf]
    %v1292 = vld [vmem:[#allocation2 + $0xb4] sm:$0xf]
    %v1293 = vld [vmem:[#allocation2 + $0xb8] sm:$0xf]
    %v1294 = vld [vmem:[#allocation2 + $0xd8] sm:$0xf]
    %v1295 = vld [vmem:[#allocation2 + $0xdc] sm:$0xf]
    %v1296 = vld [vmem:[#allocation2 + $0xe4] sm:$0xf]
    %v1297 = vld [vmem:[#allocation2 + $0xe8] sm:$0xf]
    %v1298 = vld [vmem:[#allocation2 + $0xf0] sm:$0xf]
    %v1299 = vld [vmem:[#allocation2 + $0xf4] sm:$0xf]
    %v1300 = vld [vmem:[#allocation2 + $0xfc] sm:$0xf]
    %v1301 = vld [vmem:[#allocation2 + $0x100] sm:$0xf]
    %v1302 = vld [vmem:[#allocation2 + $0x108] sm:$0xf]
    %v1303 = vld [vmem:[#allocation2 + $0x10c] sm:$0xf]
    %v1304 = vld [vmem:[#allocation2 + $0x114] sm:$0xf]
    %v1305 = vld [vmem:[#allocation2 + $0x118] sm:$0xf]
    %v1306 = vld [vmem:[#allocation2 + $0x120] sm:$0xf]
    %v1307 = vld [vmem:[#allocation2 + $0x124] sm:$0xf]
    %v1308 = vld [vmem:[#allocation2 + $0x12c] sm:$0xf]
    %v1309 = vld [vmem:[#allocation2 + $0x130] sm:$0xf]
    %v1310 = vld [vmem:[#allocation2 + $0x138] sm:$0xf]
    %v1311 = vld [vmem:[#allocation2 + $0x13c] sm:$0xf]
    %v1312 = vld [vmem:[#allocation2 + $0x144] sm:$0xf]
    %v1313 = vld [vmem:[#allocation2 + $0x148] sm:$0xf]
    %v1314 = vld [vmem:[#allocation2 + $0x150] sm:$0xf]
    %v1315 = vld [vmem:[#allocation2 + $0x154] sm:$0xf]
    %v1316 = vld [vmem:[#allocation2 + $0x15c] sm:$0xf]
    %v1317 = vld [vmem:[#allocation2 + $0x160] sm:$0xf]
    %v1318 = vld [vmem:[#allocation2 + $0x168] sm:$0xf]
    %v1319 = vld [vmem:[#allocation2 + $0x16c] sm:$0xf]
    %v1320 = vld [vmem:[#allocation2 + $0x174] sm:$0xf]
    %v1321 = vld [vmem:[#allocation2 + $0x178] sm:$0xf]
    %v1322 = vld [vmem:[#allocation2 + $0x180] sm:$0xf]
    %v1323 = vld [vmem:[#allocation2 + $0x184] sm:$0xf]
    %v1324 = vld [vmem:[#allocation2 + $0x18c] sm:$0xf]
    %v1325 = vld [vmem:[#allocation2 + $0x190] sm:$0xf]
    %1326 = vst [vmem:[#allocation3] sm:$0xf] %v1262
    %1327 = vst [vmem:[#allocation3 + $0x24] sm:$0xf] %v1263
    %1328 = vst [vmem:[#allocation3 + $0x48] sm:$0xf] %v1264
    %1329 = vst [vmem:[#allocation3 + $0x6c] sm:$0xf] %v1265
    %1330 = vst [vmem:[#allocation3 + $0x90] sm:$0xf] %v1266
    %1331 = vst [vmem:[#allocation3 + $0xb4] sm:$0xf] %v1267
    %1332 = vst [vmem:[#allocation3 + $0xd8] sm:$0xf] %v1268
    %1333 = vst [vmem:[#allocation3 + $0xfc] sm:$0xf] %v1269
    %1334 = vst [vmem:[#allocation3 + $0x120] sm:$0xf] %v1270
    %1335 = vst [vmem:[#allocation3 + $0x144] sm:$0xf] %v1271
    %1336 = vst [vmem:[#allocation3 + $0x168] sm:$0xf] %v1272
    %1337 = vst [vmem:[#allocation3 + $0x18c] sm:$0xf] %v1273
    %1338 = vst [vmem:[#allocation3 + $0x1b0] sm:$0xf] %v1274
    %1339 = vst [vmem:[#allocation3 + $0x1d4] sm:$0xf] %v1275
    %1340 = vst [vmem:[#allocation3 + $0x1f8] sm:$0xf] %v1276
    %1341 = vst [vmem:[#allocation3 + $0x21c] sm:$0xf] %v1277
    %1342 = vst [vmem:[#allocation3 + $0x240] sm:$0xf] %v1278
    %1343 = vst [vmem:[#allocation3 + $0x264] sm:$0xf] %v1279
    %1344 = vst [vmem:[#allocation3 + $0x288] sm:$0xf] %v1280
    %1345 = vst [vmem:[#allocation3 + $0x2ac] sm:$0xf] %v1281
    %1346 = vst [vmem:[#allocation3 + $0x2d0] sm:$0xf] %v1282
    %1347 = vst [vmem:[#allocation3 + $0x2f4] sm:$0xf] %v1283
    %1348 = vst [vmem:[#allocation3 + $0x318] sm:$0xf] %v1284
    %1349 = vst [vmem:[#allocation3 + $0x33c] sm:$0xf] %v1285
    %1350 = vst [vmem:[#allocation3 + $0x360] sm:$0xf] %v1286
    %1351 = vst [vmem:[#allocation3 + $0x384] sm:$0xf] %v1287
    %1352 = vst [vmem:[#allocation3 + $0x3a8] sm:$0xf] %v1288
    %1353 = vst [vmem:[#allocation3 + $0x3cc] sm:$0xf] %v1289
    %1354 = vst [vmem:[#allocation3 + $0x3f0] sm:$0xf] %v1290
    %1355 = vst [vmem:[#allocation3 + $0x414] sm:$0xf] %v1291
    %1356 = vst [vmem:[#allocation3 + $0x438] sm:$0xf] %v1292
    %1357 = vst [vmem:[#allocation3 + $0x45c] sm:$0xf] %v1293
    %1358 = vst [vmem:[#allocation3 + $0x480] sm:$0xf] %v1294
    %1359 = vst [vmem:[#allocation3 + $0x4a4] sm:$0xf] %v1295
    %1360 = vst [vmem:[#allocation3 + $0x4c8] sm:$0xf] %v1296
    %1361 = vst [vmem:[#allocation3 + $0x4ec] sm:$0xf] %v1297
    %1362 = vst [vmem:[#allocation3 + $0x510] sm:$0xf] %v1298
    %1363 = vst [vmem:[#allocation3 + $0x534] sm:$0xf] %v1299
    %1364 = vst [vmem:[#allocation3 + $0x558] sm:$0xf] %v1300
    %1365 = vst [vmem:[#allocation3 + $0x57c] sm:$0xf] %v1301
    %1366 = vst [vmem:[#allocation3 + $0x5a0] sm:$0xf] %v1302
    %1367 = vst [vmem:[#allocation3 + $0x5c4] sm:$0xf] %v1303
    %1368 = vst [vmem:[#allocation3 + $0x5e8] sm:$0xf] %v1304
    %1369 = vst [vmem:[#allocation3 + $0x60c] sm:$0xf] %v1305
    %1370 = vst [vmem:[#allocation3 + $0x630] sm:$0xf] %v1306
    %1371 = vst [vmem:[#allocation3 + $0x654] sm:$0xf] %v1307
    %1372 = vst [vmem:[#allocation3 + $0x678] sm:$0xf] %v1308
    %1373 = vst [vmem:[#allocation3 + $0x69c] sm:$0xf] %v1309
    %1374 = vst [vmem:[#allocation3 + $0x6c0] sm:$0xf] %v1310
    %1375 = vst [vmem:[#allocation3 + $0x6e4] sm:$0xf] %v1311
    %1376 = vst [vmem:[#allocation3 + $0x708] sm:$0xf] %v1312
    %1377 = vst [vmem:[#allocation3 + $0x72c] sm:$0xf] %v1313
    %1378 = vst [vmem:[#allocation3 + $0x750] sm:$0xf] %v1314
    %1379 = vst [vmem:[#allocation3 + $0x774] sm:$0xf] %v1315
    %1380 = vst [vmem:[#allocation3 + $0x798] sm:$0xf] %v1316
    %1381 = vst [vmem:[#allocation3 + $0x7bc] sm:$0xf] %v1317
    %1382 = vst [vmem:[#allocation3 + $0x7e0] sm:$0xf] %v1318
    %1383 = vst [vmem:[#allocation3 + $0x804] sm:$0xf] %v1319
    %1384 = vst [vmem:[#allocation3 + $0x828] sm:$0xf] %v1320
    %1385 = vst [vmem:[#allocation3 + $0x84c] sm:$0xf] %v1321
    %1386 = vst [vmem:[#allocation3 + $0x870] sm:$0xf] %v1322
    %1387 = vst [vmem:[#allocation3 + $0x894] sm:$0xf] %v1323
    %1388 = vst [vmem:[#allocation3 + $0x8b8] sm:$0xf] %v1324
    %1389 = vst [vmem:[#allocation3 + $0x8dc] sm:$0xf] %v1325
    %v1390 = vld [vmem:[#allocation2] sm:$0xf]
    %v1391 = vld [vmem:[#allocation2 + $0x4] sm:$0xf]
    %v1392 = vld [vmem:[#allocation2 + $0x8] sm:$0x1]
    %v1393 = vld [vmem:[#allocation2 + $0xc] sm:$0xf]
    %v1394 = vld [vmem:[#allocation2 + $0x10] sm:$0xf]
    %v1395 = vld [vmem:[#allocation2 + $0x14] sm:$0x1]
    %v1396 = vld [vmem:[#allocation2 + $0x18] sm:$0xf]
    %v1397 = vld [vmem:[#allocation2 + $0x1c] sm:$0xf]
    %v1398 = vld [vmem:[#allocation2 + $0x20] sm:$0x1]
    %v1399 = vld [vmem:[#allocation2 + $0x24] sm:$0xf]
    %v1400 = vld [vmem:[#allocation2 + $0x28] sm:$0xf]
    %v1401 = vld [vmem:[#allocation2 + $0x2c] sm:$0x1]
    %v1402 = vld [vmem:[#allocation2 + $0x30] sm:$0xf]
    %v1403 = vld [vmem:[#allocation2 + $0x34] sm:$0xf]
    %v1404 = vld [vmem:[#allocation2 + $0x38] sm:$0x1]
    %v1405 = vld [vmem:[#allocation2 + $0x3c] sm:$0xf]
    %v1406 = vld [vmem:[#allocation2 + $0x40] sm:$0xf]
    %v1407 = vld [vmem:[#allocation2 + $0x44] sm:$0x1]
    %v1408 = vld [vmem:[#allocation2 + $0x48] sm:$0xf]
    %v1409 = vld [vmem:[#allocation2 + $0x4c] sm:$0xf]
    %v1410 = vld [vmem:[#allocation2 + $0x50] sm:$0x1]
    %v1411 = vld [vmem:[#allocation2 + $0x54] sm:$0xf]
    %v1412 = vld [vmem:[#allocation2 + $0x58] sm:$0xf]
    %v1413 = vld [vmem:[#allocation2 + $0x5c] sm:$0x1]
    %v1414 = vld [vmem:[#allocation2 + $0x60] sm:$0xf]
    %v1415 = vld [vmem:[#allocation2 + $0x64] sm:$0xf]
    %v1416 = vld [vmem:[#allocation2 + $0x68] sm:$0x1]
    %v1417 = vld [vmem:[#allocation2 + $0x6c] sm:$0xf]
    %v1418 = vld [vmem:[#allocation2 + $0x70] sm:$0xf]
    %v1419 = vld [vmem:[#allocation2 + $0x74] sm:$0x1]
    %v1420 = vld [vmem:[#allocation2 + $0x78] sm:$0xf]
    %v1421 = vld [vmem:[#allocation2 + $0x7c] sm:$0xf]
    %v1422 = vld [vmem:[#allocation2 + $0x80] sm:$0x1]
    %v1423 = vld [vmem:[#allocation2 + $0x84] sm:$0xf]
    %v1424 = vld [vmem:[#allocation2 + $0x88] sm:$0xf]
    %v1425 = vld [vmem:[#allocation2 + $0x8c] sm:$0x1]
    %v1426 = vld [vmem:[#allocation2 + $0x90] sm:$0xf]
    %v1427 = vld [vmem:[#allocation2 + $0x94] sm:$0xf]
    %v1428 = vld [vmem:[#allocation2 + $0x98] sm:$0x1]
    %v1429 = vld [vmem:[#allocation2 + $0x9c] sm:$0xf]
    %v1430 = vld [vmem:[#allocation2 + $0xa0] sm:$0xf]
    %v1431 = vld [vmem:[#allocation2 + $0xa4] sm:$0x1]
    %v1432 = vld [vmem:[#allocation2 + $0xa8] sm:$0xf]
    %v1433 = vld [vmem:[#allocation2 + $0xac] sm:$0xf]
    %v1434 = vld [vmem:[#allocation2 + $0xb0] sm:$0x1]
    %v1435 = vld [vmem:[#allocation2 + $0xb4] sm:$0xf]
    %v1436 = vld [vmem:[#allocation2 + $0xb8] sm:$0xf]
    %v1437 = vld [vmem:[#allocation2 + $0xbc] sm:$0x1]
    %v1438 = vld [vmem:[#allocation2 + $0xd8] sm:$0xf]
    %v1439 = vld [vmem:[#allocation2 + $0xdc] sm:$0xf]
    %v1440 = vld [vmem:[#allocation2 + $0xe0] sm:$0x1]
    %v1441 = vld [vmem:[#allocation2 + $0xe4] sm:$0xf]
    %v1442 = vld [vmem:[#allocation2 + $0xe8] sm:$0xf]
    %v1443 = vld [vmem:[#allocation2 + $0xec] sm:$0x1]
    %v1444 = vld [vmem:[#allocation2 + $0xf0] sm:$0xf]
    %v1445 = vld [vmem:[#allocation2 + $0xf4] sm:$0xf]
    %v1446 = vld [vmem:[#allocation2 + $0xf8] sm:$0x1]
    %v1447 = vld [vmem:[#allocation2 + $0xfc] sm:$0xf]
    %v1448 = vld [vmem:[#allocation2 + $0x100] sm:$0xf]
    %v1449 = vld [vmem:[#allocation2 + $0x104] sm:$0x1]
    %v1450 = vld [vmem:[#allocation2 + $0x108] sm:$0xf]
    %v1451 = vld [vmem:[#allocation2 + $0x10c] sm:$0xf]
    %v1452 = vld [vmem:[#allocation2 + $0x110] sm:$0x1]
    %v1453 = vld [vmem:[#allocation2 + $0x114] sm:$0xf]
    %v1454 = vld [vmem:[#allocation2 + $0x118] sm:$0xf]
    %v1455 = vld [vmem:[#allocation2 + $0x11c] sm:$0x1]
    %v1456 = vld [vmem:[#allocation2 + $0x120] sm:$0xf]
    %v1457 = vld [vmem:[#allocation2 + $0x124] sm:$0xf]
    %v1458 = vld [vmem:[#allocation2 + $0x128] sm:$0x1]
    %v1459 = vld [vmem:[#allocation2 + $0x12c] sm:$0xf]
    %v1460 = vld [vmem:[#allocation2 + $0x130] sm:$0xf]
    %v1461 = vld [vmem:[#allocation2 + $0x134] sm:$0x1]
    %v1462 = vld [vmem:[#allocation2 + $0x138] sm:$0xf]
    %v1463 = vld [vmem:[#allocation2 + $0x13c] sm:$0xf]
    %v1464 = vld [vmem:[#allocation2 + $0x140] sm:$0x1]
    %v1465 = vld [vmem:[#allocation2 + $0x144] sm:$0xf]
    %v1466 = vld [vmem:[#allocation2 + $0x148] sm:$0xf]
    %v1467 = vld [vmem:[#allocation2 + $0x14c] sm:$0x1]
    %v1468 = vld [vmem:[#allocation2 + $0x150] sm:$0xf]
    %v1469 = vld [vmem:[#allocation2 + $0x154] sm:$0xf]
    %v1470 = vld [vmem:[#allocation2 + $0x158] sm:$0x1]
    %v1471 = vld [vmem:[#allocation2 + $0x15c] sm:$0xf]
    %v1472 = vld [vmem:[#allocation2 + $0x160] sm:$0xf]
    %v1473 = vld [vmem:[#allocation2 + $0x164] sm:$0x1]
    %v1474 = vld [vmem:[#allocation2 + $0x168] sm:$0xf]
    %v1475 = vld [vmem:[#allocation2 + $0x16c] sm:$0xf]
    %v1476 = vld [vmem:[#allocation2 + $0x170] sm:$0x1]
    %v1477 = vld [vmem:[#allocation2 + $0x174] sm:$0xf]
    %v1478 = vld [vmem:[#allocation2 + $0x178] sm:$0xf]
    %v1479 = vld [vmem:[#allocation2 + $0x17c] sm:$0x1]
    %v1480 = vld [vmem:[#allocation2 + $0x180] sm:$0xf]
    %v1481 = vld [vmem:[#allocation2 + $0x184] sm:$0xf]
    %v1482 = vld [vmem:[#allocation2 + $0x188] sm:$0x1]
    %v1483 = vld [vmem:[#allocation2 + $0x18c] sm:$0xf]
    %v1484 = vld [vmem:[#allocation2 + $0x190] sm:$0xf]
    %v1485 = vld [vmem:[#allocation2 + $0x194] sm:$0x1]
    %vm1486 = vsmask.f32 3328
    %vm1487 = vsmask.f32 7440
    %vm1488 = vmor %vm1486, %vm1487
    %v1490 = vshrl.u32 %v1390, 16
    %v1492 = vrot.slane %v1490, 4
    %v1493 = vshll.u32 %v1390, 16
    %v1495 = vrot.slane %v1493, 5
    %v1496 = vor.u32 %v1492, %v1495
    %v1497 = vrot.slane %v1496, 4
    %v1499 = vshll.u32 %v1391, 16
    %v1501 = vrot.slane %v1499, 5
    %v1502 = vsel %vm1488, %v1497, %v1501
    %v1503 = vshrl.u32 %v1391, 16
    %v1505 = vrot.slane %v1503, 4
    %v1506 = vor.u32 %v1505, %v1501
    %v1507 = vrot.slane %v1506, 4
    %v1509 = vshll.u32 %v1392, 16
    %v1511 = vrot.slane %v1509, 5
    %v1512 = vsel %vm1488, %v1507, %v1511
    %v1514 = vshrl.u32 %v1393, 16
    %v1516 = vrot.slane %v1514, 4
    %v1517 = vshll.u32 %v1393, 16
    %v1519 = vrot.slane %v1517, 5
    %v1520 = vor.u32 %v1516, %v1519
    %v1521 = vrot.slane %v1520, 4
    %v1523 = vshll.u32 %v1394, 16
    %v1525 = vrot.slane %v1523, 5
    %v1526 = vsel %vm1488, %v1521, %v1525
    %v1527 = vshrl.u32 %v1394, 16
    %v1529 = vrot.slane %v1527, 4
    %v1530 = vor.u32 %v1529, %v1525
    %v1531 = vrot.slane %v1530, 4
    %v1533 = vshll.u32 %v1395, 16
    %v1535 = vrot.slane %v1533, 5
    %v1536 = vsel %vm1488, %v1531, %v1535
    %v1538 = vshrl.u32 %v1396, 16
    %v1540 = vrot.slane %v1538, 4
    %v1541 = vshll.u32 %v1396, 16
    %v1543 = vrot.slane %v1541, 5
    %v1544 = vor.u32 %v1540, %v1543
    %v1545 = vrot.slane %v1544, 4
    %v1547 = vshll.u32 %v1397, 16
    %v1549 = vrot.slane %v1547, 5
    %v1550 = vsel %vm1488, %v1545, %v1549
    %v1551 = vshrl.u32 %v1397, 16
    %v1553 = vrot.slane %v1551, 4
    %v1554 = vor.u32 %v1553, %v1549
    %v1555 = vrot.slane %v1554, 4
    %v1557 = vshll.u32 %v1398, 16
    %v1559 = vrot.slane %v1557, 5
    %v1560 = vsel %vm1488, %v1555, %v1559
    %v1562 = vshrl.u32 %v1399, 16
    %v1564 = vrot.slane %v1562, 4
    %v1565 = vshll.u32 %v1399, 16
    %v1567 = vrot.slane %v1565, 5
    %v1568 = vor.u32 %v1564, %v1567
    %v1569 = vrot.slane %v1568, 4
    %v1571 = vshll.u32 %v1400, 16
    %v1573 = vrot.slane %v1571, 5
    %v1574 = vsel %vm1488, %v1569, %v1573
    %v1575 = vshrl.u32 %v1400, 16
    %v1577 = vrot.slane %v1575, 4
    %v1578 = vor.u32 %v1577, %v1573
    %v1579 = vrot.slane %v1578, 4
    %v1581 = vshll.u32 %v1401, 16
    %v1583 = vrot.slane %v1581, 5
    %v1584 = vsel %vm1488, %v1579, %v1583
    %v1586 = vshrl.u32 %v1402, 16
    %v1588 = vrot.slane %v1586, 4
    %v1589 = vshll.u32 %v1402, 16
    %v1591 = vrot.slane %v1589, 5
    %v1592 = vor.u32 %v1588, %v1591
    %v1593 = vrot.slane %v1592, 4
    %v1595 = vshll.u32 %v1403, 16
    %v1597 = vrot.slane %v1595, 5
    %v1598 = vsel %vm1488, %v1593, %v1597
    %v1599 = vshrl.u32 %v1403, 16
    %v1601 = vrot.slane %v1599, 4
    %v1602 = vor.u32 %v1601, %v1597
    %v1603 = vrot.slane %v1602, 4
    %v1605 = vshll.u32 %v1404, 16
    %v1607 = vrot.slane %v1605, 5
    %v1608 = vsel %vm1488, %v1603, %v1607
    %v1610 = vshrl.u32 %v1405, 16
    %v1612 = vrot.slane %v1610, 4
    %v1613 = vshll.u32 %v1405, 16
    %v1615 = vrot.slane %v1613, 5
    %v1616 = vor.u32 %v1612, %v1615
    %v1617 = vrot.slane %v1616, 4
    %v1619 = vshll.u32 %v1406, 16
    %v1621 = vrot.slane %v1619, 5
    %v1622 = vsel %vm1488, %v1617, %v1621
    %v1623 = vshrl.u32 %v1406, 16
    %v1625 = vrot.slane %v1623, 4
    %v1626 = vor.u32 %v1625, %v1621
    %v1627 = vrot.slane %v1626, 4
    %v1629 = vshll.u32 %v1407, 16
    %v1631 = vrot.slane %v1629, 5
    %v1632 = vsel %vm1488, %v1627, %v1631
    %v1634 = vshrl.u32 %v1408, 16
    %v1636 = vrot.slane %v1634, 4
    %v1637 = vshll.u32 %v1408, 16
    %v1639 = vrot.slane %v1637, 5
    %v1640 = vor.u32 %v1636, %v1639
    %v1641 = vrot.slane %v1640, 4
    %v1643 = vshll.u32 %v1409, 16
    %v1645 = vrot.slane %v1643, 5
    %v1646 = vsel %vm1488, %v1641, %v1645
    %v1647 = vshrl.u32 %v1409, 16
    %v1649 = vrot.slane %v1647, 4
    %v1650 = vor.u32 %v1649, %v1645
    %v1651 = vrot.slane %v1650, 4
    %v1653 = vshll.u32 %v1410, 16
    %v1655 = vrot.slane %v1653, 5
    %v1656 = vsel %vm1488, %v1651, %v1655
    %v1658 = vshrl.u32 %v1411, 16
    %v1660 = vrot.slane %v1658, 4
    %v1661 = vshll.u32 %v1411, 16
    %v1663 = vrot.slane %v1661, 5
    %v1664 = vor.u32 %v1660, %v1663
    %v1665 = vrot.slane %v1664, 4
    %v1667 = vshll.u32 %v1412, 16
    %v1669 = vrot.slane %v1667, 5
    %v1670 = vsel %vm1488, %v1665, %v1669
    %v1671 = vshrl.u32 %v1412, 16
    %v1673 = vrot.slane %v1671, 4
    %v1674 = vor.u32 %v1673, %v1669
    %v1675 = vrot.slane %v1674, 4
    %v1677 = vshll.u32 %v1413, 16
    %v1679 = vrot.slane %v1677, 5
    %v1680 = vsel %vm1488, %v1675, %v1679
    %v1682 = vshrl.u32 %v1414, 16
    %v1684 = vrot.slane %v1682, 4
    %v1685 = vshll.u32 %v1414, 16
    %v1687 = vrot.slane %v1685, 5
    %v1688 = vor.u32 %v1684, %v1687
    %v1689 = vrot.slane %v1688, 4
    %v1691 = vshll.u32 %v1415, 16
    %v1693 = vrot.slane %v1691, 5
    %v1694 = vsel %vm1488, %v1689, %v1693
    %v1695 = vshrl.u32 %v1415, 16
    %v1697 = vrot.slane %v1695, 4
    %v1698 = vor.u32 %v1697, %v1693
    %v1699 = vrot.slane %v1698, 4
    %v1701 = vshll.u32 %v1416, 16
    %v1703 = vrot.slane %v1701, 5
    %v1704 = vsel %vm1488, %v1699, %v1703
    %v1706 = vshrl.u32 %v1417, 16
    %v1708 = vrot.slane %v1706, 4
    %v1709 = vshll.u32 %v1417, 16
    %v1711 = vrot.slane %v1709, 5
    %v1712 = vor.u32 %v1708, %v1711
    %v1713 = vrot.slane %v1712, 4
    %v1715 = vshll.u32 %v1418, 16
    %v1717 = vrot.slane %v1715, 5
    %v1718 = vsel %vm1488, %v1713, %v1717
    %v1719 = vshrl.u32 %v1418, 16
    %v1721 = vrot.slane %v1719, 4
    %v1722 = vor.u32 %v1721, %v1717
    %v1723 = vrot.slane %v1722, 4
    %v1725 = vshll.u32 %v1419, 16
    %v1727 = vrot.slane %v1725, 5
    %v1728 = vsel %vm1488, %v1723, %v1727
    %v1730 = vshrl.u32 %v1420, 16
    %v1732 = vrot.slane %v1730, 4
    %v1733 = vshll.u32 %v1420, 16
    %v1735 = vrot.slane %v1733, 5
    %v1736 = vor.u32 %v1732, %v1735
    %v1737 = vrot.slane %v1736, 4
    %v1739 = vshll.u32 %v1421, 16
    %v1741 = vrot.slane %v1739, 5
    %v1742 = vsel %vm1488, %v1737, %v1741
    %v1743 = vshrl.u32 %v1421, 16
    %v1745 = vrot.slane %v1743, 4
    %v1746 = vor.u32 %v1745, %v1741
    %v1747 = vrot.slane %v1746, 4
    %v1749 = vshll.u32 %v1422, 16
    %v1751 = vrot.slane %v1749, 5
    %v1752 = vsel %vm1488, %v1747, %v1751
    %v1754 = vshrl.u32 %v1423, 16
    %v1756 = vrot.slane %v1754, 4
    %v1757 = vshll.u32 %v1423, 16
    %v1759 = vrot.slane %v1757, 5
    %v1760 = vor.u32 %v1756, %v1759
    %v1761 = vrot.slane %v1760, 4
    %v1763 = vshll.u32 %v1424, 16
    %v1765 = vrot.slane %v1763, 5
    %v1766 = vsel %vm1488, %v1761, %v1765
    %v1767 = vshrl.u32 %v1424, 16
    %v1769 = vrot.slane %v1767, 4
    %v1770 = vor.u32 %v1769, %v1765
    %v1771 = vrot.slane %v1770, 4
    %v1773 = vshll.u32 %v1425, 16
    %v1775 = vrot.slane %v1773, 5
    %v1776 = vsel %vm1488, %v1771, %v1775
    %v1778 = vshrl.u32 %v1426, 16
    %v1780 = vrot.slane %v1778, 4
    %v1781 = vshll.u32 %v1426, 16
    %v1783 = vrot.slane %v1781, 5
    %v1784 = vor.u32 %v1780, %v1783
    %v1785 = vrot.slane %v1784, 4
    %v1787 = vshll.u32 %v1427, 16
    %v1789 = vrot.slane %v1787, 5
    %v1790 = vsel %vm1488, %v1785, %v1789
    %v1791 = vshrl.u32 %v1427, 16
    %v1793 = vrot.slane %v1791, 4
    %v1794 = vor.u32 %v1793, %v1789
    %v1795 = vrot.slane %v1794, 4
    %v1797 = vshll.u32 %v1428, 16
    %v1799 = vrot.slane %v1797, 5
    %v1800 = vsel %vm1488, %v1795, %v1799
    %v1802 = vshrl.u32 %v1429, 16
    %v1804 = vrot.slane %v1802, 4
    %v1805 = vshll.u32 %v1429, 16
    %v1807 = vrot.slane %v1805, 5
    %v1808 = vor.u32 %v1804, %v1807
    %v1809 = vrot.slane %v1808, 4
    %v1811 = vshll.u32 %v1430, 16
    %v1813 = vrot.slane %v1811, 5
    %v1814 = vsel %vm1488, %v1809, %v1813
    %v1815 = vshrl.u32 %v1430, 16
    %v1817 = vrot.slane %v1815, 4
    %v1818 = vor.u32 %v1817, %v1813
    %v1819 = vrot.slane %v1818, 4
    %v1821 = vshll.u32 %v1431, 16
    %v1823 = vrot.slane %v1821, 5
    %v1824 = vsel %vm1488, %v1819, %v1823
    %v1826 = vshrl.u32 %v1432, 16
    %v1828 = vrot.slane %v1826, 4
    %v1829 = vshll.u32 %v1432, 16
    %v1831 = vrot.slane %v1829, 5
    %v1832 = vor.u32 %v1828, %v1831
    %v1833 = vrot.slane %v1832, 4
    %v1835 = vshll.u32 %v1433, 16
    %v1837 = vrot.slane %v1835, 5
    %v1838 = vsel %vm1488, %v1833, %v1837
    %v1839 = vshrl.u32 %v1433, 16
    %v1841 = vrot.slane %v1839, 4
    %v1842 = vor.u32 %v1841, %v1837
    %v1843 = vrot.slane %v1842, 4
    %v1845 = vshll.u32 %v1434, 16
    %v1847 = vrot.slane %v1845, 5
    %v1848 = vsel %vm1488, %v1843, %v1847
    %v1850 = vshrl.u32 %v1435, 16
    %v1852 = vrot.slane %v1850, 4
    %v1853 = vshll.u32 %v1435, 16
    %v1855 = vrot.slane %v1853, 5
    %v1856 = vor.u32 %v1852, %v1855
    %v1857 = vrot.slane %v1856, 4
    %v1859 = vshll.u32 %v1436, 16
    %v1861 = vrot.slane %v1859, 5
    %v1862 = vsel %vm1488, %v1857, %v1861
    %v1863 = vshrl.u32 %v1436, 16
    %v1865 = vrot.slane %v1863, 4
    %v1866 = vor.u32 %v1865, %v1861
    %v1867 = vrot.slane %v1866, 4
    %v1869 = vshll.u32 %v1437, 16
    %v1871 = vrot.slane %v1869, 5
    %v1872 = vsel %vm1488, %v1867, %v1871
    %v1874 = vshrl.u32 %v1438, 16
    %v1876 = vrot.slane %v1874, 4
    %v1877 = vshll.u32 %v1438, 16
    %v1879 = vrot.slane %v1877, 5
    %v1880 = vor.u32 %v1876, %v1879
    %v1881 = vrot.slane %v1880, 4
    %v1883 = vshll.u32 %v1439, 16
    %v1885 = vrot.slane %v1883, 5
    %v1886 = vsel %vm1488, %v1881, %v1885
    %v1887 = vshrl.u32 %v1439, 16
    %v1889 = vrot.slane %v1887, 4
    %v1890 = vor.u32 %v1889, %v1885
    %v1891 = vrot.slane %v1890, 4
    %v1893 = vshll.u32 %v1440, 16
    %v1895 = vrot.slane %v1893, 5
    %v1896 = vsel %vm1488, %v1891, %v1895
    %v1898 = vshrl.u32 %v1441, 16
    %v1900 = vrot.slane %v1898, 4
    %v1901 = vshll.u32 %v1441, 16
    %v1903 = vrot.slane %v1901, 5
    %v1904 = vor.u32 %v1900, %v1903
    %v1905 = vrot.slane %v1904, 4
    %v1907 = vshll.u32 %v1442, 16
    %v1909 = vrot.slane %v1907, 5
    %v1910 = vsel %vm1488, %v1905, %v1909
    %v1911 = vshrl.u32 %v1442, 16
    %v1913 = vrot.slane %v1911, 4
    %v1914 = vor.u32 %v1913, %v1909
    %v1915 = vrot.slane %v1914, 4
    %v1917 = vshll.u32 %v1443, 16
    %v1919 = vrot.slane %v1917, 5
    %v1920 = vsel %vm1488, %v1915, %v1919
    %v1922 = vshrl.u32 %v1444, 16
    %v1924 = vrot.slane %v1922, 4
    %v1925 = vshll.u32 %v1444, 16
    %v1927 = vrot.slane %v1925, 5
    %v1928 = vor.u32 %v1924, %v1927
    %v1929 = vrot.slane %v1928, 4
    %v1931 = vshll.u32 %v1445, 16
    %v1933 = vrot.slane %v1931, 5
    %v1934 = vsel %vm1488, %v1929, %v1933
    %v1935 = vshrl.u32 %v1445, 16
    %v1937 = vrot.slane %v1935, 4
    %v1938 = vor.u32 %v1937, %v1933
    %v1939 = vrot.slane %v1938, 4
    %v1941 = vshll.u32 %v1446, 16
    %v1943 = vrot.slane %v1941, 5
    %v1944 = vsel %vm1488, %v1939, %v1943
    %v1946 = vshrl.u32 %v1447, 16
    %v1948 = vrot.slane %v1946, 4
    %v1949 = vshll.u32 %v1447, 16
    %v1951 = vrot.slane %v1949, 5
    %v1952 = vor.u32 %v1948, %v1951
    %v1953 = vrot.slane %v1952, 4
    %v1955 = vshll.u32 %v1448, 16
    %v1957 = vrot.slane %v1955, 5
    %v1958 = vsel %vm1488, %v1953, %v1957
    %v1959 = vshrl.u32 %v1448, 16
    %v1961 = vrot.slane %v1959, 4
    %v1962 = vor.u32 %v1961, %v1957
    %v1963 = vrot.slane %v1962, 4
    %v1965 = vshll.u32 %v1449, 16
    %v1967 = vrot.slane %v1965, 5
    %v1968 = vsel %vm1488, %v1963, %v1967
    %v1970 = vshrl.u32 %v1450, 16
    %v1972 = vrot.slane %v1970, 4
    %v1973 = vshll.u32 %v1450, 16
    %v1975 = vrot.slane %v1973, 5
    %v1976 = vor.u32 %v1972, %v1975
    %v1977 = vrot.slane %v1976, 4
    %v1979 = vshll.u32 %v1451, 16
    %v1981 = vrot.slane %v1979, 5
    %v1982 = vsel %vm1488, %v1977, %v1981
    %v1983 = vshrl.u32 %v1451, 16
    %v1985 = vrot.slane %v1983, 4
    %v1986 = vor.u32 %v1985, %v1981
    %v1987 = vrot.slane %v1986, 4
    %v1989 = vshll.u32 %v1452, 16
    %v1991 = vrot.slane %v1989, 5
    %v1992 = vsel %vm1488, %v1987, %v1991
    %v1994 = vshrl.u32 %v1453, 16
    %v1996 = vrot.slane %v1994, 4
    %v1997 = vshll.u32 %v1453, 16
    %v1999 = vrot.slane %v1997, 5
    %v2000 = vor.u32 %v1996, %v1999
    %v2001 = vrot.slane %v2000, 4
    %v2003 = vshll.u32 %v1454, 16
    %v2005 = vrot.slane %v2003, 5
    %v2006 = vsel %vm1488, %v2001, %v2005
    %v2007 = vshrl.u32 %v1454, 16
    %v2009 = vrot.slane %v2007, 4
    %v2010 = vor.u32 %v2009, %v2005
    %v2011 = vrot.slane %v2010, 4
    %v2013 = vshll.u32 %v1455, 16
    %v2015 = vrot.slane %v2013, 5
    %v2016 = vsel %vm1488, %v2011, %v2015
    %v2018 = vshrl.u32 %v1456, 16
    %v2020 = vrot.slane %v2018, 4
    %v2021 = vshll.u32 %v1456, 16
    %v2023 = vrot.slane %v2021, 5
    %v2024 = vor.u32 %v2020, %v2023
    %v2025 = vrot.slane %v2024, 4
    %v2027 = vshll.u32 %v1457, 16
    %v2029 = vrot.slane %v2027, 5
    %v2030 = vsel %vm1488, %v2025, %v2029
    %v2031 = vshrl.u32 %v1457, 16
    %v2033 = vrot.slane %v2031, 4
    %v2034 = vor.u32 %v2033, %v2029
    %v2035 = vrot.slane %v2034, 4
    %v2037 = vshll.u32 %v1458, 16
    %v2039 = vrot.slane %v2037, 5
    %v2040 = vsel %vm1488, %v2035, %v2039
    %v2042 = vshrl.u32 %v1459, 16
    %v2044 = vrot.slane %v2042, 4
    %v2045 = vshll.u32 %v1459, 16
    %v2047 = vrot.slane %v2045, 5
    %v2048 = vor.u32 %v2044, %v2047
    %v2049 = vrot.slane %v2048, 4
    %v2051 = vshll.u32 %v1460, 16
    %v2053 = vrot.slane %v2051, 5
    %v2054 = vsel %vm1488, %v2049, %v2053
    %v2055 = vshrl.u32 %v1460, 16
    %v2057 = vrot.slane %v2055, 4
    %v2058 = vor.u32 %v2057, %v2053
    %v2059 = vrot.slane %v2058, 4
    %v2061 = vshll.u32 %v1461, 16
    %v2063 = vrot.slane %v2061, 5
    %v2064 = vsel %vm1488, %v2059, %v2063
    %v2066 = vshrl.u32 %v1462, 16
    %v2068 = vrot.slane %v2066, 4
    %v2069 = vshll.u32 %v1462, 16
    %v2071 = vrot.slane %v2069, 5
    %v2072 = vor.u32 %v2068, %v2071
    %v2073 = vrot.slane %v2072, 4
    %v2075 = vshll.u32 %v1463, 16
    %v2077 = vrot.slane %v2075, 5
    %v2078 = vsel %vm1488, %v2073, %v2077
    %v2079 = vshrl.u32 %v1463, 16
    %v2081 = vrot.slane %v2079, 4
    %v2082 = vor.u32 %v2081, %v2077
    %v2083 = vrot.slane %v2082, 4
    %v2085 = vshll.u32 %v1464, 16
    %v2087 = vrot.slane %v2085, 5
    %v2088 = vsel %vm1488, %v2083, %v2087
    %v2090 = vshrl.u32 %v1465, 16
    %v2092 = vrot.slane %v2090, 4
    %v2093 = vshll.u32 %v1465, 16
    %v2095 = vrot.slane %v2093, 5
    %v2096 = vor.u32 %v2092, %v2095
    %v2097 = vrot.slane %v2096, 4
    %v2099 = vshll.u32 %v1466, 16
    %v2101 = vrot.slane %v2099, 5
    %v2102 = vsel %vm1488, %v2097, %v2101
    %v2103 = vshrl.u32 %v1466, 16
    %v2105 = vrot.slane %v2103, 4
    %v2106 = vor.u32 %v2105, %v2101
    %v2107 = vrot.slane %v2106, 4
    %v2109 = vshll.u32 %v1467, 16
    %v2111 = vrot.slane %v2109, 5
    %v2112 = vsel %vm1488, %v2107, %v2111
    %v2114 = vshrl.u32 %v1468, 16
    %v2116 = vrot.slane %v2114, 4
    %v2117 = vshll.u32 %v1468, 16
    %v2119 = vrot.slane %v2117, 5
    %v2120 = vor.u32 %v2116, %v2119
    %v2121 = vrot.slane %v2120, 4
    %v2123 = vshll.u32 %v1469, 16
    %v2125 = vrot.slane %v2123, 5
    %v2126 = vsel %vm1488, %v2121, %v2125
    %v2127 = vshrl.u32 %v1469, 16
    %v2129 = vrot.slane %v2127, 4
    %v2130 = vor.u32 %v2129, %v2125
    %v2131 = vrot.slane %v2130, 4
    %v2133 = vshll.u32 %v1470, 16
    %v2135 = vrot.slane %v2133, 5
    %v2136 = vsel %vm1488, %v2131, %v2135
    %v2138 = vshrl.u32 %v1471, 16
    %v2140 = vrot.slane %v2138, 4
    %v2141 = vshll.u32 %v1471, 16
    %v2143 = vrot.slane %v2141, 5
    %v2144 = vor.u32 %v2140, %v2143
    %v2145 = vrot.slane %v2144, 4
    %v2147 = vshll.u32 %v1472, 16
    %v2149 = vrot.slane %v2147, 5
    %v2150 = vsel %vm1488, %v2145, %v2149
    %v2151 = vshrl.u32 %v1472, 16
    %v2153 = vrot.slane %v2151, 4
    %v2154 = vor.u32 %v2153, %v2149
    %v2155 = vrot.slane %v2154, 4
    %v2157 = vshll.u32 %v1473, 16
    %v2159 = vrot.slane %v2157, 5
    %v2160 = vsel %vm1488, %v2155, %v2159
    %v2162 = vshrl.u32 %v1474, 16
    %v2164 = vrot.slane %v2162, 4
    %v2165 = vshll.u32 %v1474, 16
    %v2167 = vrot.slane %v2165, 5
    %v2168 = vor.u32 %v2164, %v2167
    %v2169 = vrot.slane %v2168, 4
    %v2171 = vshll.u32 %v1475, 16
    %v2173 = vrot.slane %v2171, 5
    %v2174 = vsel %vm1488, %v2169, %v2173
    %v2175 = vshrl.u32 %v1475, 16
    %v2177 = vrot.slane %v2175, 4
    %v2178 = vor.u32 %v2177, %v2173
    %v2179 = vrot.slane %v2178, 4
    %v2181 = vshll.u32 %v1476, 16
    %v2183 = vrot.slane %v2181, 5
    %v2184 = vsel %vm1488, %v2179, %v2183
    %v2186 = vshrl.u32 %v1477, 16
    %v2188 = vrot.slane %v2186, 4
    %v2189 = vshll.u32 %v1477, 16
    %v2191 = vrot.slane %v2189, 5
    %v2192 = vor.u32 %v2188, %v2191
    %v2193 = vrot.slane %v2192, 4
    %v2195 = vshll.u32 %v1478, 16
    %v2197 = vrot.slane %v2195, 5
    %v2198 = vsel %vm1488, %v2193, %v2197
    %v2199 = vshrl.u32 %v1478, 16
    %v2201 = vrot.slane %v2199, 4
    %v2202 = vor.u32 %v2201, %v2197
    %v2203 = vrot.slane %v2202, 4
    %v2205 = vshll.u32 %v1479, 16
    %v2207 = vrot.slane %v2205, 5
    %v2208 = vsel %vm1488, %v2203, %v2207
    %v2210 = vshrl.u32 %v1480, 16
    %v2212 = vrot.slane %v2210, 4
    %v2213 = vshll.u32 %v1480, 16
    %v2215 = vrot.slane %v2213, 5
    %v2216 = vor.u32 %v2212, %v2215
    %v2217 = vrot.slane %v2216, 4
    %v2219 = vshll.u32 %v1481, 16
    %v2221 = vrot.slane %v2219, 5
    %v2222 = vsel %vm1488, %v2217, %v2221
    %v2223 = vshrl.u32 %v1481, 16
    %v2225 = vrot.slane %v2223, 4
    %v2226 = vor.u32 %v2225, %v2221
    %v2227 = vrot.slane %v2226, 4
    %v2229 = vshll.u32 %v1482, 16
    %v2231 = vrot.slane %v2229, 5
    %v2232 = vsel %vm1488, %v2227, %v2231
    %v2234 = vshrl.u32 %v1483, 16
    %v2236 = vrot.slane %v2234, 4
    %v2237 = vshll.u32 %v1483, 16
    %v2239 = vrot.slane %v2237, 5
    %v2240 = vor.u32 %v2236, %v2239
    %v2241 = vrot.slane %v2240, 4
    %v2243 = vshll.u32 %v1484, 16
    %v2245 = vrot.slane %v2243, 5
    %v2246 = vsel %vm1488, %v2241, %v2245
    %v2247 = vshrl.u32 %v1484, 16
    %v2249 = vrot.slane %v2247, 4
    %v2250 = vor.u32 %v2249, %v2245
    %v2251 = vrot.slane %v2250, 4
    %v2253 = vshll.u32 %v1485, 16
    %v2255 = vrot.slane %v2253, 5
    %v2256 = vsel %vm1488, %v2251, %v2255
    %2321 = vst [vmem:[#allocation3 + $0x4] sm:$0xf] %v1502
    %2322 = vst [vmem:[#allocation3 + $0x28] sm:$0xf] %v1512
    %2323 = vst [vmem:[#allocation3 + $0x4c] sm:$0xf] %v1526
    %2324 = vst [vmem:[#allocation3 + $0x70] sm:$0xf] %v1536
    %2325 = vst [vmem:[#allocation3 + $0x94] sm:$0xf] %v1550
    %2326 = vst [vmem:[#allocation3 + $0xb8] sm:$0xf] %v1560
    %2327 = vst [vmem:[#allocation3 + $0xdc] sm:$0xf] %v1574
    %2328 = vst [vmem:[#allocation3 + $0x100] sm:$0xf] %v1584
    %2329 = vst [vmem:[#allocation3 + $0x124] sm:$0xf] %v1598
    %2330 = vst [vmem:[#allocation3 + $0x148] sm:$0xf] %v1608
    %2331 = vst [vmem:[#allocation3 + $0x16c] sm:$0xf] %v1622
    %2332 = vst [vmem:[#allocation3 + $0x190] sm:$0xf] %v1632
    %2333 = vst [vmem:[#allocation3 + $0x1b4] sm:$0xf] %v1646
    %2334 = vst [vmem:[#allocation3 + $0x1d8] sm:$0xf] %v1656
    %2335 = vst [vmem:[#allocation3 + $0x1fc] sm:$0xf] %v1670
    %2336 = vst [vmem:[#allocation3 + $0x220] sm:$0xf] %v1680
    %2337 = vst [vmem:[#allocation3 + $0x244] sm:$0xf] %v1694
    %2338 = vst [vmem:[#allocation3 + $0x268] sm:$0xf] %v1704
    %2339 = vst [vmem:[#allocation3 + $0x28c] sm:$0xf] %v1718
    %2340 = vst [vmem:[#allocation3 + $0x2b0] sm:$0xf] %v1728
    %2341 = vst [vmem:[#allocation3 + $0x2d4] sm:$0xf] %v1742
    %2342 = vst [vmem:[#allocation3 + $0x2f8] sm:$0xf] %v1752
    %2343 = vst [vmem:[#allocation3 + $0x31c] sm:$0xf] %v1766
    %2344 = vst [vmem:[#allocation3 + $0x340] sm:$0xf] %v1776
    %2345 = vst [vmem:[#allocation3 + $0x364] sm:$0xf] %v1790
    %2346 = vst [vmem:[#allocation3 + $0x388] sm:$0xf] %v1800
    %2347 = vst [vmem:[#allocation3 + $0x3ac] sm:$0xf] %v1814
    %2348 = vst [vmem:[#allocation3 + $0x3d0] sm:$0xf] %v1824
    %2349 = vst [vmem:[#allocation3 + $0x3f4] sm:$0xf] %v1838
    %2350 = vst [vmem:[#allocation3 + $0x418] sm:$0xf] %v1848
    %2351 = vst [vmem:[#allocation3 + $0x43c] sm:$0xf] %v1862
    %2352 = vst [vmem:[#allocation3 + $0x460] sm:$0xf] %v1872
    %2353 = vst [vmem:[#allocation3 + $0x484] sm:$0xf] %v1886
    %2354 = vst [vmem:[#allocation3 + $0x4a8] sm:$0xf] %v1896
    %2355 = vst [vmem:[#allocation3 + $0x4cc] sm:$0xf] %v1910
    %2356 = vst [vmem:[#allocation3 + $0x4f0] sm:$0xf] %v1920
    %2357 = vst [vmem:[#allocation3 + $0x514] sm:$0xf] %v1934
    %2358 = vst [vmem:[#allocation3 + $0x538] sm:$0xf] %v1944
    %2359 = vst [vmem:[#allocation3 + $0x55c] sm:$0xf] %v1958
    %2360 = vst [vmem:[#allocation3 + $0x580] sm:$0xf] %v1968
    %2361 = vst [vmem:[#allocation3 + $0x5a4] sm:$0xf] %v1982
    %2362 = vst [vmem:[#allocation3 + $0x5c8] sm:$0xf] %v1992
    %2363 = vst [vmem:[#allocation3 + $0x5ec] sm:$0xf] %v2006
    %2364 = vst [vmem:[#allocation3 + $0x610] sm:$0xf] %v2016
    %2365 = vst [vmem:[#allocation3 + $0x634] sm:$0xf] %v2030
    %2366 = vst [vmem:[#allocation3 + $0x658] sm:$0xf] %v2040
    %2367 = vst [vmem:[#allocation3 + $0x67c] sm:$0xf] %v2054
    %2368 = vst [vmem:[#allocation3 + $0x6a0] sm:$0xf] %v2064
    %2369 = vst [vmem:[#allocation3 + $0x6c4] sm:$0xf] %v2078
    %2370 = vst [vmem:[#allocation3 + $0x6e8] sm:$0xf] %v2088
    %2371 = vst [vmem:[#allocation3 + $0x70c] sm:$0xf] %v2102
    %2372 = vst [vmem:[#allocation3 + $0x730] sm:$0xf] %v2112
    %2373 = vst [vmem:[#allocation3 + $0x754] sm:$0xf] %v2126
    %2374 = vst [vmem:[#allocation3 + $0x778] sm:$0xf] %v2136
    %2375 = vst [vmem:[#allocation3 + $0x79c] sm:$0xf] %v2150
    %2376 = vst [vmem:[#allocation3 + $0x7c0] sm:$0xf] %v2160
    %2377 = vst [vmem:[#allocation3 + $0x7e4] sm:$0xf] %v2174
    %2378 = vst [vmem:[#allocation3 + $0x808] sm:$0xf] %v2184
    %2379 = vst [vmem:[#allocation3 + $0x82c] sm:$0xf] %v2198
    %2380 = vst [vmem:[#allocation3 + $0x850] sm:$0xf] %v2208
    %2381 = vst [vmem:[#allocation3 + $0x874] sm:$0xf] %v2222
    %2382 = vst [vmem:[#allocation3 + $0x898] sm:$0xf] %v2232
    %2383 = vst [vmem:[#allocation3 + $0x8bc] sm:$0xf] %v2246
    %2384 = vst [vmem:[#allocation3 + $0x8e0] sm:$0xf] %v2256
    %v2385 = vld [vmem:[#allocation2] sm:$0xe]
    %v2386 = vld [vmem:[#allocation2 + $0x4] sm:$0xf]
    %v2387 = vld [vmem:[#allocation2 + $0x8] sm:$0x1]
    %v2388 = vld [vmem:[#allocation2 + $0xc] sm:$0xe]
    %v2389 = vld [vmem:[#allocation2 + $0x10] sm:$0xf]
    %v2390 = vld [vmem:[#allocation2 + $0x14] sm:$0x1]
    %v2391 = vld [vmem:[#allocation2 + $0x18] sm:$0xe]
    %v2392 = vld [vmem:[#allocation2 + $0x1c] sm:$0xf]
    %v2393 = vld [vmem:[#allocation2 + $0x20] sm:$0x1]
    %v2394 = vld [vmem:[#allocation2 + $0x24] sm:$0xe]
    %v2395 = vld [vmem:[#allocation2 + $0x28] sm:$0xf]
    %v2396 = vld [vmem:[#allocation2 + $0x2c] sm:$0x1]
    %v2397 = vld [vmem:[#allocation2 + $0x30] sm:$0xe]
    %v2398 = vld [vmem:[#allocation2 + $0x34] sm:$0xf]
    %v2399 = vld [vmem:[#allocation2 + $0x38] sm:$0x1]
    %v2400 = vld [vmem:[#allocation2 + $0x3c] sm:$0xe]
    %v2401 = vld [vmem:[#allocation2 + $0x40] sm:$0xf]
    %v2402 = vld [vmem:[#allocation2 + $0x44] sm:$0x1]
    %v2403 = vld [vmem:[#allocation2 + $0x48] sm:$0xe]
    %v2404 = vld [vmem:[#allocation2 + $0x4c] sm:$0xf]
    %v2405 = vld [vmem:[#allocation2 + $0x50] sm:$0x1]
    %v2406 = vld [vmem:[#allocation2 + $0x54] sm:$0xe]
    %v2407 = vld [vmem:[#allocation2 + $0x58] sm:$0xf]
    %v2408 = vld [vmem:[#allocation2 + $0x5c] sm:$0x1]
    %v2409 = vld [vmem:[#allocation2 + $0x60] sm:$0xe]
    %v2410 = vld [vmem:[#allocation2 + $0x64] sm:$0xf]
    %v2411 = vld [vmem:[#allocation2 + $0x68] sm:$0x1]
    %v2412 = vld [vmem:[#allocation2 + $0x6c] sm:$0xe]
    %v2413 = vld [vmem:[#allocation2 + $0x70] sm:$0xf]
    %v2414 = vld [vmem:[#allocation2 + $0x74] sm:$0x1]
    %v2415 = vld [vmem:[#allocation2 + $0x78] sm:$0xe]
    %v2416 = vld [vmem:[#allocation2 + $0x7c] sm:$0xf]
    %v2417 = vld [vmem:[#allocation2 + $0x80] sm:$0x1]
    %v2418 = vld [vmem:[#allocation2 + $0x84] sm:$0xe]
    %v2419 = vld [vmem:[#allocation2 + $0x88] sm:$0xf]
    %v2420 = vld [vmem:[#allocation2 + $0x8c] sm:$0x1]
    %v2421 = vld [vmem:[#allocation2 + $0x90] sm:$0xe]
    %v2422 = vld [vmem:[#allocation2 + $0x94] sm:$0xf]
    %v2423 = vld [vmem:[#allocation2 + $0x98] sm:$0x1]
    %v2424 = vld [vmem:[#allocation2 + $0x9c] sm:$0xe]
    %v2425 = vld [vmem:[#allocation2 + $0xa0] sm:$0xf]
    %v2426 = vld [vmem:[#allocation2 + $0xa4] sm:$0x1]
    %v2427 = vld [vmem:[#allocation2 + $0xa8] sm:$0xe]
    %v2428 = vld [vmem:[#allocation2 + $0xac] sm:$0xf]
    %v2429 = vld [vmem:[#allocation2 + $0xb0] sm:$0x1]
    %v2430 = vld [vmem:[#allocation2 + $0xb4] sm:$0xe]
    %v2431 = vld [vmem:[#allocation2 + $0xb8] sm:$0xf]
    %v2432 = vld [vmem:[#allocation2 + $0xbc] sm:$0x1]
    %v2433 = vld [vmem:[#allocation2 + $0xd8] sm:$0xe]
    %v2434 = vld [vmem:[#allocation2 + $0xdc] sm:$0xf]
    %v2435 = vld [vmem:[#allocation2 + $0xe0] sm:$0x1]
    %v2436 = vld [vmem:[#allocation2 + $0xe4] sm:$0xe]
    %v2437 = vld [vmem:[#allocation2 + $0xe8] sm:$0xf]
    %v2438 = vld [vmem:[#allocation2 + $0xec] sm:$0x1]
    %v2439 = vld [vmem:[#allocation2 + $0xf0] sm:$0xe]
    %v2440 = vld [vmem:[#allocation2 + $0xf4] sm:$0xf]
    %v2441 = vld [vmem:[#allocation2 + $0xf8] sm:$0x1]
    %v2442 = vld [vmem:[#allocation2 + $0xfc] sm:$0xe]
    %v2443 = vld [vmem:[#allocation2 + $0x100] sm:$0xf]
    %v2444 = vld [vmem:[#allocation2 + $0x104] sm:$0x1]
    %v2445 = vld [vmem:[#allocation2 + $0x108] sm:$0xe]
    %v2446 = vld [vmem:[#allocation2 + $0x10c] sm:$0xf]
    %v2447 = vld [vmem:[#allocation2 + $0x110] sm:$0x1]
    %v2448 = vld [vmem:[#allocation2 + $0x114] sm:$0xe]
    %v2449 = vld [vmem:[#allocation2 + $0x118] sm:$0xf]
    %v2450 = vld [vmem:[#allocation2 + $0x11c] sm:$0x1]
    %v2451 = vld [vmem:[#allocation2 + $0x120] sm:$0xe]
    %v2452 = vld [vmem:[#allocation2 + $0x124] sm:$0xf]
    %v2453 = vld [vmem:[#allocation2 + $0x128] sm:$0x1]
    %v2454 = vld [vmem:[#allocation2 + $0x12c] sm:$0xe]
    %v2455 = vld [vmem:[#allocation2 + $0x130] sm:$0xf]
    %v2456 = vld [vmem:[#allocation2 + $0x134] sm:$0x1]
    %v2457 = vld [vmem:[#allocation2 + $0x138] sm:$0xe]
    %v2458 = vld [vmem:[#allocation2 + $0x13c] sm:$0xf]
    %v2459 = vld [vmem:[#allocation2 + $0x140] sm:$0x1]
    %v2460 = vld [vmem:[#allocation2 + $0x144] sm:$0xe]
    %v2461 = vld [vmem:[#allocation2 + $0x148] sm:$0xf]
    %v2462 = vld [vmem:[#allocation2 + $0x14c] sm:$0x1]
    %v2463 = vld [vmem:[#allocation2 + $0x150] sm:$0xe]
    %v2464 = vld [vmem:[#allocation2 + $0x154] sm:$0xf]
    %v2465 = vld [vmem:[#allocation2 + $0x158] sm:$0x1]
    %v2466 = vld [vmem:[#allocation2 + $0x15c] sm:$0xe]
    %v2467 = vld [vmem:[#allocation2 + $0x160] sm:$0xf]
    %v2468 = vld [vmem:[#allocation2 + $0x164] sm:$0x1]
    %v2469 = vld [vmem:[#allocation2 + $0x168] sm:$0xe]
    %v2470 = vld [vmem:[#allocation2 + $0x16c] sm:$0xf]
    %v2471 = vld [vmem:[#allocation2 + $0x170] sm:$0x1]
    %v2472 = vld [vmem:[#allocation2 + $0x174] sm:$0xe]
    %v2473 = vld [vmem:[#allocation2 + $0x178] sm:$0xf]
    %v2474 = vld [vmem:[#allocation2 + $0x17c] sm:$0x1]
    %v2475 = vld [vmem:[#allocation2 + $0x180] sm:$0xe]
    %v2476 = vld [vmem:[#allocation2 + $0x184] sm:$0xf]
    %v2477 = vld [vmem:[#allocation2 + $0x188] sm:$0x1]
    %v2478 = vld [vmem:[#allocation2 + $0x18c] sm:$0xe]
    %v2479 = vld [vmem:[#allocation2 + $0x190] sm:$0xf]
    %v2480 = vld [vmem:[#allocation2 + $0x194] sm:$0x1]
    %vm2577 = vcmask 1042432
    %vm2578 = vcmask 1046532
    %vm2579 = vmor %vm2577, %vm2578
    %v2580 = vrot.slane %v2385, 5
    %v2581 = vrot.slane %v2580, 4
    %v2582 = vrot.slane %v2386, 5
    %v2583 = vsel %vm2579, %v2581, %v2582
    %v2584 = vrot.slane %v2582, 4
    %v2585 = vrot.slane %v2387, 5
    %v2586 = vsel %vm2579, %v2584, %v2585
    %v2587 = vrot.slane %v2388, 5
    %v2588 = vrot.slane %v2587, 4
    %v2589 = vrot.slane %v2389, 5
    %v2590 = vsel %vm2579, %v2588, %v2589
    %v2591 = vrot.slane %v2589, 4
    %v2592 = vrot.slane %v2390, 5
    %v2593 = vsel %vm2579, %v2591, %v2592
    %v2594 = vrot.slane %v2391, 5
    %v2595 = vrot.slane %v2594, 4
    %v2596 = vrot.slane %v2392, 5
    %v2597 = vsel %vm2579, %v2595, %v2596
    %v2598 = vrot.slane %v2596, 4
    %v2599 = vrot.slane %v2393, 5
    %v2600 = vsel %vm2579, %v2598, %v2599
    %v2601 = vrot.slane %v2394, 5
    %v2602 = vrot.slane %v2601, 4
    %v2603 = vrot.slane %v2395, 5
    %v2604 = vsel %vm2579, %v2602, %v2603
    %v2605 = vrot.slane %v2603, 4
    %v2606 = vrot.slane %v2396, 5
    %v2607 = vsel %vm2579, %v2605, %v2606
    %v2608 = vrot.slane %v2397, 5
    %v2609 = vrot.slane %v2608, 4
    %v2610 = vrot.slane %v2398, 5
    %v2611 = vsel %vm2579, %v2609, %v2610
    %v2612 = vrot.slane %v2610, 4
    %v2613 = vrot.slane %v2399, 5
    %v2614 = vsel %vm2579, %v2612, %v2613
    %v2615 = vrot.slane %v2400, 5
    %v2616 = vrot.slane %v2615, 4
    %v2617 = vrot.slane %v2401, 5
    %v2618 = vsel %vm2579, %v2616, %v2617
    %v2619 = vrot.slane %v2617, 4
    %v2620 = vrot.slane %v2402, 5
    %v2621 = vsel %vm2579, %v2619, %v2620
    %v2622 = vrot.slane %v2403, 5
    %v2623 = vrot.slane %v2622, 4
    %v2624 = vrot.slane %v2404, 5
    %v2625 = vsel %vm2579, %v2623, %v2624
    %v2626 = vrot.slane %v2624, 4
    %v2627 = vrot.slane %v2405, 5
    %v2628 = vsel %vm2579, %v2626, %v2627
    %v2629 = vrot.slane %v2406, 5
    %v2630 = vrot.slane %v2629, 4
    %v2631 = vrot.slane %v2407, 5
    %v2632 = vsel %vm2579, %v2630, %v2631
    %v2633 = vrot.slane %v2631, 4
    %v2634 = vrot.slane %v2408, 5
    %v2635 = vsel %vm2579, %v2633, %v2634
    %v2636 = vrot.slane %v2409, 5
    %v2637 = vrot.slane %v2636, 4
    %v2638 = vrot.slane %v2410, 5
    %v2639 = vsel %vm2579, %v2637, %v2638
    %v2640 = vrot.slane %v2638, 4
    %v2641 = vrot.slane %v2411, 5
    %v2642 = vsel %vm2579, %v2640, %v2641
    %v2643 = vrot.slane %v2412, 5
    %v2644 = vrot.slane %v2643, 4
    %v2645 = vrot.slane %v2413, 5
    %v2646 = vsel %vm2579, %v2644, %v2645
    %v2647 = vrot.slane %v2645, 4
    %v2648 = vrot.slane %v2414, 5
    %v2649 = vsel %vm2579, %v2647, %v2648
    %v2650 = vrot.slane %v2415, 5
    %v2651 = vrot.slane %v2650, 4
    %v2652 = vrot.slane %v2416, 5
    %v2653 = vsel %vm2579, %v2651, %v2652
    %v2654 = vrot.slane %v2652, 4
    %v2655 = vrot.slane %v2417, 5
    %v2656 = vsel %vm2579, %v2654, %v2655
    %v2657 = vrot.slane %v2418, 5
    %v2658 = vrot.slane %v2657, 4
    %v2659 = vrot.slane %v2419, 5
    %v2660 = vsel %vm2579, %v2658, %v2659
    %v2661 = vrot.slane %v2659, 4
    %v2662 = vrot.slane %v2420, 5
    %v2663 = vsel %vm2579, %v2661, %v2662
    %v2664 = vrot.slane %v2421, 5
    %v2665 = vrot.slane %v2664, 4
    %v2666 = vrot.slane %v2422, 5
    %v2667 = vsel %vm2579, %v2665, %v2666
    %v2668 = vrot.slane %v2666, 4
    %v2669 = vrot.slane %v2423, 5
    %v2670 = vsel %vm2579, %v2668, %v2669
    %v2671 = vrot.slane %v2424, 5
    %v2672 = vrot.slane %v2671, 4
    %v2673 = vrot.slane %v2425, 5
    %v2674 = vsel %vm2579, %v2672, %v2673
    %v2675 = vrot.slane %v2673, 4
    %v2676 = vrot.slane %v2426, 5
    %v2677 = vsel %vm2579, %v2675, %v2676
    %v2678 = vrot.slane %v2427, 5
    %v2679 = vrot.slane %v2678, 4
    %v2680 = vrot.slane %v2428, 5
    %v2681 = vsel %vm2579, %v2679, %v2680
    %v2682 = vrot.slane %v2680, 4
    %v2683 = vrot.slane %v2429, 5
    %v2684 = vsel %vm2579, %v2682, %v2683
    %v2685 = vrot.slane %v2430, 5
    %v2686 = vrot.slane %v2685, 4
    %v2687 = vrot.slane %v2431, 5
    %v2688 = vsel %vm2579, %v2686, %v2687
    %v2689 = vrot.slane %v2687, 4
    %v2690 = vrot.slane %v2432, 5
    %v2691 = vsel %vm2579, %v2689, %v2690
    %v2692 = vrot.slane %v2433, 5
    %v2693 = vrot.slane %v2692, 4
    %v2694 = vrot.slane %v2434, 5
    %v2695 = vsel %vm2579, %v2693, %v2694
    %v2696 = vrot.slane %v2694, 4
    %v2697 = vrot.slane %v2435, 5
    %v2698 = vsel %vm2579, %v2696, %v2697
    %v2699 = vrot.slane %v2436, 5
    %v2700 = vrot.slane %v2699, 4
    %v2701 = vrot.slane %v2437, 5
    %v2702 = vsel %vm2579, %v2700, %v2701
    %v2703 = vrot.slane %v2701, 4
    %v2704 = vrot.slane %v2438, 5
    %v2705 = vsel %vm2579, %v2703, %v2704
    %v2706 = vrot.slane %v2439, 5
    %v2707 = vrot.slane %v2706, 4
    %v2708 = vrot.slane %v2440, 5
    %v2709 = vsel %vm2579, %v2707, %v2708
    %v2710 = vrot.slane %v2708, 4
    %v2711 = vrot.slane %v2441, 5
    %v2712 = vsel %vm2579, %v2710, %v2711
    %v2713 = vrot.slane %v2442, 5
    %v2714 = vrot.slane %v2713, 4
    %v2715 = vrot.slane %v2443, 5
    %v2716 = vsel %vm2579, %v2714, %v2715
    %v2717 = vrot.slane %v2715, 4
    %v2718 = vrot.slane %v2444, 5
    %v2719 = vsel %vm2579, %v2717, %v2718
    %v2720 = vrot.slane %v2445, 5
    %v2721 = vrot.slane %v2720, 4
    %v2722 = vrot.slane %v2446, 5
    %v2723 = vsel %vm2579, %v2721, %v2722
    %v2724 = vrot.slane %v2722, 4
    %v2725 = vrot.slane %v2447, 5
    %v2726 = vsel %vm2579, %v2724, %v2725
    %v2727 = vrot.slane %v2448, 5
    %v2728 = vrot.slane %v2727, 4
    %v2729 = vrot.slane %v2449, 5
    %v2730 = vsel %vm2579, %v2728, %v2729
    %v2731 = vrot.slane %v2729, 4
    %v2732 = vrot.slane %v2450, 5
    %v2733 = vsel %vm2579, %v2731, %v2732
    %v2734 = vrot.slane %v2451, 5
    %v2735 = vrot.slane %v2734, 4
    %v2736 = vrot.slane %v2452, 5
    %v2737 = vsel %vm2579, %v2735, %v2736
    %v2738 = vrot.slane %v2736, 4
    %v2739 = vrot.slane %v2453, 5
    %v2740 = vsel %vm2579, %v2738, %v2739
    %v2741 = vrot.slane %v2454, 5
    %v2742 = vrot.slane %v2741, 4
    %v2743 = vrot.slane %v2455, 5
    %v2744 = vsel %vm2579, %v2742, %v2743
    %v2745 = vrot.slane %v2743, 4
    %v2746 = vrot.slane %v2456, 5
    %v2747 = vsel %vm2579, %v2745, %v2746
    %v2748 = vrot.slane %v2457, 5
    %v2749 = vrot.slane %v2748, 4
    %v2750 = vrot.slane %v2458, 5
    %v2751 = vsel %vm2579, %v2749, %v2750
    %v2752 = vrot.slane %v2750, 4
    %v2753 = vrot.slane %v2459, 5
    %v2754 = vsel %vm2579, %v2752, %v2753
    %v2755 = vrot.slane %v2460, 5
    %v2756 = vrot.slane %v2755, 4
    %v2757 = vrot.slane %v2461, 5
    %v2758 = vsel %vm2579, %v2756, %v2757
    %v2759 = vrot.slane %v2757, 4
    %v2760 = vrot.slane %v2462, 5
    %v2761 = vsel %vm2579, %v2759, %v2760
    %v2762 = vrot.slane %v2463, 5
    %v2763 = vrot.slane %v2762, 4
    %v2764 = vrot.slane %v2464, 5
    %v2765 = vsel %vm2579, %v2763, %v2764
    %v2766 = vrot.slane %v2764, 4
    %v2767 = vrot.slane %v2465, 5
    %v2768 = vsel %vm2579, %v2766, %v2767
    %v2769 = vrot.slane %v2466, 5
    %v2770 = vrot.slane %v2769, 4
    %v2771 = vrot.slane %v2467, 5
    %v2772 = vsel %vm2579, %v2770, %v2771
    %v2773 = vrot.slane %v2771, 4
    %v2774 = vrot.slane %v2468, 5
    %v2775 = vsel %vm2579, %v2773, %v2774
    %v2776 = vrot.slane %v2469, 5
    %v2777 = vrot.slane %v2776, 4
    %v2778 = vrot.slane %v2470, 5
    %v2779 = vsel %vm2579, %v2777, %v2778
    %v2780 = vrot.slane %v2778, 4
    %v2781 = vrot.slane %v2471, 5
    %v2782 = vsel %vm2579, %v2780, %v2781
    %v2783 = vrot.slane %v2472, 5
    %v2784 = vrot.slane %v2783, 4
    %v2785 = vrot.slane %v2473, 5
    %v2786 = vsel %vm2579, %v2784, %v2785
    %v2787 = vrot.slane %v2785, 4
    %v2788 = vrot.slane %v2474, 5
    %v2789 = vsel %vm2579, %v2787, %v2788
    %v2790 = vrot.slane %v2475, 5
    %v2791 = vrot.slane %v2790, 4
    %v2792 = vrot.slane %v2476, 5
    %v2793 = vsel %vm2579, %v2791, %v2792
    %v2794 = vrot.slane %v2792, 4
    %v2795 = vrot.slane %v2477, 5
    %v2796 = vsel %vm2579, %v2794, %v2795
    %v2797 = vrot.slane %v2478, 5
    %v2798 = vrot.slane %v2797, 4
    %v2799 = vrot.slane %v2479, 5
    %v2800 = vsel %vm2579, %v2798, %v2799
    %v2801 = vrot.slane %v2799, 4
    %v2802 = vrot.slane %v2480, 5
    %v2803 = vsel %vm2579, %v2801, %v2802
    %2868 = vst [vmem:[#allocation3 + $0x8] sm:$0xf] %v2583
    %2869 = vst [vmem:[#allocation3 + $0x2c] sm:$0xf] %v2586
    %2870 = vst [vmem:[#allocation3 + $0x50] sm:$0xf] %v2590
    %2871 = vst [vmem:[#allocation3 + $0x74] sm:$0xf] %v2593
    %2872 = vst [vmem:[#allocation3 + $0x98] sm:$0xf] %v2597
    %2873 = vst [vmem:[#allocation3 + $0xbc] sm:$0xf] %v2600
    %2874 = vst [vmem:[#allocation3 + $0xe0] sm:$0xf] %v2604
    %2875 = vst [vmem:[#allocation3 + $0x104] sm:$0xf] %v2607
    %2876 = vst [vmem:[#allocation3 + $0x128] sm:$0xf] %v2611
    %2877 = vst [vmem:[#allocation3 + $0x14c] sm:$0xf] %v2614
    %2878 = vst [vmem:[#allocation3 + $0x170] sm:$0xf] %v2618
    %2879 = vst [vmem:[#allocation3 + $0x194] sm:$0xf] %v2621
    %2880 = vst [vmem:[#allocation3 + $0x1b8] sm:$0xf] %v2625
    %2881 = vst [vmem:[#allocation3 + $0x1dc] sm:$0xf] %v2628
    %2882 = vst [vmem:[#allocation3 + $0x200] sm:$0xf] %v2632
    %2883 = vst [vmem:[#allocation3 + $0x224] sm:$0xf] %v2635
    %2884 = vst [vmem:[#allocation3 + $0x248] sm:$0xf] %v2639
    %2885 = vst [vmem:[#allocation3 + $0x26c] sm:$0xf] %v2642
    %2886 = vst [vmem:[#allocation3 + $0x290] sm:$0xf] %v2646
    %2887 = vst [vmem:[#allocation3 + $0x2b4] sm:$0xf] %v2649
    %2888 = vst [vmem:[#allocation3 + $0x2d8] sm:$0xf] %v2653
    %2889 = vst [vmem:[#allocation3 + $0x2fc] sm:$0xf] %v2656
    %2890 = vst [vmem:[#allocation3 + $0x320] sm:$0xf] %v2660
    %2891 = vst [vmem:[#allocation3 + $0x344] sm:$0xf] %v2663
    %2892 = vst [vmem:[#allocation3 + $0x368] sm:$0xf] %v2667
    %2893 = vst [vmem:[#allocation3 + $0x38c] sm:$0xf] %v2670
    %2894 = vst [vmem:[#allocation3 + $0x3b0] sm:$0xf] %v2674
    %2895 = vst [vmem:[#allocation3 + $0x3d4] sm:$0xf] %v2677
    %2896 = vst [vmem:[#allocation3 + $0x3f8] sm:$0xf] %v2681
    %2897 = vst [vmem:[#allocation3 + $0x41c] sm:$0xf] %v2684
    %2898 = vst [vmem:[#allocation3 + $0x440] sm:$0xf] %v2688
    %2899 = vst [vmem:[#allocation3 + $0x464] sm:$0xf] %v2691
    %2900 = vst [vmem:[#allocation3 + $0x488] sm:$0xf] %v2695
    %2901 = vst [vmem:[#allocation3 + $0x4ac] sm:$0xf] %v2698
    %2902 = vst [vmem:[#allocation3 + $0x4d0] sm:$0xf] %v2702
    %2903 = vst [vmem:[#allocation3 + $0x4f4] sm:$0xf] %v2705
    %2904 = vst [vmem:[#allocation3 + $0x518] sm:$0xf] %v2709
    %2905 = vst [vmem:[#allocation3 + $0x53c] sm:$0xf] %v2712
    %2906 = vst [vmem:[#allocation3 + $0x560] sm:$0xf] %v2716
    %2907 = vst [vmem:[#allocation3 + $0x584] sm:$0xf] %v2719
    %2908 = vst [vmem:[#allocation3 + $0x5a8] sm:$0xf] %v2723
    %2909 = vst [vmem:[#allocation3 + $0x5cc] sm:$0xf] %v2726
    %2910 = vst [vmem:[#allocation3 + $0x5f0] sm:$0xf] %v2730
    %2911 = vst [vmem:[#allocation3 + $0x614] sm:$0xf] %v2733
    %2912 = vst [vmem:[#allocation3 + $0x638] sm:$0xf] %v2737
    %2913 = vst [vmem:[#allocation3 + $0x65c] sm:$0xf] %v2740
    %2914 = vst [vmem:[#allocation3 + $0x680] sm:$0xf] %v2744
    %2915 = vst [vmem:[#allocation3 + $0x6a4] sm:$0xf] %v2747
    %2916 = vst [vmem:[#allocation3 + $0x6c8] sm:$0xf] %v2751
    %2917 = vst [vmem:[#allocation3 + $0x6ec] sm:$0xf] %v2754
    %2918 = vst [vmem:[#allocation3 + $0x710] sm:$0xf] %v2758
    %2919 = vst [vmem:[#allocation3 + $0x734] sm:$0xf] %v2761
    %2920 = vst [vmem:[#allocation3 + $0x758] sm:$0xf] %v2765
    %2921 = vst [vmem:[#allocation3 + $0x77c] sm:$0xf] %v2768
    %2922 = vst [vmem:[#allocation3 + $0x7a0] sm:$0xf] %v2772
    %2923 = vst [vmem:[#allocation3 + $0x7c4] sm:$0xf] %v2775
    %2924 = vst [vmem:[#allocation3 + $0x7e8] sm:$0xf] %v2779
    %2925 = vst [vmem:[#allocation3 + $0x80c] sm:$0xf] %v2782
    %2926 = vst [vmem:[#allocation3 + $0x830] sm:$0xf] %v2786
    %2927 = vst [vmem:[#allocation3 + $0x854] sm:$0xf] %v2789
    %2928 = vst [vmem:[#allocation3 + $0x878] sm:$0xf] %v2793
    %2929 = vst [vmem:[#allocation3 + $0x89c] sm:$0xf] %v2796
    %2930 = vst [vmem:[#allocation3 + $0x8c0] sm:$0xf] %v2800
    %2931 = vst [vmem:[#allocation3 + $0x8e4] sm:$0xf] %v2803
    %v2932 = vld [vmem:[%s1031] sm:$0xf]
    %v2933 = vld [vmem:[%s1031 + $0x4] sm:$0xf]
    %v2934 = vld [vmem:[%s1031 + $0xc] sm:$0xf]
    %v2935 = vld [vmem:[%s1031 + $0x10] sm:$0xf]
    %v2936 = vld [vmem:[%s1031 + $0x18] sm:$0xf]
    %v2937 = vld [vmem:[%s1031 + $0x1c] sm:$0xf]
    %v2938 = vld [vmem:[%s1031 + $0x24] sm:$0xf]
    %v2939 = vld [vmem:[%s1031 + $0x28] sm:$0xf]
    %v2940 = vld [vmem:[%s1031 + $0x30] sm:$0xf]
    %v2941 = vld [vmem:[%s1031 + $0x34] sm:$0xf]
    %v2942 = vld [vmem:[%s1031 + $0x3c] sm:$0xf]
    %v2943 = vld [vmem:[%s1031 + $0x40] sm:$0xf]
    %v2944 = vld [vmem:[%s1031 + $0x48] sm:$0xf]
    %v2945 = vld [vmem:[%s1031 + $0x4c] sm:$0xf]
    %v2946 = vld [vmem:[%s1031 + $0x54] sm:$0xf]
    %v2947 = vld [vmem:[%s1031 + $0x58] sm:$0xf]
    %v2948 = vld [vmem:[%s1031 + $0x60] sm:$0xf]
    %v2949 = vld [vmem:[%s1031 + $0x64] sm:$0xf]
    %v2950 = vld [vmem:[%s1031 + $0x6c] sm:$0xf]
    %v2951 = vld [vmem:[%s1031 + $0x70] sm:$0xf]
    %v2952 = vld [vmem:[%s1031 + $0x78] sm:$0xf]
    %v2953 = vld [vmem:[%s1031 + $0x7c] sm:$0xf]
    %v2954 = vld [vmem:[%s1031 + $0x84] sm:$0xf]
    %v2955 = vld [vmem:[%s1031 + $0x88] sm:$0xf]
    %v2956 = vld [vmem:[%s1031 + $0x90] sm:$0xf]
    %v2957 = vld [vmem:[%s1031 + $0x94] sm:$0xf]
    %v2958 = vld [vmem:[%s1031 + $0x9c] sm:$0xf]
    %v2959 = vld [vmem:[%s1031 + $0xa0] sm:$0xf]
    %v2960 = vld [vmem:[%s1031 + $0xa8] sm:$0xf]
    %v2961 = vld [vmem:[%s1031 + $0xac] sm:$0xf]
    %v2962 = vld [vmem:[%s1031 + $0xb4] sm:$0xf]
    %v2963 = vld [vmem:[%s1031 + $0xb8] sm:$0xf]
    %v2964 = vld [vmem:[%s1031 + $0xd8] sm:$0xf]
    %v2965 = vld [vmem:[%s1031 + $0xdc] sm:$0xf]
    %v2966 = vld [vmem:[%s1031 + $0xe4] sm:$0xf]
    %v2967 = vld [vmem:[%s1031 + $0xe8] sm:$0xf]
    %v2968 = vld [vmem:[%s1031 + $0xf0] sm:$0xf]
    %v2969 = vld [vmem:[%s1031 + $0xf4] sm:$0xf]
    %v2970 = vld [vmem:[%s1031 + $0xfc] sm:$0xf]
    %v2971 = vld [vmem:[%s1031 + $0x100] sm:$0xf]
    %v2972 = vld [vmem:[%s1031 + $0x108] sm:$0xf]
    %v2973 = vld [vmem:[%s1031 + $0x10c] sm:$0xf]
    %v2974 = vld [vmem:[%s1031 + $0x114] sm:$0xf]
    %v2975 = vld [vmem:[%s1031 + $0x118] sm:$0xf]
    %v2976 = vld [vmem:[%s1031 + $0x120] sm:$0xf]
    %v2977 = vld [vmem:[%s1031 + $0x124] sm:$0xf]
    %v2978 = vld [vmem:[%s1031 + $0x12c] sm:$0xf]
    %v2979 = vld [vmem:[%s1031 + $0x130] sm:$0xf]
    %v2980 = vld [vmem:[%s1031 + $0x138] sm:$0xf]
    %v2981 = vld [vmem:[%s1031 + $0x13c] sm:$0xf]
    %v2982 = vld [vmem:[%s1031 + $0x144] sm:$0xf]
    %v2983 = vld [vmem:[%s1031 + $0x148] sm:$0xf]
    %v2984 = vld [vmem:[%s1031 + $0x150] sm:$0xf]
    %v2985 = vld [vmem:[%s1031 + $0x154] sm:$0xf]
    %v2986 = vld [vmem:[%s1031 + $0x15c] sm:$0xf]
    %v2987 = vld [vmem:[%s1031 + $0x160] sm:$0xf]
    %v2988 = vld [vmem:[%s1031 + $0x168] sm:$0xf]
    %v2989 = vld [vmem:[%s1031 + $0x16c] sm:$0xf]
    %v2990 = vld [vmem:[%s1031 + $0x174] sm:$0xf]
    %v2991 = vld [vmem:[%s1031 + $0x178] sm:$0xf]
    %v2992 = vld [vmem:[%s1031 + $0x180] sm:$0xf]
    %v2993 = vld [vmem:[%s1031 + $0x184] sm:$0xf]
    %v2994 = vld [vmem:[%s1031 + $0x18c] sm:$0xf]
    %v2995 = vld [vmem:[%s1031 + $0x190] sm:$0xf]
    %2996 = vst [vmem:[#allocation3 + $0xc] sm:$0xf] %v2932
    %2997 = vst [vmem:[#allocation3 + $0x30] sm:$0xf] %v2933
    %2998 = vst [vmem:[#allocation3 + $0x54] sm:$0xf] %v2934
    %2999 = vst [vmem:[#allocation3 + $0x78] sm:$0xf] %v2935
    %3000 = vst [vmem:[#allocation3 + $0x9c] sm:$0xf] %v2936
    %3001 = vst [vmem:[#allocation3 + $0xc0] sm:$0xf] %v2937
    %3002 = vst [vmem:[#allocation3 + $0xe4] sm:$0xf] %v2938
    %3003 = vst [vmem:[#allocation3 + $0x108] sm:$0xf] %v2939
    %3004 = vst [vmem:[#allocation3 + $0x12c] sm:$0xf] %v2940
    %3005 = vst [vmem:[#allocation3 + $0x150] sm:$0xf] %v2941
    %3006 = vst [vmem:[#allocation3 + $0x174] sm:$0xf] %v2942
    %3007 = vst [vmem:[#allocation3 + $0x198] sm:$0xf] %v2943
    %3008 = vst [vmem:[#allocation3 + $0x1bc] sm:$0xf] %v2944
    %3009 = vst [vmem:[#allocation3 + $0x1e0] sm:$0xf] %v2945
    %3010 = vst [vmem:[#allocation3 + $0x204] sm:$0xf] %v2946
    %3011 = vst [vmem:[#allocation3 + $0x228] sm:$0xf] %v2947
    %3012 = vst [vmem:[#allocation3 + $0x24c] sm:$0xf] %v2948
    %3013 = vst [vmem:[#allocation3 + $0x270] sm:$0xf] %v2949
    %3014 = vst [vmem:[#allocation3 + $0x294] sm:$0xf] %v2950
    %3015 = vst [vmem:[#allocation3 + $0x2b8] sm:$0xf] %v2951
    %3016 = vst [vmem:[#allocation3 + $0x2dc] sm:$0xf] %v2952
    %3017 = vst [vmem:[#allocation3 + $0x300] sm:$0xf] %v2953
    %3018 = vst [vmem:[#allocation3 + $0x324] sm:$0xf] %v2954
    %3019 = vst [vmem:[#allocation3 + $0x348] sm:$0xf] %v2955
    %3020 = vst [vmem:[#allocation3 + $0x36c] sm:$0xf] %v2956
    %3021 = vst [vmem:[#allocation3 + $0x390] sm:$0xf] %v2957
    %3022 = vst [vmem:[#allocation3 + $0x3b4] sm:$0xf] %v2958
    %3023 = vst [vmem:[#allocation3 + $0x3d8] sm:$0xf] %v2959
    %3024 = vst [vmem:[#allocation3 + $0x3fc] sm:$0xf] %v2960
    %3025 = vst [vmem:[#allocation3 + $0x420] sm:$0xf] %v2961
    %3026 = vst [vmem:[#allocation3 + $0x444] sm:$0xf] %v2962
    %3027 = vst [vmem:[#allocation3 + $0x468] sm:$0xf] %v2963
    %3028 = vst [vmem:[#allocation3 + $0x48c] sm:$0xf] %v2964
    %3029 = vst [vmem:[#allocation3 + $0x4b0] sm:$0xf] %v2965
    %3030 = vst [vmem:[#allocation3 + $0x4d4] sm:$0xf] %v2966
    %3031 = vst [vmem:[#allocation3 + $0x4f8] sm:$0xf] %v2967
    %3032 = vst [vmem:[#allocation3 + $0x51c] sm:$0xf] %v2968
    %3033 = vst [vmem:[#allocation3 + $0x540] sm:$0xf] %v2969
    %3034 = vst [vmem:[#allocation3 + $0x564] sm:$0xf] %v2970
    %3035 = vst [vmem:[#allocation3 + $0x588] sm:$0xf] %v2971
    %3036 = vst [vmem:[#allocation3 + $0x5ac] sm:$0xf] %v2972
    %3037 = vst [vmem:[#allocation3 + $0x5d0] sm:$0xf] %v2973
    %3038 = vst [vmem:[#allocation3 + $0x5f4] sm:$0xf] %v2974
    %3039 = vst [vmem:[#allocation3 + $0x618] sm:$0xf] %v2975
    %3040 = vst [vmem:[#allocation3 + $0x63c] sm:$0xf] %v2976
    %3041 = vst [vmem:[#allocation3 + $0x660] sm:$0xf] %v2977
    %3042 = vst [vmem:[#allocation3 + $0x684] sm:$0xf] %v2978
    %3043 = vst [vmem:[#allocation3 + $0x6a8] sm:$0xf] %v2979
    %3044 = vst [vmem:[#allocation3 + $0x6cc] sm:$0xf] %v2980
    %3045 = vst [vmem:[#allocation3 + $0x6f0] sm:$0xf] %v2981
    %3046 = vst [vmem:[#allocation3 + $0x714] sm:$0xf] %v2982
    %3047 = vst [vmem:[#allocation3 + $0x738] sm:$0xf] %v2983
    %3048 = vst [vmem:[#allocation3 + $0x75c] sm:$0xf] %v2984
    %3049 = vst [vmem:[#allocation3 + $0x780] sm:$0xf] %v2985
    %3050 = vst [vmem:[#allocation3 + $0x7a4] sm:$0xf] %v2986
    %3051 = vst [vmem:[#allocation3 + $0x7c8] sm:$0xf] %v2987
    %3052 = vst [vmem:[#allocation3 + $0x7ec] sm:$0xf] %v2988
    %3053 = vst [vmem:[#allocation3 + $0x810] sm:$0xf] %v2989
    %3054 = vst [vmem:[#allocation3 + $0x834] sm:$0xf] %v2990
    %3055 = vst [vmem:[#allocation3 + $0x858] sm:$0xf] %v2991
    %3056 = vst [vmem:[#allocation3 + $0x87c] sm:$0xf] %v2992
    %3057 = vst [vmem:[#allocation3 + $0x8a0] sm:$0xf] %v2993
    %3058 = vst [vmem:[#allocation3 + $0x8c4] sm:$0xf] %v2994
    %3059 = vst [vmem:[#allocation3 + $0x8e8] sm:$0xf] %v2995
    %v3060 = vld [vmem:[%s1031] sm:$0xf]
    %v3061 = vld [vmem:[%s1031 + $0x4] sm:$0xf]
    %v3062 = vld [vmem:[%s1031 + $0x8] sm:$0x1]
    %v3063 = vld [vmem:[%s1031 + $0xc] sm:$0xf]
    %v3064 = vld [vmem:[%s1031 + $0x10] sm:$0xf]
    %v3065 = vld [vmem:[%s1031 + $0x14] sm:$0x1]
    %v3066 = vld [vmem:[%s1031 + $0x18] sm:$0xf]
    %v3067 = vld [vmem:[%s1031 + $0x1c] sm:$0xf]
    %v3068 = vld [vmem:[%s1031 + $0x20] sm:$0x1]
    %v3069 = vld [vmem:[%s1031 + $0x24] sm:$0xf]
    %v3070 = vld [vmem:[%s1031 + $0x28] sm:$0xf]
    %v3071 = vld [vmem:[%s1031 + $0x2c] sm:$0x1]
    %v3072 = vld [vmem:[%s1031 + $0x30] sm:$0xf]
    %v3073 = vld [vmem:[%s1031 + $0x34] sm:$0xf]
    %v3074 = vld [vmem:[%s1031 + $0x38] sm:$0x1]
    %v3075 = vld [vmem:[%s1031 + $0x3c] sm:$0xf]
    %v3076 = vld [vmem:[%s1031 + $0x40] sm:$0xf]
    %v3077 = vld [vmem:[%s1031 + $0x44] sm:$0x1]
    %v3078 = vld [vmem:[%s1031 + $0x48] sm:$0xf]
    %v3079 = vld [vmem:[%s1031 + $0x4c] sm:$0xf]
    %v3080 = vld [vmem:[%s1031 + $0x50] sm:$0x1]
    %v3081 = vld [vmem:[%s1031 + $0x54] sm:$0xf]
    %v3082 = vld [vmem:[%s1031 + $0x58] sm:$0xf]
    %v3083 = vld [vmem:[%s1031 + $0x5c] sm:$0x1]
    %v3084 = vld [vmem:[%s1031 + $0x60] sm:$0xf]
    %v3085 = vld [vmem:[%s1031 + $0x64] sm:$0xf]
    %v3086 = vld [vmem:[%s1031 + $0x68] sm:$0x1]
    %v3087 = vld [vmem:[%s1031 + $0x6c] sm:$0xf]
    %v3088 = vld [vmem:[%s1031 + $0x70] sm:$0xf]
    %v3089 = vld [vmem:[%s1031 + $0x74] sm:$0x1]
    %v3090 = vld [vmem:[%s1031 + $0x78] sm:$0xf]
    %v3091 = vld [vmem:[%s1031 + $0x7c] sm:$0xf]
    %v3092 = vld [vmem:[%s1031 + $0x80] sm:$0x1]
    %v3093 = vld [vmem:[%s1031 + $0x84] sm:$0xf]
    %v3094 = vld [vmem:[%s1031 + $0x88] sm:$0xf]
    %v3095 = vld [vmem:[%s1031 + $0x8c] sm:$0x1]
    %v3096 = vld [vmem:[%s1031 + $0x90] sm:$0xf]
    %v3097 = vld [vmem:[%s1031 + $0x94] sm:$0xf]
    %v3098 = vld [vmem:[%s1031 + $0x98] sm:$0x1]
    %v3099 = vld [vmem:[%s1031 + $0x9c] sm:$0xf]
    %v3100 = vld [vmem:[%s1031 + $0xa0] sm:$0xf]
    %v3101 = vld [vmem:[%s1031 + $0xa4] sm:$0x1]
    %v3102 = vld [vmem:[%s1031 + $0xa8] sm:$0xf]
    %v3103 = vld [vmem:[%s1031 + $0xac] sm:$0xf]
    %v3104 = vld [vmem:[%s1031 + $0xb0] sm:$0x1]
    %v3105 = vld [vmem:[%s1031 + $0xb4] sm:$0xf]
    %v3106 = vld [vmem:[%s1031 + $0xb8] sm:$0xf]
    %v3107 = vld [vmem:[%s1031 + $0xbc] sm:$0x1]
    %v3108 = vld [vmem:[%s1031 + $0xd8] sm:$0xf]
    %v3109 = vld [vmem:[%s1031 + $0xdc] sm:$0xf]
    %v3110 = vld [vmem:[%s1031 + $0xe0] sm:$0x1]
    %v3111 = vld [vmem:[%s1031 + $0xe4] sm:$0xf]
    %v3112 = vld [vmem:[%s1031 + $0xe8] sm:$0xf]
    %v3113 = vld [vmem:[%s1031 + $0xec] sm:$0x1]
    %v3114 = vld [vmem:[%s1031 + $0xf0] sm:$0xf]
    %v3115 = vld [vmem:[%s1031 + $0xf4] sm:$0xf]
    %v3116 = vld [vmem:[%s1031 + $0xf8] sm:$0x1]
    %v3117 = vld [vmem:[%s1031 + $0xfc] sm:$0xf]
    %v3118 = vld [vmem:[%s1031 + $0x100] sm:$0xf]
    %v3119 = vld [vmem:[%s1031 + $0x104] sm:$0x1]
    %v3120 = vld [vmem:[%s1031 + $0x108] sm:$0xf]
    %v3121 = vld [vmem:[%s1031 + $0x10c] sm:$0xf]
    %v3122 = vld [vmem:[%s1031 + $0x110] sm:$0x1]
    %v3123 = vld [vmem:[%s1031 + $0x114] sm:$0xf]
    %v3124 = vld [vmem:[%s1031 + $0x118] sm:$0xf]
    %v3125 = vld [vmem:[%s1031 + $0x11c] sm:$0x1]
    %v3126 = vld [vmem:[%s1031 + $0x120] sm:$0xf]
    %v3127 = vld [vmem:[%s1031 + $0x124] sm:$0xf]
    %v3128 = vld [vmem:[%s1031 + $0x128] sm:$0x1]
    %v3129 = vld [vmem:[%s1031 + $0x12c] sm:$0xf]
    %v3130 = vld [vmem:[%s1031 + $0x130] sm:$0xf]
    %v3131 = vld [vmem:[%s1031 + $0x134] sm:$0x1]
    %v3132 = vld [vmem:[%s1031 + $0x138] sm:$0xf]
    %v3133 = vld [vmem:[%s1031 + $0x13c] sm:$0xf]
    %v3134 = vld [vmem:[%s1031 + $0x140] sm:$0x1]
    %v3135 = vld [vmem:[%s1031 + $0x144] sm:$0xf]
    %v3136 = vld [vmem:[%s1031 + $0x148] sm:$0xf]
    %v3137 = vld [vmem:[%s1031 + $0x14c] sm:$0x1]
    %v3138 = vld [vmem:[%s1031 + $0x150] sm:$0xf]
    %v3139 = vld [vmem:[%s1031 + $0x154] sm:$0xf]
    %v3140 = vld [vmem:[%s1031 + $0x158] sm:$0x1]
    %v3141 = vld [vmem:[%s1031 + $0x15c] sm:$0xf]
    %v3142 = vld [vmem:[%s1031 + $0x160] sm:$0xf]
    %v3143 = vld [vmem:[%s1031 + $0x164] sm:$0x1]
    %v3144 = vld [vmem:[%s1031 + $0x168] sm:$0xf]
    %v3145 = vld [vmem:[%s1031 + $0x16c] sm:$0xf]
    %v3146 = vld [vmem:[%s1031 + $0x170] sm:$0x1]
    %v3147 = vld [vmem:[%s1031 + $0x174] sm:$0xf]
    %v3148 = vld [vmem:[%s1031 + $0x178] sm:$0xf]
    %v3149 = vld [vmem:[%s1031 + $0x17c] sm:$0x1]
    %v3150 = vld [vmem:[%s1031 + $0x180] sm:$0xf]
    %v3151 = vld [vmem:[%s1031 + $0x184] sm:$0xf]
    %v3152 = vld [vmem:[%s1031 + $0x188] sm:$0x1]
    %v3153 = vld [vmem:[%s1031 + $0x18c] sm:$0xf]
    %v3154 = vld [vmem:[%s1031 + $0x190] sm:$0xf]
    %v3155 = vld [vmem:[%s1031 + $0x194] sm:$0x1]
    %v3157 = vshrl.u32 %v3060, 16
    %v3159 = vrot.slane %v3157, 4
    %v3160 = vshll.u32 %v3060, 16
    %v3162 = vrot.slane %v3160, 5
    %v3163 = vor.u32 %v3159, %v3162
    %v3164 = vrot.slane %v3163, 4
    %v3166 = vshll.u32 %v3061, 16
    %v3168 = vrot.slane %v3166, 5
    %v3169 = vsel %vm1488, %v3164, %v3168
    %v3170 = vshrl.u32 %v3061, 16
    %v3172 = vrot.slane %v3170, 4
    %v3173 = vor.u32 %v3172, %v3168
    %v3174 = vrot.slane %v3173, 4
    %v3176 = vshll.u32 %v3062, 16
    %v3178 = vrot.slane %v3176, 5
    %v3179 = vsel %vm1488, %v3174, %v3178
    %v3181 = vshrl.u32 %v3063, 16
    %v3183 = vrot.slane %v3181, 4
    %v3184 = vshll.u32 %v3063, 16
    %v3186 = vrot.slane %v3184, 5
    %v3187 = vor.u32 %v3183, %v3186
    %v3188 = vrot.slane %v3187, 4
    %v3190 = vshll.u32 %v3064, 16
    %v3192 = vrot.slane %v3190, 5
    %v3193 = vsel %vm1488, %v3188, %v3192
    %v3194 = vshrl.u32 %v3064, 16
    %v3196 = vrot.slane %v3194, 4
    %v3197 = vor.u32 %v3196, %v3192
    %v3198 = vrot.slane %v3197, 4
    %v3200 = vshll.u32 %v3065, 16
    %v3202 = vrot.slane %v3200, 5
    %v3203 = vsel %vm1488, %v3198, %v3202
    %v3205 = vshrl.u32 %v3066, 16
    %v3207 = vrot.slane %v3205, 4
    %v3208 = vshll.u32 %v3066, 16
    %v3210 = vrot.slane %v3208, 5
    %v3211 = vor.u32 %v3207, %v3210
    %v3212 = vrot.slane %v3211, 4
    %v3214 = vshll.u32 %v3067, 16
    %v3216 = vrot.slane %v3214, 5
    %v3217 = vsel %vm1488, %v3212, %v3216
    %v3218 = vshrl.u32 %v3067, 16
    %v3220 = vrot.slane %v3218, 4
    %v3221 = vor.u32 %v3220, %v3216
    %v3222 = vrot.slane %v3221, 4
    %v3224 = vshll.u32 %v3068, 16
    %v3226 = vrot.slane %v3224, 5
    %v3227 = vsel %vm1488, %v3222, %v3226
    %v3229 = vshrl.u32 %v3069, 16
    %v3231 = vrot.slane %v3229, 4
    %v3232 = vshll.u32 %v3069, 16
    %v3234 = vrot.slane %v3232, 5
    %v3235 = vor.u32 %v3231, %v3234
    %v3236 = vrot.slane %v3235, 4
    %v3238 = vshll.u32 %v3070, 16
    %v3240 = vrot.slane %v3238, 5
    %v3241 = vsel %vm1488, %v3236, %v3240
    %v3242 = vshrl.u32 %v3070, 16
    %v3244 = vrot.slane %v3242, 4
    %v3245 = vor.u32 %v3244, %v3240
    %v3246 = vrot.slane %v3245, 4
    %v3248 = vshll.u32 %v3071, 16
    %v3250 = vrot.slane %v3248, 5
    %v3251 = vsel %vm1488, %v3246, %v3250
    %v3253 = vshrl.u32 %v3072, 16
    %v3255 = vrot.slane %v3253, 4
    %v3256 = vshll.u32 %v3072, 16
    %v3258 = vrot.slane %v3256, 5
    %v3259 = vor.u32 %v3255, %v3258
    %v3260 = vrot.slane %v3259, 4
    %v3262 = vshll.u32 %v3073, 16
    %v3264 = vrot.slane %v3262, 5
    %v3265 = vsel %vm1488, %v3260, %v3264
    %v3266 = vshrl.u32 %v3073, 16
    %v3268 = vrot.slane %v3266, 4
    %v3269 = vor.u32 %v3268, %v3264
    %v3270 = vrot.slane %v3269, 4
    %v3272 = vshll.u32 %v3074, 16
    %v3274 = vrot.slane %v3272, 5
    %v3275 = vsel %vm1488, %v3270, %v3274
    %v3277 = vshrl.u32 %v3075, 16
    %v3279 = vrot.slane %v3277, 4
    %v3280 = vshll.u32 %v3075, 16
    %v3282 = vrot.slane %v3280, 5
    %v3283 = vor.u32 %v3279, %v3282
    %v3284 = vrot.slane %v3283, 4
    %v3286 = vshll.u32 %v3076, 16
    %v3288 = vrot.slane %v3286, 5
    %v3289 = vsel %vm1488, %v3284, %v3288
    %v3290 = vshrl.u32 %v3076, 16
    %v3292 = vrot.slane %v3290, 4
    %v3293 = vor.u32 %v3292, %v3288
    %v3294 = vrot.slane %v3293, 4
    %v3296 = vshll.u32 %v3077, 16
    %v3298 = vrot.slane %v3296, 5
    %v3299 = vsel %vm1488, %v3294, %v3298
    %v3301 = vshrl.u32 %v3078, 16
    %v3303 = vrot.slane %v3301, 4
    %v3304 = vshll.u32 %v3078, 16
    %v3306 = vrot.slane %v3304, 5
    %v3307 = vor.u32 %v3303, %v3306
    %v3308 = vrot.slane %v3307, 4
    %v3310 = vshll.u32 %v3079, 16
    %v3312 = vrot.slane %v3310, 5
    %v3313 = vsel %vm1488, %v3308, %v3312
    %v3314 = vshrl.u32 %v3079, 16
    %v3316 = vrot.slane %v3314, 4
    %v3317 = vor.u32 %v3316, %v3312
    %v3318 = vrot.slane %v3317, 4
    %v3320 = vshll.u32 %v3080, 16
    %v3322 = vrot.slane %v3320, 5
    %v3323 = vsel %vm1488, %v3318, %v3322
    %v3325 = vshrl.u32 %v3081, 16
    %v3327 = vrot.slane %v3325, 4
    %v3328 = vshll.u32 %v3081, 16
    %v3330 = vrot.slane %v3328, 5
    %v3331 = vor.u32 %v3327, %v3330
    %v3332 = vrot.slane %v3331, 4
    %v3334 = vshll.u32 %v3082, 16
    %v3336 = vrot.slane %v3334, 5
    %v3337 = vsel %vm1488, %v3332, %v3336
    %v3338 = vshrl.u32 %v3082, 16
    %v3340 = vrot.slane %v3338, 4
    %v3341 = vor.u32 %v3340, %v3336
    %v3342 = vrot.slane %v3341, 4
    %v3344 = vshll.u32 %v3083, 16
    %v3346 = vrot.slane %v3344, 5
    %v3347 = vsel %vm1488, %v3342, %v3346
    %v3349 = vshrl.u32 %v3084, 16
    %v3351 = vrot.slane %v3349, 4
    %v3352 = vshll.u32 %v3084, 16
    %v3354 = vrot.slane %v3352, 5
    %v3355 = vor.u32 %v3351, %v3354
    %v3356 = vrot.slane %v3355, 4
    %v3358 = vshll.u32 %v3085, 16
    %v3360 = vrot.slane %v3358, 5
    %v3361 = vsel %vm1488, %v3356, %v3360
    %v3362 = vshrl.u32 %v3085, 16
    %v3364 = vrot.slane %v3362, 4
    %v3365 = vor.u32 %v3364, %v3360
    %v3366 = vrot.slane %v3365, 4
    %v3368 = vshll.u32 %v3086, 16
    %v3370 = vrot.slane %v3368, 5
    %v3371 = vsel %vm1488, %v3366, %v3370
    %v3373 = vshrl.u32 %v3087, 16
    %v3375 = vrot.slane %v3373, 4
    %v3376 = vshll.u32 %v3087, 16
    %v3378 = vrot.slane %v3376, 5
    %v3379 = vor.u32 %v3375, %v3378
    %v3380 = vrot.slane %v3379, 4
    %v3382 = vshll.u32 %v3088, 16
    %v3384 = vrot.slane %v3382, 5
    %v3385 = vsel %vm1488, %v3380, %v3384
    %v3386 = vshrl.u32 %v3088, 16
    %v3388 = vrot.slane %v3386, 4
    %v3389 = vor.u32 %v3388, %v3384
    %v3390 = vrot.slane %v3389, 4
    %v3392 = vshll.u32 %v3089, 16
    %v3394 = vrot.slane %v3392, 5
    %v3395 = vsel %vm1488, %v3390, %v3394
    %v3397 = vshrl.u32 %v3090, 16
    %v3399 = vrot.slane %v3397, 4
    %v3400 = vshll.u32 %v3090, 16
    %v3402 = vrot.slane %v3400, 5
    %v3403 = vor.u32 %v3399, %v3402
    %v3404 = vrot.slane %v3403, 4
    %v3406 = vshll.u32 %v3091, 16
    %v3408 = vrot.slane %v3406, 5
    %v3409 = vsel %vm1488, %v3404, %v3408
    %v3410 = vshrl.u32 %v3091, 16
    %v3412 = vrot.slane %v3410, 4
    %v3413 = vor.u32 %v3412, %v3408
    %v3414 = vrot.slane %v3413, 4
    %v3416 = vshll.u32 %v3092, 16
    %v3418 = vrot.slane %v3416, 5
    %v3419 = vsel %vm1488, %v3414, %v3418
    %v3421 = vshrl.u32 %v3093, 16
    %v3423 = vrot.slane %v3421, 4
    %v3424 = vshll.u32 %v3093, 16
    %v3426 = vrot.slane %v3424, 5
    %v3427 = vor.u32 %v3423, %v3426
    %v3428 = vrot.slane %v3427, 4
    %v3430 = vshll.u32 %v3094, 16
    %v3432 = vrot.slane %v3430, 5
    %v3433 = vsel %vm1488, %v3428, %v3432
    %v3434 = vshrl.u32 %v3094, 16
    %v3436 = vrot.slane %v3434, 4
    %v3437 = vor.u32 %v3436, %v3432
    %v3438 = vrot.slane %v3437, 4
    %v3440 = vshll.u32 %v3095, 16
    %v3442 = vrot.slane %v3440, 5
    %v3443 = vsel %vm1488, %v3438, %v3442
    %v3445 = vshrl.u32 %v3096, 16
    %v3447 = vrot.slane %v3445, 4
    %v3448 = vshll.u32 %v3096, 16
    %v3450 = vrot.slane %v3448, 5
    %v3451 = vor.u32 %v3447, %v3450
    %v3452 = vrot.slane %v3451, 4
    %v3454 = vshll.u32 %v3097, 16
    %v3456 = vrot.slane %v3454, 5
    %v3457 = vsel %vm1488, %v3452, %v3456
    %v3458 = vshrl.u32 %v3097, 16
    %v3460 = vrot.slane %v3458, 4
    %v3461 = vor.u32 %v3460, %v3456
    %v3462 = vrot.slane %v3461, 4
    %v3464 = vshll.u32 %v3098, 16
    %v3466 = vrot.slane %v3464, 5
    %v3467 = vsel %vm1488, %v3462, %v3466
    %v3469 = vshrl.u32 %v3099, 16
    %v3471 = vrot.slane %v3469, 4
    %v3472 = vshll.u32 %v3099, 16
    %v3474 = vrot.slane %v3472, 5
    %v3475 = vor.u32 %v3471, %v3474
    %v3476 = vrot.slane %v3475, 4
    %v3478 = vshll.u32 %v3100, 16
    %v3480 = vrot.slane %v3478, 5
    %v3481 = vsel %vm1488, %v3476, %v3480
    %v3482 = vshrl.u32 %v3100, 16
    %v3484 = vrot.slane %v3482, 4
    %v3485 = vor.u32 %v3484, %v3480
    %v3486 = vrot.slane %v3485, 4
    %v3488 = vshll.u32 %v3101, 16
    %v3490 = vrot.slane %v3488, 5
    %v3491 = vsel %vm1488, %v3486, %v3490
    %v3493 = vshrl.u32 %v3102, 16
    %v3495 = vrot.slane %v3493, 4
    %v3496 = vshll.u32 %v3102, 16
    %v3498 = vrot.slane %v3496, 5
    %v3499 = vor.u32 %v3495, %v3498
    %v3500 = vrot.slane %v3499, 4
    %v3502 = vshll.u32 %v3103, 16
    %v3504 = vrot.slane %v3502, 5
    %v3505 = vsel %vm1488, %v3500, %v3504
    %v3506 = vshrl.u32 %v3103, 16
    %v3508 = vrot.slane %v3506, 4
    %v3509 = vor.u32 %v3508, %v3504
    %v3510 = vrot.slane %v3509, 4
    %v3512 = vshll.u32 %v3104, 16
    %v3514 = vrot.slane %v3512, 5
    %v3515 = vsel %vm1488, %v3510, %v3514
    %v3517 = vshrl.u32 %v3105, 16
    %v3519 = vrot.slane %v3517, 4
    %v3520 = vshll.u32 %v3105, 16
    %v3522 = vrot.slane %v3520, 5
    %v3523 = vor.u32 %v3519, %v3522
    %v3524 = vrot.slane %v3523, 4
    %v3526 = vshll.u32 %v3106, 16
    %v3528 = vrot.slane %v3526, 5
    %v3529 = vsel %vm1488, %v3524, %v3528
    %v3530 = vshrl.u32 %v3106, 16
    %v3532 = vrot.slane %v3530, 4
    %v3533 = vor.u32 %v3532, %v3528
    %v3534 = vrot.slane %v3533, 4
    %v3536 = vshll.u32 %v3107, 16
    %v3538 = vrot.slane %v3536, 5
    %v3539 = vsel %vm1488, %v3534, %v3538
    %v3541 = vshrl.u32 %v3108, 16
    %v3543 = vrot.slane %v3541, 4
    %v3544 = vshll.u32 %v3108, 16
    %v3546 = vrot.slane %v3544, 5
    %v3547 = vor.u32 %v3543, %v3546
    %v3548 = vrot.slane %v3547, 4
    %v3550 = vshll.u32 %v3109, 16
    %v3552 = vrot.slane %v3550, 5
    %v3553 = vsel %vm1488, %v3548, %v3552
    %v3554 = vshrl.u32 %v3109, 16
    %v3556 = vrot.slane %v3554, 4
    %v3557 = vor.u32 %v3556, %v3552
    %v3558 = vrot.slane %v3557, 4
    %v3560 = vshll.u32 %v3110, 16
    %v3562 = vrot.slane %v3560, 5
    %v3563 = vsel %vm1488, %v3558, %v3562
    %v3565 = vshrl.u32 %v3111, 16
    %v3567 = vrot.slane %v3565, 4
    %v3568 = vshll.u32 %v3111, 16
    %v3570 = vrot.slane %v3568, 5
    %v3571 = vor.u32 %v3567, %v3570
    %v3572 = vrot.slane %v3571, 4
    %v3574 = vshll.u32 %v3112, 16
    %v3576 = vrot.slane %v3574, 5
    %v3577 = vsel %vm1488, %v3572, %v3576
    %v3578 = vshrl.u32 %v3112, 16
    %v3580 = vrot.slane %v3578, 4
    %v3581 = vor.u32 %v3580, %v3576
    %v3582 = vrot.slane %v3581, 4
    %v3584 = vshll.u32 %v3113, 16
    %v3586 = vrot.slane %v3584, 5
    %v3587 = vsel %vm1488, %v3582, %v3586
    %v3589 = vshrl.u32 %v3114, 16
    %v3591 = vrot.slane %v3589, 4
    %v3592 = vshll.u32 %v3114, 16
    %v3594 = vrot.slane %v3592, 5
    %v3595 = vor.u32 %v3591, %v3594
    %v3596 = vrot.slane %v3595, 4
    %v3598 = vshll.u32 %v3115, 16
    %v3600 = vrot.slane %v3598, 5
    %v3601 = vsel %vm1488, %v3596, %v3600
    %v3602 = vshrl.u32 %v3115, 16
    %v3604 = vrot.slane %v3602, 4
    %v3605 = vor.u32 %v3604, %v3600
    %v3606 = vrot.slane %v3605, 4
    %v3608 = vshll.u32 %v3116, 16
    %v3610 = vrot.slane %v3608, 5
    %v3611 = vsel %vm1488, %v3606, %v3610
    %v3613 = vshrl.u32 %v3117, 16
    %v3615 = vrot.slane %v3613, 4
    %v3616 = vshll.u32 %v3117, 16
    %v3618 = vrot.slane %v3616, 5
    %v3619 = vor.u32 %v3615, %v3618
    %v3620 = vrot.slane %v3619, 4
    %v3622 = vshll.u32 %v3118, 16
    %v3624 = vrot.slane %v3622, 5
    %v3625 = vsel %vm1488, %v3620, %v3624
    %v3626 = vshrl.u32 %v3118, 16
    %v3628 = vrot.slane %v3626, 4
    %v3629 = vor.u32 %v3628, %v3624
    %v3630 = vrot.slane %v3629, 4
    %v3632 = vshll.u32 %v3119, 16
    %v3634 = vrot.slane %v3632, 5
    %v3635 = vsel %vm1488, %v3630, %v3634
    %v3637 = vshrl.u32 %v3120, 16
    %v3639 = vrot.slane %v3637, 4
    %v3640 = vshll.u32 %v3120, 16
    %v3642 = vrot.slane %v3640, 5
    %v3643 = vor.u32 %v3639, %v3642
    %v3644 = vrot.slane %v3643, 4
    %v3646 = vshll.u32 %v3121, 16
    %v3648 = vrot.slane %v3646, 5
    %v3649 = vsel %vm1488, %v3644, %v3648
    %v3650 = vshrl.u32 %v3121, 16
    %v3652 = vrot.slane %v3650, 4
    %v3653 = vor.u32 %v3652, %v3648
    %v3654 = vrot.slane %v3653, 4
    %v3656 = vshll.u32 %v3122, 16
    %v3658 = vrot.slane %v3656, 5
    %v3659 = vsel %vm1488, %v3654, %v3658
    %v3661 = vshrl.u32 %v3123, 16
    %v3663 = vrot.slane %v3661, 4
    %v3664 = vshll.u32 %v3123, 16
    %v3666 = vrot.slane %v3664, 5
    %v3667 = vor.u32 %v3663, %v3666
    %v3668 = vrot.slane %v3667, 4
    %v3670 = vshll.u32 %v3124, 16
    %v3672 = vrot.slane %v3670, 5
    %v3673 = vsel %vm1488, %v3668, %v3672
    %v3674 = vshrl.u32 %v3124, 16
    %v3676 = vrot.slane %v3674, 4
    %v3677 = vor.u32 %v3676, %v3672
    %v3678 = vrot.slane %v3677, 4
    %v3680 = vshll.u32 %v3125, 16
    %v3682 = vrot.slane %v3680, 5
    %v3683 = vsel %vm1488, %v3678, %v3682
    %v3685 = vshrl.u32 %v3126, 16
    %v3687 = vrot.slane %v3685, 4
    %v3688 = vshll.u32 %v3126, 16
    %v3690 = vrot.slane %v3688, 5
    %v3691 = vor.u32 %v3687, %v3690
    %v3692 = vrot.slane %v3691, 4
    %v3694 = vshll.u32 %v3127, 16
    %v3696 = vrot.slane %v3694, 5
    %v3697 = vsel %vm1488, %v3692, %v3696
    %v3698 = vshrl.u32 %v3127, 16
    %v3700 = vrot.slane %v3698, 4
    %v3701 = vor.u32 %v3700, %v3696
    %v3702 = vrot.slane %v3701, 4
    %v3704 = vshll.u32 %v3128, 16
    %v3706 = vrot.slane %v3704, 5
    %v3707 = vsel %vm1488, %v3702, %v3706
    %v3709 = vshrl.u32 %v3129, 16
    %v3711 = vrot.slane %v3709, 4
    %v3712 = vshll.u32 %v3129, 16
    %v3714 = vrot.slane %v3712, 5
    %v3715 = vor.u32 %v3711, %v3714
    %v3716 = vrot.slane %v3715, 4
    %v3718 = vshll.u32 %v3130, 16
    %v3720 = vrot.slane %v3718, 5
    %v3721 = vsel %vm1488, %v3716, %v3720
    %v3722 = vshrl.u32 %v3130, 16
    %v3724 = vrot.slane %v3722, 4
    %v3725 = vor.u32 %v3724, %v3720
    %v3726 = vrot.slane %v3725, 4
    %v3728 = vshll.u32 %v3131, 16
    %v3730 = vrot.slane %v3728, 5
    %v3731 = vsel %vm1488, %v3726, %v3730
    %v3733 = vshrl.u32 %v3132, 16
    %v3735 = vrot.slane %v3733, 4
    %v3736 = vshll.u32 %v3132, 16
    %v3738 = vrot.slane %v3736, 5
    %v3739 = vor.u32 %v3735, %v3738
    %v3740 = vrot.slane %v3739, 4
    %v3742 = vshll.u32 %v3133, 16
    %v3744 = vrot.slane %v3742, 5
    %v3745 = vsel %vm1488, %v3740, %v3744
    %v3746 = vshrl.u32 %v3133, 16
    %v3748 = vrot.slane %v3746, 4
    %v3749 = vor.u32 %v3748, %v3744
    %v3750 = vrot.slane %v3749, 4
    %v3752 = vshll.u32 %v3134, 16
    %v3754 = vrot.slane %v3752, 5
    %v3755 = vsel %vm1488, %v3750, %v3754
    %v3757 = vshrl.u32 %v3135, 16
    %v3759 = vrot.slane %v3757, 4
    %v3760 = vshll.u32 %v3135, 16
    %v3762 = vrot.slane %v3760, 5
    %v3763 = vor.u32 %v3759, %v3762
    %v3764 = vrot.slane %v3763, 4
    %v3766 = vshll.u32 %v3136, 16
    %v3768 = vrot.slane %v3766, 5
    %v3769 = vsel %vm1488, %v3764, %v3768
    %v3770 = vshrl.u32 %v3136, 16
    %v3772 = vrot.slane %v3770, 4
    %v3773 = vor.u32 %v3772, %v3768
    %v3774 = vrot.slane %v3773, 4
    %v3776 = vshll.u32 %v3137, 16
    %v3778 = vrot.slane %v3776, 5
    %v3779 = vsel %vm1488, %v3774, %v3778
    %v3781 = vshrl.u32 %v3138, 16
    %v3783 = vrot.slane %v3781, 4
    %v3784 = vshll.u32 %v3138, 16
    %v3786 = vrot.slane %v3784, 5
    %v3787 = vor.u32 %v3783, %v3786
    %v3788 = vrot.slane %v3787, 4
    %v3790 = vshll.u32 %v3139, 16
    %v3792 = vrot.slane %v3790, 5
    %v3793 = vsel %vm1488, %v3788, %v3792
    %v3794 = vshrl.u32 %v3139, 16
    %v3796 = vrot.slane %v3794, 4
    %v3797 = vor.u32 %v3796, %v3792
    %v3798 = vrot.slane %v3797, 4
    %v3800 = vshll.u32 %v3140, 16
    %v3802 = vrot.slane %v3800, 5
    %v3803 = vsel %vm1488, %v3798, %v3802
    %v3805 = vshrl.u32 %v3141, 16
    %v3807 = vrot.slane %v3805, 4
    %v3808 = vshll.u32 %v3141, 16
    %v3810 = vrot.slane %v3808, 5
    %v3811 = vor.u32 %v3807, %v3810
    %v3812 = vrot.slane %v3811, 4
    %v3814 = vshll.u32 %v3142, 16
    %v3816 = vrot.slane %v3814, 5
    %v3817 = vsel %vm1488, %v3812, %v3816
    %v3818 = vshrl.u32 %v3142, 16
    %v3820 = vrot.slane %v3818, 4
    %v3821 = vor.u32 %v3820, %v3816
    %v3822 = vrot.slane %v3821, 4
    %v3824 = vshll.u32 %v3143, 16
    %v3826 = vrot.slane %v3824, 5
    %v3827 = vsel %vm1488, %v3822, %v3826
    %v3829 = vshrl.u32 %v3144, 16
    %v3831 = vrot.slane %v3829, 4
    %v3832 = vshll.u32 %v3144, 16
    %v3834 = vrot.slane %v3832, 5
    %v3835 = vor.u32 %v3831, %v3834
    %v3836 = vrot.slane %v3835, 4
    %v3838 = vshll.u32 %v3145, 16
    %v3840 = vrot.slane %v3838, 5
    %v3841 = vsel %vm1488, %v3836, %v3840
    %v3842 = vshrl.u32 %v3145, 16
    %v3844 = vrot.slane %v3842, 4
    %v3845 = vor.u32 %v3844, %v3840
    %v3846 = vrot.slane %v3845, 4
    %v3848 = vshll.u32 %v3146, 16
    %v3850 = vrot.slane %v3848, 5
    %v3851 = vsel %vm1488, %v3846, %v3850
    %v3853 = vshrl.u32 %v3147, 16
    %v3855 = vrot.slane %v3853, 4
    %v3856 = vshll.u32 %v3147, 16
    %v3858 = vrot.slane %v3856, 5
    %v3859 = vor.u32 %v3855, %v3858
    %v3860 = vrot.slane %v3859, 4
    %v3862 = vshll.u32 %v3148, 16
    %v3864 = vrot.slane %v3862, 5
    %v3865 = vsel %vm1488, %v3860, %v3864
    %v3866 = vshrl.u32 %v3148, 16
    %v3868 = vrot.slane %v3866, 4
    %v3869 = vor.u32 %v3868, %v3864
    %v3870 = vrot.slane %v3869, 4
    %v3872 = vshll.u32 %v3149, 16
    %v3874 = vrot.slane %v3872, 5
    %v3875 = vsel %vm1488, %v3870, %v3874
    %v3877 = vshrl.u32 %v3150, 16
    %v3879 = vrot.slane %v3877, 4
    %v3880 = vshll.u32 %v3150, 16
    %v3882 = vrot.slane %v3880, 5
    %v3883 = vor.u32 %v3879, %v3882
    %v3884 = vrot.slane %v3883, 4
    %v3886 = vshll.u32 %v3151, 16
    %v3888 = vrot.slane %v3886, 5
    %v3889 = vsel %vm1488, %v3884, %v3888
    %v3890 = vshrl.u32 %v3151, 16
    %v3892 = vrot.slane %v3890, 4
    %v3893 = vor.u32 %v3892, %v3888
    %v3894 = vrot.slane %v3893, 4
    %v3896 = vshll.u32 %v3152, 16
    %v3898 = vrot.slane %v3896, 5
    %v3899 = vsel %vm1488, %v3894, %v3898
    %v3901 = vshrl.u32 %v3153, 16
    %v3903 = vrot.slane %v3901, 4
    %v3904 = vshll.u32 %v3153, 16
    %v3906 = vrot.slane %v3904, 5
    %v3907 = vor.u32 %v3903, %v3906
    %v3908 = vrot.slane %v3907, 4
    %v3910 = vshll.u32 %v3154, 16
    %v3912 = vrot.slane %v3910, 5
    %v3913 = vsel %vm1488, %v3908, %v3912
    %v3914 = vshrl.u32 %v3154, 16
    %v3916 = vrot.slane %v3914, 4
    %v3917 = vor.u32 %v3916, %v3912
    %v3918 = vrot.slane %v3917, 4
    %v3920 = vshll.u32 %v3155, 16
    %v3922 = vrot.slane %v3920, 5
    %v3923 = vsel %vm1488, %v3918, %v3922
    %3988 = vst [vmem:[#allocation3 + $0x10] sm:$0xf] %v3169
    %3989 = vst [vmem:[#allocation3 + $0x34] sm:$0xf] %v3179
    %3990 = vst [vmem:[#allocation3 + $0x58] sm:$0xf] %v3193
    %3991 = vst [vmem:[#allocation3 + $0x7c] sm:$0xf] %v3203
    %3992 = vst [vmem:[#allocation3 + $0xa0] sm:$0xf] %v3217
    %3993 = vst [vmem:[#allocation3 + $0xc4] sm:$0xf] %v3227
    %3994 = vst [vmem:[#allocation3 + $0xe8] sm:$0xf] %v3241
    %3995 = vst [vmem:[#allocation3 + $0x10c] sm:$0xf] %v3251
    %3996 = vst [vmem:[#allocation3 + $0x130] sm:$0xf] %v3265
    %3997 = vst [vmem:[#allocation3 + $0x154] sm:$0xf] %v3275
    %3998 = vst [vmem:[#allocation3 + $0x178] sm:$0xf] %v3289
    %3999 = vst [vmem:[#allocation3 + $0x19c] sm:$0xf] %v3299
    %4000 = vst [vmem:[#allocation3 + $0x1c0] sm:$0xf] %v3313
    %4001 = vst [vmem:[#allocation3 + $0x1e4] sm:$0xf] %v3323
    %4002 = vst [vmem:[#allocation3 + $0x208] sm:$0xf] %v3337
    %4003 = vst [vmem:[#allocation3 + $0x22c] sm:$0xf] %v3347
    %4004 = vst [vmem:[#allocation3 + $0x250] sm:$0xf] %v3361
    %4005 = vst [vmem:[#allocation3 + $0x274] sm:$0xf] %v3371
    %4006 = vst [vmem:[#allocation3 + $0x298] sm:$0xf] %v3385
    %4007 = vst [vmem:[#allocation3 + $0x2bc] sm:$0xf] %v3395
    %4008 = vst [vmem:[#allocation3 + $0x2e0] sm:$0xf] %v3409
    %4009 = vst [vmem:[#allocation3 + $0x304] sm:$0xf] %v3419
    %4010 = vst [vmem:[#allocation3 + $0x328] sm:$0xf] %v3433
    %4011 = vst [vmem:[#allocation3 + $0x34c] sm:$0xf] %v3443
    %4012 = vst [vmem:[#allocation3 + $0x370] sm:$0xf] %v3457
    %4013 = vst [vmem:[#allocation3 + $0x394] sm:$0xf] %v3467
    %4014 = vst [vmem:[#allocation3 + $0x3b8] sm:$0xf] %v3481
    %4015 = vst [vmem:[#allocation3 + $0x3dc] sm:$0xf] %v3491
    %4016 = vst [vmem:[#allocation3 + $0x400] sm:$0xf] %v3505
    %4017 = vst [vmem:[#allocation3 + $0x424] sm:$0xf] %v3515
    %4018 = vst [vmem:[#allocation3 + $0x448] sm:$0xf] %v3529
    %4019 = vst [vmem:[#allocation3 + $0x46c] sm:$0xf] %v3539
    %4020 = vst [vmem:[#allocation3 + $0x490] sm:$0xf] %v3553
    %4021 = vst [vmem:[#allocation3 + $0x4b4] sm:$0xf] %v3563
    %4022 = vst [vmem:[#allocation3 + $0x4d8] sm:$0xf] %v3577
    %4023 = vst [vmem:[#allocation3 + $0x4fc] sm:$0xf] %v3587
    %4024 = vst [vmem:[#allocation3 + $0x520] sm:$0xf] %v3601
    %4025 = vst [vmem:[#allocation3 + $0x544] sm:$0xf] %v3611
    %4026 = vst [vmem:[#allocation3 + $0x568] sm:$0xf] %v3625
    %4027 = vst [vmem:[#allocation3 + $0x58c] sm:$0xf] %v3635
    %4028 = vst [vmem:[#allocation3 + $0x5b0] sm:$0xf] %v3649
    %4029 = vst [vmem:[#allocation3 + $0x5d4] sm:$0xf] %v3659
    %4030 = vst [vmem:[#allocation3 + $0x5f8] sm:$0xf] %v3673
    %4031 = vst [vmem:[#allocation3 + $0x61c] sm:$0xf] %v3683
    %4032 = vst [vmem:[#allocation3 + $0x640] sm:$0xf] %v3697
    %4033 = vst [vmem:[#allocation3 + $0x664] sm:$0xf] %v3707
    %4034 = vst [vmem:[#allocation3 + $0x688] sm:$0xf] %v3721
    %4035 = vst [vmem:[#allocation3 + $0x6ac] sm:$0xf] %v3731
    %4036 = vst [vmem:[#allocation3 + $0x6d0] sm:$0xf] %v3745
    %4037 = vst [vmem:[#allocation3 + $0x6f4] sm:$0xf] %v3755
    %4038 = vst [vmem:[#allocation3 + $0x718] sm:$0xf] %v3769
    %4039 = vst [vmem:[#allocation3 + $0x73c] sm:$0xf] %v3779
    %4040 = vst [vmem:[#allocation3 + $0x760] sm:$0xf] %v3793
    %4041 = vst [vmem:[#allocation3 + $0x784] sm:$0xf] %v3803
    %4042 = vst [vmem:[#allocation3 + $0x7a8] sm:$0xf] %v3817
    %4043 = vst [vmem:[#allocation3 + $0x7cc] sm:$0xf] %v3827
    %4044 = vst [vmem:[#allocation3 + $0x7f0] sm:$0xf] %v3841
    %4045 = vst [vmem:[#allocation3 + $0x814] sm:$0xf] %v3851
    %4046 = vst [vmem:[#allocation3 + $0x838] sm:$0xf] %v3865
    %4047 = vst [vmem:[#allocation3 + $0x85c] sm:$0xf] %v3875
    %4048 = vst [vmem:[#allocation3 + $0x880] sm:$0xf] %v3889
    %4049 = vst [vmem:[#allocation3 + $0x8a4] sm:$0xf] %v3899
    %4050 = vst [vmem:[#allocation3 + $0x8c8] sm:$0xf] %v3913
    %4051 = vst [vmem:[#allocation3 + $0x8ec] sm:$0xf] %v3923
    %v4052 = vld [vmem:[%s1031] sm:$0xe]
    %v4053 = vld [vmem:[%s1031 + $0x4] sm:$0xf]
    %v4054 = vld [vmem:[%s1031 + $0x8] sm:$0x1]
    %v4055 = vld [vmem:[%s1031 + $0xc] sm:$0xe]
    %v4056 = vld [vmem:[%s1031 + $0x10] sm:$0xf]
    %v4057 = vld [vmem:[%s1031 + $0x14] sm:$0x1]
    %v4058 = vld [vmem:[%s1031 + $0x18] sm:$0xe]
    %v4059 = vld [vmem:[%s1031 + $0x1c] sm:$0xf]
    %v4060 = vld [vmem:[%s1031 + $0x20] sm:$0x1]
    %v4061 = vld [vmem:[%s1031 + $0x24] sm:$0xe]
    %v4062 = vld [vmem:[%s1031 + $0x28] sm:$0xf]
    %v4063 = vld [vmem:[%s1031 + $0x2c] sm:$0x1]
    %v4064 = vld [vmem:[%s1031 + $0x30] sm:$0xe]
    %v4065 = vld [vmem:[%s1031 + $0x34] sm:$0xf]
    %v4066 = vld [vmem:[%s1031 + $0x38] sm:$0x1]
    %v4067 = vld [vmem:[%s1031 + $0x3c] sm:$0xe]
    %v4068 = vld [vmem:[%s1031 + $0x40] sm:$0xf]
    %v4069 = vld [vmem:[%s1031 + $0x44] sm:$0x1]
    %v4070 = vld [vmem:[%s1031 + $0x48] sm:$0xe]
    %v4071 = vld [vmem:[%s1031 + $0x4c] sm:$0xf]
    %v4072 = vld [vmem:[%s1031 + $0x50] sm:$0x1]
    %v4073 = vld [vmem:[%s1031 + $0x54] sm:$0xe]
    %v4074 = vld [vmem:[%s1031 + $0x58] sm:$0xf]
    %v4075 = vld [vmem:[%s1031 + $0x5c] sm:$0x1]
    %v4076 = vld [vmem:[%s1031 + $0x60] sm:$0xe]
    %v4077 = vld [vmem:[%s1031 + $0x64] sm:$0xf]
    %v4078 = vld [vmem:[%s1031 + $0x68] sm:$0x1]
    %v4079 = vld [vmem:[%s1031 + $0x6c] sm:$0xe]
    %v4080 = vld [vmem:[%s1031 + $0x70] sm:$0xf]
    %v4081 = vld [vmem:[%s1031 + $0x74] sm:$0x1]
    %v4082 = vld [vmem:[%s1031 + $0x78] sm:$0xe]
    %v4083 = vld [vmem:[%s1031 + $0x7c] sm:$0xf]
    %v4084 = vld [vmem:[%s1031 + $0x80] sm:$0x1]
    %v4085 = vld [vmem:[%s1031 + $0x84] sm:$0xe]
    %v4086 = vld [vmem:[%s1031 + $0x88] sm:$0xf]
    %v4087 = vld [vmem:[%s1031 + $0x8c] sm:$0x1]
    %v4088 = vld [vmem:[%s1031 + $0x90] sm:$0xe]
    %v4089 = vld [vmem:[%s1031 + $0x94] sm:$0xf]
    %v4090 = vld [vmem:[%s1031 + $0x98] sm:$0x1]
    %v4091 = vld [vmem:[%s1031 + $0x9c] sm:$0xe]
    %v4092 = vld [vmem:[%s1031 + $0xa0] sm:$0xf]
    %v4093 = vld [vmem:[%s1031 + $0xa4] sm:$0x1]
    %v4094 = vld [vmem:[%s1031 + $0xa8] sm:$0xe]
    %v4095 = vld [vmem:[%s1031 + $0xac] sm:$0xf]
    %v4096 = vld [vmem:[%s1031 + $0xb0] sm:$0x1]
    %v4097 = vld [vmem:[%s1031 + $0xb4] sm:$0xe]
    %v4098 = vld [vmem:[%s1031 + $0xb8] sm:$0xf]
    %v4099 = vld [vmem:[%s1031 + $0xbc] sm:$0x1]
    %v4100 = vld [vmem:[%s1031 + $0xd8] sm:$0xe]
    %v4101 = vld [vmem:[%s1031 + $0xdc] sm:$0xf]
    %v4102 = vld [vmem:[%s1031 + $0xe0] sm:$0x1]
    %v4103 = vld [vmem:[%s1031 + $0xe4] sm:$0xe]
    %v4104 = vld [vmem:[%s1031 + $0xe8] sm:$0xf]
    %v4105 = vld [vmem:[%s1031 + $0xec] sm:$0x1]
    %v4106 = vld [vmem:[%s1031 + $0xf0] sm:$0xe]
    %v4107 = vld [vmem:[%s1031 + $0xf4] sm:$0xf]
    %v4108 = vld [vmem:[%s1031 + $0xf8] sm:$0x1]
    %v4109 = vld [vmem:[%s1031 + $0xfc] sm:$0xe]
    %v4110 = vld [vmem:[%s1031 + $0x100] sm:$0xf]
    %v4111 = vld [vmem:[%s1031 + $0x104] sm:$0x1]
    %v4112 = vld [vmem:[%s1031 + $0x108] sm:$0xe]
    %v4113 = vld [vmem:[%s1031 + $0x10c] sm:$0xf]
    %v4114 = vld [vmem:[%s1031 + $0x110] sm:$0x1]
    %v4115 = vld [vmem:[%s1031 + $0x114] sm:$0xe]
    %v4116 = vld [vmem:[%s1031 + $0x118] sm:$0xf]
    %v4117 = vld [vmem:[%s1031 + $0x11c] sm:$0x1]
    %v4118 = vld [vmem:[%s1031 + $0x120] sm:$0xe]
    %v4119 = vld [vmem:[%s1031 + $0x124] sm:$0xf]
    %v4120 = vld [vmem:[%s1031 + $0x128] sm:$0x1]
    %v4121 = vld [vmem:[%s1031 + $0x12c] sm:$0xe]
    %v4122 = vld [vmem:[%s1031 + $0x130] sm:$0xf]
    %v4123 = vld [vmem:[%s1031 + $0x134] sm:$0x1]
    %v4124 = vld [vmem:[%s1031 + $0x138] sm:$0xe]
    %v4125 = vld [vmem:[%s1031 + $0x13c] sm:$0xf]
    %v4126 = vld [vmem:[%s1031 + $0x140] sm:$0x1]
    %v4127 = vld [vmem:[%s1031 + $0x144] sm:$0xe]
    %v4128 = vld [vmem:[%s1031 + $0x148] sm:$0xf]
    %v4129 = vld [vmem:[%s1031 + $0x14c] sm:$0x1]
    %v4130 = vld [vmem:[%s1031 + $0x150] sm:$0xe]
    %v4131 = vld [vmem:[%s1031 + $0x154] sm:$0xf]
    %v4132 = vld [vmem:[%s1031 + $0x158] sm:$0x1]
    %v4133 = vld [vmem:[%s1031 + $0x15c] sm:$0xe]
    %v4134 = vld [vmem:[%s1031 + $0x160] sm:$0xf]
    %v4135 = vld [vmem:[%s1031 + $0x164] sm:$0x1]
    %v4136 = vld [vmem:[%s1031 + $0x168] sm:$0xe]
    %v4137 = vld [vmem:[%s1031 + $0x16c] sm:$0xf]
    %v4138 = vld [vmem:[%s1031 + $0x170] sm:$0x1]
    %v4139 = vld [vmem:[%s1031 + $0x174] sm:$0xe]
    %v4140 = vld [vmem:[%s1031 + $0x178] sm:$0xf]
    %v4141 = vld [vmem:[%s1031 + $0x17c] sm:$0x1]
    %v4142 = vld [vmem:[%s1031 + $0x180] sm:$0xe]
    %v4143 = vld [vmem:[%s1031 + $0x184] sm:$0xf]
    %v4144 = vld [vmem:[%s1031 + $0x188] sm:$0x1]
    %v4145 = vld [vmem:[%s1031 + $0x18c] sm:$0xe]
    %v4146 = vld [vmem:[%s1031 + $0x190] sm:$0xf]
    %v4147 = vld [vmem:[%s1031 + $0x194] sm:$0x1]
    %v4244 = vrot.slane %v4052, 5
    %v4245 = vrot.slane %v4244, 4
    %v4246 = vrot.slane %v4053, 5
    %v4247 = vsel %vm2579, %v4245, %v4246
    %v4248 = vrot.slane %v4246, 4
    %v4249 = vrot.slane %v4054, 5
    %v4250 = vsel %vm2579, %v4248, %v4249
    %v4251 = vrot.slane %v4055, 5
    %v4252 = vrot.slane %v4251, 4
    %v4253 = vrot.slane %v4056, 5
    %v4254 = vsel %vm2579, %v4252, %v4253
    %v4255 = vrot.slane %v4253, 4
    %v4256 = vrot.slane %v4057, 5
    %v4257 = vsel %vm2579, %v4255, %v4256
    %v4258 = vrot.slane %v4058, 5
    %v4259 = vrot.slane %v4258, 4
    %v4260 = vrot.slane %v4059, 5
    %v4261 = vsel %vm2579, %v4259, %v4260
    %v4262 = vrot.slane %v4260, 4
    %v4263 = vrot.slane %v4060, 5
    %v4264 = vsel %vm2579, %v4262, %v4263
    %v4265 = vrot.slane %v4061, 5
    %v4266 = vrot.slane %v4265, 4
    %v4267 = vrot.slane %v4062, 5
    %v4268 = vsel %vm2579, %v4266, %v4267
    %v4269 = vrot.slane %v4267, 4
    %v4270 = vrot.slane %v4063, 5
    %v4271 = vsel %vm2579, %v4269, %v4270
    %v4272 = vrot.slane %v4064, 5
    %v4273 = vrot.slane %v4272, 4
    %v4274 = vrot.slane %v4065, 5
    %v4275 = vsel %vm2579, %v4273, %v4274
    %v4276 = vrot.slane %v4274, 4
    %v4277 = vrot.slane %v4066, 5
    %v4278 = vsel %vm2579, %v4276, %v4277
    %v4279 = vrot.slane %v4067, 5
    %v4280 = vrot.slane %v4279, 4
    %v4281 = vrot.slane %v4068, 5
    %v4282 = vsel %vm2579, %v4280, %v4281
    %v4283 = vrot.slane %v4281, 4
    %v4284 = vrot.slane %v4069, 5
    %v4285 = vsel %vm2579, %v4283, %v4284
    %v4286 = vrot.slane %v4070, 5
    %v4287 = vrot.slane %v4286, 4
    %v4288 = vrot.slane %v4071, 5
    %v4289 = vsel %vm2579, %v4287, %v4288
    %v4290 = vrot.slane %v4288, 4
    %v4291 = vrot.slane %v4072, 5
    %v4292 = vsel %vm2579, %v4290, %v4291
    %v4293 = vrot.slane %v4073, 5
    %v4294 = vrot.slane %v4293, 4
    %v4295 = vrot.slane %v4074, 5
    %v4296 = vsel %vm2579, %v4294, %v4295
    %v4297 = vrot.slane %v4295, 4
    %v4298 = vrot.slane %v4075, 5
    %v4299 = vsel %vm2579, %v4297, %v4298
    %v4300 = vrot.slane %v4076, 5
    %v4301 = vrot.slane %v4300, 4
    %v4302 = vrot.slane %v4077, 5
    %v4303 = vsel %vm2579, %v4301, %v4302
    %v4304 = vrot.slane %v4302, 4
    %v4305 = vrot.slane %v4078, 5
    %v4306 = vsel %vm2579, %v4304, %v4305
    %v4307 = vrot.slane %v4079, 5
    %v4308 = vrot.slane %v4307, 4
    %v4309 = vrot.slane %v4080, 5
    %v4310 = vsel %vm2579, %v4308, %v4309
    %v4311 = vrot.slane %v4309, 4
    %v4312 = vrot.slane %v4081, 5
    %v4313 = vsel %vm2579, %v4311, %v4312
    %v4314 = vrot.slane %v4082, 5
    %v4315 = vrot.slane %v4314, 4
    %v4316 = vrot.slane %v4083, 5
    %v4317 = vsel %vm2579, %v4315, %v4316
    %v4318 = vrot.slane %v4316, 4
    %v4319 = vrot.slane %v4084, 5
    %v4320 = vsel %vm2579, %v4318, %v4319
    %v4321 = vrot.slane %v4085, 5
    %v4322 = vrot.slane %v4321, 4
    %v4323 = vrot.slane %v4086, 5
    %v4324 = vsel %vm2579, %v4322, %v4323
    %v4325 = vrot.slane %v4323, 4
    %v4326 = vrot.slane %v4087, 5
    %v4327 = vsel %vm2579, %v4325, %v4326
    %v4328 = vrot.slane %v4088, 5
    %v4329 = vrot.slane %v4328, 4
    %v4330 = vrot.slane %v4089, 5
    %v4331 = vsel %vm2579, %v4329, %v4330
    %v4332 = vrot.slane %v4330, 4
    %v4333 = vrot.slane %v4090, 5
    %v4334 = vsel %vm2579, %v4332, %v4333
    %v4335 = vrot.slane %v4091, 5
    %v4336 = vrot.slane %v4335, 4
    %v4337 = vrot.slane %v4092, 5
    %v4338 = vsel %vm2579, %v4336, %v4337
    %v4339 = vrot.slane %v4337, 4
    %v4340 = vrot.slane %v4093, 5
    %v4341 = vsel %vm2579, %v4339, %v4340
    %v4342 = vrot.slane %v4094, 5
    %v4343 = vrot.slane %v4342, 4
    %v4344 = vrot.slane %v4095, 5
    %v4345 = vsel %vm2579, %v4343, %v4344
    %v4346 = vrot.slane %v4344, 4
    %v4347 = vrot.slane %v4096, 5
    %v4348 = vsel %vm2579, %v4346, %v4347
    %v4349 = vrot.slane %v4097, 5
    %v4350 = vrot.slane %v4349, 4
    %v4351 = vrot.slane %v4098, 5
    %v4352 = vsel %vm2579, %v4350, %v4351
    %v4353 = vrot.slane %v4351, 4
    %v4354 = vrot.slane %v4099, 5
    %v4355 = vsel %vm2579, %v4353, %v4354
    %v4356 = vrot.slane %v4100, 5
    %v4357 = vrot.slane %v4356, 4
    %v4358 = vrot.slane %v4101, 5
    %v4359 = vsel %vm2579, %v4357, %v4358
    %v4360 = vrot.slane %v4358, 4
    %v4361 = vrot.slane %v4102, 5
    %v4362 = vsel %vm2579, %v4360, %v4361
    %v4363 = vrot.slane %v4103, 5
    %v4364 = vrot.slane %v4363, 4
    %v4365 = vrot.slane %v4104, 5
    %v4366 = vsel %vm2579, %v4364, %v4365
    %v4367 = vrot.slane %v4365, 4
    %v4368 = vrot.slane %v4105, 5
    %v4369 = vsel %vm2579, %v4367, %v4368
    %v4370 = vrot.slane %v4106, 5
    %v4371 = vrot.slane %v4370, 4
    %v4372 = vrot.slane %v4107, 5
    %v4373 = vsel %vm2579, %v4371, %v4372
    %v4374 = vrot.slane %v4372, 4
    %v4375 = vrot.slane %v4108, 5
    %v4376 = vsel %vm2579, %v4374, %v4375
    %v4377 = vrot.slane %v4109, 5
    %v4378 = vrot.slane %v4377, 4
    %v4379 = vrot.slane %v4110, 5
    %v4380 = vsel %vm2579, %v4378, %v4379
    %v4381 = vrot.slane %v4379, 4
    %v4382 = vrot.slane %v4111, 5
    %v4383 = vsel %vm2579, %v4381, %v4382
    %v4384 = vrot.slane %v4112, 5
    %v4385 = vrot.slane %v4384, 4
    %v4386 = vrot.slane %v4113, 5
    %v4387 = vsel %vm2579, %v4385, %v4386
    %v4388 = vrot.slane %v4386, 4
    %v4389 = vrot.slane %v4114, 5
    %v4390 = vsel %vm2579, %v4388, %v4389
    %v4391 = vrot.slane %v4115, 5
    %v4392 = vrot.slane %v4391, 4
    %v4393 = vrot.slane %v4116, 5
    %v4394 = vsel %vm2579, %v4392, %v4393
    %v4395 = vrot.slane %v4393, 4
    %v4396 = vrot.slane %v4117, 5
    %v4397 = vsel %vm2579, %v4395, %v4396
    %v4398 = vrot.slane %v4118, 5
    %v4399 = vrot.slane %v4398, 4
    %v4400 = vrot.slane %v4119, 5
    %v4401 = vsel %vm2579, %v4399, %v4400
    %v4402 = vrot.slane %v4400, 4
    %v4403 = vrot.slane %v4120, 5
    %v4404 = vsel %vm2579, %v4402, %v4403
    %v4405 = vrot.slane %v4121, 5
    %v4406 = vrot.slane %v4405, 4
    %v4407 = vrot.slane %v4122, 5
    %v4408 = vsel %vm2579, %v4406, %v4407
    %v4409 = vrot.slane %v4407, 4
    %v4410 = vrot.slane %v4123, 5
    %v4411 = vsel %vm2579, %v4409, %v4410
    %v4412 = vrot.slane %v4124, 5
    %v4413 = vrot.slane %v4412, 4
    %v4414 = vrot.slane %v4125, 5
    %v4415 = vsel %vm2579, %v4413, %v4414
    %v4416 = vrot.slane %v4414, 4
    %v4417 = vrot.slane %v4126, 5
    %v4418 = vsel %vm2579, %v4416, %v4417
    %v4419 = vrot.slane %v4127, 5
    %v4420 = vrot.slane %v4419, 4
    %v4421 = vrot.slane %v4128, 5
    %v4422 = vsel %vm2579, %v4420, %v4421
    %v4423 = vrot.slane %v4421, 4
    %v4424 = vrot.slane %v4129, 5
    %v4425 = vsel %vm2579, %v4423, %v4424
    %v4426 = vrot.slane %v4130, 5
    %v4427 = vrot.slane %v4426, 4
    %v4428 = vrot.slane %v4131, 5
    %v4429 = vsel %vm2579, %v4427, %v4428
    %v4430 = vrot.slane %v4428, 4
    %v4431 = vrot.slane %v4132, 5
    %v4432 = vsel %vm2579, %v4430, %v4431
    %v4433 = vrot.slane %v4133, 5
    %v4434 = vrot.slane %v4433, 4
    %v4435 = vrot.slane %v4134, 5
    %v4436 = vsel %vm2579, %v4434, %v4435
    %v4437 = vrot.slane %v4435, 4
    %v4438 = vrot.slane %v4135, 5
    %v4439 = vsel %vm2579, %v4437, %v4438
    %v4440 = vrot.slane %v4136, 5
    %v4441 = vrot.slane %v4440, 4
    %v4442 = vrot.slane %v4137, 5
    %v4443 = vsel %vm2579, %v4441, %v4442
    %v4444 = vrot.slane %v4442, 4
    %v4445 = vrot.slane %v4138, 5
    %v4446 = vsel %vm2579, %v4444, %v4445
    %v4447 = vrot.slane %v4139, 5
    %v4448 = vrot.slane %v4447, 4
    %v4449 = vrot.slane %v4140, 5
    %v4450 = vsel %vm2579, %v4448, %v4449
    %v4451 = vrot.slane %v4449, 4
    %v4452 = vrot.slane %v4141, 5
    %v4453 = vsel %vm2579, %v4451, %v4452
    %v4454 = vrot.slane %v4142, 5
    %v4455 = vrot.slane %v4454, 4
    %v4456 = vrot.slane %v4143, 5
    %v4457 = vsel %vm2579, %v4455, %v4456
    %v4458 = vrot.slane %v4456, 4
    %v4459 = vrot.slane %v4144, 5
    %v4460 = vsel %vm2579, %v4458, %v4459
    %v4461 = vrot.slane %v4145, 5
    %v4462 = vrot.slane %v4461, 4
    %v4463 = vrot.slane %v4146, 5
    %v4464 = vsel %vm2579, %v4462, %v4463
    %v4465 = vrot.slane %v4463, 4
    %v4466 = vrot.slane %v4147, 5
    %v4467 = vsel %vm2579, %v4465, %v4466
    %4532 = vst [vmem:[#allocation3 + $0x14] sm:$0xf] %v4247
    %4533 = vst [vmem:[#allocation3 + $0x38] sm:$0xf] %v4250
    %4534 = vst [vmem:[#allocation3 + $0x5c] sm:$0xf] %v4254
    %4535 = vst [vmem:[#allocation3 + $0x80] sm:$0xf] %v4257
    %4536 = vst [vmem:[#allocation3 + $0xa4] sm:$0xf] %v4261
    %4537 = vst [vmem:[#allocation3 + $0xc8] sm:$0xf] %v4264
    %4538 = vst [vmem:[#allocation3 + $0xec] sm:$0xf] %v4268
    %4539 = vst [vmem:[#allocation3 + $0x110] sm:$0xf] %v4271
    %4540 = vst [vmem:[#allocation3 + $0x134] sm:$0xf] %v4275
    %4541 = vst [vmem:[#allocation3 + $0x158] sm:$0xf] %v4278
    %4542 = vst [vmem:[#allocation3 + $0x17c] sm:$0xf] %v4282
    %4543 = vst [vmem:[#allocation3 + $0x1a0] sm:$0xf] %v4285
    %4544 = vst [vmem:[#allocation3 + $0x1c4] sm:$0xf] %v4289
    %4545 = vst [vmem:[#allocation3 + $0x1e8] sm:$0xf] %v4292
    %4546 = vst [vmem:[#allocation3 + $0x20c] sm:$0xf] %v4296
    %4547 = vst [vmem:[#allocation3 + $0x230] sm:$0xf] %v4299
    %4548 = vst [vmem:[#allocation3 + $0x254] sm:$0xf] %v4303
    %4549 = vst [vmem:[#allocation3 + $0x278] sm:$0xf] %v4306
    %4550 = vst [vmem:[#allocation3 + $0x29c] sm:$0xf] %v4310
    %4551 = vst [vmem:[#allocation3 + $0x2c0] sm:$0xf] %v4313
    %4552 = vst [vmem:[#allocation3 + $0x2e4] sm:$0xf] %v4317
    %4553 = vst [vmem:[#allocation3 + $0x308] sm:$0xf] %v4320
    %4554 = vst [vmem:[#allocation3 + $0x32c] sm:$0xf] %v4324
    %4555 = vst [vmem:[#allocation3 + $0x350] sm:$0xf] %v4327
    %4556 = vst [vmem:[#allocation3 + $0x374] sm:$0xf] %v4331
    %4557 = vst [vmem:[#allocation3 + $0x398] sm:$0xf] %v4334
    %4558 = vst [vmem:[#allocation3 + $0x3bc] sm:$0xf] %v4338
    %4559 = vst [vmem:[#allocation3 + $0x3e0] sm:$0xf] %v4341
    %4560 = vst [vmem:[#allocation3 + $0x404] sm:$0xf] %v4345
    %4561 = vst [vmem:[#allocation3 + $0x428] sm:$0xf] %v4348
    %4562 = vst [vmem:[#allocation3 + $0x44c] sm:$0xf] %v4352
    %4563 = vst [vmem:[#allocation3 + $0x470] sm:$0xf] %v4355
    %4564 = vst [vmem:[#allocation3 + $0x494] sm:$0xf] %v4359
    %4565 = vst [vmem:[#allocation3 + $0x4b8] sm:$0xf] %v4362
    %4566 = vst [vmem:[#allocation3 + $0x4dc] sm:$0xf] %v4366
    %4567 = vst [vmem:[#allocation3 + $0x500] sm:$0xf] %v4369
    %4568 = vst [vmem:[#allocation3 + $0x524] sm:$0xf] %v4373
    %4569 = vst [vmem:[#allocation3 + $0x548] sm:$0xf] %v4376
    %4570 = vst [vmem:[#allocation3 + $0x56c] sm:$0xf] %v4380
    %4571 = vst [vmem:[#allocation3 + $0x590] sm:$0xf] %v4383
    %4572 = vst [vmem:[#allocation3 + $0x5b4] sm:$0xf] %v4387
    %4573 = vst [vmem:[#allocation3 + $0x5d8] sm:$0xf] %v4390
    %4574 = vst [vmem:[#allocation3 + $0x5fc] sm:$0xf] %v4394
    %4575 = vst [vmem:[#allocation3 + $0x620] sm:$0xf] %v4397
    %4576 = vst [vmem:[#allocation3 + $0x644] sm:$0xf] %v4401
    %4577 = vst [vmem:[#allocation3 + $0x668] sm:$0xf] %v4404
    %4578 = vst [vmem:[#allocation3 + $0x68c] sm:$0xf] %v4408
    %4579 = vst [vmem:[#allocation3 + $0x6b0] sm:$0xf] %v4411
    %4580 = vst [vmem:[#allocation3 + $0x6d4] sm:$0xf] %v4415
    %4581 = vst [vmem:[#allocation3 + $0x6f8] sm:$0xf] %v4418
    %4582 = vst [vmem:[#allocation3 + $0x71c] sm:$0xf] %v4422
    %4583 = vst [vmem:[#allocation3 + $0x740] sm:$0xf] %v4425
    %4584 = vst [vmem:[#allocation3 + $0x764] sm:$0xf] %v4429
    %4585 = vst [vmem:[#allocation3 + $0x788] sm:$0xf] %v4432
    %4586 = vst [vmem:[#allocation3 + $0x7ac] sm:$0xf] %v4436
    %4587 = vst [vmem:[#allocation3 + $0x7d0] sm:$0xf] %v4439
    %4588 = vst [vmem:[#allocation3 + $0x7f4] sm:$0xf] %v4443
    %4589 = vst [vmem:[#allocation3 + $0x818] sm:$0xf] %v4446
    %4590 = vst [vmem:[#allocation3 + $0x83c] sm:$0xf] %v4450
    %4591 = vst [vmem:[#allocation3 + $0x860] sm:$0xf] %v4453
    %4592 = vst [vmem:[#allocation3 + $0x884] sm:$0xf] %v4457
    %4593 = vst [vmem:[#allocation3 + $0x8a8] sm:$0xf] %v4460
    %4594 = vst [vmem:[#allocation3 + $0x8cc] sm:$0xf] %v4464
    %4595 = vst [vmem:[#allocation3 + $0x8f0] sm:$0xf] %v4467
    %s4596 = scalar_lea.vmem [#allocation2], 24
    %v4597 = vld [vmem:[%s4596] sm:$0xf]
    %v4598 = vld [vmem:[%s4596 + $0x4] sm:$0xf]
    %v4599 = vld [vmem:[%s4596 + $0xc] sm:$0xf]
    %v4600 = vld [vmem:[%s4596 + $0x10] sm:$0xf]
    %v4601 = vld [vmem:[%s4596 + $0x18] sm:$0xf]
    %v4602 = vld [vmem:[%s4596 + $0x1c] sm:$0xf]
    %v4603 = vld [vmem:[%s4596 + $0x24] sm:$0xf]
    %v4604 = vld [vmem:[%s4596 + $0x28] sm:$0xf]
    %v4605 = vld [vmem:[%s4596 + $0x30] sm:$0xf]
    %v4606 = vld [vmem:[%s4596 + $0x34] sm:$0xf]
    %v4607 = vld [vmem:[%s4596 + $0x3c] sm:$0xf]
    %v4608 = vld [vmem:[%s4596 + $0x40] sm:$0xf]
    %v4609 = vld [vmem:[%s4596 + $0x48] sm:$0xf]
    %v4610 = vld [vmem:[%s4596 + $0x4c] sm:$0xf]
    %v4611 = vld [vmem:[%s4596 + $0x54] sm:$0xf]
    %v4612 = vld [vmem:[%s4596 + $0x58] sm:$0xf]
    %v4613 = vld [vmem:[%s4596 + $0x60] sm:$0xf]
    %v4614 = vld [vmem:[%s4596 + $0x64] sm:$0xf]
    %v4615 = vld [vmem:[%s4596 + $0x6c] sm:$0xf]
    %v4616 = vld [vmem:[%s4596 + $0x70] sm:$0xf]
    %v4617 = vld [vmem:[%s4596 + $0x78] sm:$0xf]
    %v4618 = vld [vmem:[%s4596 + $0x7c] sm:$0xf]
    %v4619 = vld [vmem:[%s4596 + $0x84] sm:$0xf]
    %v4620 = vld [vmem:[%s4596 + $0x88] sm:$0xf]
    %v4621 = vld [vmem:[%s4596 + $0x90] sm:$0xf]
    %v4622 = vld [vmem:[%s4596 + $0x94] sm:$0xf]
    %v4623 = vld [vmem:[%s4596 + $0x9c] sm:$0xf]
    %v4624 = vld [vmem:[%s4596 + $0xa0] sm:$0xf]
    %v4625 = vld [vmem:[%s4596 + $0xa8] sm:$0xf]
    %v4626 = vld [vmem:[%s4596 + $0xac] sm:$0xf]
    %v4627 = vld [vmem:[%s4596 + $0xb4] sm:$0xf]
    %v4628 = vld [vmem:[%s4596 + $0xb8] sm:$0xf]
    %v4629 = vld [vmem:[%s4596 + $0xd8] sm:$0xf]
    %v4630 = vld [vmem:[%s4596 + $0xdc] sm:$0xf]
    %v4631 = vld [vmem:[%s4596 + $0xe4] sm:$0xf]
    %v4632 = vld [vmem:[%s4596 + $0xe8] sm:$0xf]
    %v4633 = vld [vmem:[%s4596 + $0xf0] sm:$0xf]
    %v4634 = vld [vmem:[%s4596 + $0xf4] sm:$0xf]
    %v4635 = vld [vmem:[%s4596 + $0xfc] sm:$0xf]
    %v4636 = vld [vmem:[%s4596 + $0x100] sm:$0xf]
    %v4637 = vld [vmem:[%s4596 + $0x108] sm:$0xf]
    %v4638 = vld [vmem:[%s4596 + $0x10c] sm:$0xf]
    %v4639 = vld [vmem:[%s4596 + $0x114] sm:$0xf]
    %v4640 = vld [vmem:[%s4596 + $0x118] sm:$0xf]
    %v4641 = vld [vmem:[%s4596 + $0x120] sm:$0xf]
    %v4642 = vld [vmem:[%s4596 + $0x124] sm:$0xf]
    %v4643 = vld [vmem:[%s4596 + $0x12c] sm:$0xf]
    %v4644 = vld [vmem:[%s4596 + $0x130] sm:$0xf]
    %v4645 = vld [vmem:[%s4596 + $0x138] sm:$0xf]
    %v4646 = vld [vmem:[%s4596 + $0x13c] sm:$0xf]
    %v4647 = vld [vmem:[%s4596 + $0x144] sm:$0xf]
    %v4648 = vld [vmem:[%s4596 + $0x148] sm:$0xf]
    %v4649 = vld [vmem:[%s4596 + $0x150] sm:$0xf]
    %v4650 = vld [vmem:[%s4596 + $0x154] sm:$0xf]
    %v4651 = vld [vmem:[%s4596 + $0x15c] sm:$0xf]
    %v4652 = vld [vmem:[%s4596 + $0x160] sm:$0xf]
    %v4653 = vld [vmem:[%s4596 + $0x168] sm:$0xf]
    %v4654 = vld [vmem:[%s4596 + $0x16c] sm:$0xf]
    %v4655 = vld [vmem:[%s4596 + $0x174] sm:$0xf]
    %v4656 = vld [vmem:[%s4596 + $0x178] sm:$0xf]
    %v4657 = vld [vmem:[%s4596 + $0x180] sm:$0xf]
    %v4658 = vld [vmem:[%s4596 + $0x184] sm:$0xf]
    %v4659 = vld [vmem:[%s4596 + $0x18c] sm:$0xf]
    %v4660 = vld [vmem:[%s4596 + $0x190] sm:$0xf]
    %4661 = vst [vmem:[#allocation3 + $0x18] sm:$0xf] %v4597
    %4662 = vst [vmem:[#allocation3 + $0x3c] sm:$0xf] %v4598
    %4663 = vst [vmem:[#allocation3 + $0x60] sm:$0xf] %v4599
    %4664 = vst [vmem:[#allocation3 + $0x84] sm:$0xf] %v4600
    %4665 = vst [vmem:[#allocation3 + $0xa8] sm:$0xf] %v4601
    %4666 = vst [vmem:[#allocation3 + $0xcc] sm:$0xf] %v4602
    %4667 = vst [vmem:[#allocation3 + $0xf0] sm:$0xf] %v4603
    %4668 = vst [vmem:[#allocation3 + $0x114] sm:$0xf] %v4604
    %4669 = vst [vmem:[#allocation3 + $0x138] sm:$0xf] %v4605
    %4670 = vst [vmem:[#allocation3 + $0x15c] sm:$0xf] %v4606
    %4671 = vst [vmem:[#allocation3 + $0x180] sm:$0xf] %v4607
    %4672 = vst [vmem:[#allocation3 + $0x1a4] sm:$0xf] %v4608
    %4673 = vst [vmem:[#allocation3 + $0x1c8] sm:$0xf] %v4609
    %4674 = vst [vmem:[#allocation3 + $0x1ec] sm:$0xf] %v4610
    %4675 = vst [vmem:[#allocation3 + $0x210] sm:$0xf] %v4611
    %4676 = vst [vmem:[#allocation3 + $0x234] sm:$0xf] %v4612
    %4677 = vst [vmem:[#allocation3 + $0x258] sm:$0xf] %v4613
    %4678 = vst [vmem:[#allocation3 + $0x27c] sm:$0xf] %v4614
    %4679 = vst [vmem:[#allocation3 + $0x2a0] sm:$0xf] %v4615
    %4680 = vst [vmem:[#allocation3 + $0x2c4] sm:$0xf] %v4616
    %4681 = vst [vmem:[#allocation3 + $0x2e8] sm:$0xf] %v4617
    %4682 = vst [vmem:[#allocation3 + $0x30c] sm:$0xf] %v4618
    %4683 = vst [vmem:[#allocation3 + $0x330] sm:$0xf] %v4619
    %4684 = vst [vmem:[#allocation3 + $0x354] sm:$0xf] %v4620
    %4685 = vst [vmem:[#allocation3 + $0x378] sm:$0xf] %v4621
    %4686 = vst [vmem:[#allocation3 + $0x39c] sm:$0xf] %v4622
    %4687 = vst [vmem:[#allocation3 + $0x3c0] sm:$0xf] %v4623
    %4688 = vst [vmem:[#allocation3 + $0x3e4] sm:$0xf] %v4624
    %4689 = vst [vmem:[#allocation3 + $0x408] sm:$0xf] %v4625
    %4690 = vst [vmem:[#allocation3 + $0x42c] sm:$0xf] %v4626
    %4691 = vst [vmem:[#allocation3 + $0x450] sm:$0xf] %v4627
    %4692 = vst [vmem:[#allocation3 + $0x474] sm:$0xf] %v4628
    %4693 = vst [vmem:[#allocation3 + $0x498] sm:$0xf] %v4629
    %4694 = vst [vmem:[#allocation3 + $0x4bc] sm:$0xf] %v4630
    %4695 = vst [vmem:[#allocation3 + $0x4e0] sm:$0xf] %v4631
    %4696 = vst [vmem:[#allocation3 + $0x504] sm:$0xf] %v4632
    %4697 = vst [vmem:[#allocation3 + $0x528] sm:$0xf] %v4633
    %4698 = vst [vmem:[#allocation3 + $0x54c] sm:$0xf] %v4634
    %4699 = vst [vmem:[#allocation3 + $0x570] sm:$0xf] %v4635
    %4700 = vst [vmem:[#allocation3 + $0x594] sm:$0xf] %v4636
    %4701 = vst [vmem:[#allocation3 + $0x5b8] sm:$0xf] %v4637
    %4702 = vst [vmem:[#allocation3 + $0x5dc] sm:$0xf] %v4638
    %4703 = vst [vmem:[#allocation3 + $0x600] sm:$0xf] %v4639
    %4704 = vst [vmem:[#allocation3 + $0x624] sm:$0xf] %v4640
    %4705 = vst [vmem:[#allocation3 + $0x648] sm:$0xf] %v4641
    %4706 = vst [vmem:[#allocation3 + $0x66c] sm:$0xf] %v4642
    %4707 = vst [vmem:[#allocation3 + $0x690] sm:$0xf] %v4643
    %4708 = vst [vmem:[#allocation3 + $0x6b4] sm:$0xf] %v4644
    %4709 = vst [vmem:[#allocation3 + $0x6d8] sm:$0xf] %v4645
    %4710 = vst [vmem:[#allocation3 + $0x6fc] sm:$0xf] %v4646
    %4711 = vst [vmem:[#allocation3 + $0x720] sm:$0xf] %v4647
    %4712 = vst [vmem:[#allocation3 + $0x744] sm:$0xf] %v4648
    %4713 = vst [vmem:[#allocation3 + $0x768] sm:$0xf] %v4649
    %4714 = vst [vmem:[#allocation3 + $0x78c] sm:$0xf] %v4650
    %4715 = vst [vmem:[#allocation3 + $0x7b0] sm:$0xf] %v4651
    %4716 = vst [vmem:[#allocation3 + $0x7d4] sm:$0xf] %v4652
    %4717 = vst [vmem:[#allocation3 + $0x7f8] sm:$0xf] %v4653
    %4718 = vst [vmem:[#allocation3 + $0x81c] sm:$0xf] %v4654
    %4719 = vst [vmem:[#allocation3 + $0x840] sm:$0xf] %v4655
    %4720 = vst [vmem:[#allocation3 + $0x864] sm:$0xf] %v4656
    %4721 = vst [vmem:[#allocation3 + $0x888] sm:$0xf] %v4657
    %4722 = vst [vmem:[#allocation3 + $0x8ac] sm:$0xf] %v4658
    %4723 = vst [vmem:[#allocation3 + $0x8d0] sm:$0xf] %v4659
    %4724 = vst [vmem:[#allocation3 + $0x8f4] sm:$0xf] %v4660
    %v4725 = vld [vmem:[%s4596] sm:$0xf]
    %v4726 = vld [vmem:[%s4596 + $0x4] sm:$0xf]
    %v4727 = vld [vmem:[%s4596 + $0x8] sm:$0x1]
    %v4728 = vld [vmem:[%s4596 + $0xc] sm:$0xf]
    %v4729 = vld [vmem:[%s4596 + $0x10] sm:$0xf]
    %v4730 = vld [vmem:[%s4596 + $0x14] sm:$0x1]
    %v4731 = vld [vmem:[%s4596 + $0x18] sm:$0xf]
    %v4732 = vld [vmem:[%s4596 + $0x1c] sm:$0xf]
    %v4733 = vld [vmem:[%s4596 + $0x20] sm:$0x1]
    %v4734 = vld [vmem:[%s4596 + $0x24] sm:$0xf]
    %v4735 = vld [vmem:[%s4596 + $0x28] sm:$0xf]
    %v4736 = vld [vmem:[%s4596 + $0x2c] sm:$0x1]
    %v4737 = vld [vmem:[%s4596 + $0x30] sm:$0xf]
    %v4738 = vld [vmem:[%s4596 + $0x34] sm:$0xf]
    %v4739 = vld [vmem:[%s4596 + $0x38] sm:$0x1]
    %v4740 = vld [vmem:[%s4596 + $0x3c] sm:$0xf]
    %v4741 = vld [vmem:[%s4596 + $0x40] sm:$0xf]
    %v4742 = vld [vmem:[%s4596 + $0x44] sm:$0x1]
    %v4743 = vld [vmem:[%s4596 + $0x48] sm:$0xf]
    %v4744 = vld [vmem:[%s4596 + $0x4c] sm:$0xf]
    %v4745 = vld [vmem:[%s4596 + $0x50] sm:$0x1]
    %v4746 = vld [vmem:[%s4596 + $0x54] sm:$0xf]
    %v4747 = vld [vmem:[%s4596 + $0x58] sm:$0xf]
    %v4748 = vld [vmem:[%s4596 + $0x5c] sm:$0x1]
    %v4749 = vld [vmem:[%s4596 + $0x60] sm:$0xf]
    %v4750 = vld [vmem:[%s4596 + $0x64] sm:$0xf]
    %v4751 = vld [vmem:[%s4596 + $0x68] sm:$0x1]
    %v4752 = vld [vmem:[%s4596 + $0x6c] sm:$0xf]
    %v4753 = vld [vmem:[%s4596 + $0x70] sm:$0xf]
    %v4754 = vld [vmem:[%s4596 + $0x74] sm:$0x1]
    %v4755 = vld [vmem:[%s4596 + $0x78] sm:$0xf]
    %v4756 = vld [vmem:[%s4596 + $0x7c] sm:$0xf]
    %v4757 = vld [vmem:[%s4596 + $0x80] sm:$0x1]
    %v4758 = vld [vmem:[%s4596 + $0x84] sm:$0xf]
    %v4759 = vld [vmem:[%s4596 + $0x88] sm:$0xf]
    %v4760 = vld [vmem:[%s4596 + $0x8c] sm:$0x1]
    %v4761 = vld [vmem:[%s4596 + $0x90] sm:$0xf]
    %v4762 = vld [vmem:[%s4596 + $0x94] sm:$0xf]
    %v4763 = vld [vmem:[%s4596 + $0x98] sm:$0x1]
    %v4764 = vld [vmem:[%s4596 + $0x9c] sm:$0xf]
    %v4765 = vld [vmem:[%s4596 + $0xa0] sm:$0xf]
    %v4766 = vld [vmem:[%s4596 + $0xa4] sm:$0x1]
    %v4767 = vld [vmem:[%s4596 + $0xa8] sm:$0xf]
    %v4768 = vld [vmem:[%s4596 + $0xac] sm:$0xf]
    %v4769 = vld [vmem:[%s4596 + $0xb0] sm:$0x1]
    %v4770 = vld [vmem:[%s4596 + $0xb4] sm:$0xf]
    %v4771 = vld [vmem:[%s4596 + $0xb8] sm:$0xf]
    %v4772 = vld [vmem:[%s4596 + $0xbc] sm:$0x1]
    %v4773 = vld [vmem:[%s4596 + $0xd8] sm:$0xf]
    %v4774 = vld [vmem:[%s4596 + $0xdc] sm:$0xf]
    %v4775 = vld [vmem:[%s4596 + $0xe0] sm:$0x1]
    %v4776 = vld [vmem:[%s4596 + $0xe4] sm:$0xf]
    %v4777 = vld [vmem:[%s4596 + $0xe8] sm:$0xf]
    %v4778 = vld [vmem:[%s4596 + $0xec] sm:$0x1]
    %v4779 = vld [vmem:[%s4596 + $0xf0] sm:$0xf]
    %v4780 = vld [vmem:[%s4596 + $0xf4] sm:$0xf]
    %v4781 = vld [vmem:[%s4596 + $0xf8] sm:$0x1]
    %v4782 = vld [vmem:[%s4596 + $0xfc] sm:$0xf]
    %v4783 = vld [vmem:[%s4596 + $0x100] sm:$0xf]
    %v4784 = vld [vmem:[%s4596 + $0x104] sm:$0x1]
    %v4785 = vld [vmem:[%s4596 + $0x108] sm:$0xf]
    %v4786 = vld [vmem:[%s4596 + $0x10c] sm:$0xf]
    %v4787 = vld [vmem:[%s4596 + $0x110] sm:$0x1]
    %v4788 = vld [vmem:[%s4596 + $0x114] sm:$0xf]
    %v4789 = vld [vmem:[%s4596 + $0x118] sm:$0xf]
    %v4790 = vld [vmem:[%s4596 + $0x11c] sm:$0x1]
    %v4791 = vld [vmem:[%s4596 + $0x120] sm:$0xf]
    %v4792 = vld [vmem:[%s4596 + $0x124] sm:$0xf]
    %v4793 = vld [vmem:[%s4596 + $0x128] sm:$0x1]
    %v4794 = vld [vmem:[%s4596 + $0x12c] sm:$0xf]
    %v4795 = vld [vmem:[%s4596 + $0x130] sm:$0xf]
    %v4796 = vld [vmem:[%s4596 + $0x134] sm:$0x1]
    %v4797 = vld [vmem:[%s4596 + $0x138] sm:$0xf]
    %v4798 = vld [vmem:[%s4596 + $0x13c] sm:$0xf]
    %v4799 = vld [vmem:[%s4596 + $0x140] sm:$0x1]
    %v4800 = vld [vmem:[%s4596 + $0x144] sm:$0xf]
    %v4801 = vld [vmem:[%s4596 + $0x148] sm:$0xf]
    %v4802 = vld [vmem:[%s4596 + $0x14c] sm:$0x1]
    %v4803 = vld [vmem:[%s4596 + $0x150] sm:$0xf]
    %v4804 = vld [vmem:[%s4596 + $0x154] sm:$0xf]
    %v4805 = vld [vmem:[%s4596 + $0x158] sm:$0x1]
    %v4806 = vld [vmem:[%s4596 + $0x15c] sm:$0xf]
    %v4807 = vld [vmem:[%s4596 + $0x160] sm:$0xf]
    %v4808 = vld [vmem:[%s4596 + $0x164] sm:$0x1]
    %v4809 = vld [vmem:[%s4596 + $0x168] sm:$0xf]
    %v4810 = vld [vmem:[%s4596 + $0x16c] sm:$0xf]
    %v4811 = vld [vmem:[%s4596 + $0x170] sm:$0x1]
    %v4812 = vld [vmem:[%s4596 + $0x174] sm:$0xf]
    %v4813 = vld [vmem:[%s4596 + $0x178] sm:$0xf]
    %v4814 = vld [vmem:[%s4596 + $0x17c] sm:$0x1]
    %v4815 = vld [vmem:[%s4596 + $0x180] sm:$0xf]
    %v4816 = vld [vmem:[%s4596 + $0x184] sm:$0xf]
    %v4817 = vld [vmem:[%s4596 + $0x188] sm:$0x1]
    %v4818 = vld [vmem:[%s4596 + $0x18c] sm:$0xf]
    %v4819 = vld [vmem:[%s4596 + $0x190] sm:$0xf]
    %v4820 = vld [vmem:[%s4596 + $0x194] sm:$0x1]
    %v4822 = vshrl.u32 %v4725, 16
    %v4824 = vrot.slane %v4822, 4
    %v4825 = vshll.u32 %v4725, 16
    %v4827 = vrot.slane %v4825, 5
    %v4828 = vor.u32 %v4824, %v4827
    %v4829 = vrot.slane %v4828, 4
    %v4831 = vshll.u32 %v4726, 16
    %v4833 = vrot.slane %v4831, 5
    %v4834 = vsel %vm1488, %v4829, %v4833
    %v4835 = vshrl.u32 %v4726, 16
    %v4837 = vrot.slane %v4835, 4
    %v4838 = vor.u32 %v4837, %v4833
    %v4839 = vrot.slane %v4838, 4
    %v4841 = vshll.u32 %v4727, 16
    %v4843 = vrot.slane %v4841, 5
    %v4844 = vsel %vm1488, %v4839, %v4843
    %v4846 = vshrl.u32 %v4728, 16
    %v4848 = vrot.slane %v4846, 4
    %v4849 = vshll.u32 %v4728, 16
    %v4851 = vrot.slane %v4849, 5
    %v4852 = vor.u32 %v4848, %v4851
    %v4853 = vrot.slane %v4852, 4
    %v4855 = vshll.u32 %v4729, 16
    %v4857 = vrot.slane %v4855, 5
    %v4858 = vsel %vm1488, %v4853, %v4857
    %v4859 = vshrl.u32 %v4729, 16
    %v4861 = vrot.slane %v4859, 4
    %v4862 = vor.u32 %v4861, %v4857
    %v4863 = vrot.slane %v4862, 4
    %v4865 = vshll.u32 %v4730, 16
    %v4867 = vrot.slane %v4865, 5
    %v4868 = vsel %vm1488, %v4863, %v4867
    %v4870 = vshrl.u32 %v4731, 16
    %v4872 = vrot.slane %v4870, 4
    %v4873 = vshll.u32 %v4731, 16
    %v4875 = vrot.slane %v4873, 5
    %v4876 = vor.u32 %v4872, %v4875
    %v4877 = vrot.slane %v4876, 4
    %v4879 = vshll.u32 %v4732, 16
    %v4881 = vrot.slane %v4879, 5
    %v4882 = vsel %vm1488, %v4877, %v4881
    %v4883 = vshrl.u32 %v4732, 16
    %v4885 = vrot.slane %v4883, 4
    %v4886 = vor.u32 %v4885, %v4881
    %v4887 = vrot.slane %v4886, 4
    %v4889 = vshll.u32 %v4733, 16
    %v4891 = vrot.slane %v4889, 5
    %v4892 = vsel %vm1488, %v4887, %v4891
    %v4894 = vshrl.u32 %v4734, 16
    %v4896 = vrot.slane %v4894, 4
    %v4897 = vshll.u32 %v4734, 16
    %v4899 = vrot.slane %v4897, 5
    %v4900 = vor.u32 %v4896, %v4899
    %v4901 = vrot.slane %v4900, 4
    %v4903 = vshll.u32 %v4735, 16
    %v4905 = vrot.slane %v4903, 5
    %v4906 = vsel %vm1488, %v4901, %v4905
    %v4907 = vshrl.u32 %v4735, 16
    %v4909 = vrot.slane %v4907, 4
    %v4910 = vor.u32 %v4909, %v4905
    %v4911 = vrot.slane %v4910, 4
    %v4913 = vshll.u32 %v4736, 16
    %v4915 = vrot.slane %v4913, 5
    %v4916 = vsel %vm1488, %v4911, %v4915
    %v4918 = vshrl.u32 %v4737, 16
    %v4920 = vrot.slane %v4918, 4
    %v4921 = vshll.u32 %v4737, 16
    %v4923 = vrot.slane %v4921, 5
    %v4924 = vor.u32 %v4920, %v4923
    %v4925 = vrot.slane %v4924, 4
    %v4927 = vshll.u32 %v4738, 16
    %v4929 = vrot.slane %v4927, 5
    %v4930 = vsel %vm1488, %v4925, %v4929
    %v4931 = vshrl.u32 %v4738, 16
    %v4933 = vrot.slane %v4931, 4
    %v4934 = vor.u32 %v4933, %v4929
    %v4935 = vrot.slane %v4934, 4
    %v4937 = vshll.u32 %v4739, 16
    %v4939 = vrot.slane %v4937, 5
    %v4940 = vsel %vm1488, %v4935, %v4939
    %v4942 = vshrl.u32 %v4740, 16
    %v4944 = vrot.slane %v4942, 4
    %v4945 = vshll.u32 %v4740, 16
    %v4947 = vrot.slane %v4945, 5
    %v4948 = vor.u32 %v4944, %v4947
    %v4949 = vrot.slane %v4948, 4
    %v4951 = vshll.u32 %v4741, 16
    %v4953 = vrot.slane %v4951, 5
    %v4954 = vsel %vm1488, %v4949, %v4953
    %v4955 = vshrl.u32 %v4741, 16
    %v4957 = vrot.slane %v4955, 4
    %v4958 = vor.u32 %v4957, %v4953
    %v4959 = vrot.slane %v4958, 4
    %v4961 = vshll.u32 %v4742, 16
    %v4963 = vrot.slane %v4961, 5
    %v4964 = vsel %vm1488, %v4959, %v4963
    %v4966 = vshrl.u32 %v4743, 16
    %v4968 = vrot.slane %v4966, 4
    %v4969 = vshll.u32 %v4743, 16
    %v4971 = vrot.slane %v4969, 5
    %v4972 = vor.u32 %v4968, %v4971
    %v4973 = vrot.slane %v4972, 4
    %v4975 = vshll.u32 %v4744, 16
    %v4977 = vrot.slane %v4975, 5
    %v4978 = vsel %vm1488, %v4973, %v4977
    %v4979 = vshrl.u32 %v4744, 16
    %v4981 = vrot.slane %v4979, 4
    %v4982 = vor.u32 %v4981, %v4977
    %v4983 = vrot.slane %v4982, 4
    %v4985 = vshll.u32 %v4745, 16
    %v4987 = vrot.slane %v4985, 5
    %v4988 = vsel %vm1488, %v4983, %v4987
    %v4990 = vshrl.u32 %v4746, 16
    %v4992 = vrot.slane %v4990, 4
    %v4993 = vshll.u32 %v4746, 16
    %v4995 = vrot.slane %v4993, 5
    %v4996 = vor.u32 %v4992, %v4995
    %v4997 = vrot.slane %v4996, 4
    %v4999 = vshll.u32 %v4747, 16
    %v5001 = vrot.slane %v4999, 5
    %v5002 = vsel %vm1488, %v4997, %v5001
    %v5003 = vshrl.u32 %v4747, 16
    %v5005 = vrot.slane %v5003, 4
    %v5006 = vor.u32 %v5005, %v5001
    %v5007 = vrot.slane %v5006, 4
    %v5009 = vshll.u32 %v4748, 16
    %v5011 = vrot.slane %v5009, 5
    %v5012 = vsel %vm1488, %v5007, %v5011
    %v5014 = vshrl.u32 %v4749, 16
    %v5016 = vrot.slane %v5014, 4
    %v5017 = vshll.u32 %v4749, 16
    %v5019 = vrot.slane %v5017, 5
    %v5020 = vor.u32 %v5016, %v5019
    %v5021 = vrot.slane %v5020, 4
    %v5023 = vshll.u32 %v4750, 16
    %v5025 = vrot.slane %v5023, 5
    %v5026 = vsel %vm1488, %v5021, %v5025
    %v5027 = vshrl.u32 %v4750, 16
    %v5029 = vrot.slane %v5027, 4
    %v5030 = vor.u32 %v5029, %v5025
    %v5031 = vrot.slane %v5030, 4
    %v5033 = vshll.u32 %v4751, 16
    %v5035 = vrot.slane %v5033, 5
    %v5036 = vsel %vm1488, %v5031, %v5035
    %v5038 = vshrl.u32 %v4752, 16
    %v5040 = vrot.slane %v5038, 4
    %v5041 = vshll.u32 %v4752, 16
    %v5043 = vrot.slane %v5041, 5
    %v5044 = vor.u32 %v5040, %v5043
    %v5045 = vrot.slane %v5044, 4
    %v5047 = vshll.u32 %v4753, 16
    %v5049 = vrot.slane %v5047, 5
    %v5050 = vsel %vm1488, %v5045, %v5049
    %v5051 = vshrl.u32 %v4753, 16
    %v5053 = vrot.slane %v5051, 4
    %v5054 = vor.u32 %v5053, %v5049
    %v5055 = vrot.slane %v5054, 4
    %v5057 = vshll.u32 %v4754, 16
    %v5059 = vrot.slane %v5057, 5
    %v5060 = vsel %vm1488, %v5055, %v5059
    %v5062 = vshrl.u32 %v4755, 16
    %v5064 = vrot.slane %v5062, 4
    %v5065 = vshll.u32 %v4755, 16
    %v5067 = vrot.slane %v5065, 5
    %v5068 = vor.u32 %v5064, %v5067
    %v5069 = vrot.slane %v5068, 4
    %v5071 = vshll.u32 %v4756, 16
    %v5073 = vrot.slane %v5071, 5
    %v5074 = vsel %vm1488, %v5069, %v5073
    %v5075 = vshrl.u32 %v4756, 16
    %v5077 = vrot.slane %v5075, 4
    %v5078 = vor.u32 %v5077, %v5073
    %v5079 = vrot.slane %v5078, 4
    %v5081 = vshll.u32 %v4757, 16
    %v5083 = vrot.slane %v5081, 5
    %v5084 = vsel %vm1488, %v5079, %v5083
    %v5086 = vshrl.u32 %v4758, 16
    %v5088 = vrot.slane %v5086, 4
    %v5089 = vshll.u32 %v4758, 16
    %v5091 = vrot.slane %v5089, 5
    %v5092 = vor.u32 %v5088, %v5091
    %v5093 = vrot.slane %v5092, 4
    %v5095 = vshll.u32 %v4759, 16
    %v5097 = vrot.slane %v5095, 5
    %v5098 = vsel %vm1488, %v5093, %v5097
    %v5099 = vshrl.u32 %v4759, 16
    %v5101 = vrot.slane %v5099, 4
    %v5102 = vor.u32 %v5101, %v5097
    %v5103 = vrot.slane %v5102, 4
    %v5105 = vshll.u32 %v4760, 16
    %v5107 = vrot.slane %v5105, 5
    %v5108 = vsel %vm1488, %v5103, %v5107
    %v5110 = vshrl.u32 %v4761, 16
    %v5112 = vrot.slane %v5110, 4
    %v5113 = vshll.u32 %v4761, 16
    %v5115 = vrot.slane %v5113, 5
    %v5116 = vor.u32 %v5112, %v5115
    %v5117 = vrot.slane %v5116, 4
    %v5119 = vshll.u32 %v4762, 16
    %v5121 = vrot.slane %v5119, 5
    %v5122 = vsel %vm1488, %v5117, %v5121
    %v5123 = vshrl.u32 %v4762, 16
    %v5125 = vrot.slane %v5123, 4
    %v5126 = vor.u32 %v5125, %v5121
    %v5127 = vrot.slane %v5126, 4
    %v5129 = vshll.u32 %v4763, 16
    %v5131 = vrot.slane %v5129, 5
    %v5132 = vsel %vm1488, %v5127, %v5131
    %v5134 = vshrl.u32 %v4764, 16
    %v5136 = vrot.slane %v5134, 4
    %v5137 = vshll.u32 %v4764, 16
    %v5139 = vrot.slane %v5137, 5
    %v5140 = vor.u32 %v5136, %v5139
    %v5141 = vrot.slane %v5140, 4
    %v5143 = vshll.u32 %v4765, 16
    %v5145 = vrot.slane %v5143, 5
    %v5146 = vsel %vm1488, %v5141, %v5145
    %v5147 = vshrl.u32 %v4765, 16
    %v5149 = vrot.slane %v5147, 4
    %v5150 = vor.u32 %v5149, %v5145
    %v5151 = vrot.slane %v5150, 4
    %v5153 = vshll.u32 %v4766, 16
    %v5155 = vrot.slane %v5153, 5
    %v5156 = vsel %vm1488, %v5151, %v5155
    %v5158 = vshrl.u32 %v4767, 16
    %v5160 = vrot.slane %v5158, 4
    %v5161 = vshll.u32 %v4767, 16
    %v5163 = vrot.slane %v5161, 5
    %v5164 = vor.u32 %v5160, %v5163
    %v5165 = vrot.slane %v5164, 4
    %v5167 = vshll.u32 %v4768, 16
    %v5169 = vrot.slane %v5167, 5
    %v5170 = vsel %vm1488, %v5165, %v5169
    %v5171 = vshrl.u32 %v4768, 16
    %v5173 = vrot.slane %v5171, 4
    %v5174 = vor.u32 %v5173, %v5169
    %v5175 = vrot.slane %v5174, 4
    %v5177 = vshll.u32 %v4769, 16
    %v5179 = vrot.slane %v5177, 5
    %v5180 = vsel %vm1488, %v5175, %v5179
    %v5182 = vshrl.u32 %v4770, 16
    %v5184 = vrot.slane %v5182, 4
    %v5185 = vshll.u32 %v4770, 16
    %v5187 = vrot.slane %v5185, 5
    %v5188 = vor.u32 %v5184, %v5187
    %v5189 = vrot.slane %v5188, 4
    %v5191 = vshll.u32 %v4771, 16
    %v5193 = vrot.slane %v5191, 5
    %v5194 = vsel %vm1488, %v5189, %v5193
    %v5195 = vshrl.u32 %v4771, 16
    %v5197 = vrot.slane %v5195, 4
    %v5198 = vor.u32 %v5197, %v5193
    %v5199 = vrot.slane %v5198, 4
    %v5201 = vshll.u32 %v4772, 16
    %v5203 = vrot.slane %v5201, 5
    %v5204 = vsel %vm1488, %v5199, %v5203
    %v5206 = vshrl.u32 %v4773, 16
    %v5208 = vrot.slane %v5206, 4
    %v5209 = vshll.u32 %v4773, 16
    %v5211 = vrot.slane %v5209, 5
    %v5212 = vor.u32 %v5208, %v5211
    %v5213 = vrot.slane %v5212, 4
    %v5215 = vshll.u32 %v4774, 16
    %v5217 = vrot.slane %v5215, 5
    %v5218 = vsel %vm1488, %v5213, %v5217
    %v5219 = vshrl.u32 %v4774, 16
    %v5221 = vrot.slane %v5219, 4
    %v5222 = vor.u32 %v5221, %v5217
    %v5223 = vrot.slane %v5222, 4
    %v5225 = vshll.u32 %v4775, 16
    %v5227 = vrot.slane %v5225, 5
    %v5228 = vsel %vm1488, %v5223, %v5227
    %v5230 = vshrl.u32 %v4776, 16
    %v5232 = vrot.slane %v5230, 4
    %v5233 = vshll.u32 %v4776, 16
    %v5235 = vrot.slane %v5233, 5
    %v5236 = vor.u32 %v5232, %v5235
    %v5237 = vrot.slane %v5236, 4
    %v5239 = vshll.u32 %v4777, 16
    %v5241 = vrot.slane %v5239, 5
    %v5242 = vsel %vm1488, %v5237, %v5241
    %v5243 = vshrl.u32 %v4777, 16
    %v5245 = vrot.slane %v5243, 4
    %v5246 = vor.u32 %v5245, %v5241
    %v5247 = vrot.slane %v5246, 4
    %v5249 = vshll.u32 %v4778, 16
    %v5251 = vrot.slane %v5249, 5
    %v5252 = vsel %vm1488, %v5247, %v5251
    %v5254 = vshrl.u32 %v4779, 16
    %v5256 = vrot.slane %v5254, 4
    %v5257 = vshll.u32 %v4779, 16
    %v5259 = vrot.slane %v5257, 5
    %v5260 = vor.u32 %v5256, %v5259
    %v5261 = vrot.slane %v5260, 4
    %v5263 = vshll.u32 %v4780, 16
    %v5265 = vrot.slane %v5263, 5
    %v5266 = vsel %vm1488, %v5261, %v5265
    %v5267 = vshrl.u32 %v4780, 16
    %v5269 = vrot.slane %v5267, 4
    %v5270 = vor.u32 %v5269, %v5265
    %v5271 = vrot.slane %v5270, 4
    %v5273 = vshll.u32 %v4781, 16
    %v5275 = vrot.slane %v5273, 5
    %v5276 = vsel %vm1488, %v5271, %v5275
    %v5278 = vshrl.u32 %v4782, 16
    %v5280 = vrot.slane %v5278, 4
    %v5281 = vshll.u32 %v4782, 16
    %v5283 = vrot.slane %v5281, 5
    %v5284 = vor.u32 %v5280, %v5283
    %v5285 = vrot.slane %v5284, 4
    %v5287 = vshll.u32 %v4783, 16
    %v5289 = vrot.slane %v5287, 5
    %v5290 = vsel %vm1488, %v5285, %v5289
    %v5291 = vshrl.u32 %v4783, 16
    %v5293 = vrot.slane %v5291, 4
    %v5294 = vor.u32 %v5293, %v5289
    %v5295 = vrot.slane %v5294, 4
    %v5297 = vshll.u32 %v4784, 16
    %v5299 = vrot.slane %v5297, 5
    %v5300 = vsel %vm1488, %v5295, %v5299
    %v5302 = vshrl.u32 %v4785, 16
    %v5304 = vrot.slane %v5302, 4
    %v5305 = vshll.u32 %v4785, 16
    %v5307 = vrot.slane %v5305, 5
    %v5308 = vor.u32 %v5304, %v5307
    %v5309 = vrot.slane %v5308, 4
    %v5311 = vshll.u32 %v4786, 16
    %v5313 = vrot.slane %v5311, 5
    %v5314 = vsel %vm1488, %v5309, %v5313
    %v5315 = vshrl.u32 %v4786, 16
    %v5317 = vrot.slane %v5315, 4
    %v5318 = vor.u32 %v5317, %v5313
    %v5319 = vrot.slane %v5318, 4
    %v5321 = vshll.u32 %v4787, 16
    %v5323 = vrot.slane %v5321, 5
    %v5324 = vsel %vm1488, %v5319, %v5323
    %v5326 = vshrl.u32 %v4788, 16
    %v5328 = vrot.slane %v5326, 4
    %v5329 = vshll.u32 %v4788, 16
    %v5331 = vrot.slane %v5329, 5
    %v5332 = vor.u32 %v5328, %v5331
    %v5333 = vrot.slane %v5332, 4
    %v5335 = vshll.u32 %v4789, 16
    %v5337 = vrot.slane %v5335, 5
    %v5338 = vsel %vm1488, %v5333, %v5337
    %v5339 = vshrl.u32 %v4789, 16
    %v5341 = vrot.slane %v5339, 4
    %v5342 = vor.u32 %v5341, %v5337
    %v5343 = vrot.slane %v5342, 4
    %v5345 = vshll.u32 %v4790, 16
    %v5347 = vrot.slane %v5345, 5
    %v5348 = vsel %vm1488, %v5343, %v5347
    %v5350 = vshrl.u32 %v4791, 16
    %v5352 = vrot.slane %v5350, 4
    %v5353 = vshll.u32 %v4791, 16
    %v5355 = vrot.slane %v5353, 5
    %v5356 = vor.u32 %v5352, %v5355
    %v5357 = vrot.slane %v5356, 4
    %v5359 = vshll.u32 %v4792, 16
    %v5361 = vrot.slane %v5359, 5
    %v5362 = vsel %vm1488, %v5357, %v5361
    %v5363 = vshrl.u32 %v4792, 16
    %v5365 = vrot.slane %v5363, 4
    %v5366 = vor.u32 %v5365, %v5361
    %v5367 = vrot.slane %v5366, 4
    %v5369 = vshll.u32 %v4793, 16
    %v5371 = vrot.slane %v5369, 5
    %v5372 = vsel %vm1488, %v5367, %v5371
    %v5374 = vshrl.u32 %v4794, 16
    %v5376 = vrot.slane %v5374, 4
    %v5377 = vshll.u32 %v4794, 16
    %v5379 = vrot.slane %v5377, 5
    %v5380 = vor.u32 %v5376, %v5379
    %v5381 = vrot.slane %v5380, 4
    %v5383 = vshll.u32 %v4795, 16
    %v5385 = vrot.slane %v5383, 5
    %v5386 = vsel %vm1488, %v5381, %v5385
    %v5387 = vshrl.u32 %v4795, 16
    %v5389 = vrot.slane %v5387, 4
    %v5390 = vor.u32 %v5389, %v5385
    %v5391 = vrot.slane %v5390, 4
    %v5393 = vshll.u32 %v4796, 16
    %v5395 = vrot.slane %v5393, 5
    %v5396 = vsel %vm1488, %v5391, %v5395
    %v5398 = vshrl.u32 %v4797, 16
    %v5400 = vrot.slane %v5398, 4
    %v5401 = vshll.u32 %v4797, 16
    %v5403 = vrot.slane %v5401, 5
    %v5404 = vor.u32 %v5400, %v5403
    %v5405 = vrot.slane %v5404, 4
    %v5407 = vshll.u32 %v4798, 16
    %v5409 = vrot.slane %v5407, 5
    %v5410 = vsel %vm1488, %v5405, %v5409
    %v5411 = vshrl.u32 %v4798, 16
    %v5413 = vrot.slane %v5411, 4
    %v5414 = vor.u32 %v5413, %v5409
    %v5415 = vrot.slane %v5414, 4
    %v5417 = vshll.u32 %v4799, 16
    %v5419 = vrot.slane %v5417, 5
    %v5420 = vsel %vm1488, %v5415, %v5419
    %v5422 = vshrl.u32 %v4800, 16
    %v5424 = vrot.slane %v5422, 4
    %v5425 = vshll.u32 %v4800, 16
    %v5427 = vrot.slane %v5425, 5
    %v5428 = vor.u32 %v5424, %v5427
    %v5429 = vrot.slane %v5428, 4
    %v5431 = vshll.u32 %v4801, 16
    %v5433 = vrot.slane %v5431, 5
    %v5434 = vsel %vm1488, %v5429, %v5433
    %v5435 = vshrl.u32 %v4801, 16
    %v5437 = vrot.slane %v5435, 4
    %v5438 = vor.u32 %v5437, %v5433
    %v5439 = vrot.slane %v5438, 4
    %v5441 = vshll.u32 %v4802, 16
    %v5443 = vrot.slane %v5441, 5
    %v5444 = vsel %vm1488, %v5439, %v5443
    %v5446 = vshrl.u32 %v4803, 16
    %v5448 = vrot.slane %v5446, 4
    %v5449 = vshll.u32 %v4803, 16
    %v5451 = vrot.slane %v5449, 5
    %v5452 = vor.u32 %v5448, %v5451
    %v5453 = vrot.slane %v5452, 4
    %v5455 = vshll.u32 %v4804, 16
    %v5457 = vrot.slane %v5455, 5
    %v5458 = vsel %vm1488, %v5453, %v5457
    %v5459 = vshrl.u32 %v4804, 16
    %v5461 = vrot.slane %v5459, 4
    %v5462 = vor.u32 %v5461, %v5457
    %v5463 = vrot.slane %v5462, 4
    %v5465 = vshll.u32 %v4805, 16
    %v5467 = vrot.slane %v5465, 5
    %v5468 = vsel %vm1488, %v5463, %v5467
    %v5470 = vshrl.u32 %v4806, 16
    %v5472 = vrot.slane %v5470, 4
    %v5473 = vshll.u32 %v4806, 16
    %v5475 = vrot.slane %v5473, 5
    %v5476 = vor.u32 %v5472, %v5475
    %v5477 = vrot.slane %v5476, 4
    %v5479 = vshll.u32 %v4807, 16
    %v5481 = vrot.slane %v5479, 5
    %v5482 = vsel %vm1488, %v5477, %v5481
    %v5483 = vshrl.u32 %v4807, 16
    %v5485 = vrot.slane %v5483, 4
    %v5486 = vor.u32 %v5485, %v5481
    %v5487 = vrot.slane %v5486, 4
    %v5489 = vshll.u32 %v4808, 16
    %v5491 = vrot.slane %v5489, 5
    %v5492 = vsel %vm1488, %v5487, %v5491
    %v5494 = vshrl.u32 %v4809, 16
    %v5496 = vrot.slane %v5494, 4
    %v5497 = vshll.u32 %v4809, 16
    %v5499 = vrot.slane %v5497, 5
    %v5500 = vor.u32 %v5496, %v5499
    %v5501 = vrot.slane %v5500, 4
    %v5503 = vshll.u32 %v4810, 16
    %v5505 = vrot.slane %v5503, 5
    %v5506 = vsel %vm1488, %v5501, %v5505
    %v5507 = vshrl.u32 %v4810, 16
    %v5509 = vrot.slane %v5507, 4
    %v5510 = vor.u32 %v5509, %v5505
    %v5511 = vrot.slane %v5510, 4
    %v5513 = vshll.u32 %v4811, 16
    %v5515 = vrot.slane %v5513, 5
    %v5516 = vsel %vm1488, %v5511, %v5515
    %v5518 = vshrl.u32 %v4812, 16
    %v5520 = vrot.slane %v5518, 4
    %v5521 = vshll.u32 %v4812, 16
    %v5523 = vrot.slane %v5521, 5
    %v5524 = vor.u32 %v5520, %v5523
    %v5525 = vrot.slane %v5524, 4
    %v5527 = vshll.u32 %v4813, 16
    %v5529 = vrot.slane %v5527, 5
    %v5530 = vsel %vm1488, %v5525, %v5529
    %v5531 = vshrl.u32 %v4813, 16
    %v5533 = vrot.slane %v5531, 4
    %v5534 = vor.u32 %v5533, %v5529
    %v5535 = vrot.slane %v5534, 4
    %v5537 = vshll.u32 %v4814, 16
    %v5539 = vrot.slane %v5537, 5
    %v5540 = vsel %vm1488, %v5535, %v5539
    %v5542 = vshrl.u32 %v4815, 16
    %v5544 = vrot.slane %v5542, 4
    %v5545 = vshll.u32 %v4815, 16
    %v5547 = vrot.slane %v5545, 5
    %v5548 = vor.u32 %v5544, %v5547
    %v5549 = vrot.slane %v5548, 4
    %v5551 = vshll.u32 %v4816, 16
    %v5553 = vrot.slane %v5551, 5
    %v5554 = vsel %vm1488, %v5549, %v5553
    %v5555 = vshrl.u32 %v4816, 16
    %v5557 = vrot.slane %v5555, 4
    %v5558 = vor.u32 %v5557, %v5553
    %v5559 = vrot.slane %v5558, 4
    %v5561 = vshll.u32 %v4817, 16
    %v5563 = vrot.slane %v5561, 5
    %v5564 = vsel %vm1488, %v5559, %v5563
    %v5566 = vshrl.u32 %v4818, 16
    %v5568 = vrot.slane %v5566, 4
    %v5569 = vshll.u32 %v4818, 16
    %v5571 = vrot.slane %v5569, 5
    %v5572 = vor.u32 %v5568, %v5571
    %v5573 = vrot.slane %v5572, 4
    %v5575 = vshll.u32 %v4819, 16
    %v5577 = vrot.slane %v5575, 5
    %v5578 = vsel %vm1488, %v5573, %v5577
    %v5579 = vshrl.u32 %v4819, 16
    %v5581 = vrot.slane %v5579, 4
    %v5582 = vor.u32 %v5581, %v5577
    %v5583 = vrot.slane %v5582, 4
    %v5585 = vshll.u32 %v4820, 16
    %v5587 = vrot.slane %v5585, 5
    %v5588 = vsel %vm1488, %v5583, %v5587
    %5653 = vst [vmem:[#allocation3 + $0x1c] sm:$0xf] %v4834
    %5654 = vst [vmem:[#allocation3 + $0x40] sm:$0xf] %v4844
    %5655 = vst [vmem:[#allocation3 + $0x64] sm:$0xf] %v4858
    %5656 = vst [vmem:[#allocation3 + $0x88] sm:$0xf] %v4868
    %5657 = vst [vmem:[#allocation3 + $0xac] sm:$0xf] %v4882
    %5658 = vst [vmem:[#allocation3 + $0xd0] sm:$0xf] %v4892
    %5659 = vst [vmem:[#allocation3 + $0xf4] sm:$0xf] %v4906
    %5660 = vst [vmem:[#allocation3 + $0x118] sm:$0xf] %v4916
    %5661 = vst [vmem:[#allocation3 + $0x13c] sm:$0xf] %v4930
    %5662 = vst [vmem:[#allocation3 + $0x160] sm:$0xf] %v4940
    %5663 = vst [vmem:[#allocation3 + $0x184] sm:$0xf] %v4954
    %5664 = vst [vmem:[#allocation3 + $0x1a8] sm:$0xf] %v4964
    %5665 = vst [vmem:[#allocation3 + $0x1cc] sm:$0xf] %v4978
    %5666 = vst [vmem:[#allocation3 + $0x1f0] sm:$0xf] %v4988
    %5667 = vst [vmem:[#allocation3 + $0x214] sm:$0xf] %v5002
    %5668 = vst [vmem:[#allocation3 + $0x238] sm:$0xf] %v5012
    %5669 = vst [vmem:[#allocation3 + $0x25c] sm:$0xf] %v5026
    %5670 = vst [vmem:[#allocation3 + $0x280] sm:$0xf] %v5036
    %5671 = vst [vmem:[#allocation3 + $0x2a4] sm:$0xf] %v5050
    %5672 = vst [vmem:[#allocation3 + $0x2c8] sm:$0xf] %v5060
    %5673 = vst [vmem:[#allocation3 + $0x2ec] sm:$0xf] %v5074
    %5674 = vst [vmem:[#allocation3 + $0x310] sm:$0xf] %v5084
    %5675 = vst [vmem:[#allocation3 + $0x334] sm:$0xf] %v5098
    %5676 = vst [vmem:[#allocation3 + $0x358] sm:$0xf] %v5108
    %5677 = vst [vmem:[#allocation3 + $0x37c] sm:$0xf] %v5122
    %5678 = vst [vmem:[#allocation3 + $0x3a0] sm:$0xf] %v5132
    %5679 = vst [vmem:[#allocation3 + $0x3c4] sm:$0xf] %v5146
    %5680 = vst [vmem:[#allocation3 + $0x3e8] sm:$0xf] %v5156
    %5681 = vst [vmem:[#allocation3 + $0x40c] sm:$0xf] %v5170
    %5682 = vst [vmem:[#allocation3 + $0x430] sm:$0xf] %v5180
    %5683 = vst [vmem:[#allocation3 + $0x454] sm:$0xf] %v5194
    %5684 = vst [vmem:[#allocation3 + $0x478] sm:$0xf] %v5204
    %5685 = vst [vmem:[#allocation3 + $0x49c] sm:$0xf] %v5218
    %5686 = vst [vmem:[#allocation3 + $0x4c0] sm:$0xf] %v5228
    %5687 = vst [vmem:[#allocation3 + $0x4e4] sm:$0xf] %v5242
    %5688 = vst [vmem:[#allocation3 + $0x508] sm:$0xf] %v5252
    %5689 = vst [vmem:[#allocation3 + $0x52c] sm:$0xf] %v5266
    %5690 = vst [vmem:[#allocation3 + $0x550] sm:$0xf] %v5276
    %5691 = vst [vmem:[#allocation3 + $0x574] sm:$0xf] %v5290
    %5692 = vst [vmem:[#allocation3 + $0x598] sm:$0xf] %v5300
    %5693 = vst [vmem:[#allocation3 + $0x5bc] sm:$0xf] %v5314
    %5694 = vst [vmem:[#allocation3 + $0x5e0] sm:$0xf] %v5324
    %5695 = vst [vmem:[#allocation3 + $0x604] sm:$0xf] %v5338
    %5696 = vst [vmem:[#allocation3 + $0x628] sm:$0xf] %v5348
    %5697 = vst [vmem:[#allocation3 + $0x64c] sm:$0xf] %v5362
    %5698 = vst [vmem:[#allocation3 + $0x670] sm:$0xf] %v5372
    %5699 = vst [vmem:[#allocation3 + $0x694] sm:$0xf] %v5386
    %5700 = vst [vmem:[#allocation3 + $0x6b8] sm:$0xf] %v5396
    %5701 = vst [vmem:[#allocation3 + $0x6dc] sm:$0xf] %v5410
    %5702 = vst [vmem:[#allocation3 + $0x700] sm:$0xf] %v5420
    %5703 = vst [vmem:[#allocation3 + $0x724] sm:$0xf] %v5434
    %5704 = vst [vmem:[#allocation3 + $0x748] sm:$0xf] %v5444
    %5705 = vst [vmem:[#allocation3 + $0x76c] sm:$0xf] %v5458
    %5706 = vst [vmem:[#allocation3 + $0x790] sm:$0xf] %v5468
    %5707 = vst [vmem:[#allocation3 + $0x7b4] sm:$0xf] %v5482
    %5708 = vst [vmem:[#allocation3 + $0x7d8] sm:$0xf] %v5492
    %5709 = vst [vmem:[#allocation3 + $0x7fc] sm:$0xf] %v5506
    %5710 = vst [vmem:[#allocation3 + $0x820] sm:$0xf] %v5516
    %5711 = vst [vmem:[#allocation3 + $0x844] sm:$0xf] %v5530
    %5712 = vst [vmem:[#allocation3 + $0x868] sm:$0xf] %v5540
    %5713 = vst [vmem:[#allocation3 + $0x88c] sm:$0xf] %v5554
    %5714 = vst [vmem:[#allocation3 + $0x8b0] sm:$0xf] %v5564
    %5715 = vst [vmem:[#allocation3 + $0x8d4] sm:$0xf] %v5578
    %5716 = vst [vmem:[#allocation3 + $0x8f8] sm:$0xf] %v5588
    %v5717 = vld [vmem:[%s4596] sm:$0xe]
    %v5718 = vld [vmem:[%s4596 + $0x4] sm:$0xf]
    %v5719 = vld [vmem:[%s4596 + $0x8] sm:$0x1]
    %v5720 = vld [vmem:[%s4596 + $0xc] sm:$0xe]
    %v5721 = vld [vmem:[%s4596 + $0x10] sm:$0xf]
    %v5722 = vld [vmem:[%s4596 + $0x14] sm:$0x1]
    %v5723 = vld [vmem:[%s4596 + $0x18] sm:$0xe]
    %v5724 = vld [vmem:[%s4596 + $0x1c] sm:$0xf]
    %v5725 = vld [vmem:[%s4596 + $0x20] sm:$0x1]
    %v5726 = vld [vmem:[%s4596 + $0x24] sm:$0xe]
    %v5727 = vld [vmem:[%s4596 + $0x28] sm:$0xf]
    %v5728 = vld [vmem:[%s4596 + $0x2c] sm:$0x1]
    %v5729 = vld [vmem:[%s4596 + $0x30] sm:$0xe]
    %v5730 = vld [vmem:[%s4596 + $0x34] sm:$0xf]
    %v5731 = vld [vmem:[%s4596 + $0x38] sm:$0x1]
    %v5732 = vld [vmem:[%s4596 + $0x3c] sm:$0xe]
    %v5733 = vld [vmem:[%s4596 + $0x40] sm:$0xf]
    %v5734 = vld [vmem:[%s4596 + $0x44] sm:$0x1]
    %v5735 = vld [vmem:[%s4596 + $0x48] sm:$0xe]
    %v5736 = vld [vmem:[%s4596 + $0x4c] sm:$0xf]
    %v5737 = vld [vmem:[%s4596 + $0x50] sm:$0x1]
    %v5738 = vld [vmem:[%s4596 + $0x54] sm:$0xe]
    %v5739 = vld [vmem:[%s4596 + $0x58] sm:$0xf]
    %v5740 = vld [vmem:[%s4596 + $0x5c] sm:$0x1]
    %v5741 = vld [vmem:[%s4596 + $0x60] sm:$0xe]
    %v5742 = vld [vmem:[%s4596 + $0x64] sm:$0xf]
    %v5743 = vld [vmem:[%s4596 + $0x68] sm:$0x1]
    %v5744 = vld [vmem:[%s4596 + $0x6c] sm:$0xe]
    %v5745 = vld [vmem:[%s4596 + $0x70] sm:$0xf]
    %v5746 = vld [vmem:[%s4596 + $0x74] sm:$0x1]
    %v5747 = vld [vmem:[%s4596 + $0x78] sm:$0xe]
    %v5748 = vld [vmem:[%s4596 + $0x7c] sm:$0xf]
    %v5749 = vld [vmem:[%s4596 + $0x80] sm:$0x1]
    %v5750 = vld [vmem:[%s4596 + $0x84] sm:$0xe]
    %v5751 = vld [vmem:[%s4596 + $0x88] sm:$0xf]
    %v5752 = vld [vmem:[%s4596 + $0x8c] sm:$0x1]
    %v5753 = vld [vmem:[%s4596 + $0x90] sm:$0xe]
    %v5754 = vld [vmem:[%s4596 + $0x94] sm:$0xf]
    %v5755 = vld [vmem:[%s4596 + $0x98] sm:$0x1]
    %v5756 = vld [vmem:[%s4596 + $0x9c] sm:$0xe]
    %v5757 = vld [vmem:[%s4596 + $0xa0] sm:$0xf]
    %v5758 = vld [vmem:[%s4596 + $0xa4] sm:$0x1]
    %v5759 = vld [vmem:[%s4596 + $0xa8] sm:$0xe]
    %v5760 = vld [vmem:[%s4596 + $0xac] sm:$0xf]
    %v5761 = vld [vmem:[%s4596 + $0xb0] sm:$0x1]
    %v5762 = vld [vmem:[%s4596 + $0xb4] sm:$0xe]
    %v5763 = vld [vmem:[%s4596 + $0xb8] sm:$0xf]
    %v5764 = vld [vmem:[%s4596 + $0xbc] sm:$0x1]
    %v5765 = vld [vmem:[%s4596 + $0xd8] sm:$0xe]
    %v5766 = vld [vmem:[%s4596 + $0xdc] sm:$0xf]
    %v5767 = vld [vmem:[%s4596 + $0xe0] sm:$0x1]
    %v5768 = vld [vmem:[%s4596 + $0xe4] sm:$0xe]
    %v5769 = vld [vmem:[%s4596 + $0xe8] sm:$0xf]
    %v5770 = vld [vmem:[%s4596 + $0xec] sm:$0x1]
    %v5771 = vld [vmem:[%s4596 + $0xf0] sm:$0xe]
    %v5772 = vld [vmem:[%s4596 + $0xf4] sm:$0xf]
    %v5773 = vld [vmem:[%s4596 + $0xf8] sm:$0x1]
    %v5774 = vld [vmem:[%s4596 + $0xfc] sm:$0xe]
    %v5775 = vld [vmem:[%s4596 + $0x100] sm:$0xf]
    %v5776 = vld [vmem:[%s4596 + $0x104] sm:$0x1]
    %v5777 = vld [vmem:[%s4596 + $0x108] sm:$0xe]
    %v5778 = vld [vmem:[%s4596 + $0x10c] sm:$0xf]
    %v5779 = vld [vmem:[%s4596 + $0x110] sm:$0x1]
    %v5780 = vld [vmem:[%s4596 + $0x114] sm:$0xe]
    %v5781 = vld [vmem:[%s4596 + $0x118] sm:$0xf]
    %v5782 = vld [vmem:[%s4596 + $0x11c] sm:$0x1]
    %v5783 = vld [vmem:[%s4596 + $0x120] sm:$0xe]
    %v5784 = vld [vmem:[%s4596 + $0x124] sm:$0xf]
    %v5785 = vld [vmem:[%s4596 + $0x128] sm:$0x1]
    %v5786 = vld [vmem:[%s4596 + $0x12c] sm:$0xe]
    %v5787 = vld [vmem:[%s4596 + $0x130] sm:$0xf]
    %v5788 = vld [vmem:[%s4596 + $0x134] sm:$0x1]
    %v5789 = vld [vmem:[%s4596 + $0x138] sm:$0xe]
    %v5790 = vld [vmem:[%s4596 + $0x13c] sm:$0xf]
    %v5791 = vld [vmem:[%s4596 + $0x140] sm:$0x1]
    %v5792 = vld [vmem:[%s4596 + $0x144] sm:$0xe]
    %v5793 = vld [vmem:[%s4596 + $0x148] sm:$0xf]
    %v5794 = vld [vmem:[%s4596 + $0x14c] sm:$0x1]
    %v5795 = vld [vmem:[%s4596 + $0x150] sm:$0xe]
    %v5796 = vld [vmem:[%s4596 + $0x154] sm:$0xf]
    %v5797 = vld [vmem:[%s4596 + $0x158] sm:$0x1]
    %v5798 = vld [vmem:[%s4596 + $0x15c] sm:$0xe]
    %v5799 = vld [vmem:[%s4596 + $0x160] sm:$0xf]
    %v5800 = vld [vmem:[%s4596 + $0x164] sm:$0x1]
    %v5801 = vld [vmem:[%s4596 + $0x168] sm:$0xe]
    %v5802 = vld [vmem:[%s4596 + $0x16c] sm:$0xf]
    %v5803 = vld [vmem:[%s4596 + $0x170] sm:$0x1]
    %v5804 = vld [vmem:[%s4596 + $0x174] sm:$0xe]
    %v5805 = vld [vmem:[%s4596 + $0x178] sm:$0xf]
    %v5806 = vld [vmem:[%s4596 + $0x17c] sm:$0x1]
    %v5807 = vld [vmem:[%s4596 + $0x180] sm:$0xe]
    %v5808 = vld [vmem:[%s4596 + $0x184] sm:$0xf]
    %v5809 = vld [vmem:[%s4596 + $0x188] sm:$0x1]
    %v5810 = vld [vmem:[%s4596 + $0x18c] sm:$0xe]
    %v5811 = vld [vmem:[%s4596 + $0x190] sm:$0xf]
    %v5812 = vld [vmem:[%s4596 + $0x194] sm:$0x1]
    %v5909 = vrot.slane %v5717, 5
    %v5910 = vrot.slane %v5909, 4
    %v5911 = vrot.slane %v5718, 5
    %v5912 = vsel %vm2579, %v5910, %v5911
    %v5913 = vrot.slane %v5911, 4
    %v5914 = vrot.slane %v5719, 5
    %v5915 = vsel %vm2579, %v5913, %v5914
    %v5916 = vrot.slane %v5720, 5
    %v5917 = vrot.slane %v5916, 4
    %v5918 = vrot.slane %v5721, 5
    %v5919 = vsel %vm2579, %v5917, %v5918
    %v5920 = vrot.slane %v5918, 4
    %v5921 = vrot.slane %v5722, 5
    %v5922 = vsel %vm2579, %v5920, %v5921
    %v5923 = vrot.slane %v5723, 5
    %v5924 = vrot.slane %v5923, 4
    %v5925 = vrot.slane %v5724, 5
    %v5926 = vsel %vm2579, %v5924, %v5925
    %v5927 = vrot.slane %v5925, 4
    %v5928 = vrot.slane %v5725, 5
    %v5929 = vsel %vm2579, %v5927, %v5928
    %v5930 = vrot.slane %v5726, 5
    %v5931 = vrot.slane %v5930, 4
    %v5932 = vrot.slane %v5727, 5
    %v5933 = vsel %vm2579, %v5931, %v5932
    %v5934 = vrot.slane %v5932, 4
    %v5935 = vrot.slane %v5728, 5
    %v5936 = vsel %vm2579, %v5934, %v5935
    %v5937 = vrot.slane %v5729, 5
    %v5938 = vrot.slane %v5937, 4
    %v5939 = vrot.slane %v5730, 5
    %v5940 = vsel %vm2579, %v5938, %v5939
    %v5941 = vrot.slane %v5939, 4
    %v5942 = vrot.slane %v5731, 5
    %v5943 = vsel %vm2579, %v5941, %v5942
    %v5944 = vrot.slane %v5732, 5
    %v5945 = vrot.slane %v5944, 4
    %v5946 = vrot.slane %v5733, 5
    %v5947 = vsel %vm2579, %v5945, %v5946
    %v5948 = vrot.slane %v5946, 4
    %v5949 = vrot.slane %v5734, 5
    %v5950 = vsel %vm2579, %v5948, %v5949
    %v5951 = vrot.slane %v5735, 5
    %v5952 = vrot.slane %v5951, 4
    %v5953 = vrot.slane %v5736, 5
    %v5954 = vsel %vm2579, %v5952, %v5953
    %v5955 = vrot.slane %v5953, 4
    %v5956 = vrot.slane %v5737, 5
    %v5957 = vsel %vm2579, %v5955, %v5956
    %v5958 = vrot.slane %v5738, 5
    %v5959 = vrot.slane %v5958, 4
    %v5960 = vrot.slane %v5739, 5
    %v5961 = vsel %vm2579, %v5959, %v5960
    %v5962 = vrot.slane %v5960, 4
    %v5963 = vrot.slane %v5740, 5
    %v5964 = vsel %vm2579, %v5962, %v5963
    %v5965 = vrot.slane %v5741, 5
    %v5966 = vrot.slane %v5965, 4
    %v5967 = vrot.slane %v5742, 5
    %v5968 = vsel %vm2579, %v5966, %v5967
    %v5969 = vrot.slane %v5967, 4
    %v5970 = vrot.slane %v5743, 5
    %v5971 = vsel %vm2579, %v5969, %v5970
    %v5972 = vrot.slane %v5744, 5
    %v5973 = vrot.slane %v5972, 4
    %v5974 = vrot.slane %v5745, 5
    %v5975 = vsel %vm2579, %v5973, %v5974
    %v5976 = vrot.slane %v5974, 4
    %v5977 = vrot.slane %v5746, 5
    %v5978 = vsel %vm2579, %v5976, %v5977
    %v5979 = vrot.slane %v5747, 5
    %v5980 = vrot.slane %v5979, 4
    %v5981 = vrot.slane %v5748, 5
    %v5982 = vsel %vm2579, %v5980, %v5981
    %v5983 = vrot.slane %v5981, 4
    %v5984 = vrot.slane %v5749, 5
    %v5985 = vsel %vm2579, %v5983, %v5984
    %v5986 = vrot.slane %v5750, 5
    %v5987 = vrot.slane %v5986, 4
    %v5988 = vrot.slane %v5751, 5
    %v5989 = vsel %vm2579, %v5987, %v5988
    %v5990 = vrot.slane %v5988, 4
    %v5991 = vrot.slane %v5752, 5
    %v5992 = vsel %vm2579, %v5990, %v5991
    %v5993 = vrot.slane %v5753, 5
    %v5994 = vrot.slane %v5993, 4
    %v5995 = vrot.slane %v5754, 5
    %v5996 = vsel %vm2579, %v5994, %v5995
    %v5997 = vrot.slane %v5995, 4
    %v5998 = vrot.slane %v5755, 5
    %v5999 = vsel %vm2579, %v5997, %v5998
    %v6000 = vrot.slane %v5756, 5
    %v6001 = vrot.slane %v6000, 4
    %v6002 = vrot.slane %v5757, 5
    %v6003 = vsel %vm2579, %v6001, %v6002
    %v6004 = vrot.slane %v6002, 4
    %v6005 = vrot.slane %v5758, 5
    %v6006 = vsel %vm2579, %v6004, %v6005
    %v6007 = vrot.slane %v5759, 5
    %v6008 = vrot.slane %v6007, 4
    %v6009 = vrot.slane %v5760, 5
    %v6010 = vsel %vm2579, %v6008, %v6009
    %v6011 = vrot.slane %v6009, 4
    %v6012 = vrot.slane %v5761, 5
    %v6013 = vsel %vm2579, %v6011, %v6012
    %v6014 = vrot.slane %v5762, 5
    %v6015 = vrot.slane %v6014, 4
    %v6016 = vrot.slane %v5763, 5
    %v6017 = vsel %vm2579, %v6015, %v6016
    %v6018 = vrot.slane %v6016, 4
    %v6019 = vrot.slane %v5764, 5
    %v6020 = vsel %vm2579, %v6018, %v6019
    %v6021 = vrot.slane %v5765, 5
    %v6022 = vrot.slane %v6021, 4
    %v6023 = vrot.slane %v5766, 5
    %v6024 = vsel %vm2579, %v6022, %v6023
    %v6025 = vrot.slane %v6023, 4
    %v6026 = vrot.slane %v5767, 5
    %v6027 = vsel %vm2579, %v6025, %v6026
    %v6028 = vrot.slane %v5768, 5
    %v6029 = vrot.slane %v6028, 4
    %v6030 = vrot.slane %v5769, 5
    %v6031 = vsel %vm2579, %v6029, %v6030
    %v6032 = vrot.slane %v6030, 4
    %v6033 = vrot.slane %v5770, 5
    %v6034 = vsel %vm2579, %v6032, %v6033
    %v6035 = vrot.slane %v5771, 5
    %v6036 = vrot.slane %v6035, 4
    %v6037 = vrot.slane %v5772, 5
    %v6038 = vsel %vm2579, %v6036, %v6037
    %v6039 = vrot.slane %v6037, 4
    %v6040 = vrot.slane %v5773, 5
    %v6041 = vsel %vm2579, %v6039, %v6040
    %v6042 = vrot.slane %v5774, 5
    %v6043 = vrot.slane %v6042, 4
    %v6044 = vrot.slane %v5775, 5
    %v6045 = vsel %vm2579, %v6043, %v6044
    %v6046 = vrot.slane %v6044, 4
    %v6047 = vrot.slane %v5776, 5
    %v6048 = vsel %vm2579, %v6046, %v6047
    %v6049 = vrot.slane %v5777, 5
    %v6050 = vrot.slane %v6049, 4
    %v6051 = vrot.slane %v5778, 5
    %v6052 = vsel %vm2579, %v6050, %v6051
    %v6053 = vrot.slane %v6051, 4
    %v6054 = vrot.slane %v5779, 5
    %v6055 = vsel %vm2579, %v6053, %v6054
    %v6056 = vrot.slane %v5780, 5
    %v6057 = vrot.slane %v6056, 4
    %v6058 = vrot.slane %v5781, 5
    %v6059 = vsel %vm2579, %v6057, %v6058
    %v6060 = vrot.slane %v6058, 4
    %v6061 = vrot.slane %v5782, 5
    %v6062 = vsel %vm2579, %v6060, %v6061
    %v6063 = vrot.slane %v5783, 5
    %v6064 = vrot.slane %v6063, 4
    %v6065 = vrot.slane %v5784, 5
    %v6066 = vsel %vm2579, %v6064, %v6065
    %v6067 = vrot.slane %v6065, 4
    %v6068 = vrot.slane %v5785, 5
    %v6069 = vsel %vm2579, %v6067, %v6068
    %v6070 = vrot.slane %v5786, 5
    %v6071 = vrot.slane %v6070, 4
    %v6072 = vrot.slane %v5787, 5
    %v6073 = vsel %vm2579, %v6071, %v6072
    %v6074 = vrot.slane %v6072, 4
    %v6075 = vrot.slane %v5788, 5
    %v6076 = vsel %vm2579, %v6074, %v6075
    %v6077 = vrot.slane %v5789, 5
    %v6078 = vrot.slane %v6077, 4
    %v6079 = vrot.slane %v5790, 5
    %v6080 = vsel %vm2579, %v6078, %v6079
    %v6081 = vrot.slane %v6079, 4
    %v6082 = vrot.slane %v5791, 5
    %v6083 = vsel %vm2579, %v6081, %v6082
    %v6084 = vrot.slane %v5792, 5
    %v6085 = vrot.slane %v6084, 4
    %v6086 = vrot.slane %v5793, 5
    %v6087 = vsel %vm2579, %v6085, %v6086
    %v6088 = vrot.slane %v6086, 4
    %v6089 = vrot.slane %v5794, 5
    %v6090 = vsel %vm2579, %v6088, %v6089
    %v6091 = vrot.slane %v5795, 5
    %v6092 = vrot.slane %v6091, 4
    %v6093 = vrot.slane %v5796, 5
    %v6094 = vsel %vm2579, %v6092, %v6093
    %v6095 = vrot.slane %v6093, 4
    %v6096 = vrot.slane %v5797, 5
    %v6097 = vsel %vm2579, %v6095, %v6096
    %v6098 = vrot.slane %v5798, 5
    %v6099 = vrot.slane %v6098, 4
    %v6100 = vrot.slane %v5799, 5
    %v6101 = vsel %vm2579, %v6099, %v6100
    %v6102 = vrot.slane %v6100, 4
    %v6103 = vrot.slane %v5800, 5
    %v6104 = vsel %vm2579, %v6102, %v6103
    %v6105 = vrot.slane %v5801, 5
    %v6106 = vrot.slane %v6105, 4
    %v6107 = vrot.slane %v5802, 5
    %v6108 = vsel %vm2579, %v6106, %v6107
    %v6109 = vrot.slane %v6107, 4
    %v6110 = vrot.slane %v5803, 5
    %v6111 = vsel %vm2579, %v6109, %v6110
    %v6112 = vrot.slane %v5804, 5
    %v6113 = vrot.slane %v6112, 4
    %v6114 = vrot.slane %v5805, 5
    %v6115 = vsel %vm2579, %v6113, %v6114
    %v6116 = vrot.slane %v6114, 4
    %v6117 = vrot.slane %v5806, 5
    %v6118 = vsel %vm2579, %v6116, %v6117
    %v6119 = vrot.slane %v5807, 5
    %v6120 = vrot.slane %v6119, 4
    %v6121 = vrot.slane %v5808, 5
    %v6122 = vsel %vm2579, %v6120, %v6121
    %v6123 = vrot.slane %v6121, 4
    %v6124 = vrot.slane %v5809, 5
    %v6125 = vsel %vm2579, %v6123, %v6124
    %v6126 = vrot.slane %v5810, 5
    %v6127 = vrot.slane %v6126, 4
    %v6128 = vrot.slane %v5811, 5
    %v6129 = vsel %vm2579, %v6127, %v6128
    %v6130 = vrot.slane %v6128, 4
    %v6131 = vrot.slane %v5812, 5
    %v6132 = vsel %vm2579, %v6130, %v6131
    %6197 = vst [vmem:[#allocation3 + $0x20] sm:$0xf] %v5912
    %6198 = vst [vmem:[#allocation3 + $0x44] sm:$0xf] %v5915
    %6199 = vst [vmem:[#allocation3 + $0x68] sm:$0xf] %v5919
    %6200 = vst [vmem:[#allocation3 + $0x8c] sm:$0xf] %v5922
    %6201 = vst [vmem:[#allocation3 + $0xb0] sm:$0xf] %v5926
    %6202 = vst [vmem:[#allocation3 + $0xd4] sm:$0xf] %v5929
    %6203 = vst [vmem:[#allocation3 + $0xf8] sm:$0xf] %v5933
    %6204 = vst [vmem:[#allocation3 + $0x11c] sm:$0xf] %v5936
    %6205 = vst [vmem:[#allocation3 + $0x140] sm:$0xf] %v5940
    %6206 = vst [vmem:[#allocation3 + $0x164] sm:$0xf] %v5943
    %6207 = vst [vmem:[#allocation3 + $0x188] sm:$0xf] %v5947
    %6208 = vst [vmem:[#allocation3 + $0x1ac] sm:$0xf] %v5950
    %6209 = vst [vmem:[#allocation3 + $0x1d0] sm:$0xf] %v5954
    %6210 = vst [vmem:[#allocation3 + $0x1f4] sm:$0xf] %v5957
    %6211 = vst [vmem:[#allocation3 + $0x218] sm:$0xf] %v5961
    %6212 = vst [vmem:[#allocation3 + $0x23c] sm:$0xf] %v5964
    %6213 = vst [vmem:[#allocation3 + $0x260] sm:$0xf] %v5968
    %6214 = vst [vmem:[#allocation3 + $0x284] sm:$0xf] %v5971
    %6215 = vst [vmem:[#allocation3 + $0x2a8] sm:$0xf] %v5975
    %6216 = vst [vmem:[#allocation3 + $0x2cc] sm:$0xf] %v5978
    %6217 = vst [vmem:[#allocation3 + $0x2f0] sm:$0xf] %v5982
    %6218 = vst [vmem:[#allocation3 + $0x314] sm:$0xf] %v5985
    %6219 = vst [vmem:[#allocation3 + $0x338] sm:$0xf] %v5989
    %6220 = vst [vmem:[#allocation3 + $0x35c] sm:$0xf] %v5992
    %6221 = vst [vmem:[#allocation3 + $0x380] sm:$0xf] %v5996
    %6222 = vst [vmem:[#allocation3 + $0x3a4] sm:$0xf] %v5999
    %6223 = vst [vmem:[#allocation3 + $0x3c8] sm:$0xf] %v6003
    %6224 = vst [vmem:[#allocation3 + $0x3ec] sm:$0xf] %v6006
    %6225 = vst [vmem:[#allocation3 + $0x410] sm:$0xf] %v6010
    %6226 = vst [vmem:[#allocation3 + $0x434] sm:$0xf] %v6013
    %6227 = vst [vmem:[#allocation3 + $0x458] sm:$0xf] %v6017
    %6228 = vst [vmem:[#allocation3 + $0x47c] sm:$0xf] %v6020
    %6229 = vst [vmem:[#allocation3 + $0x4a0] sm:$0xf] %v6024
    %6230 = vst [vmem:[#allocation3 + $0x4c4] sm:$0xf] %v6027
    %6231 = vst [vmem:[#allocation3 + $0x4e8] sm:$0xf] %v6031
    %6232 = vst [vmem:[#allocation3 + $0x50c] sm:$0xf] %v6034
    %6233 = vst [vmem:[#allocation3 + $0x530] sm:$0xf] %v6038
    %6234 = vst [vmem:[#allocation3 + $0x554] sm:$0xf] %v6041
    %6235 = vst [vmem:[#allocation3 + $0x578] sm:$0xf] %v6045
    %6236 = vst [vmem:[#allocation3 + $0x59c] sm:$0xf] %v6048
    %6237 = vst [vmem:[#allocation3 + $0x5c0] sm:$0xf] %v6052
    %6238 = vst [vmem:[#allocation3 + $0x5e4] sm:$0xf] %v6055
    %6239 = vst [vmem:[#allocation3 + $0x608] sm:$0xf] %v6059
    %6240 = vst [vmem:[#allocation3 + $0x62c] sm:$0xf] %v6062
    %6241 = vst [vmem:[#allocation3 + $0x650] sm:$0xf] %v6066
    %6242 = vst [vmem:[#allocation3 + $0x674] sm:$0xf] %v6069
    %6243 = vst [vmem:[#allocation3 + $0x698] sm:$0xf] %v6073
    %6244 = vst [vmem:[#allocation3 + $0x6bc] sm:$0xf] %v6076
    %6245 = vst [vmem:[#allocation3 + $0x6e0] sm:$0xf] %v6080
    %6246 = vst [vmem:[#allocation3 + $0x704] sm:$0xf] %v6083
    %6247 = vst [vmem:[#allocation3 + $0x728] sm:$0xf] %v6087
    %6248 = vst [vmem:[#allocation3 + $0x74c] sm:$0xf] %v6090
    %6249 = vst [vmem:[#allocation3 + $0x770] sm:$0xf] %v6094
    %6250 = vst [vmem:[#allocation3 + $0x794] sm:$0xf] %v6097
    %6251 = vst [vmem:[#allocation3 + $0x7b8] sm:$0xf] %v6101
    %6252 = vst [vmem:[#allocation3 + $0x7dc] sm:$0xf] %v6104
    %6253 = vst [vmem:[#allocation3 + $0x800] sm:$0xf] %v6108
    %6254 = vst [vmem:[#allocation3 + $0x824] sm:$0xf] %v6111
    %6255 = vst [vmem:[#allocation3 + $0x848] sm:$0xf] %v6115
    %6256 = vst [vmem:[#allocation3 + $0x86c] sm:$0xf] %v6118
    %6257 = vst [vmem:[#allocation3 + $0x890] sm:$0xf] %v6122
    %6258 = vst [vmem:[#allocation3 + $0x8b4] sm:$0xf] %v6125
    %6259 = vst [vmem:[#allocation3 + $0x8d8] sm:$0xf] %v6129
    %6260 = vst [vmem:[#allocation3 + $0x8fc] sm:$0xf] %v6132
    %v6261 = vld [vmem:[#allocation3] sm:$0xff]
    %v6262 = vld [vmem:[#allocation3 + $0x8] sm:$0xff]
    %v6263 = vld [vmem:[#allocation3 + $0x10] sm:$0xff]
    %v6264 = vld [vmem:[#allocation3 + $0x18] sm:$0xff]
    %v6265 = vld [vmem:[#allocation3 + $0x20] sm:$0xf]
    %v6266 = vld [vmem:[#allocation3 + $0x24] sm:$0xff]
    %v6267 = vld [vmem:[#allocation3 + $0x2c] sm:$0xff]
    %v6268 = vld [vmem:[#allocation3 + $0x34] sm:$0xff]
    %v6269 = vld [vmem:[#allocation3 + $0x3c] sm:$0xff]
    %v6270 = vld [vmem:[#allocation3 + $0x44] sm:$0xf]
    %v6271 = vld [vmem:[#allocation3 + $0x48] sm:$0xff]
    %v6272 = vld [vmem:[#allocation3 + $0x50] sm:$0xff]
    %v6273 = vld [vmem:[#allocation3 + $0x58] sm:$0xff]
    %v6274 = vld [vmem:[#allocation3 + $0x60] sm:$0xff]
    %v6275 = vld [vmem:[#allocation3 + $0x68] sm:$0xf]
    %v6276 = vld [vmem:[#allocation3 + $0x6c] sm:$0xff]
    %v6277 = vld [vmem:[#allocation3 + $0x74] sm:$0xff]
    %v6278 = vld [vmem:[#allocation3 + $0x7c] sm:$0xff]
    %v6279 = vld [vmem:[#allocation3 + $0x84] sm:$0xff]
    %v6280 = vld [vmem:[#allocation3 + $0x8c] sm:$0xf]
    %v6281 = vld [vmem:[#allocation3 + $0x90] sm:$0xff]
    %v6282 = vld [vmem:[#allocation3 + $0x98] sm:$0xff]
    %v6283 = vld [vmem:[#allocation3 + $0xa0] sm:$0xff]
    %v6284 = vld [vmem:[#allocation3 + $0xa8] sm:$0xff]
    %v6285 = vld [vmem:[#allocation3 + $0xb0] sm:$0xf]
    %v6286 = vld [vmem:[#allocation3 + $0xb4] sm:$0xff]
    %v6287 = vld [vmem:[#allocation3 + $0xbc] sm:$0xff]
    %v6288 = vld [vmem:[#allocation3 + $0xc4] sm:$0xff]
    %v6289 = vld [vmem:[#allocation3 + $0xcc] sm:$0xff]
    %v6290 = vld [vmem:[#allocation3 + $0xd4] sm:$0xf]
    %v6291 = vld [vmem:[#allocation3 + $0xd8] sm:$0xff]
    %v6292 = vld [vmem:[#allocation3 + $0xe0] sm:$0xff]
    %v6293 = vld [vmem:[#allocation3 + $0xe8] sm:$0xff]
    %v6294 = vld [vmem:[#allocation3 + $0xf0] sm:$0xff]
    %v6295 = vld [vmem:[#allocation3 + $0xf8] sm:$0xf]
    %v6296 = vld [vmem:[#allocation3 + $0xfc] sm:$0xff]
    %v6297 = vld [vmem:[#allocation3 + $0x104] sm:$0xff]
    %v6298 = vld [vmem:[#allocation3 + $0x10c] sm:$0xff]
    %v6299 = vld [vmem:[#allocation3 + $0x114] sm:$0xff]
    %v6300 = vld [vmem:[#allocation3 + $0x11c] sm:$0xf]
    %v6301 = vld [vmem:[#allocation3 + $0x120] sm:$0xff]
    %v6302 = vld [vmem:[#allocation3 + $0x128] sm:$0xff]
    %v6303 = vld [vmem:[#allocation3 + $0x130] sm:$0xff]
    %v6304 = vld [vmem:[#allocation3 + $0x138] sm:$0xff]
    %v6305 = vld [vmem:[#allocation3 + $0x140] sm:$0xf]
    %v6306 = vld [vmem:[#allocation3 + $0x144] sm:$0xff]
    %v6307 = vld [vmem:[#allocation3 + $0x14c] sm:$0xff]
    %v6308 = vld [vmem:[#allocation3 + $0x154] sm:$0xff]
    %v6309 = vld [vmem:[#allocation3 + $0x15c] sm:$0xff]
    %v6310 = vld [vmem:[#allocation3 + $0x164] sm:$0xf]
    %v6311 = vld [vmem:[#allocation3 + $0x168] sm:$0xff]
    %v6312 = vld [vmem:[#allocation3 + $0x170] sm:$0xff]
    %v6313 = vld [vmem:[#allocation3 + $0x178] sm:$0xff]
    %v6314 = vld [vmem:[#allocation3 + $0x180] sm:$0xff]
    %v6315 = vld [vmem:[#allocation3 + $0x188] sm:$0xf]
    %v6316 = vld [vmem:[#allocation3 + $0x18c] sm:$0xff]
    %v6317 = vld [vmem:[#allocation3 + $0x194] sm:$0xff]
    %v6318 = vld [vmem:[#allocation3 + $0x19c] sm:$0xff]
    %v6319 = vld [vmem:[#allocation3 + $0x1a4] sm:$0xff]
    %v6320 = vld [vmem:[#allocation3 + $0x1ac] sm:$0xf]
    %v6321 = vld [vmem:[#allocation3 + $0x1b0] sm:$0xff]
    %v6322 = vld [vmem:[#allocation3 + $0x1b8] sm:$0xff]
    %v6323 = vld [vmem:[#allocation3 + $0x1c0] sm:$0xff]
    %v6324 = vld [vmem:[#allocation3 + $0x1c8] sm:$0xff]
    %v6325 = vld [vmem:[#allocation3 + $0x1d0] sm:$0xf]
    %v6326 = vld [vmem:[#allocation3 + $0x1d4] sm:$0xff]
    %v6327 = vld [vmem:[#allocation3 + $0x1dc] sm:$0xff]
    %v6328 = vld [vmem:[#allocation3 + $0x1e4] sm:$0xff]
    %v6329 = vld [vmem:[#allocation3 + $0x1ec] sm:$0xff]
    %v6330 = vld [vmem:[#allocation3 + $0x1f4] sm:$0xf]
    %v6331 = vld [vmem:[#allocation3 + $0x1f8] sm:$0xff]
    %v6332 = vld [vmem:[#allocation3 + $0x200] sm:$0xff]
    %v6333 = vld [vmem:[#allocation3 + $0x208] sm:$0xff]
    %v6334 = vld [vmem:[#allocation3 + $0x210] sm:$0xff]
    %v6335 = vld [vmem:[#allocation3 + $0x218] sm:$0xf]
    %v6336 = vld [vmem:[#allocation3 + $0x21c] sm:$0xff]
    %v6337 = vld [vmem:[#allocation3 + $0x224] sm:$0xff]
    %v6338 = vld [vmem:[#allocation3 + $0x22c] sm:$0xff]
    %v6339 = vld [vmem:[#allocation3 + $0x234] sm:$0xff]
    %v6340 = vld [vmem:[#allocation3 + $0x23c] sm:$0xf]
    %v6341 = vld [vmem:[#allocation3 + $0x240] sm:$0xff]
    %v6342 = vld [vmem:[#allocation3 + $0x248] sm:$0xff]
    %v6343 = vld [vmem:[#allocation3 + $0x250] sm:$0xff]
    %v6344 = vld [vmem:[#allocation3 + $0x258] sm:$0xff]
    %v6345 = vld [vmem:[#allocation3 + $0x260] sm:$0xf]
    %v6346 = vld [vmem:[#allocation3 + $0x264] sm:$0xff]
    %v6347 = vld [vmem:[#allocation3 + $0x26c] sm:$0xff]
    %v6348 = vld [vmem:[#allocation3 + $0x274] sm:$0xff]
    %v6349 = vld [vmem:[#allocation3 + $0x27c] sm:$0xff]
    %v6350 = vld [vmem:[#allocation3 + $0x284] sm:$0xf]
    %v6351 = vld [vmem:[#allocation3 + $0x288] sm:$0xff]
    %v6352 = vld [vmem:[#allocation3 + $0x290] sm:$0xff]
    %v6353 = vld [vmem:[#allocation3 + $0x298] sm:$0xff]
    %v6354 = vld [vmem:[#allocation3 + $0x2a0] sm:$0xff]
    %v6355 = vld [vmem:[#allocation3 + $0x2a8] sm:$0xf]
    %v6356 = vld [vmem:[#allocation3 + $0x2ac] sm:$0xff]
    %v6357 = vld [vmem:[#allocation3 + $0x2b4] sm:$0xff]
    %v6358 = vld [vmem:[#allocation3 + $0x2bc] sm:$0xff]
    %v6359 = vld [vmem:[#allocation3 + $0x2c4] sm:$0xff]
    %v6360 = vld [vmem:[#allocation3 + $0x2cc] sm:$0xf]
    %v6361 = vld [vmem:[#allocation3 + $0x2d0] sm:$0xff]
    %v6362 = vld [vmem:[#allocation3 + $0x2d8] sm:$0xff]
    %v6363 = vld [vmem:[#allocation3 + $0x2e0] sm:$0xff]
    %v6364 = vld [vmem:[#allocation3 + $0x2e8] sm:$0xff]
    %v6365 = vld [vmem:[#allocation3 + $0x2f0] sm:$0xf]
    %v6366 = vld [vmem:[#allocation3 + $0x2f4] sm:$0xff]
    %v6367 = vld [vmem:[#allocation3 + $0x2fc] sm:$0xff]
    %v6368 = vld [vmem:[#allocation3 + $0x304] sm:$0xff]
    %v6369 = vld [vmem:[#allocation3 + $0x30c] sm:$0xff]
    %v6370 = vld [vmem:[#allocation3 + $0x314] sm:$0xf]
    %v6371 = vld [vmem:[#allocation3 + $0x318] sm:$0xff]
    %v6372 = vld [vmem:[#allocation3 + $0x320] sm:$0xff]
    %v6373 = vld [vmem:[#allocation3 + $0x328] sm:$0xff]
    %v6374 = vld [vmem:[#allocation3 + $0x330] sm:$0xff]
    %v6375 = vld [vmem:[#allocation3 + $0x338] sm:$0xf]
    %v6376 = vld [vmem:[#allocation3 + $0x33c] sm:$0xff]
    %v6377 = vld [vmem:[#allocation3 + $0x344] sm:$0xff]
    %v6378 = vld [vmem:[#allocation3 + $0x34c] sm:$0xff]
    %v6379 = vld [vmem:[#allocation3 + $0x354] sm:$0xff]
    %v6380 = vld [vmem:[#allocation3 + $0x35c] sm:$0xf]
    %v6381 = vld [vmem:[#allocation3 + $0x360] sm:$0xff]
    %v6382 = vld [vmem:[#allocation3 + $0x368] sm:$0xff]
    %v6383 = vld [vmem:[#allocation3 + $0x370] sm:$0xff]
    %v6384 = vld [vmem:[#allocation3 + $0x378] sm:$0xff]
    %v6385 = vld [vmem:[#allocation3 + $0x380] sm:$0xf]
    %v6386 = vld [vmem:[#allocation3 + $0x384] sm:$0xff]
    %v6387 = vld [vmem:[#allocation3 + $0x38c] sm:$0xff]
    %v6388 = vld [vmem:[#allocation3 + $0x394] sm:$0xff]
    %v6389 = vld [vmem:[#allocation3 + $0x39c] sm:$0xff]
    %v6390 = vld [vmem:[#allocation3 + $0x3a4] sm:$0xf]
    %v6391 = vld [vmem:[#allocation3 + $0x3a8] sm:$0xff]
    %v6392 = vld [vmem:[#allocation3 + $0x3b0] sm:$0xff]
    %v6393 = vld [vmem:[#allocation3 + $0x3b8] sm:$0xff]
    %v6394 = vld [vmem:[#allocation3 + $0x3c0] sm:$0xff]
    %v6395 = vld [vmem:[#allocation3 + $0x3c8] sm:$0xf]
    %v6396 = vld [vmem:[#allocation3 + $0x3cc] sm:$0xff]
    %v6397 = vld [vmem:[#allocation3 + $0x3d4] sm:$0xff]
    %v6398 = vld [vmem:[#allocation3 + $0x3dc] sm:$0xff]
    %v6399 = vld [vmem:[#allocation3 + $0x3e4] sm:$0xff]
    %v6400 = vld [vmem:[#allocation3 + $0x3ec] sm:$0xf]
    %v6401 = vld [vmem:[#allocation3 + $0x3f0] sm:$0xff]
    %v6402 = vld [vmem:[#allocation3 + $0x3f8] sm:$0xff]
    %v6403 = vld [vmem:[#allocation3 + $0x400] sm:$0xff]
    %v6404 = vld [vmem:[#allocation3 + $0x408] sm:$0xff]
    %v6405 = vld [vmem:[#allocation3 + $0x410] sm:$0xf]
    %v6406 = vld [vmem:[#allocation3 + $0x414] sm:$0xff]
    %v6407 = vld [vmem:[#allocation3 + $0x41c] sm:$0xff]
    %v6408 = vld [vmem:[#allocation3 + $0x424] sm:$0xff]
    %v6409 = vld [vmem:[#allocation3 + $0x42c] sm:$0xff]
    %v6410 = vld [vmem:[#allocation3 + $0x434] sm:$0xf]
    %v6411 = vld [vmem:[#allocation3 + $0x438] sm:$0xff]
    %v6412 = vld [vmem:[#allocation3 + $0x440] sm:$0xff]
    %v6413 = vld [vmem:[#allocation3 + $0x448] sm:$0xff]
    %v6414 = vld [vmem:[#allocation3 + $0x450] sm:$0xff]
    %v6415 = vld [vmem:[#allocation3 + $0x458] sm:$0xf]
    %v6416 = vld [vmem:[#allocation3 + $0x45c] sm:$0xff]
    %v6417 = vld [vmem:[#allocation3 + $0x464] sm:$0xff]
    %v6418 = vld [vmem:[#allocation3 + $0x46c] sm:$0xff]
    %v6419 = vld [vmem:[#allocation3 + $0x474] sm:$0xff]
    %v6420 = vld [vmem:[#allocation3 + $0x47c] sm:$0xf]
    %v6421 = vld [vmem:[#allocation3 + $0x480] sm:$0xff]
    %v6422 = vld [vmem:[#allocation3 + $0x488] sm:$0xff]
    %v6423 = vld [vmem:[#allocation3 + $0x490] sm:$0xff]
    %v6424 = vld [vmem:[#allocation3 + $0x498] sm:$0xff]
    %v6425 = vld [vmem:[#allocation3 + $0x4a0] sm:$0xf]
    %v6426 = vld [vmem:[#allocation3 + $0x4a4] sm:$0xff]
    %v6427 = vld [vmem:[#allocation3 + $0x4ac] sm:$0xff]
    %v6428 = vld [vmem:[#allocation3 + $0x4b4] sm:$0xff]
    %v6429 = vld [vmem:[#allocation3 + $0x4bc] sm:$0xff]
    %v6430 = vld [vmem:[#allocation3 + $0x4c4] sm:$0xf]
    %v6431 = vld [vmem:[#allocation3 + $0x4c8] sm:$0xff]
    %v6432 = vld [vmem:[#allocation3 + $0x4d0] sm:$0xff]
    %v6433 = vld [vmem:[#allocation3 + $0x4d8] sm:$0xff]
    %v6434 = vld [vmem:[#allocation3 + $0x4e0] sm:$0xff]
    %v6435 = vld [vmem:[#allocation3 + $0x4e8] sm:$0xf]
    %v6436 = vld [vmem:[#allocation3 + $0x4ec] sm:$0xff]
    %v6437 = vld [vmem:[#allocation3 + $0x4f4] sm:$0xff]
    %v6438 = vld [vmem:[#allocation3 + $0x4fc] sm:$0xff]
    %v6439 = vld [vmem:[#allocation3 + $0x504] sm:$0xff]
    %v6440 = vld [vmem:[#allocation3 + $0x50c] sm:$0xf]
    %v6441 = vld [vmem:[#allocation3 + $0x510] sm:$0xff]
    %v6442 = vld [vmem:[#allocation3 + $0x518] sm:$0xff]
    %v6443 = vld [vmem:[#allocation3 + $0x520] sm:$0xff]
    %v6444 = vld [vmem:[#allocation3 + $0x528] sm:$0xff]
    %v6445 = vld [vmem:[#allocation3 + $0x530] sm:$0xf]
    %v6446 = vld [vmem:[#allocation3 + $0x534] sm:$0xff]
    %v6447 = vld [vmem:[#allocation3 + $0x53c] sm:$0xff]
    %v6448 = vld [vmem:[#allocation3 + $0x544] sm:$0xff]
    %v6449 = vld [vmem:[#allocation3 + $0x54c] sm:$0xff]
    %v6450 = vld [vmem:[#allocation3 + $0x554] sm:$0xf]
    %v6451 = vld [vmem:[#allocation3 + $0x558] sm:$0xff]
    %v6452 = vld [vmem:[#allocation3 + $0x560] sm:$0xff]
    %v6453 = vld [vmem:[#allocation3 + $0x568] sm:$0xff]
    %v6454 = vld [vmem:[#allocation3 + $0x570] sm:$0xff]
    %v6455 = vld [vmem:[#allocation3 + $0x578] sm:$0xf]
    %v6456 = vld [vmem:[#allocation3 + $0x57c] sm:$0xff]
    %v6457 = vld [vmem:[#allocation3 + $0x584] sm:$0xff]
    %v6458 = vld [vmem:[#allocation3 + $0x58c] sm:$0xff]
    %v6459 = vld [vmem:[#allocation3 + $0x594] sm:$0xff]
    %v6460 = vld [vmem:[#allocation3 + $0x59c] sm:$0xf]
    %v6461 = vld [vmem:[#allocation3 + $0x5a0] sm:$0xff]
    %v6462 = vld [vmem:[#allocation3 + $0x5a8] sm:$0xff]
    %v6463 = vld [vmem:[#allocation3 + $0x5b0] sm:$0xff]
    %v6464 = vld [vmem:[#allocation3 + $0x5b8] sm:$0xff]
    %v6465 = vld [vmem:[#allocation3 + $0x5c0] sm:$0xf]
    %v6466 = vld [vmem:[#allocation3 + $0x5c4] sm:$0xff]
    %v6467 = vld [vmem:[#allocation3 + $0x5cc] sm:$0xff]
    %v6468 = vld [vmem:[#allocation3 + $0x5d4] sm:$0xff]
    %v6469 = vld [vmem:[#allocation3 + $0x5dc] sm:$0xff]
    %v6470 = vld [vmem:[#allocation3 + $0x5e4] sm:$0xf]
    %v6471 = vld [vmem:[#allocation3 + $0x5e8] sm:$0xff]
    %v6472 = vld [vmem:[#allocation3 + $0x5f0] sm:$0xff]
    %v6473 = vld [vmem:[#allocation3 + $0x5f8] sm:$0xff]
    %v6474 = vld [vmem:[#allocation3 + $0x600] sm:$0xff]
    %v6475 = vld [vmem:[#allocation3 + $0x608] sm:$0xf]
    %v6476 = vld [vmem:[#allocation3 + $0x60c] sm:$0xff]
    %v6477 = vld [vmem:[#allocation3 + $0x614] sm:$0xff]
    %v6478 = vld [vmem:[#allocation3 + $0x61c] sm:$0xff]
    %v6479 = vld [vmem:[#allocation3 + $0x624] sm:$0xff]
    %v6480 = vld [vmem:[#allocation3 + $0x62c] sm:$0xf]
    %v6481 = vld [vmem:[#allocation3 + $0x630] sm:$0xff]
    %v6482 = vld [vmem:[#allocation3 + $0x638] sm:$0xff]
    %v6483 = vld [vmem:[#allocation3 + $0x640] sm:$0xff]
    %v6484 = vld [vmem:[#allocation3 + $0x648] sm:$0xff]
    %v6485 = vld [vmem:[#allocation3 + $0x650] sm:$0xf]
    %v6486 = vld [vmem:[#allocation3 + $0x654] sm:$0xff]
    %v6487 = vld [vmem:[#allocation3 + $0x65c] sm:$0xff]
    %v6488 = vld [vmem:[#allocation3 + $0x664] sm:$0xff]
    %v6489 = vld [vmem:[#allocation3 + $0x66c] sm:$0xff]
    %v6490 = vld [vmem:[#allocation3 + $0x674] sm:$0xf]
    %v6491 = vld [vmem:[#allocation3 + $0x678] sm:$0xff]
    %v6492 = vld [vmem:[#allocation3 + $0x680] sm:$0xff]
    %v6493 = vld [vmem:[#allocation3 + $0x688] sm:$0xff]
    %v6494 = vld [vmem:[#allocation3 + $0x690] sm:$0xff]
    %v6495 = vld [vmem:[#allocation3 + $0x698] sm:$0xf]
    %v6496 = vld [vmem:[#allocation3 + $0x69c] sm:$0xff]
    %v6497 = vld [vmem:[#allocation3 + $0x6a4] sm:$0xff]
    %v6498 = vld [vmem:[#allocation3 + $0x6ac] sm:$0xff]
    %v6499 = vld [vmem:[#allocation3 + $0x6b4] sm:$0xff]
    %v6500 = vld [vmem:[#allocation3 + $0x6bc] sm:$0xf]
    %v6501 = vld [vmem:[#allocation3 + $0x6c0] sm:$0xff]
    %v6502 = vld [vmem:[#allocation3 + $0x6c8] sm:$0xff]
    %v6503 = vld [vmem:[#allocation3 + $0x6d0] sm:$0xff]
    %v6504 = vld [vmem:[#allocation3 + $0x6d8] sm:$0xff]
    %v6505 = vld [vmem:[#allocation3 + $0x6e0] sm:$0xf]
    %v6506 = vld [vmem:[#allocation3 + $0x6e4] sm:$0xff]
    %v6507 = vld [vmem:[#allocation3 + $0x6ec] sm:$0xff]
    %v6508 = vld [vmem:[#allocation3 + $0x6f4] sm:$0xff]
    %v6509 = vld [vmem:[#allocation3 + $0x6fc] sm:$0xff]
    %v6510 = vld [vmem:[#allocation3 + $0x704] sm:$0xf]
    %v6511 = vld [vmem:[#allocation3 + $0x708] sm:$0xff]
    %v6512 = vld [vmem:[#allocation3 + $0x710] sm:$0xff]
    %v6513 = vld [vmem:[#allocation3 + $0x718] sm:$0xff]
    %v6514 = vld [vmem:[#allocation3 + $0x720] sm:$0xff]
    %v6515 = vld [vmem:[#allocation3 + $0x728] sm:$0xf]
    %v6516 = vld [vmem:[#allocation3 + $0x72c] sm:$0xff]
    %v6517 = vld [vmem:[#allocation3 + $0x734] sm:$0xff]
    %v6518 = vld [vmem:[#allocation3 + $0x73c] sm:$0xff]
    %v6519 = vld [vmem:[#allocation3 + $0x744] sm:$0xff]
    %v6520 = vld [vmem:[#allocation3 + $0x74c] sm:$0xf]
    %v6521 = vld [vmem:[#allocation3 + $0x750] sm:$0xff]
    %v6522 = vld [vmem:[#allocation3 + $0x758] sm:$0xff]
    %v6523 = vld [vmem:[#allocation3 + $0x760] sm:$0xff]
    %v6524 = vld [vmem:[#allocation3 + $0x768] sm:$0xff]
    %v6525 = vld [vmem:[#allocation3 + $0x770] sm:$0xf]
    %v6526 = vld [vmem:[#allocation3 + $0x774] sm:$0xff]
    %v6527 = vld [vmem:[#allocation3 + $0x77c] sm:$0xff]
    %v6528 = vld [vmem:[#allocation3 + $0x784] sm:$0xff]
    %v6529 = vld [vmem:[#allocation3 + $0x78c] sm:$0xff]
    %v6530 = vld [vmem:[#allocation3 + $0x794] sm:$0xf]
    %v6531 = vld [vmem:[#allocation3 + $0x798] sm:$0xff]
    %v6532 = vld [vmem:[#allocation3 + $0x7a0] sm:$0xff]
    %v6533 = vld [vmem:[#allocation3 + $0x7a8] sm:$0xff]
    %v6534 = vld [vmem:[#allocation3 + $0x7b0] sm:$0xff]
    %v6535 = vld [vmem:[#allocation3 + $0x7b8] sm:$0xf]
    %v6536 = vld [vmem:[#allocation3 + $0x7bc] sm:$0xff]
    %v6537 = vld [vmem:[#allocation3 + $0x7c4] sm:$0xff]
    %v6538 = vld [vmem:[#allocation3 + $0x7cc] sm:$0xff]
    %v6539 = vld [vmem:[#allocation3 + $0x7d4] sm:$0xff]
    %v6540 = vld [vmem:[#allocation3 + $0x7dc] sm:$0xf]
    %v6541 = vld [vmem:[#allocation3 + $0x7e0] sm:$0xff]
    %v6542 = vld [vmem:[#allocation3 + $0x7e8] sm:$0xff]
    %v6543 = vld [vmem:[#allocation3 + $0x7f0] sm:$0xff]
    %v6544 = vld [vmem:[#allocation3 + $0x7f8] sm:$0xff]
    %v6545 = vld [vmem:[#allocation3 + $0x800] sm:$0xf]
    %v6546 = vld [vmem:[#allocation3 + $0x804] sm:$0xff]
    %v6547 = vld [vmem:[#allocation3 + $0x80c] sm:$0xff]
    %v6548 = vld [vmem:[#allocation3 + $0x814] sm:$0xff]
    %v6549 = vld [vmem:[#allocation3 + $0x81c] sm:$0xff]
    %v6550 = vld [vmem:[#allocation3 + $0x824] sm:$0xf]
    %v6551 = vld [vmem:[#allocation3 + $0x828] sm:$0xff]
    %v6552 = vld [vmem:[#allocation3 + $0x830] sm:$0xff]
    %v6553 = vld [vmem:[#allocation3 + $0x838] sm:$0xff]
    %v6554 = vld [vmem:[#allocation3 + $0x840] sm:$0xff]
    %v6555 = vld [vmem:[#allocation3 + $0x848] sm:$0xf]
    %v6556 = vld [vmem:[#allocation3 + $0x84c] sm:$0xff]
    %v6557 = vld [vmem:[#allocation3 + $0x854] sm:$0xff]
    %v6558 = vld [vmem:[#allocation3 + $0x85c] sm:$0xff]
    %v6559 = vld [vmem:[#allocation3 + $0x864] sm:$0xff]
    %v6560 = vld [vmem:[#allocation3 + $0x86c] sm:$0xf]
    %v6561 = vld [vmem:[#allocation3 + $0x870] sm:$0xff]
    %v6562 = vld [vmem:[#allocation3 + $0x878] sm:$0xff]
    %v6563 = vld [vmem:[#allocation3 + $0x880] sm:$0xff]
    %v6564 = vld [vmem:[#allocation3 + $0x888] sm:$0xff]
    %v6565 = vld [vmem:[#allocation3 + $0x890] sm:$0xf]
    %v6566 = vld [vmem:[#allocation3 + $0x894] sm:$0xff]
    %v6567 = vld [vmem:[#allocation3 + $0x89c] sm:$0xff]
    %v6568 = vld [vmem:[#allocation3 + $0x8a4] sm:$0xff]
    %v6569 = vld [vmem:[#allocation3 + $0x8ac] sm:$0xff]
    %v6570 = vld [vmem:[#allocation3 + $0x8b4] sm:$0xf]
    %v6571 = vld [vmem:[#allocation3 + $0x8b8] sm:$0xff]
    %v6572 = vld [vmem:[#allocation3 + $0x8c0] sm:$0xff]
    %v6573 = vld [vmem:[#allocation3 + $0x8c8] sm:$0xff]
    %v6574 = vld [vmem:[#allocation3 + $0x8d0] sm:$0xff]
    %v6575 = vld [vmem:[#allocation3 + $0x8d8] sm:$0xf]
    %v6576 = vld [vmem:[#allocation3 + $0x8dc] sm:$0xff]
    %v6577 = vld [vmem:[#allocation3 + $0x8e4] sm:$0xff]
    %v6578 = vld [vmem:[#allocation3 + $0x8ec] sm:$0xff]
    %v6579 = vld [vmem:[#allocation3 + $0x8f4] sm:$0xff]
    %v6580 = vld [vmem:[#allocation3 + $0x8fc] sm:$0xf]
    %v6581 = vld [vmem:[%s1] sm:$0xf]
    %v6582 = vld [vmem:[%s1 + $0x4] sm:$0xf]
    %v6583 = vld [vmem:[%s1 + $0x8] sm:$0xf]
    %v6584 = vld [vmem:[%s1 + $0xc] sm:$0xf]
    %v6585 = vld [vmem:[%s1 + $0x10] sm:$0xf]
    %v6586 = vld [vmem:[%s1 + $0x14] sm:$0xf]
    %v6587 = vld [vmem:[%s1 + $0x18] sm:$0xf]
    %v6588 = vld [vmem:[%s1 + $0x1c] sm:$0xf]
    %v6589 = vld [vmem:[%s1 + $0x20] sm:$0xf]
    %v6590 = vld [vmem:[%s1 + $0x24] sm:$0xf]
    %v6591 = vld [vmem:[%s1 + $0x28] sm:$0xf]
    %v6592 = vld [vmem:[%s1 + $0x2c] sm:$0xf]
    %v6593 = vld [vmem:[%s1 + $0x30] sm:$0xf]
    %v6594 = vld [vmem:[%s1 + $0x34] sm:$0xf]
    %v6595 = vld [vmem:[%s1 + $0x38] sm:$0xf]
    %v6596 = vld [vmem:[%s1 + $0x3c] sm:$0xf]
    %v6597 = vld [vmem:[%s1 + $0x40] sm:$0xf]
    %v6598 = vld [vmem:[%s1 + $0x44] sm:$0xf]
    %v6599 = vld [vmem:[%s1 + $0x48] sm:$0xf]
    %v6600 = vld [vmem:[%s1 + $0x4c] sm:$0xf]
    %v6601 = vld [vmem:[%s1 + $0x50] sm:$0xf]
    %v6602 = vld [vmem:[%s1 + $0x54] sm:$0xf]
    %v6603 = vld [vmem:[%s1 + $0x58] sm:$0xf]
    %v6604 = vld [vmem:[%s1 + $0x5c] sm:$0xf]
    %v6605 = vld [vmem:[%s1 + $0x60] sm:$0xf]
    %v6606 = vld [vmem:[%s1 + $0x64] sm:$0xf]
    %v6607 = vld [vmem:[%s1 + $0x68] sm:$0xf]
    %v6608 = vld [vmem:[%s1 + $0x6c] sm:$0xf]
    %v6609 = vld [vmem:[%s1 + $0x70] sm:$0xf]
    %v6610 = vld [vmem:[%s1 + $0x74] sm:$0xf]
    %v6611 = vld [vmem:[%s1 + $0x78] sm:$0xf]
    %v6612 = vld [vmem:[%s1 + $0x7c] sm:$0xf]
    %v6613 = vld [vmem:[%s1 + $0x80] sm:$0xf]
    %v6614 = vld [vmem:[%s1 + $0x84] sm:$0xf]
    %v6615 = vld [vmem:[%s1 + $0x88] sm:$0xf]
    %v6616 = vld [vmem:[%s1 + $0x8c] sm:$0xf]
    %v6617 = vld [vmem:[%s1 + $0x90] sm:$0xf]
    %v6618 = vld [vmem:[%s1 + $0x94] sm:$0xf]
    %v6619 = vld [vmem:[%s1 + $0x98] sm:$0xf]
    %v6620 = vld [vmem:[%s1 + $0x9c] sm:$0xf]
    %v6621 = vld [vmem:[%s1 + $0xa0] sm:$0xf]
    %v6622 = vld [vmem:[%s1 + $0xa4] sm:$0xf]
    %v6623 = vld [vmem:[%s1 + $0xa8] sm:$0xf]
    %v6624 = vld [vmem:[%s1 + $0xac] sm:$0xf]
    %v6625 = vld [vmem:[%s1 + $0xb0] sm:$0xf]
    %v6626 = vld [vmem:[%s1 + $0xb4] sm:$0xf]
    %v6627 = vld [vmem:[%s1 + $0xb8] sm:$0xf]
    %v6628 = vld [vmem:[%s1 + $0xbc] sm:$0xf]
    %v6629 = vld [vmem:[%s1 + $0xc0] sm:$0xf]
    %v6630 = vld [vmem:[%s1 + $0xc4] sm:$0xf]
    %v6631 = vld [vmem:[%s1 + $0xc8] sm:$0xf]
    %v6632 = vld [vmem:[%s1 + $0xcc] sm:$0xf]
    %v6633 = vld [vmem:[%s1 + $0xd0] sm:$0xf]
    %v6634 = vld [vmem:[%s1 + $0xd4] sm:$0xf]
    %v6635 = vld [vmem:[%s1 + $0xd8] sm:$0xf]
    %v6636 = vld [vmem:[%s1 + $0xdc] sm:$0xf]
    %v6637 = vld [vmem:[%s1 + $0xe0] sm:$0xf]
    %v6638 = vld [vmem:[%s1 + $0xe4] sm:$0xf]
    %v6639 = vld [vmem:[%s1 + $0xe8] sm:$0xf]
    %v6640 = vld [vmem:[%s1 + $0xec] sm:$0xf]
    %v6641 = vld [vmem:[%s1 + $0xf0] sm:$0xf]
    %v6642 = vld [vmem:[%s1 + $0xf4] sm:$0xf]
    %v6643 = vld [vmem:[%s1 + $0xf8] sm:$0xf]
    %v6644 = vld [vmem:[%s1 + $0xfc] sm:$0xf]
    %v6645 = vld [vmem:[%s1 + $0x100] sm:$0xf]
    %v6646 = vld [vmem:[%s1 + $0x104] sm:$0xf]
    %v6647 = vld [vmem:[%s1 + $0x108] sm:$0xf]
    %v6648 = vld [vmem:[%s1 + $0x10c] sm:$0xf]
    %v6649 = vld [vmem:[%s1 + $0x110] sm:$0xf]
    %v6650 = vld [vmem:[%s1 + $0x114] sm:$0xf]
    %v6651 = vld [vmem:[%s1 + $0x118] sm:$0xf]
    %v6652 = vld [vmem:[%s1 + $0x11c] sm:$0xf]
    %v6653 = vld [vmem:[%s1 + $0x120] sm:$0xf]
    %v6654 = vld [vmem:[%s1 + $0x124] sm:$0xf]
    %v6655 = vld [vmem:[%s1 + $0x128] sm:$0xf]
    %v6656 = vld [vmem:[%s1 + $0x12c] sm:$0xf]
    %v6657 = vld [vmem:[%s1 + $0x130] sm:$0xf]
    %v6658 = vld [vmem:[%s1 + $0x134] sm:$0xf]
    %v6659 = vld [vmem:[%s1 + $0x138] sm:$0xf]
    %v6660 = vld [vmem:[%s1 + $0x13c] sm:$0xf]
    %v6661 = vld [vmem:[%s1 + $0x140] sm:$0xf]
    %v6662 = vld [vmem:[%s1 + $0x144] sm:$0xf]
    %v6663 = vld [vmem:[%s1 + $0x148] sm:$0xf]
    %v6664 = vld [vmem:[%s1 + $0x14c] sm:$0xf]
    %v6665 = vld [vmem:[%s1 + $0x150] sm:$0xf]
    %v6666 = vld [vmem:[%s1 + $0x154] sm:$0xf]
    %v6667 = vld [vmem:[%s1 + $0x158] sm:$0xf]
    %v6668 = vld [vmem:[%s1 + $0x15c] sm:$0xf]
    %v6669 = vld [vmem:[%s1 + $0x160] sm:$0xf]
    %v6670 = vld [vmem:[%s1 + $0x164] sm:$0xf]
    %v6671 = vld [vmem:[%s1 + $0x168] sm:$0xf]
    %v6672 = vld [vmem:[%s1 + $0x16c] sm:$0xf]
    %v6673 = vld [vmem:[%s1 + $0x170] sm:$0xf]
    %v6674 = vld [vmem:[%s1 + $0x174] sm:$0xf]
    %v6675 = vld [vmem:[%s1 + $0x178] sm:$0xf]
    %v6676 = vld [vmem:[%s1 + $0x17c] sm:$0xf]
    %v6677 = vld [vmem:[%s1 + $0x180] sm:$0xf]
    %v6678 = vld [vmem:[%s1 + $0x184] sm:$0xf]
    %v6679 = vld [vmem:[%s1 + $0x188] sm:$0xf]
    %v6680 = vld [vmem:[%s1 + $0x18c] sm:$0xf]
    %v6681 = vld [vmem:[%s1 + $0x190] sm:$0xf]
    %v6682 = vld [vmem:[%s1 + $0x194] sm:$0xf]
    %v6683 = vld [vmem:[%s1 + $0x198] sm:$0xf]
    %v6684 = vld [vmem:[%s1 + $0x19c] sm:$0xf]
    %v6685 = vld [vmem:[%s1 + $0x1a0] sm:$0xf]
    %v6686 = vld [vmem:[%s1 + $0x1a4] sm:$0xf]
    %v6687 = vld [vmem:[%s1 + $0x1a8] sm:$0xf]
    %v6688 = vld [vmem:[%s1 + $0x1ac] sm:$0xf]
    %v6689 = vld [vmem:[%s1 + $0x1b0] sm:$0xf]
    %v6690 = vld [vmem:[%s1 + $0x1b4] sm:$0xf]
    %v6691 = vld [vmem:[%s1 + $0x1b8] sm:$0xf]
    %v6692 = vld [vmem:[%s1 + $0x1bc] sm:$0xf]
    %v6693 = vld [vmem:[%s1 + $0x1c0] sm:$0xf]
    %v6694 = vld [vmem:[%s1 + $0x1c4] sm:$0xf]
    %v6695 = vld [vmem:[%s1 + $0x1c8] sm:$0xf]
    %v6696 = vld [vmem:[%s1 + $0x1cc] sm:$0xf]
    %v6697 = vld [vmem:[%s1 + $0x1d0] sm:$0xf]
    %v6698 = vld [vmem:[%s1 + $0x1d4] sm:$0xf]
    %v6699 = vld [vmem:[%s1 + $0x1d8] sm:$0xf]
    %v6700 = vld [vmem:[%s1 + $0x1dc] sm:$0xf]
    %v6701 = vld [vmem:[%s1 + $0x1e0] sm:$0xf]
    %v6702 = vld [vmem:[%s1 + $0x1e4] sm:$0xf]
    %v6703 = vld [vmem:[%s1 + $0x1e8] sm:$0xf]
    %v6704 = vld [vmem:[%s1 + $0x1ec] sm:$0xf]
    %v6705 = vld [vmem:[%s1 + $0x1f0] sm:$0xf]
    %v6706 = vld [vmem:[%s1 + $0x1f4] sm:$0xf]
    %v6707 = vld [vmem:[%s1 + $0x1f8] sm:$0xf]
    %v6708 = vld [vmem:[%s1 + $0x1fc] sm:$0xf]
    %v6709 = vld [vmem:[%s1 + $0x200] sm:$0xf]
    %v6710 = vld [vmem:[%s1 + $0x204] sm:$0xf]
    %v6711 = vld [vmem:[%s1 + $0x208] sm:$0xf]
    %v6712 = vld [vmem:[%s1 + $0x20c] sm:$0xf]
    %v6713 = vld [vmem:[%s1 + $0x210] sm:$0xf]
    %v6714 = vld [vmem:[%s1 + $0x214] sm:$0xf]
    %v6715 = vld [vmem:[%s1 + $0x218] sm:$0xf]
    %v6716 = vld [vmem:[%s1 + $0x21c] sm:$0xf]
    %v6717 = vld [vmem:[%s1 + $0x220] sm:$0xf]
    %v6718 = vld [vmem:[%s1 + $0x224] sm:$0xf]
    %v6719 = vld [vmem:[%s1 + $0x228] sm:$0xf]
    %v6720 = vld [vmem:[%s1 + $0x22c] sm:$0xf]
    %v6721 = vld [vmem:[%s1 + $0x230] sm:$0xf]
    %v6722 = vld [vmem:[%s1 + $0x234] sm:$0xf]
    %v6723 = vld [vmem:[%s1 + $0x238] sm:$0xf]
    %v6724 = vld [vmem:[%s1 + $0x23c] sm:$0xf]
    %v6725 = vld [vmem:[%s2] sm:$0x1]
    %v6727 = vlaneseq
    %v6728 = vshrl.u32 %v6727, 7
    %v6729 = vsub.s32 0, %v6728
    %v6730 = vrot.slane %v6725, %v6729
    %v7052 = vunpack.c.l.b16 %v6261
    %v7053 = vunpack.c.h.b16 %v6261
    %v7054 = vunpack.c.l.b16 %v6262
    %v7055 = vunpack.c.h.b16 %v6262
    %v7056 = vunpack.c.l.b16 %v6263
    %v7057 = vunpack.c.h.b16 %v6263
    %v7058 = vunpack.c.l.b16 %v6264
    %v7059 = vunpack.c.h.b16 %v6264
    %v7060 = vunpack.c.l.b16 %v6265
    %v7061 = vunpack.c.l.b16 %v6266
    %v7062 = vunpack.c.h.b16 %v6266
    %v7063 = vunpack.c.l.b16 %v6267
    %v7064 = vunpack.c.h.b16 %v6267
    %v7065 = vunpack.c.l.b16 %v6268
    %v7066 = vunpack.c.h.b16 %v6268
    %v7067 = vunpack.c.l.b16 %v6269
    %v7068 = vunpack.c.h.b16 %v6269
    %v7069 = vunpack.c.l.b16 %v6270
    %v7070 = vunpack.c.l.b16 %v6271
    %v7071 = vunpack.c.h.b16 %v6271
    %v7072 = vunpack.c.l.b16 %v6272
    %v7073 = vunpack.c.h.b16 %v6272
    %v7074 = vunpack.c.l.b16 %v6273
    %v7075 = vunpack.c.h.b16 %v6273
    %v7076 = vunpack.c.l.b16 %v6274
    %v7077 = vunpack.c.h.b16 %v6274
    %v7078 = vunpack.c.l.b16 %v6275
    %v7079 = vunpack.c.l.b16 %v6276
    %v7080 = vunpack.c.h.b16 %v6276
    %v7081 = vunpack.c.l.b16 %v6277
    %v7082 = vunpack.c.h.b16 %v6277
    %v7083 = vunpack.c.l.b16 %v6278
    %v7084 = vunpack.c.h.b16 %v6278
    %v7085 = vunpack.c.l.b16 %v6279
    %v7086 = vunpack.c.h.b16 %v6279
    %v7087 = vunpack.c.l.b16 %v6280
    %v7088 = vunpack.c.l.b16 %v6281
    %v7089 = vunpack.c.h.b16 %v6281
    %v7090 = vunpack.c.l.b16 %v6282
    %v7091 = vunpack.c.h.b16 %v6282
    %v7092 = vunpack.c.l.b16 %v6283
    %v7093 = vunpack.c.h.b16 %v6283
    %v7094 = vunpack.c.l.b16 %v6284
    %v7095 = vunpack.c.h.b16 %v6284
    %v7096 = vunpack.c.l.b16 %v6285
    %v7097 = vunpack.c.l.b16 %v6286
    %v7098 = vunpack.c.h.b16 %v6286
    %v7099 = vunpack.c.l.b16 %v6287
    %v7100 = vunpack.c.h.b16 %v6287
    %v7101 = vunpack.c.l.b16 %v6288
    %v7102 = vunpack.c.h.b16 %v6288
    %v7103 = vunpack.c.l.b16 %v6289
    %v7104 = vunpack.c.h.b16 %v6289
    %v7105 = vunpack.c.l.b16 %v6290
    %v7106 = vunpack.c.l.b16 %v6291
    %v7107 = vunpack.c.h.b16 %v6291
    %v7108 = vunpack.c.l.b16 %v6292
    %v7109 = vunpack.c.h.b16 %v6292
    %v7110 = vunpack.c.l.b16 %v6293
    %v7111 = vunpack.c.h.b16 %v6293
    %v7112 = vunpack.c.l.b16 %v6294
    %v7113 = vunpack.c.h.b16 %v6294
    %v7114 = vunpack.c.l.b16 %v6295
    %v7115 = vunpack.c.l.b16 %v6296
    %v7116 = vunpack.c.h.b16 %v6296
    %v7117 = vunpack.c.l.b16 %v6297
    %v7118 = vunpack.c.h.b16 %v6297
    %v7119 = vunpack.c.l.b16 %v6298
    %v7120 = vunpack.c.h.b16 %v6298
    %v7121 = vunpack.c.l.b16 %v6299
    %v7122 = vunpack.c.h.b16 %v6299
    %v7123 = vunpack.c.l.b16 %v6300
    %v7124 = vunpack.c.l.b16 %v6301
    %v7125 = vunpack.c.h.b16 %v6301
    %v7126 = vunpack.c.l.b16 %v6302
    %v7127 = vunpack.c.h.b16 %v6302
    %v7128 = vunpack.c.l.b16 %v6303
    %v7129 = vunpack.c.h.b16 %v6303
    %v7130 = vunpack.c.l.b16 %v6304
    %v7131 = vunpack.c.h.b16 %v6304
    %v7132 = vunpack.c.l.b16 %v6305
    %v7133 = vunpack.c.l.b16 %v6306
    %v7134 = vunpack.c.h.b16 %v6306
    %v7135 = vunpack.c.l.b16 %v6307
    %v7136 = vunpack.c.h.b16 %v6307
    %v7137 = vunpack.c.l.b16 %v6308
    %v7138 = vunpack.c.h.b16 %v6308
    %v7139 = vunpack.c.l.b16 %v6309
    %v7140 = vunpack.c.h.b16 %v6309
    %v7141 = vunpack.c.l.b16 %v6310
    %v7142 = vunpack.c.l.b16 %v6311
    %v7143 = vunpack.c.h.b16 %v6311
    %v7144 = vunpack.c.l.b16 %v6312
    %v7145 = vunpack.c.h.b16 %v6312
    %v7146 = vunpack.c.l.b16 %v6313
    %v7147 = vunpack.c.h.b16 %v6313
    %v7148 = vunpack.c.l.b16 %v6314
    %v7149 = vunpack.c.h.b16 %v6314
    %v7150 = vunpack.c.l.b16 %v6315
    %v7151 = vunpack.c.l.b16 %v6316
    %v7152 = vunpack.c.h.b16 %v6316
    %v7153 = vunpack.c.l.b16 %v6317
    %v7154 = vunpack.c.h.b16 %v6317
    %v7155 = vunpack.c.l.b16 %v6318
    %v7156 = vunpack.c.h.b16 %v6318
    %v7157 = vunpack.c.l.b16 %v6319
    %v7158 = vunpack.c.h.b16 %v6319
    %v7159 = vunpack.c.l.b16 %v6320
    %v7160 = vunpack.c.l.b16 %v6321
    %v7161 = vunpack.c.h.b16 %v6321
    %v7162 = vunpack.c.l.b16 %v6322
    %v7163 = vunpack.c.h.b16 %v6322
    %v7164 = vunpack.c.l.b16 %v6323
    %v7165 = vunpack.c.h.b16 %v6323
    %v7166 = vunpack.c.l.b16 %v6324
    %v7167 = vunpack.c.h.b16 %v6324
    %v7168 = vunpack.c.l.b16 %v6325
    %v7169 = vunpack.c.l.b16 %v6326
    %v7170 = vunpack.c.h.b16 %v6326
    %v7171 = vunpack.c.l.b16 %v6327
    %v7172 = vunpack.c.h.b16 %v6327
    %v7173 = vunpack.c.l.b16 %v6328
    %v7174 = vunpack.c.h.b16 %v6328
    %v7175 = vunpack.c.l.b16 %v6329
    %v7176 = vunpack.c.h.b16 %v6329
    %v7177 = vunpack.c.l.b16 %v6330
    %v7178 = vunpack.c.l.b16 %v6331
    %v7179 = vunpack.c.h.b16 %v6331
    %v7180 = vunpack.c.l.b16 %v6332
    %v7181 = vunpack.c.h.b16 %v6332
    %v7182 = vunpack.c.l.b16 %v6333
    %v7183 = vunpack.c.h.b16 %v6333
    %v7184 = vunpack.c.l.b16 %v6334
    %v7185 = vunpack.c.h.b16 %v6334
    %v7186 = vunpack.c.l.b16 %v6335
    %v7187 = vunpack.c.l.b16 %v6336
    %v7188 = vunpack.c.h.b16 %v6336
    %v7189 = vunpack.c.l.b16 %v6337
    %v7190 = vunpack.c.h.b16 %v6337
    %v7191 = vunpack.c.l.b16 %v6338
    %v7192 = vunpack.c.h.b16 %v6338
    %v7193 = vunpack.c.l.b16 %v6339
    %v7194 = vunpack.c.h.b16 %v6339
    %v7195 = vunpack.c.l.b16 %v6340
    %v7196 = vunpack.c.l.b16 %v6341
    %v7197 = vunpack.c.h.b16 %v6341
    %v7198 = vunpack.c.l.b16 %v6342
    %v7199 = vunpack.c.h.b16 %v6342
    %v7200 = vunpack.c.l.b16 %v6343
    %v7201 = vunpack.c.h.b16 %v6343
    %v7202 = vunpack.c.l.b16 %v6344
    %v7203 = vunpack.c.h.b16 %v6344
    %v7204 = vunpack.c.l.b16 %v6345
    %v7205 = vunpack.c.l.b16 %v6346
    %v7206 = vunpack.c.h.b16 %v6346
    %v7207 = vunpack.c.l.b16 %v6347
    %v7208 = vunpack.c.h.b16 %v6347
    %v7209 = vunpack.c.l.b16 %v6348
    %v7210 = vunpack.c.h.b16 %v6348
    %v7211 = vunpack.c.l.b16 %v6349
    %v7212 = vunpack.c.h.b16 %v6349
    %v7213 = vunpack.c.l.b16 %v6350
    %v7214 = vunpack.c.l.b16 %v6351
    %v7215 = vunpack.c.h.b16 %v6351
    %v7216 = vunpack.c.l.b16 %v6352
    %v7217 = vunpack.c.h.b16 %v6352
    %v7218 = vunpack.c.l.b16 %v6353
    %v7219 = vunpack.c.h.b16 %v6353
    %v7220 = vunpack.c.l.b16 %v6354
    %v7221 = vunpack.c.h.b16 %v6354
    %v7222 = vunpack.c.l.b16 %v6355
    %v7223 = vunpack.c.l.b16 %v6356
    %v7224 = vunpack.c.h.b16 %v6356
    %v7225 = vunpack.c.l.b16 %v6357
    %v7226 = vunpack.c.h.b16 %v6357
    %v7227 = vunpack.c.l.b16 %v6358
    %v7228 = vunpack.c.h.b16 %v6358
    %v7229 = vunpack.c.l.b16 %v6359
    %v7230 = vunpack.c.h.b16 %v6359
    %v7231 = vunpack.c.l.b16 %v6360
    %v7232 = vunpack.c.l.b16 %v6361
    %v7233 = vunpack.c.h.b16 %v6361
    %v7234 = vunpack.c.l.b16 %v6362
    %v7235 = vunpack.c.h.b16 %v6362
    %v7236 = vunpack.c.l.b16 %v6363
    %v7237 = vunpack.c.h.b16 %v6363
    %v7238 = vunpack.c.l.b16 %v6364
    %v7239 = vunpack.c.h.b16 %v6364
    %v7240 = vunpack.c.l.b16 %v6365
    %v7241 = vunpack.c.l.b16 %v6366
    %v7242 = vunpack.c.h.b16 %v6366
    %v7243 = vunpack.c.l.b16 %v6367
    %v7244 = vunpack.c.h.b16 %v6367
    %v7245 = vunpack.c.l.b16 %v6368
    %v7246 = vunpack.c.h.b16 %v6368
    %v7247 = vunpack.c.l.b16 %v6369
    %v7248 = vunpack.c.h.b16 %v6369
    %v7249 = vunpack.c.l.b16 %v6370
    %v7250 = vunpack.c.l.b16 %v6371
    %v7251 = vunpack.c.h.b16 %v6371
    %v7252 = vunpack.c.l.b16 %v6372
    %v7253 = vunpack.c.h.b16 %v6372
    %v7254 = vunpack.c.l.b16 %v6373
    %v7255 = vunpack.c.h.b16 %v6373
    %v7256 = vunpack.c.l.b16 %v6374
    %v7257 = vunpack.c.h.b16 %v6374
    %v7258 = vunpack.c.l.b16 %v6375
    %v7259 = vunpack.c.l.b16 %v6376
    %v7260 = vunpack.c.h.b16 %v6376
    %v7261 = vunpack.c.l.b16 %v6377
    %v7262 = vunpack.c.h.b16 %v6377
    %v7263 = vunpack.c.l.b16 %v6378
    %v7264 = vunpack.c.h.b16 %v6378
    %v7265 = vunpack.c.l.b16 %v6379
    %v7266 = vunpack.c.h.b16 %v6379
    %v7267 = vunpack.c.l.b16 %v6380
    %v7268 = vunpack.c.l.b16 %v6381
    %v7269 = vunpack.c.h.b16 %v6381
    %v7270 = vunpack.c.l.b16 %v6382
    %v7271 = vunpack.c.h.b16 %v6382
    %v7272 = vunpack.c.l.b16 %v6383
    %v7273 = vunpack.c.h.b16 %v6383
    %v7274 = vunpack.c.l.b16 %v6384
    %v7275 = vunpack.c.h.b16 %v6384
    %v7276 = vunpack.c.l.b16 %v6385
    %v7277 = vunpack.c.l.b16 %v6386
    %v7278 = vunpack.c.h.b16 %v6386
    %v7279 = vunpack.c.l.b16 %v6387
    %v7280 = vunpack.c.h.b16 %v6387
    %v7281 = vunpack.c.l.b16 %v6388
    %v7282 = vunpack.c.h.b16 %v6388
    %v7283 = vunpack.c.l.b16 %v6389
    %v7284 = vunpack.c.h.b16 %v6389
    %v7285 = vunpack.c.l.b16 %v6390
    %v7286 = vunpack.c.l.b16 %v6391
    %v7287 = vunpack.c.h.b16 %v6391
    %v7288 = vunpack.c.l.b16 %v6392
    %v7289 = vunpack.c.h.b16 %v6392
    %v7290 = vunpack.c.l.b16 %v6393
    %v7291 = vunpack.c.h.b16 %v6393
    %v7292 = vunpack.c.l.b16 %v6394
    %v7293 = vunpack.c.h.b16 %v6394
    %v7294 = vunpack.c.l.b16 %v6395
    %v7295 = vunpack.c.l.b16 %v6396
    %v7296 = vunpack.c.h.b16 %v6396
    %v7297 = vunpack.c.l.b16 %v6397
    %v7298 = vunpack.c.h.b16 %v6397
    %v7299 = vunpack.c.l.b16 %v6398
    %v7300 = vunpack.c.h.b16 %v6398
    %v7301 = vunpack.c.l.b16 %v6399
    %v7302 = vunpack.c.h.b16 %v6399
    %v7303 = vunpack.c.l.b16 %v6400
    %v7304 = vunpack.c.l.b16 %v6401
    %v7305 = vunpack.c.h.b16 %v6401
    %v7306 = vunpack.c.l.b16 %v6402
    %v7307 = vunpack.c.h.b16 %v6402
    %v7308 = vunpack.c.l.b16 %v6403
    %v7309 = vunpack.c.h.b16 %v6403
    %v7310 = vunpack.c.l.b16 %v6404
    %v7311 = vunpack.c.h.b16 %v6404
    %v7312 = vunpack.c.l.b16 %v6405
    %v7313 = vunpack.c.l.b16 %v6406
    %v7314 = vunpack.c.h.b16 %v6406
    %v7315 = vunpack.c.l.b16 %v6407
    %v7316 = vunpack.c.h.b16 %v6407
    %v7317 = vunpack.c.l.b16 %v6408
    %v7318 = vunpack.c.h.b16 %v6408
    %v7319 = vunpack.c.l.b16 %v6409
    %v7320 = vunpack.c.h.b16 %v6409
    %v7321 = vunpack.c.l.b16 %v6410
    %v7322 = vunpack.c.l.b16 %v6411
    %v7323 = vunpack.c.h.b16 %v6411
    %v7324 = vunpack.c.l.b16 %v6412
    %v7325 = vunpack.c.h.b16 %v6412
    %v7326 = vunpack.c.l.b16 %v6413
    %v7327 = vunpack.c.h.b16 %v6413
    %v7328 = vunpack.c.l.b16 %v6414
    %v7329 = vunpack.c.h.b16 %v6414
    %v7330 = vunpack.c.l.b16 %v6415
    %v7331 = vunpack.c.l.b16 %v6416
    %v7332 = vunpack.c.h.b16 %v6416
    %v7333 = vunpack.c.l.b16 %v6417
    %v7334 = vunpack.c.h.b16 %v6417
    %v7335 = vunpack.c.l.b16 %v6418
    %v7336 = vunpack.c.h.b16 %v6418
    %v7337 = vunpack.c.l.b16 %v6419
    %v7338 = vunpack.c.h.b16 %v6419
    %v7339 = vunpack.c.l.b16 %v6420
    %v7340 = vunpack.c.l.b16 %v6421
    %v7341 = vunpack.c.h.b16 %v6421
    %v7342 = vunpack.c.l.b16 %v6422
    %v7343 = vunpack.c.h.b16 %v6422
    %v7344 = vunpack.c.l.b16 %v6423
    %v7345 = vunpack.c.h.b16 %v6423
    %v7346 = vunpack.c.l.b16 %v6424
    %v7347 = vunpack.c.h.b16 %v6424
    %v7348 = vunpack.c.l.b16 %v6425
    %v7349 = vunpack.c.l.b16 %v6426
    %v7350 = vunpack.c.h.b16 %v6426
    %v7351 = vunpack.c.l.b16 %v6427
    %v7352 = vunpack.c.h.b16 %v6427
    %v7353 = vunpack.c.l.b16 %v6428
    %v7354 = vunpack.c.h.b16 %v6428
    %v7355 = vunpack.c.l.b16 %v6429
    %v7356 = vunpack.c.h.b16 %v6429
    %v7357 = vunpack.c.l.b16 %v6430
    %v7358 = vunpack.c.l.b16 %v6431
    %v7359 = vunpack.c.h.b16 %v6431
    %v7360 = vunpack.c.l.b16 %v6432
    %v7361 = vunpack.c.h.b16 %v6432
    %v7362 = vunpack.c.l.b16 %v6433
    %v7363 = vunpack.c.h.b16 %v6433
    %v7364 = vunpack.c.l.b16 %v6434
    %v7365 = vunpack.c.h.b16 %v6434
    %v7366 = vunpack.c.l.b16 %v6435
    %v7367 = vunpack.c.l.b16 %v6436
    %v7368 = vunpack.c.h.b16 %v6436
    %v7369 = vunpack.c.l.b16 %v6437
    %v7370 = vunpack.c.h.b16 %v6437
    %v7371 = vunpack.c.l.b16 %v6438
    %v7372 = vunpack.c.h.b16 %v6438
    %v7373 = vunpack.c.l.b16 %v6439
    %v7374 = vunpack.c.h.b16 %v6439
    %v7375 = vunpack.c.l.b16 %v6440
    %v7376 = vunpack.c.l.b16 %v6441
    %v7377 = vunpack.c.h.b16 %v6441
    %v7378 = vunpack.c.l.b16 %v6442
    %v7379 = vunpack.c.h.b16 %v6442
    %v7380 = vunpack.c.l.b16 %v6443
    %v7381 = vunpack.c.h.b16 %v6443
    %v7382 = vunpack.c.l.b16 %v6444
    %v7383 = vunpack.c.h.b16 %v6444
    %v7384 = vunpack.c.l.b16 %v6445
    %v7385 = vunpack.c.l.b16 %v6446
    %v7386 = vunpack.c.h.b16 %v6446
    %v7387 = vunpack.c.l.b16 %v6447
    %v7388 = vunpack.c.h.b16 %v6447
    %v7389 = vunpack.c.l.b16 %v6448
    %v7390 = vunpack.c.h.b16 %v6448
    %v7391 = vunpack.c.l.b16 %v6449
    %v7392 = vunpack.c.h.b16 %v6449
    %v7393 = vunpack.c.l.b16 %v6450
    %v7394 = vunpack.c.l.b16 %v6451
    %v7395 = vunpack.c.h.b16 %v6451
    %v7396 = vunpack.c.l.b16 %v6452
    %v7397 = vunpack.c.h.b16 %v6452
    %v7398 = vunpack.c.l.b16 %v6453
    %v7399 = vunpack.c.h.b16 %v6453
    %v7400 = vunpack.c.l.b16 %v6454
    %v7401 = vunpack.c.h.b16 %v6454
    %v7402 = vunpack.c.l.b16 %v6455
    %v7403 = vunpack.c.l.b16 %v6456
    %v7404 = vunpack.c.h.b16 %v6456
    %v7405 = vunpack.c.l.b16 %v6457
    %v7406 = vunpack.c.h.b16 %v6457
    %v7407 = vunpack.c.l.b16 %v6458
    %v7408 = vunpack.c.h.b16 %v6458
    %v7409 = vunpack.c.l.b16 %v6459
    %v7410 = vunpack.c.h.b16 %v6459
    %v7411 = vunpack.c.l.b16 %v6460
    %v7412 = vunpack.c.l.b16 %v6461
    %v7413 = vunpack.c.h.b16 %v6461
    %v7414 = vunpack.c.l.b16 %v6462
    %v7415 = vunpack.c.h.b16 %v6462
    %v7416 = vunpack.c.l.b16 %v6463
    %v7417 = vunpack.c.h.b16 %v6463
    %v7418 = vunpack.c.l.b16 %v6464
    %v7419 = vunpack.c.h.b16 %v6464
    %v7420 = vunpack.c.l.b16 %v6465
    %v7421 = vunpack.c.l.b16 %v6466
    %v7422 = vunpack.c.h.b16 %v6466
    %v7423 = vunpack.c.l.b16 %v6467
    %v7424 = vunpack.c.h.b16 %v6467
    %v7425 = vunpack.c.l.b16 %v6468
    %v7426 = vunpack.c.h.b16 %v6468
    %v7427 = vunpack.c.l.b16 %v6469
    %v7428 = vunpack.c.h.b16 %v6469
    %v7429 = vunpack.c.l.b16 %v6470
    %v7430 = vunpack.c.l.b16 %v6471
    %v7431 = vunpack.c.h.b16 %v6471
    %v7432 = vunpack.c.l.b16 %v6472
    %v7433 = vunpack.c.h.b16 %v6472
    %v7434 = vunpack.c.l.b16 %v6473
    %v7435 = vunpack.c.h.b16 %v6473
    %v7436 = vunpack.c.l.b16 %v6474
    %v7437 = vunpack.c.h.b16 %v6474
    %v7438 = vunpack.c.l.b16 %v6475
    %v7439 = vunpack.c.l.b16 %v6476
    %v7440 = vunpack.c.h.b16 %v6476
    %v7441 = vunpack.c.l.b16 %v6477
    %v7442 = vunpack.c.h.b16 %v6477
    %v7443 = vunpack.c.l.b16 %v6478
    %v7444 = vunpack.c.h.b16 %v6478
    %v7445 = vunpack.c.l.b16 %v6479
    %v7446 = vunpack.c.h.b16 %v6479
    %v7447 = vunpack.c.l.b16 %v6480
    %v7448 = vunpack.c.l.b16 %v6481
    %v7449 = vunpack.c.h.b16 %v6481
    %v7450 = vunpack.c.l.b16 %v6482
    %v7451 = vunpack.c.h.b16 %v6482
    %v7452 = vunpack.c.l.b16 %v6483
    %v7453 = vunpack.c.h.b16 %v6483
    %v7454 = vunpack.c.l.b16 %v6484
    %v7455 = vunpack.c.h.b16 %v6484
    %v7456 = vunpack.c.l.b16 %v6485
    %v7457 = vunpack.c.l.b16 %v6486
    %v7458 = vunpack.c.h.b16 %v6486
    %v7459 = vunpack.c.l.b16 %v6487
    %v7460 = vunpack.c.h.b16 %v6487
    %v7461 = vunpack.c.l.b16 %v6488
    %v7462 = vunpack.c.h.b16 %v6488
    %v7463 = vunpack.c.l.b16 %v6489
    %v7464 = vunpack.c.h.b16 %v6489
    %v7465 = vunpack.c.l.b16 %v6490
    %v7466 = vunpack.c.l.b16 %v6491
    %v7467 = vunpack.c.h.b16 %v6491
    %v7468 = vunpack.c.l.b16 %v6492
    %v7469 = vunpack.c.h.b16 %v6492
    %v7470 = vunpack.c.l.b16 %v6493
    %v7471 = vunpack.c.h.b16 %v6493
    %v7472 = vunpack.c.l.b16 %v6494
    %v7473 = vunpack.c.h.b16 %v6494
    %v7474 = vunpack.c.l.b16 %v6495
    %v7475 = vunpack.c.l.b16 %v6496
    %v7476 = vunpack.c.h.b16 %v6496
    %v7477 = vunpack.c.l.b16 %v6497
    %v7478 = vunpack.c.h.b16 %v6497
    %v7479 = vunpack.c.l.b16 %v6498
    %v7480 = vunpack.c.h.b16 %v6498
    %v7481 = vunpack.c.l.b16 %v6499
    %v7482 = vunpack.c.h.b16 %v6499
    %v7483 = vunpack.c.l.b16 %v6500
    %v7484 = vunpack.c.l.b16 %v6501
    %v7485 = vunpack.c.h.b16 %v6501
    %v7486 = vunpack.c.l.b16 %v6502
    %v7487 = vunpack.c.h.b16 %v6502
    %v7488 = vunpack.c.l.b16 %v6503
    %v7489 = vunpack.c.h.b16 %v6503
    %v7490 = vunpack.c.l.b16 %v6504
    %v7491 = vunpack.c.h.b16 %v6504
    %v7492 = vunpack.c.l.b16 %v6505
    %v7493 = vunpack.c.l.b16 %v6506
    %v7494 = vunpack.c.h.b16 %v6506
    %v7495 = vunpack.c.l.b16 %v6507
    %v7496 = vunpack.c.h.b16 %v6507
    %v7497 = vunpack.c.l.b16 %v6508
    %v7498 = vunpack.c.h.b16 %v6508
    %v7499 = vunpack.c.l.b16 %v6509
    %v7500 = vunpack.c.h.b16 %v6509
    %v7501 = vunpack.c.l.b16 %v6510
    %v7502 = vunpack.c.l.b16 %v6511
    %v7503 = vunpack.c.h.b16 %v6511
    %v7504 = vunpack.c.l.b16 %v6512
    %v7505 = vunpack.c.h.b16 %v6512
    %v7506 = vunpack.c.l.b16 %v6513
    %v7507 = vunpack.c.h.b16 %v6513
    %v7508 = vunpack.c.l.b16 %v6514
    %v7509 = vunpack.c.h.b16 %v6514
    %v7510 = vunpack.c.l.b16 %v6515
    %v7511 = vunpack.c.l.b16 %v6516
    %v7512 = vunpack.c.h.b16 %v6516
    %v7513 = vunpack.c.l.b16 %v6517
    %v7514 = vunpack.c.h.b16 %v6517
    %v7515 = vunpack.c.l.b16 %v6518
    %v7516 = vunpack.c.h.b16 %v6518
    %v7517 = vunpack.c.l.b16 %v6519
    %v7518 = vunpack.c.h.b16 %v6519
    %v7519 = vunpack.c.l.b16 %v6520
    %v7520 = vunpack.c.l.b16 %v6521
    %v7521 = vunpack.c.h.b16 %v6521
    %v7522 = vunpack.c.l.b16 %v6522
    %v7523 = vunpack.c.h.b16 %v6522
    %v7524 = vunpack.c.l.b16 %v6523
    %v7525 = vunpack.c.h.b16 %v6523
    %v7526 = vunpack.c.l.b16 %v6524
    %v7527 = vunpack.c.h.b16 %v6524
    %v7528 = vunpack.c.l.b16 %v6525
    %v7529 = vunpack.c.l.b16 %v6526
    %v7530 = vunpack.c.h.b16 %v6526
    %v7531 = vunpack.c.l.b16 %v6527
    %v7532 = vunpack.c.h.b16 %v6527
    %v7533 = vunpack.c.l.b16 %v6528
    %v7534 = vunpack.c.h.b16 %v6528
    %v7535 = vunpack.c.l.b16 %v6529
    %v7536 = vunpack.c.h.b16 %v6529
    %v7537 = vunpack.c.l.b16 %v6530
    %v7538 = vunpack.c.l.b16 %v6531
    %v7539 = vunpack.c.h.b16 %v6531
    %v7540 = vunpack.c.l.b16 %v6532
    %v7541 = vunpack.c.h.b16 %v6532
    %v7542 = vunpack.c.l.b16 %v6533
    %v7543 = vunpack.c.h.b16 %v6533
    %v7544 = vunpack.c.l.b16 %v6534
    %v7545 = vunpack.c.h.b16 %v6534
    %v7546 = vunpack.c.l.b16 %v6535
    %v7547 = vunpack.c.l.b16 %v6536
    %v7548 = vunpack.c.h.b16 %v6536
    %v7549 = vunpack.c.l.b16 %v6537
    %v7550 = vunpack.c.h.b16 %v6537
    %v7551 = vunpack.c.l.b16 %v6538
    %v7552 = vunpack.c.h.b16 %v6538
    %v7553 = vunpack.c.l.b16 %v6539
    %v7554 = vunpack.c.h.b16 %v6539
    %v7555 = vunpack.c.l.b16 %v6540
    %v7556 = vunpack.c.l.b16 %v6541
    %v7557 = vunpack.c.h.b16 %v6541
    %v7558 = vunpack.c.l.b16 %v6542
    %v7559 = vunpack.c.h.b16 %v6542
    %v7560 = vunpack.c.l.b16 %v6543
    %v7561 = vunpack.c.h.b16 %v6543
    %v7562 = vunpack.c.l.b16 %v6544
    %v7563 = vunpack.c.h.b16 %v6544
    %v7564 = vunpack.c.l.b16 %v6545
    %v7565 = vunpack.c.l.b16 %v6546
    %v7566 = vunpack.c.h.b16 %v6546
    %v7567 = vunpack.c.l.b16 %v6547
    %v7568 = vunpack.c.h.b16 %v6547
    %v7569 = vunpack.c.l.b16 %v6548
    %v7570 = vunpack.c.h.b16 %v6548
    %v7571 = vunpack.c.l.b16 %v6549
    %v7572 = vunpack.c.h.b16 %v6549
    %v7573 = vunpack.c.l.b16 %v6550
    %v7574 = vunpack.c.l.b16 %v6551
    %v7575 = vunpack.c.h.b16 %v6551
    %v7576 = vunpack.c.l.b16 %v6552
    %v7577 = vunpack.c.h.b16 %v6552
    %v7578 = vunpack.c.l.b16 %v6553
    %v7579 = vunpack.c.h.b16 %v6553
    %v7580 = vunpack.c.l.b16 %v6554
    %v7581 = vunpack.c.h.b16 %v6554
    %v7582 = vunpack.c.l.b16 %v6555
    %v7583 = vunpack.c.l.b16 %v6556
    %v7584 = vunpack.c.h.b16 %v6556
    %v7585 = vunpack.c.l.b16 %v6557
    %v7586 = vunpack.c.h.b16 %v6557
    %v7587 = vunpack.c.l.b16 %v6558
    %v7588 = vunpack.c.h.b16 %v6558
    %v7589 = vunpack.c.l.b16 %v6559
    %v7590 = vunpack.c.h.b16 %v6559
    %v7591 = vunpack.c.l.b16 %v6560
    %v7592 = vunpack.c.l.b16 %v6561
    %v7593 = vunpack.c.h.b16 %v6561
    %v7594 = vunpack.c.l.b16 %v6562
    %v7595 = vunpack.c.h.b16 %v6562
    %v7596 = vunpack.c.l.b16 %v6563
    %v7597 = vunpack.c.h.b16 %v6563
    %v7598 = vunpack.c.l.b16 %v6564
    %v7599 = vunpack.c.h.b16 %v6564
    %v7600 = vunpack.c.l.b16 %v6565
    %v7601 = vunpack.c.l.b16 %v6566
    %v7602 = vunpack.c.h.b16 %v6566
    %v7603 = vunpack.c.l.b16 %v6567
    %v7604 = vunpack.c.h.b16 %v6567
    %v7605 = vunpack.c.l.b16 %v6568
    %v7606 = vunpack.c.h.b16 %v6568
    %v7607 = vunpack.c.l.b16 %v6569
    %v7608 = vunpack.c.h.b16 %v6569
    %v7609 = vunpack.c.l.b16 %v6570
    %v7610 = vunpack.c.l.b16 %v6571
    %v7611 = vunpack.c.h.b16 %v6571
    %v7612 = vunpack.c.l.b16 %v6572
    %v7613 = vunpack.c.h.b16 %v6572
    %v7614 = vunpack.c.l.b16 %v6573
    %v7615 = vunpack.c.h.b16 %v6573
    %v7616 = vunpack.c.l.b16 %v6574
    %v7617 = vunpack.c.h.b16 %v6574
    %v7618 = vunpack.c.l.b16 %v6575
    %v7619 = vunpack.c.l.b16 %v6576
    %v7620 = vunpack.c.h.b16 %v6576
    %v7621 = vunpack.c.l.b16 %v6577
    %v7622 = vunpack.c.h.b16 %v6577
    %v7623 = vunpack.c.l.b16 %v6578
    %v7624 = vunpack.c.h.b16 %v6578
    %v7625 = vunpack.c.l.b16 %v6579
    %v7626 = vunpack.c.h.b16 %v6579
    %v7627 = vunpack.c.l.b16 %v6580
    %v7628 = vpack.c.b16 %v7061, %v7052
    %v7629 = vpack.c.b16 %v7062, %v7053
    %v7630 = vpack.c.b16 %v7063, %v7054
    %v7631 = vpack.c.b16 %v7064, %v7055
    %v7632 = vpack.c.b16 %v7065, %v7056
    %v7633 = vpack.c.b16 %v7066, %v7057
    %v7634 = vpack.c.b16 %v7067, %v7058
    %v7635 = vpack.c.b16 %v7068, %v7059
    %v7636 = vpack.c.b16 %v7069, %v7060
    %v7637 = vpack.c.b16 %v7079, %v7070
    %v7638 = vpack.c.b16 %v7080, %v7071
    %v7639 = vpack.c.b16 %v7081, %v7072
    %v7640 = vpack.c.b16 %v7082, %v7073
    %v7641 = vpack.c.b16 %v7083, %v7074
    %v7642 = vpack.c.b16 %v7084, %v7075
    %v7643 = vpack.c.b16 %v7085, %v7076
    %v7644 = vpack.c.b16 %v7086, %v7077
    %v7645 = vpack.c.b16 %v7087, %v7078
    %v7646 = vpack.c.b16 %v7097, %v7088
    %v7647 = vpack.c.b16 %v7098, %v7089
    %v7648 = vpack.c.b16 %v7099, %v7090
    %v7649 = vpack.c.b16 %v7100, %v7091
    %v7650 = vpack.c.b16 %v7101, %v7092
    %v7651 = vpack.c.b16 %v7102, %v7093
    %v7652 = vpack.c.b16 %v7103, %v7094
    %v7653 = vpack.c.b16 %v7104, %v7095
    %v7654 = vpack.c.b16 %v7105, %v7096
    %v7655 = vpack.c.b16 %v7115, %v7106
    %v7656 = vpack.c.b16 %v7116, %v7107
    %v7657 = vpack.c.b16 %v7117, %v7108
    %v7658 = vpack.c.b16 %v7118, %v7109
    %v7659 = vpack.c.b16 %v7119, %v7110
    %v7660 = vpack.c.b16 %v7120, %v7111
    %v7661 = vpack.c.b16 %v7121, %v7112
    %v7662 = vpack.c.b16 %v7122, %v7113
    %v7663 = vpack.c.b16 %v7123, %v7114
    %v7664 = vpack.c.b16 %v7133, %v7124
    %v7665 = vpack.c.b16 %v7134, %v7125
    %v7666 = vpack.c.b16 %v7135, %v7126
    %v7667 = vpack.c.b16 %v7136, %v7127
    %v7668 = vpack.c.b16 %v7137, %v7128
    %v7669 = vpack.c.b16 %v7138, %v7129
    %v7670 = vpack.c.b16 %v7139, %v7130
    %v7671 = vpack.c.b16 %v7140, %v7131
    %v7672 = vpack.c.b16 %v7141, %v7132
    %v7673 = vpack.c.b16 %v7151, %v7142
    %v7674 = vpack.c.b16 %v7152, %v7143
    %v7675 = vpack.c.b16 %v7153, %v7144
    %v7676 = vpack.c.b16 %v7154, %v7145
    %v7677 = vpack.c.b16 %v7155, %v7146
    %v7678 = vpack.c.b16 %v7156, %v7147
    %v7679 = vpack.c.b16 %v7157, %v7148
    %v7680 = vpack.c.b16 %v7158, %v7149
    %v7681 = vpack.c.b16 %v7159, %v7150
    %v7682 = vpack.c.b16 %v7169, %v7160
    %v7683 = vpack.c.b16 %v7170, %v7161
    %v7684 = vpack.c.b16 %v7171, %v7162
    %v7685 = vpack.c.b16 %v7172, %v7163
    %v7686 = vpack.c.b16 %v7173, %v7164
    %v7687 = vpack.c.b16 %v7174, %v7165
    %v7688 = vpack.c.b16 %v7175, %v7166
    %v7689 = vpack.c.b16 %v7176, %v7167
    %v7690 = vpack.c.b16 %v7177, %v7168
    %v7691 = vpack.c.b16 %v7187, %v7178
    %v7692 = vpack.c.b16 %v7188, %v7179
    %v7693 = vpack.c.b16 %v7189, %v7180
    %v7694 = vpack.c.b16 %v7190, %v7181
    %v7695 = vpack.c.b16 %v7191, %v7182
    %v7696 = vpack.c.b16 %v7192, %v7183
    %v7697 = vpack.c.b16 %v7193, %v7184
    %v7698 = vpack.c.b16 %v7194, %v7185
    %v7699 = vpack.c.b16 %v7195, %v7186
    %v7700 = vpack.c.b16 %v7205, %v7196
    %v7701 = vpack.c.b16 %v7206, %v7197
    %v7702 = vpack.c.b16 %v7207, %v7198
    %v7703 = vpack.c.b16 %v7208, %v7199
    %v7704 = vpack.c.b16 %v7209, %v7200
    %v7705 = vpack.c.b16 %v7210, %v7201
    %v7706 = vpack.c.b16 %v7211, %v7202
    %v7707 = vpack.c.b16 %v7212, %v7203
    %v7708 = vpack.c.b16 %v7213, %v7204
    %v7709 = vpack.c.b16 %v7223, %v7214
    %v7710 = vpack.c.b16 %v7224, %v7215
    %v7711 = vpack.c.b16 %v7225, %v7216
    %v7712 = vpack.c.b16 %v7226, %v7217
    %v7713 = vpack.c.b16 %v7227, %v7218
    %v7714 = vpack.c.b16 %v7228, %v7219
    %v7715 = vpack.c.b16 %v7229, %v7220
    %v7716 = vpack.c.b16 %v7230, %v7221
    %v7717 = vpack.c.b16 %v7231, %v7222
    %v7718 = vpack.c.b16 %v7241, %v7232
    %v7719 = vpack.c.b16 %v7242, %v7233
    %v7720 = vpack.c.b16 %v7243, %v7234
    %v7721 = vpack.c.b16 %v7244, %v7235
    %v7722 = vpack.c.b16 %v7245, %v7236
    %v7723 = vpack.c.b16 %v7246, %v7237
    %v7724 = vpack.c.b16 %v7247, %v7238
    %v7725 = vpack.c.b16 %v7248, %v7239
    %v7726 = vpack.c.b16 %v7249, %v7240
    %v7727 = vpack.c.b16 %v7259, %v7250
    %v7728 = vpack.c.b16 %v7260, %v7251
    %v7729 = vpack.c.b16 %v7261, %v7252
    %v7730 = vpack.c.b16 %v7262, %v7253
    %v7731 = vpack.c.b16 %v7263, %v7254
    %v7732 = vpack.c.b16 %v7264, %v7255
    %v7733 = vpack.c.b16 %v7265, %v7256
    %v7734 = vpack.c.b16 %v7266, %v7257
    %v7735 = vpack.c.b16 %v7267, %v7258
    %v7736 = vpack.c.b16 %v7277, %v7268
    %v7737 = vpack.c.b16 %v7278, %v7269
    %v7738 = vpack.c.b16 %v7279, %v7270
    %v7739 = vpack.c.b16 %v7280, %v7271
    %v7740 = vpack.c.b16 %v7281, %v7272
    %v7741 = vpack.c.b16 %v7282, %v7273
    %v7742 = vpack.c.b16 %v7283, %v7274
    %v7743 = vpack.c.b16 %v7284, %v7275
    %v7744 = vpack.c.b16 %v7285, %v7276
    %v7745 = vpack.c.b16 %v7295, %v7286
    %v7746 = vpack.c.b16 %v7296, %v7287
    %v7747 = vpack.c.b16 %v7297, %v7288
    %v7748 = vpack.c.b16 %v7298, %v7289
    %v7749 = vpack.c.b16 %v7299, %v7290
    %v7750 = vpack.c.b16 %v7300, %v7291
    %v7751 = vpack.c.b16 %v7301, %v7292
    %v7752 = vpack.c.b16 %v7302, %v7293
    %v7753 = vpack.c.b16 %v7303, %v7294
    %v7754 = vpack.c.b16 %v7313, %v7304
    %v7755 = vpack.c.b16 %v7314, %v7305
    %v7756 = vpack.c.b16 %v7315, %v7306
    %v7757 = vpack.c.b16 %v7316, %v7307
    %v7758 = vpack.c.b16 %v7317, %v7308
    %v7759 = vpack.c.b16 %v7318, %v7309
    %v7760 = vpack.c.b16 %v7319, %v7310
    %v7761 = vpack.c.b16 %v7320, %v7311
    %v7762 = vpack.c.b16 %v7321, %v7312
    %v7763 = vpack.c.b16 %v7331, %v7322
    %v7764 = vpack.c.b16 %v7332, %v7323
    %v7765 = vpack.c.b16 %v7333, %v7324
    %v7766 = vpack.c.b16 %v7334, %v7325
    %v7767 = vpack.c.b16 %v7335, %v7326
    %v7768 = vpack.c.b16 %v7336, %v7327
    %v7769 = vpack.c.b16 %v7337, %v7328
    %v7770 = vpack.c.b16 %v7338, %v7329
    %v7771 = vpack.c.b16 %v7339, %v7330
    %v7772 = vpack.c.b16 %v7349, %v7340
    %v7773 = vpack.c.b16 %v7350, %v7341
    %v7774 = vpack.c.b16 %v7351, %v7342
    %v7775 = vpack.c.b16 %v7352, %v7343
    %v7776 = vpack.c.b16 %v7353, %v7344
    %v7777 = vpack.c.b16 %v7354, %v7345
    %v7778 = vpack.c.b16 %v7355, %v7346
    %v7779 = vpack.c.b16 %v7356, %v7347
    %v7780 = vpack.c.b16 %v7357, %v7348
    %v7781 = vpack.c.b16 %v7367, %v7358
    %v7782 = vpack.c.b16 %v7368, %v7359
    %v7783 = vpack.c.b16 %v7369, %v7360
    %v7784 = vpack.c.b16 %v7370, %v7361
    %v7785 = vpack.c.b16 %v7371, %v7362
    %v7786 = vpack.c.b16 %v7372, %v7363
    %v7787 = vpack.c.b16 %v7373, %v7364
    %v7788 = vpack.c.b16 %v7374, %v7365
    %v7789 = vpack.c.b16 %v7375, %v7366
    %v7790 = vpack.c.b16 %v7385, %v7376
    %v7791 = vpack.c.b16 %v7386, %v7377
    %v7792 = vpack.c.b16 %v7387, %v7378
    %v7793 = vpack.c.b16 %v7388, %v7379
    %v7794 = vpack.c.b16 %v7389, %v7380
    %v7795 = vpack.c.b16 %v7390, %v7381
    %v7796 = vpack.c.b16 %v7391, %v7382
    %v7797 = vpack.c.b16 %v7392, %v7383
    %v7798 = vpack.c.b16 %v7393, %v7384
    %v7799 = vpack.c.b16 %v7403, %v7394
    %v7800 = vpack.c.b16 %v7404, %v7395
    %v7801 = vpack.c.b16 %v7405, %v7396
    %v7802 = vpack.c.b16 %v7406, %v7397
    %v7803 = vpack.c.b16 %v7407, %v7398
    %v7804 = vpack.c.b16 %v7408, %v7399
    %v7805 = vpack.c.b16 %v7409, %v7400
    %v7806 = vpack.c.b16 %v7410, %v7401
    %v7807 = vpack.c.b16 %v7411, %v7402
    %v7808 = vpack.c.b16 %v7421, %v7412
    %v7809 = vpack.c.b16 %v7422, %v7413
    %v7810 = vpack.c.b16 %v7423, %v7414
    %v7811 = vpack.c.b16 %v7424, %v7415
    %v7812 = vpack.c.b16 %v7425, %v7416
    %v7813 = vpack.c.b16 %v7426, %v7417
    %v7814 = vpack.c.b16 %v7427, %v7418
    %v7815 = vpack.c.b16 %v7428, %v7419
    %v7816 = vpack.c.b16 %v7429, %v7420
    %v7817 = vpack.c.b16 %v7439, %v7430
    %v7818 = vpack.c.b16 %v7440, %v7431
    %v7819 = vpack.c.b16 %v7441, %v7432
    %v7820 = vpack.c.b16 %v7442, %v7433
    %v7821 = vpack.c.b16 %v7443, %v7434
    %v7822 = vpack.c.b16 %v7444, %v7435
    %v7823 = vpack.c.b16 %v7445, %v7436
    %v7824 = vpack.c.b16 %v7446, %v7437
    %v7825 = vpack.c.b16 %v7447, %v7438
    %v7826 = vpack.c.b16 %v7457, %v7448
    %v7827 = vpack.c.b16 %v7458, %v7449
    %v7828 = vpack.c.b16 %v7459, %v7450
    %v7829 = vpack.c.b16 %v7460, %v7451
    %v7830 = vpack.c.b16 %v7461, %v7452
    %v7831 = vpack.c.b16 %v7462, %v7453
    %v7832 = vpack.c.b16 %v7463, %v7454
    %v7833 = vpack.c.b16 %v7464, %v7455
    %v7834 = vpack.c.b16 %v7465, %v7456
    %v7835 = vpack.c.b16 %v7475, %v7466
    %v7836 = vpack.c.b16 %v7476, %v7467
    %v7837 = vpack.c.b16 %v7477, %v7468
    %v7838 = vpack.c.b16 %v7478, %v7469
    %v7839 = vpack.c.b16 %v7479, %v7470
    %v7840 = vpack.c.b16 %v7480, %v7471
    %v7841 = vpack.c.b16 %v7481, %v7472
    %v7842 = vpack.c.b16 %v7482, %v7473
    %v7843 = vpack.c.b16 %v7483, %v7474
    %v7844 = vpack.c.b16 %v7493, %v7484
    %v7845 = vpack.c.b16 %v7494, %v7485
    %v7846 = vpack.c.b16 %v7495, %v7486
    %v7847 = vpack.c.b16 %v7496, %v7487
    %v7848 = vpack.c.b16 %v7497, %v7488
    %v7849 = vpack.c.b16 %v7498, %v7489
    %v7850 = vpack.c.b16 %v7499, %v7490
    %v7851 = vpack.c.b16 %v7500, %v7491
    %v7852 = vpack.c.b16 %v7501, %v7492
    %v7853 = vpack.c.b16 %v7511, %v7502
    %v7854 = vpack.c.b16 %v7512, %v7503
    %v7855 = vpack.c.b16 %v7513, %v7504
    %v7856 = vpack.c.b16 %v7514, %v7505
    %v7857 = vpack.c.b16 %v7515, %v7506
    %v7858 = vpack.c.b16 %v7516, %v7507
    %v7859 = vpack.c.b16 %v7517, %v7508
    %v7860 = vpack.c.b16 %v7518, %v7509
    %v7861 = vpack.c.b16 %v7519, %v7510
    %v7862 = vpack.c.b16 %v7529, %v7520
    %v7863 = vpack.c.b16 %v7530, %v7521
    %v7864 = vpack.c.b16 %v7531, %v7522
    %v7865 = vpack.c.b16 %v7532, %v7523
    %v7866 = vpack.c.b16 %v7533, %v7524
    %v7867 = vpack.c.b16 %v7534, %v7525
    %v7868 = vpack.c.b16 %v7535, %v7526
    %v7869 = vpack.c.b16 %v7536, %v7527
    %v7870 = vpack.c.b16 %v7537, %v7528
    %v7871 = vpack.c.b16 %v7547, %v7538
    %v7872 = vpack.c.b16 %v7548, %v7539
    %v7873 = vpack.c.b16 %v7549, %v7540
    %v7874 = vpack.c.b16 %v7550, %v7541
    %v7875 = vpack.c.b16 %v7551, %v7542
    %v7876 = vpack.c.b16 %v7552, %v7543
    %v7877 = vpack.c.b16 %v7553, %v7544
    %v7878 = vpack.c.b16 %v7554, %v7545
    %v7879 = vpack.c.b16 %v7555, %v7546
    %v7880 = vpack.c.b16 %v7565, %v7556
    %v7881 = vpack.c.b16 %v7566, %v7557
    %v7882 = vpack.c.b16 %v7567, %v7558
    %v7883 = vpack.c.b16 %v7568, %v7559
    %v7884 = vpack.c.b16 %v7569, %v7560
    %v7885 = vpack.c.b16 %v7570, %v7561
    %v7886 = vpack.c.b16 %v7571, %v7562
    %v7887 = vpack.c.b16 %v7572, %v7563
    %v7888 = vpack.c.b16 %v7573, %v7564
    %v7889 = vpack.c.b16 %v7583, %v7574
    %v7890 = vpack.c.b16 %v7584, %v7575
    %v7891 = vpack.c.b16 %v7585, %v7576
    %v7892 = vpack.c.b16 %v7586, %v7577
    %v7893 = vpack.c.b16 %v7587, %v7578
    %v7894 = vpack.c.b16 %v7588, %v7579
    %v7895 = vpack.c.b16 %v7589, %v7580
    %v7896 = vpack.c.b16 %v7590, %v7581
    %v7897 = vpack.c.b16 %v7591, %v7582
    %v7898 = vpack.c.b16 %v7601, %v7592
    %v7899 = vpack.c.b16 %v7602, %v7593
    %v7900 = vpack.c.b16 %v7603, %v7594
    %v7901 = vpack.c.b16 %v7604, %v7595
    %v7902 = vpack.c.b16 %v7605, %v7596
    %v7903 = vpack.c.b16 %v7606, %v7597
    %v7904 = vpack.c.b16 %v7607, %v7598
    %v7905 = vpack.c.b16 %v7608, %v7599
    %v7906 = vpack.c.b16 %v7609, %v7600
    %v7907 = vpack.c.b16 %v7619, %v7610
    %v7908 = vpack.c.b16 %v7620, %v7611
    %v7909 = vpack.c.b16 %v7621, %v7612
    %v7910 = vpack.c.b16 %v7622, %v7613
    %v7911 = vpack.c.b16 %v7623, %v7614
    %v7912 = vpack.c.b16 %v7624, %v7615
    %v7913 = vpack.c.b16 %v7625, %v7616
    %v7914 = vpack.c.b16 %v7626, %v7617
    %v7915 = vpack.c.b16 %v7627, %v7618
    %v8348 = vunpack.c.l.b16 %v6581
    %v8349 = vunpack.c.l.b16 %v6582
    %v8350 = vunpack.c.l.b16 %v6583
    %v8351 = vunpack.c.l.b16 %v6584
    %v8352 = vunpack.c.l.b16 %v6585
    %v8353 = vunpack.c.l.b16 %v6586
    %v8354 = vunpack.c.l.b16 %v6587
    %v8355 = vunpack.c.l.b16 %v6588
    %v8356 = vunpack.c.l.b16 %v6589
    %v8357 = vunpack.c.l.b16 %v6590
    %v8358 = vunpack.c.l.b16 %v6591
    %v8359 = vunpack.c.l.b16 %v6592
    %v8360 = vunpack.c.l.b16 %v6593
    %v8361 = vunpack.c.l.b16 %v6594
    %v8362 = vunpack.c.l.b16 %v6595
    %v8363 = vunpack.c.l.b16 %v6596
    %v8364 = vunpack.c.l.b16 %v6597
    %v8365 = vunpack.c.l.b16 %v6598
    %v8366 = vunpack.c.l.b16 %v6599
    %v8367 = vunpack.c.l.b16 %v6600
    %v8368 = vunpack.c.l.b16 %v6601
    %v8369 = vunpack.c.l.b16 %v6602
    %v8370 = vunpack.c.l.b16 %v6603
    %v8371 = vunpack.c.l.b16 %v6604
    %v8372 = vunpack.c.l.b16 %v6605
    %v8373 = vunpack.c.l.b16 %v6606
    %v8374 = vunpack.c.l.b16 %v6607
    %v8375 = vunpack.c.l.b16 %v6608
    %v8376 = vunpack.c.l.b16 %v6609
    %v8377 = vunpack.c.l.b16 %v6610
    %v8378 = vunpack.c.l.b16 %v6611
    %v8379 = vunpack.c.l.b16 %v6612
    %v8380 = vunpack.c.l.b16 %v6613
    %v8381 = vunpack.c.l.b16 %v6614
    %v8382 = vunpack.c.l.b16 %v6615
    %v8383 = vunpack.c.l.b16 %v6616
    %v8384 = vunpack.c.l.b16 %v6617
    %v8385 = vunpack.c.l.b16 %v6618
    %v8386 = vunpack.c.l.b16 %v6619
    %v8387 = vunpack.c.l.b16 %v6620
    %v8388 = vunpack.c.l.b16 %v6621
    %v8389 = vunpack.c.l.b16 %v6622
    %v8390 = vunpack.c.l.b16 %v6623
    %v8391 = vunpack.c.l.b16 %v6624
    %v8392 = vunpack.c.l.b16 %v6625
    %v8393 = vunpack.c.l.b16 %v6626
    %v8394 = vunpack.c.l.b16 %v6627
    %v8395 = vunpack.c.l.b16 %v6628
    %v8396 = vunpack.c.l.b16 %v6629
    %v8397 = vunpack.c.l.b16 %v6630
    %v8398 = vunpack.c.l.b16 %v6631
    %v8399 = vunpack.c.l.b16 %v6632
    %v8400 = vunpack.c.l.b16 %v6633
    %v8401 = vunpack.c.l.b16 %v6634
    %v8402 = vunpack.c.l.b16 %v6635
    %v8403 = vunpack.c.l.b16 %v6636
    %v8404 = vunpack.c.l.b16 %v6637
    %v8405 = vunpack.c.l.b16 %v6638
    %v8406 = vunpack.c.l.b16 %v6639
    %v8407 = vunpack.c.l.b16 %v6640
    %v8408 = vunpack.c.l.b16 %v6641
    %v8409 = vunpack.c.l.b16 %v6642
    %v8410 = vunpack.c.l.b16 %v6643
    %v8411 = vunpack.c.l.b16 %v6644
    %v8412 = vunpack.c.l.b16 %v6645
    %v8413 = vunpack.c.l.b16 %v6646
    %v8414 = vunpack.c.l.b16 %v6647
    %v8415 = vunpack.c.l.b16 %v6648
    %v8416 = vunpack.c.l.b16 %v6649
    %v8417 = vunpack.c.l.b16 %v6650
    %v8418 = vunpack.c.l.b16 %v6651
    %v8419 = vunpack.c.l.b16 %v6652
    %v8420 = vunpack.c.l.b16 %v6653
    %v8421 = vunpack.c.l.b16 %v6654
    %v8422 = vunpack.c.l.b16 %v6655
    %v8423 = vunpack.c.l.b16 %v6656
    %v8424 = vunpack.c.l.b16 %v6657
    %v8425 = vunpack.c.l.b16 %v6658
    %v8426 = vunpack.c.l.b16 %v6659
    %v8427 = vunpack.c.l.b16 %v6660
    %v8428 = vunpack.c.l.b16 %v6661
    %v8429 = vunpack.c.l.b16 %v6662
    %v8430 = vunpack.c.l.b16 %v6663
    %v8431 = vunpack.c.l.b16 %v6664
    %v8432 = vunpack.c.l.b16 %v6665
    %v8433 = vunpack.c.l.b16 %v6666
    %v8434 = vunpack.c.l.b16 %v6667
    %v8435 = vunpack.c.l.b16 %v6668
    %v8436 = vunpack.c.l.b16 %v6669
    %v8437 = vunpack.c.l.b16 %v6670
    %v8438 = vunpack.c.l.b16 %v6671
    %v8439 = vunpack.c.l.b16 %v6672
    %v8440 = vunpack.c.l.b16 %v6673
    %v8441 = vunpack.c.l.b16 %v6674
    %v8442 = vunpack.c.l.b16 %v6675
    %v8443 = vunpack.c.l.b16 %v6676
    %v8444 = vunpack.c.l.b16 %v6677
    %v8445 = vunpack.c.l.b16 %v6678
    %v8446 = vunpack.c.l.b16 %v6679
    %v8447 = vunpack.c.l.b16 %v6680
    %v8448 = vunpack.c.l.b16 %v6681
    %v8449 = vunpack.c.l.b16 %v6682
    %v8450 = vunpack.c.l.b16 %v6683
    %v8451 = vunpack.c.l.b16 %v6684
    %v8452 = vunpack.c.l.b16 %v6685
    %v8453 = vunpack.c.l.b16 %v6686
    %v8454 = vunpack.c.l.b16 %v6687
    %v8455 = vunpack.c.l.b16 %v6688
    %v8456 = vunpack.c.l.b16 %v6689
    %v8457 = vunpack.c.l.b16 %v6690
    %v8458 = vunpack.c.l.b16 %v6691
    %v8459 = vunpack.c.l.b16 %v6692
    %v8460 = vunpack.c.l.b16 %v6693
    %v8461 = vunpack.c.l.b16 %v6694
    %v8462 = vunpack.c.l.b16 %v6695
    %v8463 = vunpack.c.l.b16 %v6696
    %v8464 = vunpack.c.l.b16 %v6697
    %v8465 = vunpack.c.l.b16 %v6698
    %v8466 = vunpack.c.l.b16 %v6699
    %v8467 = vunpack.c.l.b16 %v6700
    %v8468 = vunpack.c.l.b16 %v6701
    %v8469 = vunpack.c.l.b16 %v6702
    %v8470 = vunpack.c.l.b16 %v6703
    %v8471 = vunpack.c.l.b16 %v6704
    %v8472 = vunpack.c.l.b16 %v6705
    %v8473 = vunpack.c.l.b16 %v6706
    %v8474 = vunpack.c.l.b16 %v6707
    %v8475 = vunpack.c.l.b16 %v6708
    %v8476 = vunpack.c.l.b16 %v6709
    %v8477 = vunpack.c.l.b16 %v6710
    %v8478 = vunpack.c.l.b16 %v6711
    %v8479 = vunpack.c.l.b16 %v6712
    %v8480 = vunpack.c.l.b16 %v6713
    %v8481 = vunpack.c.l.b16 %v6714
    %v8482 = vunpack.c.l.b16 %v6715
    %v8483 = vunpack.c.l.b16 %v6716
    %v8484 = vunpack.c.l.b16 %v6717
    %v8485 = vunpack.c.l.b16 %v6718
    %v8486 = vunpack.c.l.b16 %v6719
    %v8487 = vunpack.c.l.b16 %v6720
    %v8488 = vunpack.c.l.b16 %v6721
    %v8489 = vunpack.c.l.b16 %v6722
    %v8490 = vunpack.c.l.b16 %v6723
    %v8491 = vunpack.c.l.b16 %v6724
    %v8492 = vpack.c.b16 %v8349, %v8348
    %v8493 = vpack.c.b16 %v8351, %v8350
    %v8494 = vpack.c.b16 %v8353, %v8352
    %v8495 = vpack.c.b16 %v8355, %v8354
    %v8496 = vpack.c.b16 %v8357, %v8356
    %v8497 = vpack.c.b16 %v8359, %v8358
    %v8498 = vpack.c.b16 %v8361, %v8360
    %v8499 = vpack.c.b16 %v8363, %v8362
    %v8500 = vpack.c.b16 %v8365, %v8364
    %v8501 = vpack.c.b16 %v8367, %v8366
    %v8502 = vpack.c.b16 %v8369, %v8368
    %v8503 = vpack.c.b16 %v8371, %v8370
    %v8504 = vpack.c.b16 %v8373, %v8372
    %v8505 = vpack.c.b16 %v8375, %v8374
    %v8506 = vpack.c.b16 %v8377, %v8376
    %v8507 = vpack.c.b16 %v8379, %v8378
    %v8508 = vpack.c.b16 %v8381, %v8380
    %v8509 = vpack.c.b16 %v8383, %v8382
    %v8510 = vpack.c.b16 %v8385, %v8384
    %v8511 = vpack.c.b16 %v8387, %v8386
    %v8512 = vpack.c.b16 %v8389, %v8388
    %v8513 = vpack.c.b16 %v8391, %v8390
    %v8514 = vpack.c.b16 %v8393, %v8392
    %v8515 = vpack.c.b16 %v8395, %v8394
    %v8516 = vpack.c.b16 %v8397, %v8396
    %v8517 = vpack.c.b16 %v8399, %v8398
    %v8518 = vpack.c.b16 %v8401, %v8400
    %v8519 = vpack.c.b16 %v8403, %v8402
    %v8520 = vpack.c.b16 %v8405, %v8404
    %v8521 = vpack.c.b16 %v8407, %v8406
    %v8522 = vpack.c.b16 %v8409, %v8408
    %v8523 = vpack.c.b16 %v8411, %v8410
    %v8524 = vpack.c.b16 %v8413, %v8412
    %v8525 = vpack.c.b16 %v8415, %v8414
    %v8526 = vpack.c.b16 %v8417, %v8416
    %v8527 = vpack.c.b16 %v8419, %v8418
    %v8528 = vpack.c.b16 %v8421, %v8420
    %v8529 = vpack.c.b16 %v8423, %v8422
    %v8530 = vpack.c.b16 %v8425, %v8424
    %v8531 = vpack.c.b16 %v8427, %v8426
    %v8532 = vpack.c.b16 %v8429, %v8428
    %v8533 = vpack.c.b16 %v8431, %v8430
    %v8534 = vpack.c.b16 %v8433, %v8432
    %v8535 = vpack.c.b16 %v8435, %v8434
    %v8536 = vpack.c.b16 %v8437, %v8436
    %v8537 = vpack.c.b16 %v8439, %v8438
    %v8538 = vpack.c.b16 %v8441, %v8440
    %v8539 = vpack.c.b16 %v8443, %v8442
    %v8540 = vpack.c.b16 %v8445, %v8444
    %v8541 = vpack.c.b16 %v8447, %v8446
    %v8542 = vpack.c.b16 %v8449, %v8448
    %v8543 = vpack.c.b16 %v8451, %v8450
    %v8544 = vpack.c.b16 %v8453, %v8452
    %v8545 = vpack.c.b16 %v8455, %v8454
    %v8546 = vpack.c.b16 %v8457, %v8456
    %v8547 = vpack.c.b16 %v8459, %v8458
    %v8548 = vpack.c.b16 %v8461, %v8460
    %v8549 = vpack.c.b16 %v8463, %v8462
    %v8550 = vpack.c.b16 %v8465, %v8464
    %v8551 = vpack.c.b16 %v8467, %v8466
    %v8552 = vpack.c.b16 %v8469, %v8468
    %v8553 = vpack.c.b16 %v8471, %v8470
    %v8554 = vpack.c.b16 %v8473, %v8472
    %v8555 = vpack.c.b16 %v8475, %v8474
    %v8556 = vpack.c.b16 %v8477, %v8476
    %v8557 = vpack.c.b16 %v8479, %v8478
    %v8558 = vpack.c.b16 %v8481, %v8480
    %v8559 = vpack.c.b16 %v8483, %v8482
    %v8560 = vpack.c.b16 %v8485, %v8484
    %v8561 = vpack.c.b16 %v8487, %v8486
    %v8562 = vpack.c.b16 %v8489, %v8488
    %v8563 = vpack.c.b16 %v8491, %v8490
    %8636 = vmatprep.subr.bf16.mxu0 0
    %8637 = vmatpush1.bf16.msra.mxu0 %v8499
    %8638 = vmatprep.subr.bf16.mxu0 0
    %8639 = vmatpush1.bf16.msra.mxu0 %v8498
    %8640 = vmatprep.subr.bf16.mxu0 0
    %8641 = vmatpush1.bf16.msra.mxu0 %v8497
    %8642 = vmatprep.subr.bf16.mxu0 0
    %8643 = vmatpush1.bf16.msra.mxu0 %v8496
    %8644 = vmatprep.subr.bf16.mxu0 0
    %8645 = vmatpush1.bf16.msra.mxu0 %v8495
    %8646 = vmatprep.subr.bf16.mxu0 0
    %8647 = vmatpush1.bf16.msra.mxu0 %v8494
    %8648 = vmatprep.subr.bf16.mxu0 0
    %8649 = vmatpush1.bf16.msra.mxu0 %v8493
    %8650 = vmatprep.subr.bf16.mxu0 0
    %8651 = vmatpush1.bf16.msra.mxu0 %v8492
    %8652 = vmatprep.subr.bf16.mxu0 0
    %8653 = vmatpush2.bf16.msra.mxu0 %v8507
    %8654 = vmatprep.subr.bf16.mxu0 0
    %8655 = vmatpush2.bf16.msra.mxu0 %v8506
    %8656 = vmatprep.subr.bf16.mxu0 0
    %8657 = vmatpush2.bf16.msra.mxu0 %v8505
    %8658 = vmatprep.subr.bf16.mxu0 0
    %8659 = vmatpush2.bf16.msra.mxu0 %v8504
    %8660 = vmatprep.subr.bf16.mxu0 0
    %8661 = vmatpush2.bf16.msra.mxu0 %v8503
    %8662 = vmatprep.subr.bf16.mxu0 0
    %8663 = vmatpush2.bf16.msra.mxu0 %v8502
    %8664 = vmatprep.subr.bf16.mxu0 0
    %8665 = vmatpush2.bf16.msra.mxu0 %v8501
    %8666 = vmatprep.subr.bf16.mxu0 0
    %8667 = vmatpush2.bf16.msra.mxu0 %v8500
    %8668 = vmatprep.mubr.bf16.mxu0 %v7629
    %8669 = vmatmul.mubr.bf16.gmra.mxu0 %v7628
    %v8670 = vpop.f32.mrf.mxu0
    %v8671 = vadd.f32 %v6730, %v8670
    %v8672 = vpop.f32.mrf.mxu0
    %v8673 = vpop.f32.mrf.mxu0
    %v8674 = vadd.f32 %v6730, %v8673
    %v8675 = vpop.f32.mrf.mxu0
    %8676 = vmatprep.mubr.bf16.mxu0 %v7638
    %8677 = vmatmul.mubr.bf16.gmra.mxu0 %v7637
    %v8678 = vpop.f32.mrf.mxu0
    %v8679 = vadd.f32 %v6730, %v8678
    %v8680 = vpop.f32.mrf.mxu0
    %v8681 = vpop.f32.mrf.mxu0
    %v8682 = vadd.f32 %v6730, %v8681
    %v8683 = vpop.f32.mrf.mxu0
    %8684 = vmatprep.mubr.bf16.mxu0 %v7647
    %8685 = vmatmul.mubr.bf16.gmra.mxu0 %v7646
    %v8686 = vpop.f32.mrf.mxu0
    %v8687 = vadd.f32 %v6730, %v8686
    %v8688 = vpop.f32.mrf.mxu0
    %v8689 = vpop.f32.mrf.mxu0
    %v8690 = vadd.f32 %v6730, %v8689
    %v8691 = vpop.f32.mrf.mxu0
    %8692 = vmatprep.mubr.bf16.mxu0 %v7656
    %8693 = vmatmul.mubr.bf16.gmra.mxu0 %v7655
    %v8694 = vpop.f32.mrf.mxu0
    %v8695 = vadd.f32 %v6730, %v8694
    %v8696 = vpop.f32.mrf.mxu0
    %v8697 = vpop.f32.mrf.mxu0
    %v8698 = vadd.f32 %v6730, %v8697
    %v8699 = vpop.f32.mrf.mxu0
    %8700 = vmatprep.mubr.bf16.mxu0 %v7665
    %8701 = vmatmul.mubr.bf16.gmra.mxu0 %v7664
    %v8702 = vpop.f32.mrf.mxu0
    %v8703 = vadd.f32 %v6730, %v8702
    %v8704 = vpop.f32.mrf.mxu0
    %v8705 = vpop.f32.mrf.mxu0
    %v8706 = vadd.f32 %v6730, %v8705
    %v8707 = vpop.f32.mrf.mxu0
    %8708 = vmatprep.mubr.bf16.mxu0 %v7674
    %8709 = vmatmul.mubr.bf16.gmra.mxu0 %v7673
    %v8710 = vpop.f32.mrf.mxu0
    %v8711 = vadd.f32 %v6730, %v8710
    %v8712 = vpop.f32.mrf.mxu0
    %v8713 = vpop.f32.mrf.mxu0
    %v8714 = vadd.f32 %v6730, %v8713
    %v8715 = vpop.f32.mrf.mxu0
    %8716 = vmatprep.mubr.bf16.mxu0 %v7683
    %8717 = vmatmul.mubr.bf16.gmra.mxu0 %v7682
    %v8718 = vpop.f32.mrf.mxu0
    %v8719 = vadd.f32 %v6730, %v8718
    %v8720 = vpop.f32.mrf.mxu0
    %v8721 = vpop.f32.mrf.mxu0
    %v8722 = vadd.f32 %v6730, %v8721
    %v8723 = vpop.f32.mrf.mxu0
    %8724 = vmatprep.mubr.bf16.mxu0 %v7692
    %8725 = vmatmul.mubr.bf16.gmra.mxu0 %v7691
    %v8726 = vpop.f32.mrf.mxu0
    %v8727 = vadd.f32 %v6730, %v8726
    %v8728 = vpop.f32.mrf.mxu0
    %v8729 = vpop.f32.mrf.mxu0
    %v8730 = vadd.f32 %v6730, %v8729
    %v8731 = vpop.f32.mrf.mxu0
    %8732 = vmatprep.mubr.bf16.mxu0 %v7701
    %8733 = vmatmul.mubr.bf16.gmra.mxu0 %v7700
    %v8734 = vpop.f32.mrf.mxu0
    %v8735 = vadd.f32 %v6730, %v8734
    %v8736 = vpop.f32.mrf.mxu0
    %v8737 = vpop.f32.mrf.mxu0
    %v8738 = vadd.f32 %v6730, %v8737
    %v8739 = vpop.f32.mrf.mxu0
    %8740 = vmatprep.mubr.bf16.mxu0 %v7710
    %8741 = vmatmul.mubr.bf16.gmra.mxu0 %v7709
    %v8742 = vpop.f32.mrf.mxu0
    %v8743 = vadd.f32 %v6730, %v8742
    %v8744 = vpop.f32.mrf.mxu0
    %v8745 = vpop.f32.mrf.mxu0
    %v8746 = vadd.f32 %v6730, %v8745
    %v8747 = vpop.f32.mrf.mxu0
    %8748 = vmatprep.mubr.bf16.mxu0 %v7719
    %8749 = vmatmul.mubr.bf16.gmra.mxu0 %v7718
    %v8750 = vpop.f32.mrf.mxu0
    %v8751 = vadd.f32 %v6730, %v8750
    %v8752 = vpop.f32.mrf.mxu0
    %v8753 = vpop.f32.mrf.mxu0
    %v8754 = vadd.f32 %v6730, %v8753
    %v8755 = vpop.f32.mrf.mxu0
    %8756 = vmatprep.mubr.bf16.mxu0 %v7728
    %8757 = vmatmul.mubr.bf16.gmra.mxu0 %v7727
    %v8758 = vpop.f32.mrf.mxu0
    %v8759 = vadd.f32 %v6730, %v8758
    %v8760 = vpop.f32.mrf.mxu0
    %v8761 = vpop.f32.mrf.mxu0
    %v8762 = vadd.f32 %v6730, %v8761
    %v8763 = vpop.f32.mrf.mxu0
    %8764 = vmatprep.mubr.bf16.mxu0 %v7737
    %8765 = vmatmul.mubr.bf16.gmra.mxu0 %v7736
    %v8766 = vpop.f32.mrf.mxu0
    %v8767 = vadd.f32 %v6730, %v8766
    %v8768 = vpop.f32.mrf.mxu0
    %v8769 = vpop.f32.mrf.mxu0
    %v8770 = vadd.f32 %v6730, %v8769
    %v8771 = vpop.f32.mrf.mxu0
    %8772 = vmatprep.mubr.bf16.mxu0 %v7746
    %8773 = vmatmul.mubr.bf16.gmra.mxu0 %v7745
    %v8774 = vpop.f32.mrf.mxu0
    %v8775 = vadd.f32 %v6730, %v8774
    %v8776 = vpop.f32.mrf.mxu0
    %v8777 = vpop.f32.mrf.mxu0
    %v8778 = vadd.f32 %v6730, %v8777
    %v8779 = vpop.f32.mrf.mxu0
    %8780 = vmatprep.mubr.bf16.mxu0 %v7755
    %8781 = vmatmul.mubr.bf16.gmra.mxu0 %v7754
    %v8782 = vpop.f32.mrf.mxu0
    %v8783 = vadd.f32 %v6730, %v8782
    %v8784 = vpop.f32.mrf.mxu0
    %v8785 = vpop.f32.mrf.mxu0
    %v8786 = vadd.f32 %v6730, %v8785
    %v8787 = vpop.f32.mrf.mxu0
    %8788 = vmatprep.mubr.bf16.mxu0 %v7764
    %8789 = vmatmul.mubr.bf16.gmra.mxu0 %v7763
    %v8790 = vpop.f32.mrf.mxu0
    %v8791 = vadd.f32 %v6730, %v8790
    %v8792 = vpop.f32.mrf.mxu0
    %v8793 = vpop.f32.mrf.mxu0
    %v8794 = vadd.f32 %v6730, %v8793
    %v8795 = vpop.f32.mrf.mxu0
    %8796 = vmatprep.mubr.bf16.mxu0 %v7773
    %8797 = vmatmul.mubr.bf16.gmra.mxu0 %v7772
    %v8798 = vpop.f32.mrf.mxu0
    %v8799 = vadd.f32 %v6730, %v8798
    %v8800 = vpop.f32.mrf.mxu0
    %v8801 = vpop.f32.mrf.mxu0
    %v8802 = vadd.f32 %v6730, %v8801
    %v8803 = vpop.f32.mrf.mxu0
    %8804 = vmatprep.mubr.bf16.mxu0 %v7782
    %8805 = vmatmul.mubr.bf16.gmra.mxu0 %v7781
    %v8806 = vpop.f32.mrf.mxu0
    %v8807 = vadd.f32 %v6730, %v8806
    %v8808 = vpop.f32.mrf.mxu0
    %v8809 = vpop.f32.mrf.mxu0
    %v8810 = vadd.f32 %v6730, %v8809
    %v8811 = vpop.f32.mrf.mxu0
    %8812 = vmatprep.mubr.bf16.mxu0 %v7791
    %8813 = vmatmul.mubr.bf16.gmra.mxu0 %v7790
    %v8814 = vpop.f32.mrf.mxu0
    %v8815 = vadd.f32 %v6730, %v8814
    %v8816 = vpop.f32.mrf.mxu0
    %v8817 = vpop.f32.mrf.mxu0
    %v8818 = vadd.f32 %v6730, %v8817
    %v8819 = vpop.f32.mrf.mxu0
    %8820 = vmatprep.mubr.bf16.mxu0 %v7800
    %8821 = vmatmul.mubr.bf16.gmra.mxu0 %v7799
    %v8822 = vpop.f32.mrf.mxu0
    %v8823 = vadd.f32 %v6730, %v8822
    %v8824 = vpop.f32.mrf.mxu0
    %v8825 = vpop.f32.mrf.mxu0
    %v8826 = vadd.f32 %v6730, %v8825
    %v8827 = vpop.f32.mrf.mxu0
    %8828 = vmatprep.mubr.bf16.mxu0 %v7809
    %8829 = vmatmul.mubr.bf16.gmra.mxu0 %v7808
    %v8830 = vpop.f32.mrf.mxu0
    %v8831 = vadd.f32 %v6730, %v8830
    %v8832 = vpop.f32.mrf.mxu0
    %v8833 = vpop.f32.mrf.mxu0
    %v8834 = vadd.f32 %v6730, %v8833
    %v8835 = vpop.f32.mrf.mxu0
    %8836 = vmatprep.mubr.bf16.mxu0 %v7818
    %8837 = vmatmul.mubr.bf16.gmra.mxu0 %v7817
    %v8838 = vpop.f32.mrf.mxu0
    %v8839 = vadd.f32 %v6730, %v8838
    %v8840 = vpop.f32.mrf.mxu0
    %v8841 = vpop.f32.mrf.mxu0
    %v8842 = vadd.f32 %v6730, %v8841
    %v8843 = vpop.f32.mrf.mxu0
    %8844 = vmatprep.mubr.bf16.mxu0 %v7827
    %8845 = vmatmul.mubr.bf16.gmra.mxu0 %v7826
    %v8846 = vpop.f32.mrf.mxu0
    %v8847 = vadd.f32 %v6730, %v8846
    %v8848 = vpop.f32.mrf.mxu0
    %v8849 = vpop.f32.mrf.mxu0
    %v8850 = vadd.f32 %v6730, %v8849
    %v8851 = vpop.f32.mrf.mxu0
    %8852 = vmatprep.mubr.bf16.mxu0 %v7836
    %8853 = vmatmul.mubr.bf16.gmra.mxu0 %v7835
    %v8854 = vpop.f32.mrf.mxu0
    %v8855 = vadd.f32 %v6730, %v8854
    %v8856 = vpop.f32.mrf.mxu0
    %v8857 = vpop.f32.mrf.mxu0
    %v8858 = vadd.f32 %v6730, %v8857
    %v8859 = vpop.f32.mrf.mxu0
    %8860 = vmatprep.mubr.bf16.mxu0 %v7845
    %8861 = vmatmul.mubr.bf16.gmra.mxu0 %v7844
    %v8862 = vpop.f32.mrf.mxu0
    %v8863 = vadd.f32 %v6730, %v8862
    %v8864 = vpop.f32.mrf.mxu0
    %v8865 = vpop.f32.mrf.mxu0
    %v8866 = vadd.f32 %v6730, %v8865
    %v8867 = vpop.f32.mrf.mxu0
    %8868 = vmatprep.mubr.bf16.mxu0 %v7854
    %8869 = vmatmul.mubr.bf16.gmra.mxu0 %v7853
    %v8870 = vpop.f32.mrf.mxu0
    %v8871 = vadd.f32 %v6730, %v8870
    %v8872 = vpop.f32.mrf.mxu0
    %v8873 = vpop.f32.mrf.mxu0
    %v8874 = vadd.f32 %v6730, %v8873
    %v8875 = vpop.f32.mrf.mxu0
    %8876 = vmatprep.mubr.bf16.mxu0 %v7863
    %8877 = vmatmul.mubr.bf16.gmra.mxu0 %v7862
    %v8878 = vpop.f32.mrf.mxu0
    %v8879 = vadd.f32 %v6730, %v8878
    %v8880 = vpop.f32.mrf.mxu0
    %v8881 = vpop.f32.mrf.mxu0
    %v8882 = vadd.f32 %v6730, %v8881
    %v8883 = vpop.f32.mrf.mxu0
    %8884 = vmatprep.mubr.bf16.mxu0 %v7872
    %8885 = vmatmul.mubr.bf16.gmra.mxu0 %v7871
    %v8886 = vpop.f32.mrf.mxu0
    %v8887 = vadd.f32 %v6730, %v8886
    %v8888 = vpop.f32.mrf.mxu0
    %v8889 = vpop.f32.mrf.mxu0
    %v8890 = vadd.f32 %v6730, %v8889
    %v8891 = vpop.f32.mrf.mxu0
    %8892 = vmatprep.mubr.bf16.mxu0 %v7881
    %8893 = vmatmul.mubr.bf16.gmra.mxu0 %v7880
    %v8894 = vpop.f32.mrf.mxu0
    %v8895 = vadd.f32 %v6730, %v8894
    %v8896 = vpop.f32.mrf.mxu0
    %v8897 = vpop.f32.mrf.mxu0
    %v8898 = vadd.f32 %v6730, %v8897
    %v8899 = vpop.f32.mrf.mxu0
    %8900 = vmatprep.mubr.bf16.mxu0 %v7890
    %8901 = vmatmul.mubr.bf16.gmra.mxu0 %v7889
    %v8902 = vpop.f32.mrf.mxu0
    %v8903 = vadd.f32 %v6730, %v8902
    %v8904 = vpop.f32.mrf.mxu0
    %v8905 = vpop.f32.mrf.mxu0
    %v8906 = vadd.f32 %v6730, %v8905
    %v8907 = vpop.f32.mrf.mxu0
    %8908 = vmatprep.mubr.bf16.mxu0 %v7899
    %8909 = vmatmul.mubr.bf16.gmra.mxu0 %v7898
    %v8910 = vpop.f32.mrf.mxu0
    %v8911 = vadd.f32 %v6730, %v8910
    %v8912 = vpop.f32.mrf.mxu0
    %v8913 = vpop.f32.mrf.mxu0
    %v8914 = vadd.f32 %v6730, %v8913
    %v8915 = vpop.f32.mrf.mxu0
    %8916 = vmatprep.mubr.bf16.mxu0 %v7908
    %8917 = vmatmul.mubr.bf16.gmra.mxu0 %v7907
    %v8918 = vpop.f32.mrf.mxu0
    %v8919 = vadd.f32 %v6730, %v8918
    %v8920 = vpop.f32.mrf.mxu0
    %v8921 = vpop.f32.mrf.mxu0
    %v8922 = vadd.f32 %v6730, %v8921
    %v8923 = vpop.f32.mrf.mxu0
    %8924 = vdwg.mxu0
    %8925 = vmatprep.subr.bf16.mxu0 0
    %8926 = vmatpush1.bf16.msra.mxu0 %v8515
    %8927 = vmatprep.subr.bf16.mxu0 0
    %8928 = vmatpush1.bf16.msra.mxu0 %v8514
    %8929 = vmatprep.subr.bf16.mxu0 0
    %8930 = vmatpush1.bf16.msra.mxu0 %v8513
    %8931 = vmatprep.subr.bf16.mxu0 0
    %8932 = vmatpush1.bf16.msra.mxu0 %v8512
    %8933 = vmatprep.subr.bf16.mxu0 0
    %8934 = vmatpush1.bf16.msra.mxu0 %v8511
    %8935 = vmatprep.subr.bf16.mxu0 0
    %8936 = vmatpush1.bf16.msra.mxu0 %v8510
    %8937 = vmatprep.subr.bf16.mxu0 0
    %8938 = vmatpush1.bf16.msra.mxu0 %v8509
    %8939 = vmatprep.subr.bf16.mxu0 0
    %8940 = vmatpush1.bf16.msra.mxu0 %v8508
    %8941 = vmatprep.subr.bf16.mxu0 0
    %8942 = vmatpush2.bf16.msra.mxu0 %v8523
    %8943 = vmatprep.subr.bf16.mxu0 0
    %8944 = vmatpush2.bf16.msra.mxu0 %v8522
    %8945 = vmatprep.subr.bf16.mxu0 0
    %8946 = vmatpush2.bf16.msra.mxu0 %v8521
    %8947 = vmatprep.subr.bf16.mxu0 0
    %8948 = vmatpush2.bf16.msra.mxu0 %v8520
    %8949 = vmatprep.subr.bf16.mxu0 0
    %8950 = vmatpush2.bf16.msra.mxu0 %v8519
    %8951 = vmatprep.subr.bf16.mxu0 0
    %8952 = vmatpush2.bf16.msra.mxu0 %v8518
    %8953 = vmatprep.subr.bf16.mxu0 0
    %8954 = vmatpush2.bf16.msra.mxu0 %v8517
    %8955 = vmatprep.subr.bf16.mxu0 0
    %8956 = vmatpush2.bf16.msra.mxu0 %v8516
    %8957 = vmatprep.mubr.bf16.mxu0 %v7631
    %8958 = vmatmul.mubr.bf16.gmra.mxu0 %v7630
    %v8959 = vpop.f32.mrf.mxu0
    %v8960 = vadd.f32 %v8671, %v8959
    %v8961 = vpop.f32.mrf.mxu0
    %v8962 = vpop.f32.mrf.mxu0
    %v8963 = vadd.f32 %v8674, %v8962
    %v8964 = vpop.f32.mrf.mxu0
    %8965 = vmatprep.mubr.bf16.mxu0 %v7640
    %8966 = vmatmul.mubr.bf16.gmra.mxu0 %v7639
    %v8967 = vpop.f32.mrf.mxu0
    %v8968 = vadd.f32 %v8679, %v8967
    %v8969 = vpop.f32.mrf.mxu0
    %v8970 = vpop.f32.mrf.mxu0
    %v8971 = vadd.f32 %v8682, %v8970
    %v8972 = vpop.f32.mrf.mxu0
    %8973 = vmatprep.mubr.bf16.mxu0 %v7649
    %8974 = vmatmul.mubr.bf16.gmra.mxu0 %v7648
    %v8975 = vpop.f32.mrf.mxu0
    %v8976 = vadd.f32 %v8687, %v8975
    %v8977 = vpop.f32.mrf.mxu0
    %v8978 = vpop.f32.mrf.mxu0
    %v8979 = vadd.f32 %v8690, %v8978
    %v8980 = vpop.f32.mrf.mxu0
    %8981 = vmatprep.mubr.bf16.mxu0 %v7658
    %8982 = vmatmul.mubr.bf16.gmra.mxu0 %v7657
    %v8983 = vpop.f32.mrf.mxu0
    %v8984 = vadd.f32 %v8695, %v8983
    %v8985 = vpop.f32.mrf.mxu0
    %v8986 = vpop.f32.mrf.mxu0
    %v8987 = vadd.f32 %v8698, %v8986
    %v8988 = vpop.f32.mrf.mxu0
    %8989 = vmatprep.mubr.bf16.mxu0 %v7667
    %8990 = vmatmul.mubr.bf16.gmra.mxu0 %v7666
    %v8991 = vpop.f32.mrf.mxu0
    %v8992 = vadd.f32 %v8703, %v8991
    %v8993 = vpop.f32.mrf.mxu0
    %v8994 = vpop.f32.mrf.mxu0
    %v8995 = vadd.f32 %v8706, %v8994
    %v8996 = vpop.f32.mrf.mxu0
    %8997 = vmatprep.mubr.bf16.mxu0 %v7676
    %8998 = vmatmul.mubr.bf16.gmra.mxu0 %v7675
    %v8999 = vpop.f32.mrf.mxu0
    %v9000 = vadd.f32 %v8711, %v8999
    %v9001 = vpop.f32.mrf.mxu0
    %v9002 = vpop.f32.mrf.mxu0
    %v9003 = vadd.f32 %v8714, %v9002
    %v9004 = vpop.f32.mrf.mxu0
    %9005 = vmatprep.mubr.bf16.mxu0 %v7685
    %9006 = vmatmul.mubr.bf16.gmra.mxu0 %v7684
    %v9007 = vpop.f32.mrf.mxu0
    %v9008 = vadd.f32 %v8719, %v9007
    %v9009 = vpop.f32.mrf.mxu0
    %v9010 = vpop.f32.mrf.mxu0
    %v9011 = vadd.f32 %v8722, %v9010
    %v9012 = vpop.f32.mrf.mxu0
    %9013 = vmatprep.mubr.bf16.mxu0 %v7694
    %9014 = vmatmul.mubr.bf16.gmra.mxu0 %v7693
    %v9015 = vpop.f32.mrf.mxu0
    %v9016 = vadd.f32 %v8727, %v9015
    %v9017 = vpop.f32.mrf.mxu0
    %v9018 = vpop.f32.mrf.mxu0
    %v9019 = vadd.f32 %v8730, %v9018
    %v9020 = vpop.f32.mrf.mxu0
    %9021 = vmatprep.mubr.bf16.mxu0 %v7703
    %9022 = vmatmul.mubr.bf16.gmra.mxu0 %v7702
    %v9023 = vpop.f32.mrf.mxu0
    %v9024 = vadd.f32 %v8735, %v9023
    %v9025 = vpop.f32.mrf.mxu0
    %v9026 = vpop.f32.mrf.mxu0
    %v9027 = vadd.f32 %v8738, %v9026
    %v9028 = vpop.f32.mrf.mxu0
    %9029 = vmatprep.mubr.bf16.mxu0 %v7712
    %9030 = vmatmul.mubr.bf16.gmra.mxu0 %v7711
    %v9031 = vpop.f32.mrf.mxu0
    %v9032 = vadd.f32 %v8743, %v9031
    %v9033 = vpop.f32.mrf.mxu0
    %v9034 = vpop.f32.mrf.mxu0
    %v9035 = vadd.f32 %v8746, %v9034
    %v9036 = vpop.f32.mrf.mxu0
    %9037 = vmatprep.mubr.bf16.mxu0 %v7721
    %9038 = vmatmul.mubr.bf16.gmra.mxu0 %v7720
    %v9039 = vpop.f32.mrf.mxu0
    %v9040 = vadd.f32 %v8751, %v9039
    %v9041 = vpop.f32.mrf.mxu0
    %v9042 = vpop.f32.mrf.mxu0
    %v9043 = vadd.f32 %v8754, %v9042
    %v9044 = vpop.f32.mrf.mxu0
    %9045 = vmatprep.mubr.bf16.mxu0 %v7730
    %9046 = vmatmul.mubr.bf16.gmra.mxu0 %v7729
    %v9047 = vpop.f32.mrf.mxu0
    %v9048 = vadd.f32 %v8759, %v9047
    %v9049 = vpop.f32.mrf.mxu0
    %v9050 = vpop.f32.mrf.mxu0
    %v9051 = vadd.f32 %v8762, %v9050
    %v9052 = vpop.f32.mrf.mxu0
    %9053 = vmatprep.mubr.bf16.mxu0 %v7739
    %9054 = vmatmul.mubr.bf16.gmra.mxu0 %v7738
    %v9055 = vpop.f32.mrf.mxu0
    %v9056 = vadd.f32 %v8767, %v9055
    %v9057 = vpop.f32.mrf.mxu0
    %v9058 = vpop.f32.mrf.mxu0
    %v9059 = vadd.f32 %v8770, %v9058
    %v9060 = vpop.f32.mrf.mxu0
    %9061 = vmatprep.mubr.bf16.mxu0 %v7748
    %9062 = vmatmul.mubr.bf16.gmra.mxu0 %v7747
    %v9063 = vpop.f32.mrf.mxu0
    %v9064 = vadd.f32 %v8775, %v9063
    %v9065 = vpop.f32.mrf.mxu0
    %v9066 = vpop.f32.mrf.mxu0
    %v9067 = vadd.f32 %v8778, %v9066
    %v9068 = vpop.f32.mrf.mxu0
    %9069 = vmatprep.mubr.bf16.mxu0 %v7757
    %9070 = vmatmul.mubr.bf16.gmra.mxu0 %v7756
    %v9071 = vpop.f32.mrf.mxu0
    %v9072 = vadd.f32 %v8783, %v9071
    %v9073 = vpop.f32.mrf.mxu0
    %v9074 = vpop.f32.mrf.mxu0
    %v9075 = vadd.f32 %v8786, %v9074
    %v9076 = vpop.f32.mrf.mxu0
    %9077 = vmatprep.mubr.bf16.mxu0 %v7766
    %9078 = vmatmul.mubr.bf16.gmra.mxu0 %v7765
    %v9079 = vpop.f32.mrf.mxu0
    %v9080 = vadd.f32 %v8791, %v9079
    %v9081 = vpop.f32.mrf.mxu0
    %v9082 = vpop.f32.mrf.mxu0
    %v9083 = vadd.f32 %v8794, %v9082
    %v9084 = vpop.f32.mrf.mxu0
    %9085 = vmatprep.mubr.bf16.mxu0 %v7775
    %9086 = vmatmul.mubr.bf16.gmra.mxu0 %v7774
    %v9087 = vpop.f32.mrf.mxu0
    %v9088 = vadd.f32 %v8799, %v9087
    %v9089 = vpop.f32.mrf.mxu0
    %v9090 = vpop.f32.mrf.mxu0
    %v9091 = vadd.f32 %v8802, %v9090
    %v9092 = vpop.f32.mrf.mxu0
    %9093 = vmatprep.mubr.bf16.mxu0 %v7784
    %9094 = vmatmul.mubr.bf16.gmra.mxu0 %v7783
    %v9095 = vpop.f32.mrf.mxu0
    %v9096 = vadd.f32 %v8807, %v9095
    %v9097 = vpop.f32.mrf.mxu0
    %v9098 = vpop.f32.mrf.mxu0
    %v9099 = vadd.f32 %v8810, %v9098
    %v9100 = vpop.f32.mrf.mxu0
    %9101 = vmatprep.mubr.bf16.mxu0 %v7793
    %9102 = vmatmul.mubr.bf16.gmra.mxu0 %v7792
    %v9103 = vpop.f32.mrf.mxu0
    %v9104 = vadd.f32 %v8815, %v9103
    %v9105 = vpop.f32.mrf.mxu0
    %v9106 = vpop.f32.mrf.mxu0
    %v9107 = vadd.f32 %v8818, %v9106
    %v9108 = vpop.f32.mrf.mxu0
    %9109 = vmatprep.mubr.bf16.mxu0 %v7802
    %9110 = vmatmul.mubr.bf16.gmra.mxu0 %v7801
    %v9111 = vpop.f32.mrf.mxu0
    %v9112 = vadd.f32 %v8823, %v9111
    %v9113 = vpop.f32.mrf.mxu0
    %v9114 = vpop.f32.mrf.mxu0
    %v9115 = vadd.f32 %v8826, %v9114
    %v9116 = vpop.f32.mrf.mxu0
    %9117 = vmatprep.mubr.bf16.mxu0 %v7811
    %9118 = vmatmul.mubr.bf16.gmra.mxu0 %v7810
    %v9119 = vpop.f32.mrf.mxu0
    %v9120 = vadd.f32 %v8831, %v9119
    %v9121 = vpop.f32.mrf.mxu0
    %v9122 = vpop.f32.mrf.mxu0
    %v9123 = vadd.f32 %v8834, %v9122
    %v9124 = vpop.f32.mrf.mxu0
    %9125 = vmatprep.mubr.bf16.mxu0 %v7820
    %9126 = vmatmul.mubr.bf16.gmra.mxu0 %v7819
    %v9127 = vpop.f32.mrf.mxu0
    %v9128 = vadd.f32 %v8839, %v9127
    %v9129 = vpop.f32.mrf.mxu0
    %v9130 = vpop.f32.mrf.mxu0
    %v9131 = vadd.f32 %v8842, %v9130
    %v9132 = vpop.f32.mrf.mxu0
    %9133 = vmatprep.mubr.bf16.mxu0 %v7829
    %9134 = vmatmul.mubr.bf16.gmra.mxu0 %v7828
    %v9135 = vpop.f32.mrf.mxu0
    %v9136 = vadd.f32 %v8847, %v9135
    %v9137 = vpop.f32.mrf.mxu0
    %v9138 = vpop.f32.mrf.mxu0
    %v9139 = vadd.f32 %v8850, %v9138
    %v9140 = vpop.f32.mrf.mxu0
    %9141 = vmatprep.mubr.bf16.mxu0 %v7838
    %9142 = vmatmul.mubr.bf16.gmra.mxu0 %v7837
    %v9143 = vpop.f32.mrf.mxu0
    %v9144 = vadd.f32 %v8855, %v9143
    %v9145 = vpop.f32.mrf.mxu0
    %v9146 = vpop.f32.mrf.mxu0
    %v9147 = vadd.f32 %v8858, %v9146
    %v9148 = vpop.f32.mrf.mxu0
    %9149 = vmatprep.mubr.bf16.mxu0 %v7847
    %9150 = vmatmul.mubr.bf16.gmra.mxu0 %v7846
    %v9151 = vpop.f32.mrf.mxu0
    %v9152 = vadd.f32 %v8863, %v9151
    %v9153 = vpop.f32.mrf.mxu0
    %v9154 = vpop.f32.mrf.mxu0
    %v9155 = vadd.f32 %v8866, %v9154
    %v9156 = vpop.f32.mrf.mxu0
    %9157 = vmatprep.mubr.bf16.mxu0 %v7856
    %9158 = vmatmul.mubr.bf16.gmra.mxu0 %v7855
    %v9159 = vpop.f32.mrf.mxu0
    %v9160 = vadd.f32 %v8871, %v9159
    %v9161 = vpop.f32.mrf.mxu0
    %v9162 = vpop.f32.mrf.mxu0
    %v9163 = vadd.f32 %v8874, %v9162
    %v9164 = vpop.f32.mrf.mxu0
    %9165 = vmatprep.mubr.bf16.mxu0 %v7865
    %9166 = vmatmul.mubr.bf16.gmra.mxu0 %v7864
    %v9167 = vpop.f32.mrf.mxu0
    %v9168 = vadd.f32 %v8879, %v9167
    %v9169 = vpop.f32.mrf.mxu0
    %v9170 = vpop.f32.mrf.mxu0
    %v9171 = vadd.f32 %v8882, %v9170
    %v9172 = vpop.f32.mrf.mxu0
    %9173 = vmatprep.mubr.bf16.mxu0 %v7874
    %9174 = vmatmul.mubr.bf16.gmra.mxu0 %v7873
    %v9175 = vpop.f32.mrf.mxu0
    %v9176 = vadd.f32 %v8887, %v9175
    %v9177 = vpop.f32.mrf.mxu0
    %v9178 = vpop.f32.mrf.mxu0
    %v9179 = vadd.f32 %v8890, %v9178
    %v9180 = vpop.f32.mrf.mxu0
    %9181 = vmatprep.mubr.bf16.mxu0 %v7883
    %9182 = vmatmul.mubr.bf16.gmra.mxu0 %v7882
    %v9183 = vpop.f32.mrf.mxu0
    %v9184 = vadd.f32 %v8895, %v9183
    %v9185 = vpop.f32.mrf.mxu0
    %v9186 = vpop.f32.mrf.mxu0
    %v9187 = vadd.f32 %v8898, %v9186
    %v9188 = vpop.f32.mrf.mxu0
    %9189 = vmatprep.mubr.bf16.mxu0 %v7892
    %9190 = vmatmul.mubr.bf16.gmra.mxu0 %v7891
    %v9191 = vpop.f32.mrf.mxu0
    %v9192 = vadd.f32 %v8903, %v9191
    %v9193 = vpop.f32.mrf.mxu0
    %v9194 = vpop.f32.mrf.mxu0
    %v9195 = vadd.f32 %v8906, %v9194
    %v9196 = vpop.f32.mrf.mxu0
    %9197 = vmatprep.mubr.bf16.mxu0 %v7901
    %9198 = vmatmul.mubr.bf16.gmra.mxu0 %v7900
    %v9199 = vpop.f32.mrf.mxu0
    %v9200 = vadd.f32 %v8911, %v9199
    %v9201 = vpop.f32.mrf.mxu0
    %v9202 = vpop.f32.mrf.mxu0
    %v9203 = vadd.f32 %v8914, %v9202
    %v9204 = vpop.f32.mrf.mxu0
    %9205 = vmatprep.mubr.bf16.mxu0 %v7910
    %9206 = vmatmul.mubr.bf16.gmra.mxu0 %v7909
    %v9207 = vpop.f32.mrf.mxu0
    %v9208 = vadd.f32 %v8919, %v9207
    %v9209 = vpop.f32.mrf.mxu0
    %v9210 = vpop.f32.mrf.mxu0
    %v9211 = vadd.f32 %v8922, %v9210
    %v9212 = vpop.f32.mrf.mxu0
    %9213 = vdwg.mxu0
    %9214 = vmatprep.subr.bf16.mxu0 0
    %9215 = vmatpush1.bf16.msra.mxu0 %v8531
    %9216 = vmatprep.subr.bf16.mxu0 0
    %9217 = vmatpush1.bf16.msra.mxu0 %v8530
    %9218 = vmatprep.subr.bf16.mxu0 0
    %9219 = vmatpush1.bf16.msra.mxu0 %v8529
    %9220 = vmatprep.subr.bf16.mxu0 0
    %9221 = vmatpush1.bf16.msra.mxu0 %v8528
    %9222 = vmatprep.subr.bf16.mxu0 0
    %9223 = vmatpush1.bf16.msra.mxu0 %v8527
    %9224 = vmatprep.subr.bf16.mxu0 0
    %9225 = vmatpush1.bf16.msra.mxu0 %v8526
    %9226 = vmatprep.subr.bf16.mxu0 0
    %9227 = vmatpush1.bf16.msra.mxu0 %v8525
    %9228 = vmatprep.subr.bf16.mxu0 0
    %9229 = vmatpush1.bf16.msra.mxu0 %v8524
    %9230 = vmatprep.subr.bf16.mxu0 0
    %9231 = vmatpush2.bf16.msra.mxu0 %v8539
    %9232 = vmatprep.subr.bf16.mxu0 0
    %9233 = vmatpush2.bf16.msra.mxu0 %v8538
    %9234 = vmatprep.subr.bf16.mxu0 0
    %9235 = vmatpush2.bf16.msra.mxu0 %v8537
    %9236 = vmatprep.subr.bf16.mxu0 0
    %9237 = vmatpush2.bf16.msra.mxu0 %v8536
    %9238 = vmatprep.subr.bf16.mxu0 0
    %9239 = vmatpush2.bf16.msra.mxu0 %v8535
    %9240 = vmatprep.subr.bf16.mxu0 0
    %9241 = vmatpush2.bf16.msra.mxu0 %v8534
    %9242 = vmatprep.subr.bf16.mxu0 0
    %9243 = vmatpush2.bf16.msra.mxu0 %v8533
    %9244 = vmatprep.subr.bf16.mxu0 0
    %9245 = vmatpush2.bf16.msra.mxu0 %v8532
    %9246 = vmatprep.mubr.bf16.mxu0 %v7633
    %9247 = vmatmul.mubr.bf16.gmra.mxu0 %v7632
    %v9248 = vpop.f32.mrf.mxu0
    %v9249 = vadd.f32 %v8960, %v9248
    %v9250 = vpop.f32.mrf.mxu0
    %v9251 = vpop.f32.mrf.mxu0
    %v9252 = vadd.f32 %v8963, %v9251
    %v9253 = vpop.f32.mrf.mxu0
    %9254 = vmatprep.mubr.bf16.mxu0 %v7642
    %9255 = vmatmul.mubr.bf16.gmra.mxu0 %v7641
    %v9256 = vpop.f32.mrf.mxu0
    %v9257 = vadd.f32 %v8968, %v9256
    %v9258 = vpop.f32.mrf.mxu0
    %v9259 = vpop.f32.mrf.mxu0
    %v9260 = vadd.f32 %v8971, %v9259
    %v9261 = vpop.f32.mrf.mxu0
    %9262 = vmatprep.mubr.bf16.mxu0 %v7651
    %9263 = vmatmul.mubr.bf16.gmra.mxu0 %v7650
    %v9264 = vpop.f32.mrf.mxu0
    %v9265 = vadd.f32 %v8976, %v9264
    %v9266 = vpop.f32.mrf.mxu0
    %v9267 = vpop.f32.mrf.mxu0
    %v9268 = vadd.f32 %v8979, %v9267
    %v9269 = vpop.f32.mrf.mxu0
    %9270 = vmatprep.mubr.bf16.mxu0 %v7660
    %9271 = vmatmul.mubr.bf16.gmra.mxu0 %v7659
    %v9272 = vpop.f32.mrf.mxu0
    %v9273 = vadd.f32 %v8984, %v9272
    %v9274 = vpop.f32.mrf.mxu0
    %v9275 = vpop.f32.mrf.mxu0
    %v9276 = vadd.f32 %v8987, %v9275
    %v9277 = vpop.f32.mrf.mxu0
    %9278 = vmatprep.mubr.bf16.mxu0 %v7669
    %9279 = vmatmul.mubr.bf16.gmra.mxu0 %v7668
    %v9280 = vpop.f32.mrf.mxu0
    %v9281 = vadd.f32 %v8992, %v9280
    %v9282 = vpop.f32.mrf.mxu0
    %v9283 = vpop.f32.mrf.mxu0
    %v9284 = vadd.f32 %v8995, %v9283
    %v9285 = vpop.f32.mrf.mxu0
    %9286 = vmatprep.mubr.bf16.mxu0 %v7678
    %9287 = vmatmul.mubr.bf16.gmra.mxu0 %v7677
    %v9288 = vpop.f32.mrf.mxu0
    %v9289 = vadd.f32 %v9000, %v9288
    %v9290 = vpop.f32.mrf.mxu0
    %v9291 = vpop.f32.mrf.mxu0
    %v9292 = vadd.f32 %v9003, %v9291
    %v9293 = vpop.f32.mrf.mxu0
    %9294 = vmatprep.mubr.bf16.mxu0 %v7687
    %9295 = vmatmul.mubr.bf16.gmra.mxu0 %v7686
    %v9296 = vpop.f32.mrf.mxu0
    %v9297 = vadd.f32 %v9008, %v9296
    %v9298 = vpop.f32.mrf.mxu0
    %v9299 = vpop.f32.mrf.mxu0
    %v9300 = vadd.f32 %v9011, %v9299
    %v9301 = vpop.f32.mrf.mxu0
    %9302 = vmatprep.mubr.bf16.mxu0 %v7696
    %9303 = vmatmul.mubr.bf16.gmra.mxu0 %v7695
    %v9304 = vpop.f32.mrf.mxu0
    %v9305 = vadd.f32 %v9016, %v9304
    %v9306 = vpop.f32.mrf.mxu0
    %v9307 = vpop.f32.mrf.mxu0
    %v9308 = vadd.f32 %v9019, %v9307
    %v9309 = vpop.f32.mrf.mxu0
    %9310 = vmatprep.mubr.bf16.mxu0 %v7705
    %9311 = vmatmul.mubr.bf16.gmra.mxu0 %v7704
    %v9312 = vpop.f32.mrf.mxu0
    %v9313 = vadd.f32 %v9024, %v9312
    %v9314 = vpop.f32.mrf.mxu0
    %v9315 = vpop.f32.mrf.mxu0
    %v9316 = vadd.f32 %v9027, %v9315
    %v9317 = vpop.f32.mrf.mxu0
    %9318 = vmatprep.mubr.bf16.mxu0 %v7714
    %9319 = vmatmul.mubr.bf16.gmra.mxu0 %v7713
    %v9320 = vpop.f32.mrf.mxu0
    %v9321 = vadd.f32 %v9032, %v9320
    %v9322 = vpop.f32.mrf.mxu0
    %v9323 = vpop.f32.mrf.mxu0
    %v9324 = vadd.f32 %v9035, %v9323
    %v9325 = vpop.f32.mrf.mxu0
    %9326 = vmatprep.mubr.bf16.mxu0 %v7723
    %9327 = vmatmul.mubr.bf16.gmra.mxu0 %v7722
    %v9328 = vpop.f32.mrf.mxu0
    %v9329 = vadd.f32 %v9040, %v9328
    %v9330 = vpop.f32.mrf.mxu0
    %v9331 = vpop.f32.mrf.mxu0
    %v9332 = vadd.f32 %v9043, %v9331
    %v9333 = vpop.f32.mrf.mxu0
    %9334 = vmatprep.mubr.bf16.mxu0 %v7732
    %9335 = vmatmul.mubr.bf16.gmra.mxu0 %v7731
    %v9336 = vpop.f32.mrf.mxu0
    %v9337 = vadd.f32 %v9048, %v9336
    %v9338 = vpop.f32.mrf.mxu0
    %v9339 = vpop.f32.mrf.mxu0
    %v9340 = vadd.f32 %v9051, %v9339
    %v9341 = vpop.f32.mrf.mxu0
    %9342 = vmatprep.mubr.bf16.mxu0 %v7741
    %9343 = vmatmul.mubr.bf16.gmra.mxu0 %v7740
    %v9344 = vpop.f32.mrf.mxu0
    %v9345 = vadd.f32 %v9056, %v9344
    %v9346 = vpop.f32.mrf.mxu0
    %v9347 = vpop.f32.mrf.mxu0
    %v9348 = vadd.f32 %v9059, %v9347
    %v9349 = vpop.f32.mrf.mxu0
    %9350 = vmatprep.mubr.bf16.mxu0 %v7750
    %9351 = vmatmul.mubr.bf16.gmra.mxu0 %v7749
    %v9352 = vpop.f32.mrf.mxu0
    %v9353 = vadd.f32 %v9064, %v9352
    %v9354 = vpop.f32.mrf.mxu0
    %v9355 = vpop.f32.mrf.mxu0
    %v9356 = vadd.f32 %v9067, %v9355
    %v9357 = vpop.f32.mrf.mxu0
    %9358 = vmatprep.mubr.bf16.mxu0 %v7759
    %9359 = vmatmul.mubr.bf16.gmra.mxu0 %v7758
    %v9360 = vpop.f32.mrf.mxu0
    %v9361 = vadd.f32 %v9072, %v9360
    %v9362 = vpop.f32.mrf.mxu0
    %v9363 = vpop.f32.mrf.mxu0
    %v9364 = vadd.f32 %v9075, %v9363
    %v9365 = vpop.f32.mrf.mxu0
    %9366 = vmatprep.mubr.bf16.mxu0 %v7768
    %9367 = vmatmul.mubr.bf16.gmra.mxu0 %v7767
    %v9368 = vpop.f32.mrf.mxu0
    %v9369 = vadd.f32 %v9080, %v9368
    %v9370 = vpop.f32.mrf.mxu0
    %v9371 = vpop.f32.mrf.mxu0
    %v9372 = vadd.f32 %v9083, %v9371
    %v9373 = vpop.f32.mrf.mxu0
    %9374 = vmatprep.mubr.bf16.mxu0 %v7777
    %9375 = vmatmul.mubr.bf16.gmra.mxu0 %v7776
    %v9376 = vpop.f32.mrf.mxu0
    %v9377 = vadd.f32 %v9088, %v9376
    %v9378 = vpop.f32.mrf.mxu0
    %v9379 = vpop.f32.mrf.mxu0
    %v9380 = vadd.f32 %v9091, %v9379
    %v9381 = vpop.f32.mrf.mxu0
    %9382 = vmatprep.mubr.bf16.mxu0 %v7786
    %9383 = vmatmul.mubr.bf16.gmra.mxu0 %v7785
    %v9384 = vpop.f32.mrf.mxu0
    %v9385 = vadd.f32 %v9096, %v9384
    %v9386 = vpop.f32.mrf.mxu0
    %v9387 = vpop.f32.mrf.mxu0
    %v9388 = vadd.f32 %v9099, %v9387
    %v9389 = vpop.f32.mrf.mxu0
    %9390 = vmatprep.mubr.bf16.mxu0 %v7795
    %9391 = vmatmul.mubr.bf16.gmra.mxu0 %v7794
    %v9392 = vpop.f32.mrf.mxu0
    %v9393 = vadd.f32 %v9104, %v9392
    %v9394 = vpop.f32.mrf.mxu0
    %v9395 = vpop.f32.mrf.mxu0
    %v9396 = vadd.f32 %v9107, %v9395
    %v9397 = vpop.f32.mrf.mxu0
    %9398 = vmatprep.mubr.bf16.mxu0 %v7804
    %9399 = vmatmul.mubr.bf16.gmra.mxu0 %v7803
    %v9400 = vpop.f32.mrf.mxu0
    %v9401 = vadd.f32 %v9112, %v9400
    %v9402 = vpop.f32.mrf.mxu0
    %v9403 = vpop.f32.mrf.mxu0
    %v9404 = vadd.f32 %v9115, %v9403
    %v9405 = vpop.f32.mrf.mxu0
    %9406 = vmatprep.mubr.bf16.mxu0 %v7813
    %9407 = vmatmul.mubr.bf16.gmra.mxu0 %v7812
    %v9408 = vpop.f32.mrf.mxu0
    %v9409 = vadd.f32 %v9120, %v9408
    %v9410 = vpop.f32.mrf.mxu0
    %v9411 = vpop.f32.mrf.mxu0
    %v9412 = vadd.f32 %v9123, %v9411
    %v9413 = vpop.f32.mrf.mxu0
    %9414 = vmatprep.mubr.bf16.mxu0 %v7822
    %9415 = vmatmul.mubr.bf16.gmra.mxu0 %v7821
    %v9416 = vpop.f32.mrf.mxu0
    %v9417 = vadd.f32 %v9128, %v9416
    %v9418 = vpop.f32.mrf.mxu0
    %v9419 = vpop.f32.mrf.mxu0
    %v9420 = vadd.f32 %v9131, %v9419
    %v9421 = vpop.f32.mrf.mxu0
    %9422 = vmatprep.mubr.bf16.mxu0 %v7831
    %9423 = vmatmul.mubr.bf16.gmra.mxu0 %v7830
    %v9424 = vpop.f32.mrf.mxu0
    %v9425 = vadd.f32 %v9136, %v9424
    %v9426 = vpop.f32.mrf.mxu0
    %v9427 = vpop.f32.mrf.mxu0
    %v9428 = vadd.f32 %v9139, %v9427
    %v9429 = vpop.f32.mrf.mxu0
    %9430 = vmatprep.mubr.bf16.mxu0 %v7840
    %9431 = vmatmul.mubr.bf16.gmra.mxu0 %v7839
    %v9432 = vpop.f32.mrf.mxu0
    %v9433 = vadd.f32 %v9144, %v9432
    %v9434 = vpop.f32.mrf.mxu0
    %v9435 = vpop.f32.mrf.mxu0
    %v9436 = vadd.f32 %v9147, %v9435
    %v9437 = vpop.f32.mrf.mxu0
    %9438 = vmatprep.mubr.bf16.mxu0 %v7849
    %9439 = vmatmul.mubr.bf16.gmra.mxu0 %v7848
    %v9440 = vpop.f32.mrf.mxu0
    %v9441 = vadd.f32 %v9152, %v9440
    %v9442 = vpop.f32.mrf.mxu0
    %v9443 = vpop.f32.mrf.mxu0
    %v9444 = vadd.f32 %v9155, %v9443
    %v9445 = vpop.f32.mrf.mxu0
    %9446 = vmatprep.mubr.bf16.mxu0 %v7858
    %9447 = vmatmul.mubr.bf16.gmra.mxu0 %v7857
    %v9448 = vpop.f32.mrf.mxu0
    %v9449 = vadd.f32 %v9160, %v9448
    %v9450 = vpop.f32.mrf.mxu0
    %v9451 = vpop.f32.mrf.mxu0
    %v9452 = vadd.f32 %v9163, %v9451
    %v9453 = vpop.f32.mrf.mxu0
    %9454 = vmatprep.mubr.bf16.mxu0 %v7867
    %9455 = vmatmul.mubr.bf16.gmra.mxu0 %v7866
    %v9456 = vpop.f32.mrf.mxu0
    %v9457 = vadd.f32 %v9168, %v9456
    %v9458 = vpop.f32.mrf.mxu0
    %v9459 = vpop.f32.mrf.mxu0
    %v9460 = vadd.f32 %v9171, %v9459
    %v9461 = vpop.f32.mrf.mxu0
    %9462 = vmatprep.mubr.bf16.mxu0 %v7876
    %9463 = vmatmul.mubr.bf16.gmra.mxu0 %v7875
    %v9464 = vpop.f32.mrf.mxu0
    %v9465 = vadd.f32 %v9176, %v9464
    %v9466 = vpop.f32.mrf.mxu0
    %v9467 = vpop.f32.mrf.mxu0
    %v9468 = vadd.f32 %v9179, %v9467
    %v9469 = vpop.f32.mrf.mxu0
    %9470 = vmatprep.mubr.bf16.mxu0 %v7885
    %9471 = vmatmul.mubr.bf16.gmra.mxu0 %v7884
    %v9472 = vpop.f32.mrf.mxu0
    %v9473 = vadd.f32 %v9184, %v9472
    %v9474 = vpop.f32.mrf.mxu0
    %v9475 = vpop.f32.mrf.mxu0
    %v9476 = vadd.f32 %v9187, %v9475
    %v9477 = vpop.f32.mrf.mxu0
    %9478 = vmatprep.mubr.bf16.mxu0 %v7894
    %9479 = vmatmul.mubr.bf16.gmra.mxu0 %v7893
    %v9480 = vpop.f32.mrf.mxu0
    %v9481 = vadd.f32 %v9192, %v9480
    %v9482 = vpop.f32.mrf.mxu0
    %v9483 = vpop.f32.mrf.mxu0
    %v9484 = vadd.f32 %v9195, %v9483
    %v9485 = vpop.f32.mrf.mxu0
    %9486 = vmatprep.mubr.bf16.mxu0 %v7903
    %9487 = vmatmul.mubr.bf16.gmra.mxu0 %v7902
    %v9488 = vpop.f32.mrf.mxu0
    %v9489 = vadd.f32 %v9200, %v9488
    %v9490 = vpop.f32.mrf.mxu0
    %v9491 = vpop.f32.mrf.mxu0
    %v9492 = vadd.f32 %v9203, %v9491
    %v9493 = vpop.f32.mrf.mxu0
    %9494 = vmatprep.mubr.bf16.mxu0 %v7912
    %9495 = vmatmul.mubr.bf16.gmra.mxu0 %v7911
    %v9496 = vpop.f32.mrf.mxu0
    %v9497 = vadd.f32 %v9208, %v9496
    %v9498 = vpop.f32.mrf.mxu0
    %v9499 = vpop.f32.mrf.mxu0
    %v9500 = vadd.f32 %v9211, %v9499
    %v9501 = vpop.f32.mrf.mxu0
    %9502 = vdwg.mxu0
    %9503 = vmatprep.subr.bf16.mxu0 0
    %9504 = vmatpush1.bf16.msra.mxu0 %v8547
    %9505 = vmatprep.subr.bf16.mxu0 0
    %9506 = vmatpush1.bf16.msra.mxu0 %v8546
    %9507 = vmatprep.subr.bf16.mxu0 0
    %9508 = vmatpush1.bf16.msra.mxu0 %v8545
    %9509 = vmatprep.subr.bf16.mxu0 0
    %9510 = vmatpush1.bf16.msra.mxu0 %v8544
    %9511 = vmatprep.subr.bf16.mxu0 0
    %9512 = vmatpush1.bf16.msra.mxu0 %v8543
    %9513 = vmatprep.subr.bf16.mxu0 0
    %9514 = vmatpush1.bf16.msra.mxu0 %v8542
    %9515 = vmatprep.subr.bf16.mxu0 0
    %9516 = vmatpush1.bf16.msra.mxu0 %v8541
    %9517 = vmatprep.subr.bf16.mxu0 0
    %9518 = vmatpush1.bf16.msra.mxu0 %v8540
    %9519 = vmatprep.subr.bf16.mxu0 0
    %9520 = vmatpush2.bf16.msra.mxu0 %v8555
    %9521 = vmatprep.subr.bf16.mxu0 0
    %9522 = vmatpush2.bf16.msra.mxu0 %v8554
    %9523 = vmatprep.subr.bf16.mxu0 0
    %9524 = vmatpush2.bf16.msra.mxu0 %v8553
    %9525 = vmatprep.subr.bf16.mxu0 0
    %9526 = vmatpush2.bf16.msra.mxu0 %v8552
    %9527 = vmatprep.subr.bf16.mxu0 0
    %9528 = vmatpush2.bf16.msra.mxu0 %v8551
    %9529 = vmatprep.subr.bf16.mxu0 0
    %9530 = vmatpush2.bf16.msra.mxu0 %v8550
    %9531 = vmatprep.subr.bf16.mxu0 0
    %9532 = vmatpush2.bf16.msra.mxu0 %v8549
    %9533 = vmatprep.subr.bf16.mxu0 0
    %9534 = vmatpush2.bf16.msra.mxu0 %v8548
    %9535 = vmatprep.mubr.bf16.mxu0 %v7635
    %9536 = vmatmul.mubr.bf16.gmra.mxu0 %v7634
    %v9537 = vpop.f32.mrf.mxu0
    %v9538 = vadd.f32 %v9249, %v9537
    %v9539 = vpop.f32.mrf.mxu0
    %v9540 = vpop.f32.mrf.mxu0
    %v9541 = vadd.f32 %v9252, %v9540
    %v9542 = vpop.f32.mrf.mxu0
    %9543 = vmatprep.mubr.bf16.mxu0 %v7644
    %9544 = vmatmul.mubr.bf16.gmra.mxu0 %v7643
    %v9545 = vpop.f32.mrf.mxu0
    %v9546 = vadd.f32 %v9257, %v9545
    %v9547 = vpop.f32.mrf.mxu0
    %v9548 = vpop.f32.mrf.mxu0
    %v9549 = vadd.f32 %v9260, %v9548
    %v9550 = vpop.f32.mrf.mxu0
    %9551 = vmatprep.mubr.bf16.mxu0 %v7653
    %9552 = vmatmul.mubr.bf16.gmra.mxu0 %v7652
    %v9553 = vpop.f32.mrf.mxu0
    %v9554 = vadd.f32 %v9265, %v9553
    %v9555 = vpop.f32.mrf.mxu0
    %v9556 = vpop.f32.mrf.mxu0
    %v9557 = vadd.f32 %v9268, %v9556
    %v9558 = vpop.f32.mrf.mxu0
    %9559 = vmatprep.mubr.bf16.mxu0 %v7662
    %9560 = vmatmul.mubr.bf16.gmra.mxu0 %v7661
    %v9561 = vpop.f32.mrf.mxu0
    %v9562 = vadd.f32 %v9273, %v9561
    %v9563 = vpop.f32.mrf.mxu0
    %v9564 = vpop.f32.mrf.mxu0
    %v9565 = vadd.f32 %v9276, %v9564
    %v9566 = vpop.f32.mrf.mxu0
    %9567 = vmatprep.mubr.bf16.mxu0 %v7671
    %9568 = vmatmul.mubr.bf16.gmra.mxu0 %v7670
    %v9569 = vpop.f32.mrf.mxu0
    %v9570 = vadd.f32 %v9281, %v9569
    %v9571 = vpop.f32.mrf.mxu0
    %v9572 = vpop.f32.mrf.mxu0
    %v9573 = vadd.f32 %v9284, %v9572
    %v9574 = vpop.f32.mrf.mxu0
    %9575 = vmatprep.mubr.bf16.mxu0 %v7680
    %9576 = vmatmul.mubr.bf16.gmra.mxu0 %v7679
    %v9577 = vpop.f32.mrf.mxu0
    %v9578 = vadd.f32 %v9289, %v9577
    %v9579 = vpop.f32.mrf.mxu0
    %v9580 = vpop.f32.mrf.mxu0
    %v9581 = vadd.f32 %v9292, %v9580
    %v9582 = vpop.f32.mrf.mxu0
    %9583 = vmatprep.mubr.bf16.mxu0 %v7689
    %9584 = vmatmul.mubr.bf16.gmra.mxu0 %v7688
    %v9585 = vpop.f32.mrf.mxu0
    %v9586 = vadd.f32 %v9297, %v9585
    %v9587 = vpop.f32.mrf.mxu0
    %v9588 = vpop.f32.mrf.mxu0
    %v9589 = vadd.f32 %v9300, %v9588
    %v9590 = vpop.f32.mrf.mxu0
    %9591 = vmatprep.mubr.bf16.mxu0 %v7698
    %9592 = vmatmul.mubr.bf16.gmra.mxu0 %v7697
    %v9593 = vpop.f32.mrf.mxu0
    %v9594 = vadd.f32 %v9305, %v9593
    %v9595 = vpop.f32.mrf.mxu0
    %v9596 = vpop.f32.mrf.mxu0
    %v9597 = vadd.f32 %v9308, %v9596
    %v9598 = vpop.f32.mrf.mxu0
    %9599 = vmatprep.mubr.bf16.mxu0 %v7707
    %9600 = vmatmul.mubr.bf16.gmra.mxu0 %v7706
    %v9601 = vpop.f32.mrf.mxu0
    %v9602 = vadd.f32 %v9313, %v9601
    %v9603 = vpop.f32.mrf.mxu0
    %v9604 = vpop.f32.mrf.mxu0
    %v9605 = vadd.f32 %v9316, %v9604
    %v9606 = vpop.f32.mrf.mxu0
    %9607 = vmatprep.mubr.bf16.mxu0 %v7716
    %9608 = vmatmul.mubr.bf16.gmra.mxu0 %v7715
    %v9609 = vpop.f32.mrf.mxu0
    %v9610 = vadd.f32 %v9321, %v9609
    %v9611 = vpop.f32.mrf.mxu0
    %v9612 = vpop.f32.mrf.mxu0
    %v9613 = vadd.f32 %v9324, %v9612
    %v9614 = vpop.f32.mrf.mxu0
    %9615 = vmatprep.mubr.bf16.mxu0 %v7725
    %9616 = vmatmul.mubr.bf16.gmra.mxu0 %v7724
    %v9617 = vpop.f32.mrf.mxu0
    %v9618 = vadd.f32 %v9329, %v9617
    %v9619 = vpop.f32.mrf.mxu0
    %v9620 = vpop.f32.mrf.mxu0
    %v9621 = vadd.f32 %v9332, %v9620
    %v9622 = vpop.f32.mrf.mxu0
    %9623 = vmatprep.mubr.bf16.mxu0 %v7734
    %9624 = vmatmul.mubr.bf16.gmra.mxu0 %v7733
    %v9625 = vpop.f32.mrf.mxu0
    %v9626 = vadd.f32 %v9337, %v9625
    %v9627 = vpop.f32.mrf.mxu0
    %v9628 = vpop.f32.mrf.mxu0
    %v9629 = vadd.f32 %v9340, %v9628
    %v9630 = vpop.f32.mrf.mxu0
    %9631 = vmatprep.mubr.bf16.mxu0 %v7743
    %9632 = vmatmul.mubr.bf16.gmra.mxu0 %v7742
    %v9633 = vpop.f32.mrf.mxu0
    %v9634 = vadd.f32 %v9345, %v9633
    %v9635 = vpop.f32.mrf.mxu0
    %v9636 = vpop.f32.mrf.mxu0
    %v9637 = vadd.f32 %v9348, %v9636
    %v9638 = vpop.f32.mrf.mxu0
    %9639 = vmatprep.mubr.bf16.mxu0 %v7752
    %9640 = vmatmul.mubr.bf16.gmra.mxu0 %v7751
    %v9641 = vpop.f32.mrf.mxu0
    %v9642 = vadd.f32 %v9353, %v9641
    %v9643 = vpop.f32.mrf.mxu0
    %v9644 = vpop.f32.mrf.mxu0
    %v9645 = vadd.f32 %v9356, %v9644
    %v9646 = vpop.f32.mrf.mxu0
    %9647 = vmatprep.mubr.bf16.mxu0 %v7761
    %9648 = vmatmul.mubr.bf16.gmra.mxu0 %v7760
    %v9649 = vpop.f32.mrf.mxu0
    %v9650 = vadd.f32 %v9361, %v9649
    %v9651 = vpop.f32.mrf.mxu0
    %v9652 = vpop.f32.mrf.mxu0
    %v9653 = vadd.f32 %v9364, %v9652
    %v9654 = vpop.f32.mrf.mxu0
    %9655 = vmatprep.mubr.bf16.mxu0 %v7770
    %9656 = vmatmul.mubr.bf16.gmra.mxu0 %v7769
    %v9657 = vpop.f32.mrf.mxu0
    %v9658 = vadd.f32 %v9369, %v9657
    %v9659 = vpop.f32.mrf.mxu0
    %v9660 = vpop.f32.mrf.mxu0
    %v9661 = vadd.f32 %v9372, %v9660
    %v9662 = vpop.f32.mrf.mxu0
    %9663 = vmatprep.mubr.bf16.mxu0 %v7779
    %9664 = vmatmul.mubr.bf16.gmra.mxu0 %v7778
    %v9665 = vpop.f32.mrf.mxu0
    %v9666 = vadd.f32 %v9377, %v9665
    %v9667 = vpop.f32.mrf.mxu0
    %v9668 = vpop.f32.mrf.mxu0
    %v9669 = vadd.f32 %v9380, %v9668
    %v9670 = vpop.f32.mrf.mxu0
    %9671 = vmatprep.mubr.bf16.mxu0 %v7788
    %9672 = vmatmul.mubr.bf16.gmra.mxu0 %v7787
    %v9673 = vpop.f32.mrf.mxu0
    %v9674 = vadd.f32 %v9385, %v9673
    %v9675 = vpop.f32.mrf.mxu0
    %v9676 = vpop.f32.mrf.mxu0
    %v9677 = vadd.f32 %v9388, %v9676
    %v9678 = vpop.f32.mrf.mxu0
    %9679 = vmatprep.mubr.bf16.mxu0 %v7797
    %9680 = vmatmul.mubr.bf16.gmra.mxu0 %v7796
    %v9681 = vpop.f32.mrf.mxu0
    %v9682 = vadd.f32 %v9393, %v9681
    %v9683 = vpop.f32.mrf.mxu0
    %v9684 = vpop.f32.mrf.mxu0
    %v9685 = vadd.f32 %v9396, %v9684
    %v9686 = vpop.f32.mrf.mxu0
    %9687 = vmatprep.mubr.bf16.mxu0 %v7806
    %9688 = vmatmul.mubr.bf16.gmra.mxu0 %v7805
    %v9689 = vpop.f32.mrf.mxu0
    %v9690 = vadd.f32 %v9401, %v9689
    %v9691 = vpop.f32.mrf.mxu0
    %v9692 = vpop.f32.mrf.mxu0
    %v9693 = vadd.f32 %v9404, %v9692
    %v9694 = vpop.f32.mrf.mxu0
    %9695 = vmatprep.mubr.bf16.mxu0 %v7815
    %9696 = vmatmul.mubr.bf16.gmra.mxu0 %v7814
    %v9697 = vpop.f32.mrf.mxu0
    %v9698 = vadd.f32 %v9409, %v9697
    %v9699 = vpop.f32.mrf.mxu0
    %v9700 = vpop.f32.mrf.mxu0
    %v9701 = vadd.f32 %v9412, %v9700
    %v9702 = vpop.f32.mrf.mxu0
    %9703 = vmatprep.mubr.bf16.mxu0 %v7824
    %9704 = vmatmul.mubr.bf16.gmra.mxu0 %v7823
    %v9705 = vpop.f32.mrf.mxu0
    %v9706 = vadd.f32 %v9417, %v9705
    %v9707 = vpop.f32.mrf.mxu0
    %v9708 = vpop.f32.mrf.mxu0
    %v9709 = vadd.f32 %v9420, %v9708
    %v9710 = vpop.f32.mrf.mxu0
    %9711 = vmatprep.mubr.bf16.mxu0 %v7833
    %9712 = vmatmul.mubr.bf16.gmra.mxu0 %v7832
    %v9713 = vpop.f32.mrf.mxu0
    %v9714 = vadd.f32 %v9425, %v9713
    %v9715 = vpop.f32.mrf.mxu0
    %v9716 = vpop.f32.mrf.mxu0
    %v9717 = vadd.f32 %v9428, %v9716
    %v9718 = vpop.f32.mrf.mxu0
    %9719 = vmatprep.mubr.bf16.mxu0 %v7842
    %9720 = vmatmul.mubr.bf16.gmra.mxu0 %v7841
    %v9721 = vpop.f32.mrf.mxu0
    %v9722 = vadd.f32 %v9433, %v9721
    %v9723 = vpop.f32.mrf.mxu0
    %v9724 = vpop.f32.mrf.mxu0
    %v9725 = vadd.f32 %v9436, %v9724
    %v9726 = vpop.f32.mrf.mxu0
    %9727 = vmatprep.mubr.bf16.mxu0 %v7851
    %9728 = vmatmul.mubr.bf16.gmra.mxu0 %v7850
    %v9729 = vpop.f32.mrf.mxu0
    %v9730 = vadd.f32 %v9441, %v9729
    %v9731 = vpop.f32.mrf.mxu0
    %v9732 = vpop.f32.mrf.mxu0
    %v9733 = vadd.f32 %v9444, %v9732
    %v9734 = vpop.f32.mrf.mxu0
    %9735 = vmatprep.mubr.bf16.mxu0 %v7860
    %9736 = vmatmul.mubr.bf16.gmra.mxu0 %v7859
    %v9737 = vpop.f32.mrf.mxu0
    %v9738 = vadd.f32 %v9449, %v9737
    %v9739 = vpop.f32.mrf.mxu0
    %v9740 = vpop.f32.mrf.mxu0
    %v9741 = vadd.f32 %v9452, %v9740
    %v9742 = vpop.f32.mrf.mxu0
    %9743 = vmatprep.mubr.bf16.mxu0 %v7869
    %9744 = vmatmul.mubr.bf16.gmra.mxu0 %v7868
    %v9745 = vpop.f32.mrf.mxu0
    %v9746 = vadd.f32 %v9457, %v9745
    %v9747 = vpop.f32.mrf.mxu0
    %v9748 = vpop.f32.mrf.mxu0
    %v9749 = vadd.f32 %v9460, %v9748
    %v9750 = vpop.f32.mrf.mxu0
    %9751 = vmatprep.mubr.bf16.mxu0 %v7878
    %9752 = vmatmul.mubr.bf16.gmra.mxu0 %v7877
    %v9753 = vpop.f32.mrf.mxu0
    %v9754 = vadd.f32 %v9465, %v9753
    %v9755 = vpop.f32.mrf.mxu0
    %v9756 = vpop.f32.mrf.mxu0
    %v9757 = vadd.f32 %v9468, %v9756
    %v9758 = vpop.f32.mrf.mxu0
    %9759 = vmatprep.mubr.bf16.mxu0 %v7887
    %9760 = vmatmul.mubr.bf16.gmra.mxu0 %v7886
    %v9761 = vpop.f32.mrf.mxu0
    %v9762 = vadd.f32 %v9473, %v9761
    %v9763 = vpop.f32.mrf.mxu0
    %v9764 = vpop.f32.mrf.mxu0
    %v9765 = vadd.f32 %v9476, %v9764
    %v9766 = vpop.f32.mrf.mxu0
    %9767 = vmatprep.mubr.bf16.mxu0 %v7896
    %9768 = vmatmul.mubr.bf16.gmra.mxu0 %v7895
    %v9769 = vpop.f32.mrf.mxu0
    %v9770 = vadd.f32 %v9481, %v9769
    %v9771 = vpop.f32.mrf.mxu0
    %v9772 = vpop.f32.mrf.mxu0
    %v9773 = vadd.f32 %v9484, %v9772
    %v9774 = vpop.f32.mrf.mxu0
    %9775 = vmatprep.mubr.bf16.mxu0 %v7905
    %9776 = vmatmul.mubr.bf16.gmra.mxu0 %v7904
    %v9777 = vpop.f32.mrf.mxu0
    %v9778 = vadd.f32 %v9489, %v9777
    %v9779 = vpop.f32.mrf.mxu0
    %v9780 = vpop.f32.mrf.mxu0
    %v9781 = vadd.f32 %v9492, %v9780
    %v9782 = vpop.f32.mrf.mxu0
    %9783 = vmatprep.mubr.bf16.mxu0 %v7914
    %9784 = vmatmul.mubr.bf16.gmra.mxu0 %v7913
    %v9785 = vpop.f32.mrf.mxu0
    %v9786 = vadd.f32 %v9497, %v9785
    %v9787 = vpop.f32.mrf.mxu0
    %v9788 = vpop.f32.mrf.mxu0
    %v9789 = vadd.f32 %v9500, %v9788
    %v9790 = vpop.f32.mrf.mxu0
    %9791 = vdwg.mxu0
    %9792 = vmatprep.subr.bf16.mxu0 0
    %9793 = vmatpush1.bf16.msra.mxu0 %v8563
    %9794 = vmatprep.subr.bf16.mxu0 0
    %9795 = vmatpush1.bf16.msra.mxu0 %v8562
    %9796 = vmatprep.subr.bf16.mxu0 0
    %9797 = vmatpush1.bf16.msra.mxu0 %v8561
    %9798 = vmatprep.subr.bf16.mxu0 0
    %9799 = vmatpush1.bf16.msra.mxu0 %v8560
    %9800 = vmatprep.subr.bf16.mxu0 0
    %9801 = vmatpush1.bf16.msra.mxu0 %v8559
    %9802 = vmatprep.subr.bf16.mxu0 0
    %9803 = vmatpush1.bf16.msra.mxu0 %v8558
    %9804 = vmatprep.subr.bf16.mxu0 0
    %9805 = vmatpush1.bf16.msra.mxu0 %v8557
    %9806 = vmatprep.subr.bf16.mxu0 0
    %9807 = vmatpush1.bf16.msra.mxu0 %v8556
    %9808 = vmatprep.subr.bf16.mxu0 0
    %9809 = vmatpush2.bf16.msra.mxu0 0
    %9810 = vmatprep.subr.bf16.mxu0 0
    %9811 = vmatpush2.bf16.msra.mxu0 0
    %9812 = vmatprep.subr.bf16.mxu0 0
    %9813 = vmatpush2.bf16.msra.mxu0 0
    %9814 = vmatprep.subr.bf16.mxu0 0
    %9815 = vmatpush2.bf16.msra.mxu0 0
    %9816 = vmatprep.subr.bf16.mxu0 0
    %9817 = vmatpush2.bf16.msra.mxu0 0
    %9818 = vmatprep.subr.bf16.mxu0 0
    %9819 = vmatpush2.bf16.msra.mxu0 0
    %9820 = vmatprep.subr.bf16.mxu0 0
    %9821 = vmatpush2.bf16.msra.mxu0 0
    %9822 = vmatprep.subr.bf16.mxu0 0
    %9823 = vmatpush2.bf16.msra.mxu0 0
    %9824 = vmatprep.mubr.bf16.mxu0 0
    %9825 = vmatmul.mubr.bf16.gmra.mxu0 %v7636
    %v9826 = vpop.f32.mrf.mxu0
    %v9827 = vadd.f32 %v9538, %v9826
    %v9828 = vpop.f32.mrf.mxu0
    %v9829 = vpop.f32.mrf.mxu0
    %v9830 = vadd.f32 %v9541, %v9829
    %v9831 = vpop.f32.mrf.mxu0
    %9832 = vmatprep.mubr.bf16.mxu0 0
    %9833 = vmatmul.mubr.bf16.gmra.mxu0 %v7645
    %v9834 = vpop.f32.mrf.mxu0
    %v9835 = vadd.f32 %v9546, %v9834
    %v9836 = vpop.f32.mrf.mxu0
    %v9837 = vpop.f32.mrf.mxu0
    %v9838 = vadd.f32 %v9549, %v9837
    %v9839 = vpop.f32.mrf.mxu0
    %9840 = vmatprep.mubr.bf16.mxu0 0
    %9841 = vmatmul.mubr.bf16.gmra.mxu0 %v7654
    %v9842 = vpop.f32.mrf.mxu0
    %v9843 = vadd.f32 %v9554, %v9842
    %v9844 = vpop.f32.mrf.mxu0
    %v9845 = vpop.f32.mrf.mxu0
    %v9846 = vadd.f32 %v9557, %v9845
    %v9847 = vpop.f32.mrf.mxu0
    %9848 = vmatprep.mubr.bf16.mxu0 0
    %9849 = vmatmul.mubr.bf16.gmra.mxu0 %v7663
    %v9850 = vpop.f32.mrf.mxu0
    %v9851 = vadd.f32 %v9562, %v9850
    %v9852 = vpop.f32.mrf.mxu0
    %v9853 = vpop.f32.mrf.mxu0
    %v9854 = vadd.f32 %v9565, %v9853
    %v9855 = vpop.f32.mrf.mxu0
    %9856 = vmatprep.mubr.bf16.mxu0 0
    %9857 = vmatmul.mubr.bf16.gmra.mxu0 %v7672
    %v9858 = vpop.f32.mrf.mxu0
    %v9859 = vadd.f32 %v9570, %v9858
    %v9860 = vpop.f32.mrf.mxu0
    %v9861 = vpop.f32.mrf.mxu0
    %v9862 = vadd.f32 %v9573, %v9861
    %v9863 = vpop.f32.mrf.mxu0
    %9864 = vmatprep.mubr.bf16.mxu0 0
    %9865 = vmatmul.mubr.bf16.gmra.mxu0 %v7681
    %v9866 = vpop.f32.mrf.mxu0
    %v9867 = vadd.f32 %v9578, %v9866
    %v9868 = vpop.f32.mrf.mxu0
    %v9869 = vpop.f32.mrf.mxu0
    %v9870 = vadd.f32 %v9581, %v9869
    %v9871 = vpop.f32.mrf.mxu0
    %9872 = vmatprep.mubr.bf16.mxu0 0
    %9873 = vmatmul.mubr.bf16.gmra.mxu0 %v7690
    %v9874 = vpop.f32.mrf.mxu0
    %v9875 = vadd.f32 %v9586, %v9874
    %v9876 = vpop.f32.mrf.mxu0
    %v9877 = vpop.f32.mrf.mxu0
    %v9878 = vadd.f32 %v9589, %v9877
    %v9879 = vpop.f32.mrf.mxu0
    %9880 = vmatprep.mubr.bf16.mxu0 0
    %9881 = vmatmul.mubr.bf16.gmra.mxu0 %v7699
    %v9882 = vpop.f32.mrf.mxu0
    %v9883 = vadd.f32 %v9594, %v9882
    %v9884 = vpop.f32.mrf.mxu0
    %v9885 = vpop.f32.mrf.mxu0
    %v9886 = vadd.f32 %v9597, %v9885
    %v9887 = vpop.f32.mrf.mxu0
    %9888 = vmatprep.mubr.bf16.mxu0 0
    %9889 = vmatmul.mubr.bf16.gmra.mxu0 %v7708
    %v9890 = vpop.f32.mrf.mxu0
    %v9891 = vadd.f32 %v9602, %v9890
    %v9892 = vpop.f32.mrf.mxu0
    %v9893 = vpop.f32.mrf.mxu0
    %v9894 = vadd.f32 %v9605, %v9893
    %v9895 = vpop.f32.mrf.mxu0
    %9896 = vmatprep.mubr.bf16.mxu0 0
    %9897 = vmatmul.mubr.bf16.gmra.mxu0 %v7717
    %v9898 = vpop.f32.mrf.mxu0
    %v9899 = vadd.f32 %v9610, %v9898
    %v9900 = vpop.f32.mrf.mxu0
    %v9901 = vpop.f32.mrf.mxu0
    %v9902 = vadd.f32 %v9613, %v9901
    %v9903 = vpop.f32.mrf.mxu0
    %9904 = vmatprep.mubr.bf16.mxu0 0
    %9905 = vmatmul.mubr.bf16.gmra.mxu0 %v7726
    %v9906 = vpop.f32.mrf.mxu0
    %v9907 = vadd.f32 %v9618, %v9906
    %v9908 = vpop.f32.mrf.mxu0
    %v9909 = vpop.f32.mrf.mxu0
    %v9910 = vadd.f32 %v9621, %v9909
    %v9911 = vpop.f32.mrf.mxu0
    %9912 = vmatprep.mubr.bf16.mxu0 0
    %9913 = vmatmul.mubr.bf16.gmra.mxu0 %v7735
    %v9914 = vpop.f32.mrf.mxu0
    %v9915 = vadd.f32 %v9626, %v9914
    %v9916 = vpop.f32.mrf.mxu0
    %v9917 = vpop.f32.mrf.mxu0
    %v9918 = vadd.f32 %v9629, %v9917
    %v9919 = vpop.f32.mrf.mxu0
    %9920 = vmatprep.mubr.bf16.mxu0 0
    %9921 = vmatmul.mubr.bf16.gmra.mxu0 %v7744
    %v9922 = vpop.f32.mrf.mxu0
    %v9923 = vadd.f32 %v9634, %v9922
    %v9924 = vpop.f32.mrf.mxu0
    %v9925 = vpop.f32.mrf.mxu0
    %v9926 = vadd.f32 %v9637, %v9925
    %v9927 = vpop.f32.mrf.mxu0
    %9928 = vmatprep.mubr.bf16.mxu0 0
    %9929 = vmatmul.mubr.bf16.gmra.mxu0 %v7753
    %v9930 = vpop.f32.mrf.mxu0
    %v9931 = vadd.f32 %v9642, %v9930
    %v9932 = vpop.f32.mrf.mxu0
    %v9933 = vpop.f32.mrf.mxu0
    %v9934 = vadd.f32 %v9645, %v9933
    %v9935 = vpop.f32.mrf.mxu0
    %9936 = vmatprep.mubr.bf16.mxu0 0
    %9937 = vmatmul.mubr.bf16.gmra.mxu0 %v7762
    %v9938 = vpop.f32.mrf.mxu0
    %v9939 = vadd.f32 %v9650, %v9938
    %v9940 = vpop.f32.mrf.mxu0
    %v9941 = vpop.f32.mrf.mxu0
    %v9942 = vadd.f32 %v9653, %v9941
    %v9943 = vpop.f32.mrf.mxu0
    %9944 = vmatprep.mubr.bf16.mxu0 0
    %9945 = vmatmul.mubr.bf16.gmra.mxu0 %v7771
    %v9946 = vpop.f32.mrf.mxu0
    %v9947 = vadd.f32 %v9658, %v9946
    %v9948 = vpop.f32.mrf.mxu0
    %v9949 = vpop.f32.mrf.mxu0
    %v9950 = vadd.f32 %v9661, %v9949
    %v9951 = vpop.f32.mrf.mxu0
    %9952 = vmatprep.mubr.bf16.mxu0 0
    %9953 = vmatmul.mubr.bf16.gmra.mxu0 %v7780
    %v9954 = vpop.f32.mrf.mxu0
    %v9955 = vadd.f32 %v9666, %v9954
    %v9956 = vpop.f32.mrf.mxu0
    %v9957 = vpop.f32.mrf.mxu0
    %v9958 = vadd.f32 %v9669, %v9957
    %v9959 = vpop.f32.mrf.mxu0
    %9960 = vmatprep.mubr.bf16.mxu0 0
    %9961 = vmatmul.mubr.bf16.gmra.mxu0 %v7789
    %v9962 = vpop.f32.mrf.mxu0
    %v9963 = vadd.f32 %v9674, %v9962
    %v9964 = vpop.f32.mrf.mxu0
    %v9965 = vpop.f32.mrf.mxu0
    %v9966 = vadd.f32 %v9677, %v9965
    %v9967 = vpop.f32.mrf.mxu0
    %9968 = vmatprep.mubr.bf16.mxu0 0
    %9969 = vmatmul.mubr.bf16.gmra.mxu0 %v7798
    %v9970 = vpop.f32.mrf.mxu0
    %v9971 = vadd.f32 %v9682, %v9970
    %v9972 = vpop.f32.mrf.mxu0
    %v9973 = vpop.f32.mrf.mxu0
    %v9974 = vadd.f32 %v9685, %v9973
    %v9975 = vpop.f32.mrf.mxu0
    %9976 = vmatprep.mubr.bf16.mxu0 0
    %9977 = vmatmul.mubr.bf16.gmra.mxu0 %v7807
    %v9978 = vpop.f32.mrf.mxu0
    %v9979 = vadd.f32 %v9690, %v9978
    %v9980 = vpop.f32.mrf.mxu0
    %v9981 = vpop.f32.mrf.mxu0
    %v9982 = vadd.f32 %v9693, %v9981
    %v9983 = vpop.f32.mrf.mxu0
    %9984 = vmatprep.mubr.bf16.mxu0 0
    %9985 = vmatmul.mubr.bf16.gmra.mxu0 %v7816
    %v9986 = vpop.f32.mrf.mxu0
    %v9987 = vadd.f32 %v9698, %v9986
    %v9988 = vpop.f32.mrf.mxu0
    %v9989 = vpop.f32.mrf.mxu0
    %v9990 = vadd.f32 %v9701, %v9989
    %v9991 = vpop.f32.mrf.mxu0
    %9992 = vmatprep.mubr.bf16.mxu0 0
    %9993 = vmatmul.mubr.bf16.gmra.mxu0 %v7825
    %v9994 = vpop.f32.mrf.mxu0
    %v9995 = vadd.f32 %v9706, %v9994
    %v9996 = vpop.f32.mrf.mxu0
    %v9997 = vpop.f32.mrf.mxu0
    %v9998 = vadd.f32 %v9709, %v9997
    %v9999 = vpop.f32.mrf.mxu0
    %10000 = vmatprep.mubr.bf16.mxu0 0
    %10001 = vmatmul.mubr.bf16.gmra.mxu0 %v7834
    %v10002 = vpop.f32.mrf.mxu0
    %v10003 = vadd.f32 %v9714, %v10002
    %v10004 = vpop.f32.mrf.mxu0
    %v10005 = vpop.f32.mrf.mxu0
    %v10006 = vadd.f32 %v9717, %v10005
    %v10007 = vpop.f32.mrf.mxu0
    %10008 = vmatprep.mubr.bf16.mxu0 0
    %10009 = vmatmul.mubr.bf16.gmra.mxu0 %v7843
    %v10010 = vpop.f32.mrf.mxu0
    %v10011 = vadd.f32 %v9722, %v10010
    %v10012 = vpop.f32.mrf.mxu0
    %v10013 = vpop.f32.mrf.mxu0
    %v10014 = vadd.f32 %v9725, %v10013
    %v10015 = vpop.f32.mrf.mxu0
    %10016 = vmatprep.mubr.bf16.mxu0 0
    %10017 = vmatmul.mubr.bf16.gmra.mxu0 %v7852
    %v10018 = vpop.f32.mrf.mxu0
    %v10019 = vadd.f32 %v9730, %v10018
    %v10020 = vpop.f32.mrf.mxu0
    %v10021 = vpop.f32.mrf.mxu0
    %v10022 = vadd.f32 %v9733, %v10021
    %v10023 = vpop.f32.mrf.mxu0
    %10024 = vmatprep.mubr.bf16.mxu0 0
    %10025 = vmatmul.mubr.bf16.gmra.mxu0 %v7861
    %v10026 = vpop.f32.mrf.mxu0
    %v10027 = vadd.f32 %v9738, %v10026
    %v10028 = vpop.f32.mrf.mxu0
    %v10029 = vpop.f32.mrf.mxu0
    %v10030 = vadd.f32 %v9741, %v10029
    %v10031 = vpop.f32.mrf.mxu0
    %10032 = vmatprep.mubr.bf16.mxu0 0
    %10033 = vmatmul.mubr.bf16.gmra.mxu0 %v7870
    %v10034 = vpop.f32.mrf.mxu0
    %v10035 = vadd.f32 %v9746, %v10034
    %v10036 = vpop.f32.mrf.mxu0
    %v10037 = vpop.f32.mrf.mxu0
    %v10038 = vadd.f32 %v9749, %v10037
    %v10039 = vpop.f32.mrf.mxu0
    %10040 = vmatprep.mubr.bf16.mxu0 0
    %10041 = vmatmul.mubr.bf16.gmra.mxu0 %v7879
    %v10042 = vpop.f32.mrf.mxu0
    %v10043 = vadd.f32 %v9754, %v10042
    %v10044 = vpop.f32.mrf.mxu0
    %v10045 = vpop.f32.mrf.mxu0
    %v10046 = vadd.f32 %v9757, %v10045
    %v10047 = vpop.f32.mrf.mxu0
    %10048 = vmatprep.mubr.bf16.mxu0 0
    %10049 = vmatmul.mubr.bf16.gmra.mxu0 %v7888
    %v10050 = vpop.f32.mrf.mxu0
    %v10051 = vadd.f32 %v9762, %v10050
    %v10052 = vpop.f32.mrf.mxu0
    %v10053 = vpop.f32.mrf.mxu0
    %v10054 = vadd.f32 %v9765, %v10053
    %v10055 = vpop.f32.mrf.mxu0
    %10056 = vmatprep.mubr.bf16.mxu0 0
    %10057 = vmatmul.mubr.bf16.gmra.mxu0 %v7897
    %v10058 = vpop.f32.mrf.mxu0
    %v10059 = vadd.f32 %v9770, %v10058
    %v10060 = vpop.f32.mrf.mxu0
    %v10061 = vpop.f32.mrf.mxu0
    %v10062 = vadd.f32 %v9773, %v10061
    %v10063 = vpop.f32.mrf.mxu0
    %10064 = vmatprep.mubr.bf16.mxu0 0
    %10065 = vmatmul.mubr.bf16.gmra.mxu0 %v7906
    %v10066 = vpop.f32.mrf.mxu0
    %v10067 = vadd.f32 %v9778, %v10066
    %v10068 = vpop.f32.mrf.mxu0
    %v10069 = vpop.f32.mrf.mxu0
    %v10070 = vadd.f32 %v9781, %v10069
    %v10071 = vpop.f32.mrf.mxu0
    %10072 = vmatprep.mubr.bf16.mxu0 0
    %10073 = vmatmul.mubr.bf16.gmra.mxu0 %v7915
    %v10074 = vpop.f32.mrf.mxu0
    %v10075 = vadd.f32 %v9786, %v10074
    %v10076 = vpop.f32.mrf.mxu0
    %v10077 = vpop.f32.mrf.mxu0
    %v10078 = vadd.f32 %v9789, %v10077
    %v10079 = vpop.f32.mrf.mxu0
    %10080 = vdwg.mxu0
    %v10081 = vmin.f32 %v9827, 0.0
    %v10082 = vmin.f32 %v9830, 0.0
    %v10083 = vmin.f32 %v9835, 0.0
    %v10084 = vmin.f32 %v9838, 0.0
    %v10085 = vmin.f32 %v9843, 0.0
    %v10086 = vmin.f32 %v9846, 0.0
    %v10087 = vmin.f32 %v9851, 0.0
    %v10088 = vmin.f32 %v9854, 0.0
    %v10089 = vmin.f32 %v9859, 0.0
    %v10090 = vmin.f32 %v9862, 0.0
    %v10091 = vmin.f32 %v9867, 0.0
    %v10092 = vmin.f32 %v9870, 0.0
    %v10093 = vmin.f32 %v9875, 0.0
    %v10094 = vmin.f32 %v9878, 0.0
    %v10095 = vmin.f32 %v9883, 0.0
    %v10096 = vmin.f32 %v9886, 0.0
    %v10097 = vmin.f32 %v9891, 0.0
    %v10098 = vmin.f32 %v9894, 0.0
    %v10099 = vmin.f32 %v9899, 0.0
    %v10100 = vmin.f32 %v9902, 0.0
    %v10101 = vmin.f32 %v9907, 0.0
    %v10102 = vmin.f32 %v9910, 0.0
    %v10103 = vmin.f32 %v9915, 0.0
    %v10104 = vmin.f32 %v9918, 0.0
    %v10105 = vmin.f32 %v9923, 0.0
    %v10106 = vmin.f32 %v9926, 0.0
    %v10107 = vmin.f32 %v9931, 0.0
    %v10108 = vmin.f32 %v9934, 0.0
    %v10109 = vmin.f32 %v9939, 0.0
    %v10110 = vmin.f32 %v9942, 0.0
    %v10111 = vmin.f32 %v9947, 0.0
    %v10112 = vmin.f32 %v9950, 0.0
    %v10113 = vmin.f32 %v9955, 0.0
    %v10114 = vmin.f32 %v9958, 0.0
    %v10115 = vmin.f32 %v9963, 0.0
    %v10116 = vmin.f32 %v9966, 0.0
    %v10117 = vmin.f32 %v9971, 0.0
    %v10118 = vmin.f32 %v9974, 0.0
    %v10119 = vmin.f32 %v9979, 0.0
    %v10120 = vmin.f32 %v9982, 0.0
    %v10121 = vmin.f32 %v9987, 0.0
    %v10122 = vmin.f32 %v9990, 0.0
    %v10123 = vmin.f32 %v9995, 0.0
    %v10124 = vmin.f32 %v9998, 0.0
    %v10125 = vmin.f32 %v10003, 0.0
    %v10126 = vmin.f32 %v10006, 0.0
    %v10127 = vmin.f32 %v10011, 0.0
    %v10128 = vmin.f32 %v10014, 0.0
    %v10129 = vmin.f32 %v10019, 0.0
    %v10130 = vmin.f32 %v10022, 0.0
    %v10131 = vmin.f32 %v10027, 0.0
    %v10132 = vmin.f32 %v10030, 0.0
    %v10133 = vmin.f32 %v10035, 0.0
    %v10134 = vmin.f32 %v10038, 0.0
    %v10135 = vmin.f32 %v10043, 0.0
    %v10136 = vmin.f32 %v10046, 0.0
    %v10137 = vmin.f32 %v10051, 0.0
    %v10138 = vmin.f32 %v10054, 0.0
    %v10139 = vmin.f32 %v10059, 0.0
    %v10140 = vmin.f32 %v10062, 0.0
    %v10141 = vmin.f32 %v10067, 0.0
    %v10142 = vmin.f32 %v10070, 0.0
    %v10143 = vmin.f32 %v10075, 0.0
    %v10144 = vmin.f32 %v10078, 0.0
    %v10145 = vmul.f32 %v10081, 1.442695
    %v10146 = vpow.pop %v10145
    %v10147 = vmul.f32 %v10082, 1.442695
    %v10148 = vpow.pop %v10147
    %v10149 = vmul.f32 %v10083, 1.442695
    %v10150 = vpow.pop %v10149
    %v10151 = vmul.f32 %v10084, 1.442695
    %v10152 = vpow.pop %v10151
    %v10153 = vmul.f32 %v10085, 1.442695
    %v10154 = vpow.pop %v10153
    %v10155 = vmul.f32 %v10086, 1.442695
    %v10156 = vpow.pop %v10155
    %v10157 = vmul.f32 %v10087, 1.442695
    %v10158 = vpow.pop %v10157
    %v10159 = vmul.f32 %v10088, 1.442695
    %v10160 = vpow.pop %v10159
    %v10161 = vmul.f32 %v10089, 1.442695
    %v10162 = vpow.pop %v10161
    %v10163 = vmul.f32 %v10090, 1.442695
    %v10164 = vpow.pop %v10163
    %v10165 = vmul.f32 %v10091, 1.442695
    %v10166 = vpow.pop %v10165
    %v10167 = vmul.f32 %v10092, 1.442695
    %v10168 = vpow.pop %v10167
    %v10169 = vmul.f32 %v10093, 1.442695
    %v10170 = vpow.pop %v10169
    %v10171 = vmul.f32 %v10094, 1.442695
    %v10172 = vpow.pop %v10171
    %v10173 = vmul.f32 %v10095, 1.442695
    %v10174 = vpow.pop %v10173
    %v10175 = vmul.f32 %v10096, 1.442695
    %v10176 = vpow.pop %v10175
    %v10177 = vmul.f32 %v10097, 1.442695
    %v10178 = vpow.pop %v10177
    %v10179 = vmul.f32 %v10098, 1.442695
    %v10180 = vpow.pop %v10179
    %v10181 = vmul.f32 %v10099, 1.442695
    %v10182 = vpow.pop %v10181
    %v10183 = vmul.f32 %v10100, 1.442695
    %v10184 = vpow.pop %v10183
    %v10185 = vmul.f32 %v10101, 1.442695
    %v10186 = vpow.pop %v10185
    %v10187 = vmul.f32 %v10102, 1.442695
    %v10188 = vpow.pop %v10187
    %v10189 = vmul.f32 %v10103, 1.442695
    %v10190 = vpow.pop %v10189
    %v10191 = vmul.f32 %v10104, 1.442695
    %v10192 = vpow.pop %v10191
    %v10193 = vmul.f32 %v10105, 1.442695
    %v10194 = vpow.pop %v10193
    %v10195 = vmul.f32 %v10106, 1.442695
    %v10196 = vpow.pop %v10195
    %v10197 = vmul.f32 %v10107, 1.442695
    %v10198 = vpow.pop %v10197
    %v10199 = vmul.f32 %v10108, 1.442695
    %v10200 = vpow.pop %v10199
    %v10201 = vmul.f32 %v10109, 1.442695
    %v10202 = vpow.pop %v10201
    %v10203 = vmul.f32 %v10110, 1.442695
    %v10204 = vpow.pop %v10203
    %v10205 = vmul.f32 %v10111, 1.442695
    %v10206 = vpow.pop %v10205
    %v10207 = vmul.f32 %v10112, 1.442695
    %v10208 = vpow.pop %v10207
    %v10209 = vmul.f32 %v10113, 1.442695
    %v10210 = vpow.pop %v10209
    %v10211 = vmul.f32 %v10114, 1.442695
    %v10212 = vpow.pop %v10211
    %v10213 = vmul.f32 %v10115, 1.442695
    %v10214 = vpow.pop %v10213
    %v10215 = vmul.f32 %v10116, 1.442695
    %v10216 = vpow.pop %v10215
    %v10217 = vmul.f32 %v10117, 1.442695
    %v10218 = vpow.pop %v10217
    %v10219 = vmul.f32 %v10118, 1.442695
    %v10220 = vpow.pop %v10219
    %v10221 = vmul.f32 %v10119, 1.442695
    %v10222 = vpow.pop %v10221
    %v10223 = vmul.f32 %v10120, 1.442695
    %v10224 = vpow.pop %v10223
    %v10225 = vmul.f32 %v10121, 1.442695
    %v10226 = vpow.pop %v10225
    %v10227 = vmul.f32 %v10122, 1.442695
    %v10228 = vpow.pop %v10227
    %v10229 = vmul.f32 %v10123, 1.442695
    %v10230 = vpow.pop %v10229
    %v10231 = vmul.f32 %v10124, 1.442695
    %v10232 = vpow.pop %v10231
    %v10233 = vmul.f32 %v10125, 1.442695
    %v10234 = vpow.pop %v10233
    %v10235 = vmul.f32 %v10126, 1.442695
    %v10236 = vpow.pop %v10235
    %v10237 = vmul.f32 %v10127, 1.442695
    %v10238 = vpow.pop %v10237
    %v10239 = vmul.f32 %v10128, 1.442695
    %v10240 = vpow.pop %v10239
    %v10241 = vmul.f32 %v10129, 1.442695
    %v10242 = vpow.pop %v10241
    %v10243 = vmul.f32 %v10130, 1.442695
    %v10244 = vpow.pop %v10243
    %v10245 = vmul.f32 %v10131, 1.442695
    %v10246 = vpow.pop %v10245
    %v10247 = vmul.f32 %v10132, 1.442695
    %v10248 = vpow.pop %v10247
    %v10249 = vmul.f32 %v10133, 1.442695
    %v10250 = vpow.pop %v10249
    %v10251 = vmul.f32 %v10134, 1.442695
    %v10252 = vpow.pop %v10251
    %v10253 = vmul.f32 %v10135, 1.442695
    %v10254 = vpow.pop %v10253
    %v10255 = vmul.f32 %v10136, 1.442695
    %v10256 = vpow.pop %v10255
    %v10257 = vmul.f32 %v10137, 1.442695
    %v10258 = vpow.pop %v10257
    %v10259 = vmul.f32 %v10138, 1.442695
    %v10260 = vpow.pop %v10259
    %v10261 = vmul.f32 %v10139, 1.442695
    %v10262 = vpow.pop %v10261
    %v10263 = vmul.f32 %v10140, 1.442695
    %v10264 = vpow.pop %v10263
    %v10265 = vmul.f32 %v10141, 1.442695
    %v10266 = vpow.pop %v10265
    %v10267 = vmul.f32 %v10142, 1.442695
    %v10268 = vpow.pop %v10267
    %v10269 = vmul.f32 %v10143, 1.442695
    %v10270 = vpow.pop %v10269
    %v10271 = vmul.f32 %v10144, 1.442695
    %v10272 = vpow.pop %v10271
    %v10273 = vsub.f32 %v10146, 1.0
    %v10274 = vsub.f32 %v10148, 1.0
    %v10275 = vsub.f32 %v10150, 1.0
    %v10276 = vsub.f32 %v10152, 1.0
    %v10277 = vsub.f32 %v10154, 1.0
    %v10278 = vsub.f32 %v10156, 1.0
    %v10279 = vsub.f32 %v10158, 1.0
    %v10280 = vsub.f32 %v10160, 1.0
    %v10281 = vsub.f32 %v10162, 1.0
    %v10282 = vsub.f32 %v10164, 1.0
    %v10283 = vsub.f32 %v10166, 1.0
    %v10284 = vsub.f32 %v10168, 1.0
    %v10285 = vsub.f32 %v10170, 1.0
    %v10286 = vsub.f32 %v10172, 1.0
    %v10287 = vsub.f32 %v10174, 1.0
    %v10288 = vsub.f32 %v10176, 1.0
    %v10289 = vsub.f32 %v10178, 1.0
    %v10290 = vsub.f32 %v10180, 1.0
    %v10291 = vsub.f32 %v10182, 1.0
    %v10292 = vsub.f32 %v10184, 1.0
    %v10293 = vsub.f32 %v10186, 1.0
    %v10294 = vsub.f32 %v10188, 1.0
    %v10295 = vsub.f32 %v10190, 1.0
    %v10296 = vsub.f32 %v10192, 1.0
    %v10297 = vsub.f32 %v10194, 1.0
    %v10298 = vsub.f32 %v10196, 1.0
    %v10299 = vsub.f32 %v10198, 1.0
    %v10300 = vsub.f32 %v10200, 1.0
    %v10301 = vsub.f32 %v10202, 1.0
    %v10302 = vsub.f32 %v10204, 1.0
    %v10303 = vsub.f32 %v10206, 1.0
    %v10304 = vsub.f32 %v10208, 1.0
    %v10305 = vsub.f32 %v10210, 1.0
    %v10306 = vsub.f32 %v10212, 1.0
    %v10307 = vsub.f32 %v10214, 1.0
    %v10308 = vsub.f32 %v10216, 1.0
    %v10309 = vsub.f32 %v10218, 1.0
    %v10310 = vsub.f32 %v10220, 1.0
    %v10311 = vsub.f32 %v10222, 1.0
    %v10312 = vsub.f32 %v10224, 1.0
    %v10313 = vsub.f32 %v10226, 1.0
    %v10314 = vsub.f32 %v10228, 1.0
    %v10315 = vsub.f32 %v10230, 1.0
    %v10316 = vsub.f32 %v10232, 1.0
    %v10317 = vsub.f32 %v10234, 1.0
    %v10318 = vsub.f32 %v10236, 1.0
    %v10319 = vsub.f32 %v10238, 1.0
    %v10320 = vsub.f32 %v10240, 1.0
    %v10321 = vsub.f32 %v10242, 1.0
    %v10322 = vsub.f32 %v10244, 1.0
    %v10323 = vsub.f32 %v10246, 1.0
    %v10324 = vsub.f32 %v10248, 1.0
    %v10325 = vsub.f32 %v10250, 1.0
    %v10326 = vsub.f32 %v10252, 1.0
    %v10327 = vsub.f32 %v10254, 1.0
    %v10328 = vsub.f32 %v10256, 1.0
    %v10329 = vsub.f32 %v10258, 1.0
    %v10330 = vsub.f32 %v10260, 1.0
    %v10331 = vsub.f32 %v10262, 1.0
    %v10332 = vsub.f32 %v10264, 1.0
    %v10333 = vsub.f32 %v10266, 1.0
    %v10334 = vsub.f32 %v10268, 1.0
    %v10335 = vsub.f32 %v10270, 1.0
    %v10336 = vsub.f32 %v10272, 1.0
    %v10337 = vmul.f32 %v10273, 1.6732632
    %v10338 = vmul.f32 %v10274, 1.6732632
    %v10339 = vmul.f32 %v10275, 1.6732632
    %v10340 = vmul.f32 %v10276, 1.6732632
    %v10341 = vmul.f32 %v10277, 1.6732632
    %v10342 = vmul.f32 %v10278, 1.6732632
    %v10343 = vmul.f32 %v10279, 1.6732632
    %v10344 = vmul.f32 %v10280, 1.6732632
    %v10345 = vmul.f32 %v10281, 1.6732632
    %v10346 = vmul.f32 %v10282, 1.6732632
    %v10347 = vmul.f32 %v10283, 1.6732632
    %v10348 = vmul.f32 %v10284, 1.6732632
    %v10349 = vmul.f32 %v10285, 1.6732632
    %v10350 = vmul.f32 %v10286, 1.6732632
    %v10351 = vmul.f32 %v10287, 1.6732632
    %v10352 = vmul.f32 %v10288, 1.6732632
    %v10353 = vmul.f32 %v10289, 1.6732632
    %v10354 = vmul.f32 %v10290, 1.6732632
    %v10355 = vmul.f32 %v10291, 1.6732632
    %v10356 = vmul.f32 %v10292, 1.6732632
    %v10357 = vmul.f32 %v10293, 1.6732632
    %v10358 = vmul.f32 %v10294, 1.6732632
    %v10359 = vmul.f32 %v10295, 1.6732632
    %v10360 = vmul.f32 %v10296, 1.6732632
    %v10361 = vmul.f32 %v10297, 1.6732632
    %v10362 = vmul.f32 %v10298, 1.6732632
    %v10363 = vmul.f32 %v10299, 1.6732632
    %v10364 = vmul.f32 %v10300, 1.6732632
    %v10365 = vmul.f32 %v10301, 1.6732632
    %v10366 = vmul.f32 %v10302, 1.6732632
    %v10367 = vmul.f32 %v10303, 1.6732632
    %v10368 = vmul.f32 %v10304, 1.6732632
    %v10369 = vmul.f32 %v10305, 1.6732632
    %v10370 = vmul.f32 %v10306, 1.6732632
    %v10371 = vmul.f32 %v10307, 1.6732632
    %v10372 = vmul.f32 %v10308, 1.6732632
    %v10373 = vmul.f32 %v10309, 1.6732632
    %v10374 = vmul.f32 %v10310, 1.6732632
    %v10375 = vmul.f32 %v10311, 1.6732632
    %v10376 = vmul.f32 %v10312, 1.6732632
    %v10377 = vmul.f32 %v10313, 1.6732632
    %v10378 = vmul.f32 %v10314, 1.6732632
    %v10379 = vmul.f32 %v10315, 1.6732632
    %v10380 = vmul.f32 %v10316, 1.6732632
    %v10381 = vmul.f32 %v10317, 1.6732632
    %v10382 = vmul.f32 %v10318, 1.6732632
    %v10383 = vmul.f32 %v10319, 1.6732632
    %v10384 = vmul.f32 %v10320, 1.6732632
    %v10385 = vmul.f32 %v10321, 1.6732632
    %v10386 = vmul.f32 %v10322, 1.6732632
    %v10387 = vmul.f32 %v10323, 1.6732632
    %v10388 = vmul.f32 %v10324, 1.6732632
    %v10389 = vmul.f32 %v10325, 1.6732632
    %v10390 = vmul.f32 %v10326, 1.6732632
    %v10391 = vmul.f32 %v10327, 1.6732632
    %v10392 = vmul.f32 %v10328, 1.6732632
    %v10393 = vmul.f32 %v10329, 1.6732632
    %v10394 = vmul.f32 %v10330, 1.6732632
    %v10395 = vmul.f32 %v10331, 1.6732632
    %v10396 = vmul.f32 %v10332, 1.6732632
    %v10397 = vmul.f32 %v10333, 1.6732632
    %v10398 = vmul.f32 %v10334, 1.6732632
    %v10399 = vmul.f32 %v10335, 1.6732632
    %v10400 = vmul.f32 %v10336, 1.6732632
    %vm10401 = vcmp.gt.f32.partialorder %v9827, 0.0
    %vm10402 = vcmp.gt.f32.partialorder %v9830, 0.0
    %vm10403 = vcmp.gt.f32.partialorder %v9835, 0.0
    %vm10404 = vcmp.gt.f32.partialorder %v9838, 0.0
    %vm10405 = vcmp.gt.f32.partialorder %v9843, 0.0
    %vm10406 = vcmp.gt.f32.partialorder %v9846, 0.0
    %vm10407 = vcmp.gt.f32.partialorder %v9851, 0.0
    %vm10408 = vcmp.gt.f32.partialorder %v9854, 0.0
    %vm10409 = vcmp.gt.f32.partialorder %v9859, 0.0
    %vm10410 = vcmp.gt.f32.partialorder %v9862, 0.0
    %vm10411 = vcmp.gt.f32.partialorder %v9867, 0.0
    %vm10412 = vcmp.gt.f32.partialorder %v9870, 0.0
    %vm10413 = vcmp.gt.f32.partialorder %v9875, 0.0
    %vm10414 = vcmp.gt.f32.partialorder %v9878, 0.0
    %vm10415 = vcmp.gt.f32.partialorder %v9883, 0.0
    %vm10416 = vcmp.gt.f32.partialorder %v9886, 0.0
    %vm10417 = vcmp.gt.f32.partialorder %v9891, 0.0
    %vm10418 = vcmp.gt.f32.partialorder %v9894, 0.0
    %vm10419 = vcmp.gt.f32.partialorder %v9899, 0.0
    %vm10420 = vcmp.gt.f32.partialorder %v9902, 0.0
    %vm10421 = vcmp.gt.f32.partialorder %v9907, 0.0
    %vm10422 = vcmp.gt.f32.partialorder %v9910, 0.0
    %vm10423 = vcmp.gt.f32.partialorder %v9915, 0.0
    %vm10424 = vcmp.gt.f32.partialorder %v9918, 0.0
    %vm10425 = vcmp.gt.f32.partialorder %v9923, 0.0
    %vm10426 = vcmp.gt.f32.partialorder %v9926, 0.0
    %vm10427 = vcmp.gt.f32.partialorder %v9931, 0.0
    %vm10428 = vcmp.gt.f32.partialorder %v9934, 0.0
    %vm10429 = vcmp.gt.f32.partialorder %v9939, 0.0
    %vm10430 = vcmp.gt.f32.partialorder %v9942, 0.0
    %vm10431 = vcmp.gt.f32.partialorder %v9947, 0.0
    %vm10432 = vcmp.gt.f32.partialorder %v9950, 0.0
    %vm10433 = vcmp.gt.f32.partialorder %v9955, 0.0
    %vm10434 = vcmp.gt.f32.partialorder %v9958, 0.0
    %vm10435 = vcmp.gt.f32.partialorder %v9963, 0.0
    %vm10436 = vcmp.gt.f32.partialorder %v9966, 0.0
    %vm10437 = vcmp.gt.f32.partialorder %v9971, 0.0
    %vm10438 = vcmp.gt.f32.partialorder %v9974, 0.0
    %vm10439 = vcmp.gt.f32.partialorder %v9979, 0.0
    %vm10440 = vcmp.gt.f32.partialorder %v9982, 0.0
    %vm10441 = vcmp.gt.f32.partialorder %v9987, 0.0
    %vm10442 = vcmp.gt.f32.partialorder %v9990, 0.0
    %vm10443 = vcmp.gt.f32.partialorder %v9995, 0.0
    %vm10444 = vcmp.gt.f32.partialorder %v9998, 0.0
    %vm10445 = vcmp.gt.f32.partialorder %v10003, 0.0
    %vm10446 = vcmp.gt.f32.partialorder %v10006, 0.0
    %vm10447 = vcmp.gt.f32.partialorder %v10011, 0.0
    %vm10448 = vcmp.gt.f32.partialorder %v10014, 0.0
    %vm10449 = vcmp.gt.f32.partialorder %v10019, 0.0
    %vm10450 = vcmp.gt.f32.partialorder %v10022, 0.0
    %vm10451 = vcmp.gt.f32.partialorder %v10027, 0.0
    %vm10452 = vcmp.gt.f32.partialorder %v10030, 0.0
    %vm10453 = vcmp.gt.f32.partialorder %v10035, 0.0
    %vm10454 = vcmp.gt.f32.partialorder %v10038, 0.0
    %vm10455 = vcmp.gt.f32.partialorder %v10043, 0.0
    %vm10456 = vcmp.gt.f32.partialorder %v10046, 0.0
    %vm10457 = vcmp.gt.f32.partialorder %v10051, 0.0
    %vm10458 = vcmp.gt.f32.partialorder %v10054, 0.0
    %vm10459 = vcmp.gt.f32.partialorder %v10059, 0.0
    %vm10460 = vcmp.gt.f32.partialorder %v10062, 0.0
    %vm10461 = vcmp.gt.f32.partialorder %v10067, 0.0
    %vm10462 = vcmp.gt.f32.partialorder %v10070, 0.0
    %vm10463 = vcmp.gt.f32.partialorder %v10075, 0.0
    %vm10464 = vcmp.gt.f32.partialorder %v10078, 0.0
    %v10465 = vsel %vm10401, %v9827, %v10337
    %v10466 = vsel %vm10402, %v9830, %v10338
    %v10467 = vsel %vm10403, %v9835, %v10339
    %v10468 = vsel %vm10404, %v9838, %v10340
    %v10469 = vsel %vm10405, %v9843, %v10341
    %v10470 = vsel %vm10406, %v9846, %v10342
    %v10471 = vsel %vm10407, %v9851, %v10343
    %v10472 = vsel %vm10408, %v9854, %v10344
    %v10473 = vsel %vm10409, %v9859, %v10345
    %v10474 = vsel %vm10410, %v9862, %v10346
    %v10475 = vsel %vm10411, %v9867, %v10347
    %v10476 = vsel %vm10412, %v9870, %v10348
    %v10477 = vsel %vm10413, %v9875, %v10349
    %v10478 = vsel %vm10414, %v9878, %v10350
    %v10479 = vsel %vm10415, %v9883, %v10351
    %v10480 = vsel %vm10416, %v9886, %v10352
    %v10481 = vsel %vm10417, %v9891, %v10353
    %v10482 = vsel %vm10418, %v9894, %v10354
    %v10483 = vsel %vm10419, %v9899, %v10355
    %v10484 = vsel %vm10420, %v9902, %v10356
    %v10485 = vsel %vm10421, %v9907, %v10357
    %v10486 = vsel %vm10422, %v9910, %v10358
    %v10487 = vsel %vm10423, %v9915, %v10359
    %v10488 = vsel %vm10424, %v9918, %v10360
    %v10489 = vsel %vm10425, %v9923, %v10361
    %v10490 = vsel %vm10426, %v9926, %v10362
    %v10491 = vsel %vm10427, %v9931, %v10363
    %v10492 = vsel %vm10428, %v9934, %v10364
    %v10493 = vsel %vm10429, %v9939, %v10365
    %v10494 = vsel %vm10430, %v9942, %v10366
    %v10495 = vsel %vm10431, %v9947, %v10367
    %v10496 = vsel %vm10432, %v9950, %v10368
    %v10497 = vsel %vm10433, %v9955, %v10369
    %v10498 = vsel %vm10434, %v9958, %v10370
    %v10499 = vsel %vm10435, %v9963, %v10371
    %v10500 = vsel %vm10436, %v9966, %v10372
    %v10501 = vsel %vm10437, %v9971, %v10373
    %v10502 = vsel %vm10438, %v9974, %v10374
    %v10503 = vsel %vm10439, %v9979, %v10375
    %v10504 = vsel %vm10440, %v9982, %v10376
    %v10505 = vsel %vm10441, %v9987, %v10377
    %v10506 = vsel %vm10442, %v9990, %v10378
    %v10507 = vsel %vm10443, %v9995, %v10379
    %v10508 = vsel %vm10444, %v9998, %v10380
    %v10509 = vsel %vm10445, %v10003, %v10381
    %v10510 = vsel %vm10446, %v10006, %v10382
    %v10511 = vsel %vm10447, %v10011, %v10383
    %v10512 = vsel %vm10448, %v10014, %v10384
    %v10513 = vsel %vm10449, %v10019, %v10385
    %v10514 = vsel %vm10450, %v10022, %v10386
    %v10515 = vsel %vm10451, %v10027, %v10387
    %v10516 = vsel %vm10452, %v10030, %v10388
    %v10517 = vsel %vm10453, %v10035, %v10389
    %v10518 = vsel %vm10454, %v10038, %v10390
    %v10519 = vsel %vm10455, %v10043, %v10391
    %v10520 = vsel %vm10456, %v10046, %v10392
    %v10521 = vsel %vm10457, %v10051, %v10393
    %v10522 = vsel %vm10458, %v10054, %v10394
    %v10523 = vsel %vm10459, %v10059, %v10395
    %v10524 = vsel %vm10460, %v10062, %v10396
    %v10525 = vsel %vm10461, %v10067, %v10397
    %v10526 = vsel %vm10462, %v10070, %v10398
    %v10527 = vsel %vm10463, %v10075, %v10399
    %v10528 = vsel %vm10464, %v10078, %v10400
    %v10529 = vmul.f32 %v10465, 1.050701
    %v10530 = vmul.f32 %v10466, 1.050701
    %v10531 = vmul.f32 %v10467, 1.050701
    %v10532 = vmul.f32 %v10468, 1.050701
    %v10533 = vmul.f32 %v10469, 1.050701
    %v10534 = vmul.f32 %v10470, 1.050701
    %v10535 = vmul.f32 %v10471, 1.050701
    %v10536 = vmul.f32 %v10472, 1.050701
    %v10537 = vmul.f32 %v10473, 1.050701
    %v10538 = vmul.f32 %v10474, 1.050701
    %v10539 = vmul.f32 %v10475, 1.050701
    %v10540 = vmul.f32 %v10476, 1.050701
    %v10541 = vmul.f32 %v10477, 1.050701
    %v10542 = vmul.f32 %v10478, 1.050701
    %v10543 = vmul.f32 %v10479, 1.050701
    %v10544 = vmul.f32 %v10480, 1.050701
    %v10545 = vmul.f32 %v10481, 1.050701
    %v10546 = vmul.f32 %v10482, 1.050701
    %v10547 = vmul.f32 %v10483, 1.050701
    %v10548 = vmul.f32 %v10484, 1.050701
    %v10549 = vmul.f32 %v10485, 1.050701
    %v10550 = vmul.f32 %v10486, 1.050701
    %v10551 = vmul.f32 %v10487, 1.050701
    %v10552 = vmul.f32 %v10488, 1.050701
    %v10553 = vmul.f32 %v10489, 1.050701
    %v10554 = vmul.f32 %v10490, 1.050701
    %v10555 = vmul.f32 %v10491, 1.050701
    %v10556 = vmul.f32 %v10492, 1.050701
    %v10557 = vmul.f32 %v10493, 1.050701
    %v10558 = vmul.f32 %v10494, 1.050701
    %v10559 = vmul.f32 %v10495, 1.050701
    %v10560 = vmul.f32 %v10496, 1.050701
    %v10561 = vmul.f32 %v10497, 1.050701
    %v10562 = vmul.f32 %v10498, 1.050701
    %v10563 = vmul.f32 %v10499, 1.050701
    %v10564 = vmul.f32 %v10500, 1.050701
    %v10565 = vmul.f32 %v10501, 1.050701
    %v10566 = vmul.f32 %v10502, 1.050701
    %v10567 = vmul.f32 %v10503, 1.050701
    %v10568 = vmul.f32 %v10504, 1.050701
    %v10569 = vmul.f32 %v10505, 1.050701
    %v10570 = vmul.f32 %v10506, 1.050701
    %v10571 = vmul.f32 %v10507, 1.050701
    %v10572 = vmul.f32 %v10508, 1.050701
    %v10573 = vmul.f32 %v10509, 1.050701
    %v10574 = vmul.f32 %v10510, 1.050701
    %v10575 = vmul.f32 %v10511, 1.050701
    %v10576 = vmul.f32 %v10512, 1.050701
    %v10577 = vmul.f32 %v10513, 1.050701
    %v10578 = vmul.f32 %v10514, 1.050701
    %v10579 = vmul.f32 %v10515, 1.050701
    %v10580 = vmul.f32 %v10516, 1.050701
    %v10581 = vmul.f32 %v10517, 1.050701
    %v10582 = vmul.f32 %v10518, 1.050701
    %v10583 = vmul.f32 %v10519, 1.050701
    %v10584 = vmul.f32 %v10520, 1.050701
    %v10585 = vmul.f32 %v10521, 1.050701
    %v10586 = vmul.f32 %v10522, 1.050701
    %v10587 = vmul.f32 %v10523, 1.050701
    %v10588 = vmul.f32 %v10524, 1.050701
    %v10589 = vmul.f32 %v10525, 1.050701
    %v10590 = vmul.f32 %v10526, 1.050701
    %v10591 = vmul.f32 %v10527, 1.050701
    %v10592 = vmul.f32 %v10528, 1.050701
    %10593 = vst [vmem:[#allocation4] sm:$0xff] %v10529
    %10594 = vst [vmem:[#allocation4 + $0x8] sm:$0xff] %v10530
    %10595 = vst [vmem:[#allocation4 + $0x10] sm:$0xff] %v10531
    %10596 = vst [vmem:[#allocation4 + $0x18] sm:$0xff] %v10532
    %10597 = vst [vmem:[#allocation4 + $0x20] sm:$0xff] %v10533
    %10598 = vst [vmem:[#allocation4 + $0x28] sm:$0xff] %v10534
    %10599 = vst [vmem:[#allocation4 + $0x30] sm:$0xff] %v10535
    %10600 = vst [vmem:[#allocation4 + $0x38] sm:$0xff] %v10536
    %10601 = vst [vmem:[#allocation4 + $0x40] sm:$0xff] %v10537
    %10602 = vst [vmem:[#allocation4 + $0x48] sm:$0xff] %v10538
    %10603 = vst [vmem:[#allocation4 + $0x50] sm:$0xff] %v10539
    %10604 = vst [vmem:[#allocation4 + $0x58] sm:$0xff] %v10540
    %10605 = vst [vmem:[#allocation4 + $0x60] sm:$0xff] %v10541
    %10606 = vst [vmem:[#allocation4 + $0x68] sm:$0xff] %v10542
    %10607 = vst [vmem:[#allocation4 + $0x70] sm:$0xff] %v10543
    %10608 = vst [vmem:[#allocation4 + $0x78] sm:$0xff] %v10544
    %10609 = vst [vmem:[#allocation4 + $0x80] sm:$0xff] %v10545
    %10610 = vst [vmem:[#allocation4 + $0x88] sm:$0xff] %v10546
    %10611 = vst [vmem:[#allocation4 + $0x90] sm:$0xff] %v10547
    %10612 = vst [vmem:[#allocation4 + $0x98] sm:$0xff] %v10548
    %10613 = vst [vmem:[#allocation4 + $0xa0] sm:$0xff] %v10549
    %10614 = vst [vmem:[#allocation4 + $0xa8] sm:$0xff] %v10550
    %10615 = vst [vmem:[#allocation4 + $0xb0] sm:$0xff] %v10551
    %10616 = vst [vmem:[#allocation4 + $0xb8] sm:$0xff] %v10552
    %10617 = vst [vmem:[#allocation4 + $0xc0] sm:$0xff] %v10553
    %10618 = vst [vmem:[#allocation4 + $0xc8] sm:$0xff] %v10554
    %10619 = vst [vmem:[#allocation4 + $0xd0] sm:$0xff] %v10555
    %10620 = vst [vmem:[#allocation4 + $0xd8] sm:$0xff] %v10556
    %10621 = vst [vmem:[#allocation4 + $0xe0] sm:$0xff] %v10557
    %10622 = vst [vmem:[#allocation4 + $0xe8] sm:$0xff] %v10558
    %10623 = vst [vmem:[#allocation4 + $0xf0] sm:$0xff] %v10559
    %10624 = vst [vmem:[#allocation4 + $0xf8] sm:$0xff] %v10560
    %10625 = vst [vmem:[#allocation4 + $0x100] sm:$0xff] %v10561
    %10626 = vst [vmem:[#allocation4 + $0x108] sm:$0xff] %v10562
    %10627 = vst [vmem:[#allocation4 + $0x110] sm:$0xff] %v10563
    %10628 = vst [vmem:[#allocation4 + $0x118] sm:$0xff] %v10564
    %10629 = vst [vmem:[#allocation4 + $0x120] sm:$0xff] %v10565
    %10630 = vst [vmem:[#allocation4 + $0x128] sm:$0xff] %v10566
    %10631 = vst [vmem:[#allocation4 + $0x130] sm:$0xff] %v10567
    %10632 = vst [vmem:[#allocation4 + $0x138] sm:$0xff] %v10568
    %10633 = vst [vmem:[#allocation4 + $0x140] sm:$0xff] %v10569
    %10634 = vst [vmem:[#allocation4 + $0x148] sm:$0xff] %v10570
    %10635 = vst [vmem:[#allocation4 + $0x150] sm:$0xff] %v10571
    %10636 = vst [vmem:[#allocation4 + $0x158] sm:$0xff] %v10572
    %10637 = vst [vmem:[#allocation4 + $0x160] sm:$0xff] %v10573
    %10638 = vst [vmem:[#allocation4 + $0x168] sm:$0xff] %v10574
    %10639 = vst [vmem:[#allocation4 + $0x170] sm:$0xff] %v10575
    %10640 = vst [vmem:[#allocation4 + $0x178] sm:$0xff] %v10576
    %10641 = vst [vmem:[#allocation4 + $0x180] sm:$0xff] %v10577
    %10642 = vst [vmem:[#allocation4 + $0x188] sm:$0xff] %v10578
    %10643 = vst [vmem:[#allocation4 + $0x190] sm:$0xff] %v10579
    %10644 = vst [vmem:[#allocation4 + $0x198] sm:$0xff] %v10580
    %10645 = vst [vmem:[#allocation4 + $0x1a0] sm:$0xff] %v10581
    %10646 = vst [vmem:[#allocation4 + $0x1a8] sm:$0xff] %v10582
    %10647 = vst [vmem:[#allocation4 + $0x1b0] sm:$0xff] %v10583
    %10648 = vst [vmem:[#allocation4 + $0x1b8] sm:$0xff] %v10584
    %10649 = vst [vmem:[#allocation4 + $0x1c0] sm:$0xff] %v10585
    %10650 = vst [vmem:[#allocation4 + $0x1c8] sm:$0xff] %v10586
    %10651 = vst [vmem:[#allocation4 + $0x1d0] sm:$0xff] %v10587
    %10652 = vst [vmem:[#allocation4 + $0x1d8] sm:$0xff] %v10588
    %10653 = vst [vmem:[#allocation4 + $0x1e0] sm:$0xff] %v10589
    %10654 = vst [vmem:[#allocation4 + $0x1e8] sm:$0xff] %v10590
    %10655 = vst [vmem:[#allocation4 + $0x1f0] sm:$0xff] %v10591
    %10656 = vst [vmem:[#allocation4 + $0x1f8] sm:$0xff] %v10592
    %v10657 = vadd.f32 %v10529, %v10530
    %v10658 = vadd.f32 %v10657, %v10531
    %v10659 = vadd.f32 %v10658, %v10532
    %v10660 = vadd.f32 %v10659, %v10533
    %v10661 = vadd.f32 %v10660, %v10534
    %v10662 = vadd.f32 %v10661, %v10535
    %v10663 = vadd.f32 %v10662, %v10536
    %v10664 = vadd.f32 %v10663, %v10537
    %v10665 = vadd.f32 %v10664, %v10538
    %v10666 = vadd.f32 %v10665, %v10539
    %v10667 = vadd.f32 %v10666, %v10540
    %v10668 = vadd.f32 %v10667, %v10541
    %v10669 = vadd.f32 %v10668, %v10542
    %v10670 = vadd.f32 %v10669, %v10543
    %v10671 = vadd.f32 %v10670, %v10544
    %v10672 = vadd.f32 %v10671, %v10545
    %v10673 = vadd.f32 %v10672, %v10546
    %v10674 = vadd.f32 %v10673, %v10547
    %v10675 = vadd.f32 %v10674, %v10548
    %v10676 = vadd.f32 %v10675, %v10549
    %v10677 = vadd.f32 %v10676, %v10550
    %v10678 = vadd.f32 %v10677, %v10551
    %v10679 = vadd.f32 %v10678, %v10552
    %v10680 = vadd.f32 %v10679, %v10553
    %v10681 = vadd.f32 %v10680, %v10554
    %v10682 = vadd.f32 %v10681, %v10555
    %v10683 = vadd.f32 %v10682, %v10556
    %v10684 = vadd.f32 %v10683, %v10557
    %v10685 = vadd.f32 %v10684, %v10558
    %v10686 = vadd.f32 %v10685, %v10559
    %v10687 = vadd.f32 %v10686, %v10560
    %v10688 = vadd.f32 %v10687, %v10561
    %v10689 = vadd.f32 %v10688, %v10562
    %v10690 = vadd.f32 %v10689, %v10563
    %v10691 = vadd.f32 %v10690, %v10564
    %v10692 = vadd.f32 %v10691, %v10565
    %v10693 = vadd.f32 %v10692, %v10566
    %v10694 = vadd.f32 %v10693, %v10567
    %v10695 = vadd.f32 %v10694, %v10568
    %v10696 = vadd.f32 %v10695, %v10569
    %v10697 = vadd.f32 %v10696, %v10570
    %v10698 = vadd.f32 %v10697, %v10571
    %v10699 = vadd.f32 %v10698, %v10572
    %v10700 = vadd.f32 %v10699, %v10573
    %v10701 = vadd.f32 %v10700, %v10574
    %v10702 = vadd.f32 %v10701, %v10575
    %v10703 = vadd.f32 %v10702, %v10576
    %v10704 = vadd.f32 %v10703, %v10577
    %v10705 = vadd.f32 %v10704, %v10578
    %v10706 = vadd.f32 %v10705, %v10579
    %v10707 = vadd.f32 %v10706, %v10580
    %v10708 = vadd.f32 %v10707, %v10581
    %v10709 = vadd.f32 %v10708, %v10582
    %v10710 = vadd.f32 %v10709, %v10583
    %v10711 = vadd.f32 %v10710, %v10584
    %v10712 = vadd.f32 %v10711, %v10585
    %v10713 = vadd.f32 %v10712, %v10586
    %v10714 = vadd.f32 %v10713, %v10587
    %v10715 = vadd.f32 %v10714, %v10588
    %v10716 = vadd.f32 %v10715, %v10589
    %v10717 = vadd.f32 %v10716, %v10590
    %v10718 = vadd.f32 %v10717, %v10591
    %v10719 = vadd.f32 %v10718, %v10592
    %v10720 = vrot.slane %v10719, 4
    %v10721 = vadd.f32 %v10719, %v10720
    %v10722 = vrot.slane %v10721, 2
    %v10723 = vadd.f32 %v10721, %v10722
    %v10724 = vrot.slane %v10723, 1
    %v10725 = vadd.f32 %v10723, %v10724
    %v10726 = vmul.f32 %v10529, %v10529
    %v10727 = vmul.f32 %v10530, %v10530
    %v10728 = vmul.f32 %v10531, %v10531
    %v10729 = vmul.f32 %v10532, %v10532
    %v10730 = vmul.f32 %v10533, %v10533
    %v10731 = vmul.f32 %v10534, %v10534
    %v10732 = vmul.f32 %v10535, %v10535
    %v10733 = vmul.f32 %v10536, %v10536
    %v10734 = vmul.f32 %v10537, %v10537
    %v10735 = vmul.f32 %v10538, %v10538
    %v10736 = vmul.f32 %v10539, %v10539
    %v10737 = vmul.f32 %v10540, %v10540
    %v10738 = vmul.f32 %v10541, %v10541
    %v10739 = vmul.f32 %v10542, %v10542
    %v10740 = vmul.f32 %v10543, %v10543
    %v10741 = vmul.f32 %v10544, %v10544
    %v10742 = vmul.f32 %v10545, %v10545
    %v10743 = vmul.f32 %v10546, %v10546
    %v10744 = vmul.f32 %v10547, %v10547
    %v10745 = vmul.f32 %v10548, %v10548
    %v10746 = vmul.f32 %v10549, %v10549
    %v10747 = vmul.f32 %v10550, %v10550
    %v10748 = vmul.f32 %v10551, %v10551
    %v10749 = vmul.f32 %v10552, %v10552
    %v10750 = vmul.f32 %v10553, %v10553
    %v10751 = vmul.f32 %v10554, %v10554
    %v10752 = vmul.f32 %v10555, %v10555
    %v10753 = vmul.f32 %v10556, %v10556
    %v10754 = vmul.f32 %v10557, %v10557
    %v10755 = vmul.f32 %v10558, %v10558
    %v10756 = vmul.f32 %v10559, %v10559
    %v10757 = vmul.f32 %v10560, %v10560
    %v10758 = vmul.f32 %v10561, %v10561
    %v10759 = vmul.f32 %v10562, %v10562
    %v10760 = vmul.f32 %v10563, %v10563
    %v10761 = vmul.f32 %v10564, %v10564
    %v10762 = vmul.f32 %v10565, %v10565
    %v10763 = vmul.f32 %v10566, %v10566
    %v10764 = vmul.f32 %v10567, %v10567
    %v10765 = vmul.f32 %v10568, %v10568
    %v10766 = vmul.f32 %v10569, %v10569
    %v10767 = vmul.f32 %v10570, %v10570
    %v10768 = vmul.f32 %v10571, %v10571
    %v10769 = vmul.f32 %v10572, %v10572
    %v10770 = vmul.f32 %v10573, %v10573
    %v10771 = vmul.f32 %v10574, %v10574
    %v10772 = vmul.f32 %v10575, %v10575
    %v10773 = vmul.f32 %v10576, %v10576
    %v10774 = vmul.f32 %v10577, %v10577
    %v10775 = vmul.f32 %v10578, %v10578
    %v10776 = vmul.f32 %v10579, %v10579
    %v10777 = vmul.f32 %v10580, %v10580
    %v10778 = vmul.f32 %v10581, %v10581
    %v10779 = vmul.f32 %v10582, %v10582
    %v10780 = vmul.f32 %v10583, %v10583
    %v10781 = vmul.f32 %v10584, %v10584
    %v10782 = vmul.f32 %v10585, %v10585
    %v10783 = vmul.f32 %v10586, %v10586
    %v10784 = vmul.f32 %v10587, %v10587
    %v10785 = vmul.f32 %v10588, %v10588
    %v10786 = vmul.f32 %v10589, %v10589
    %v10787 = vmul.f32 %v10590, %v10590
    %v10788 = vmul.f32 %v10591, %v10591
    %v10789 = vmul.f32 %v10592, %v10592
    %v10790 = vadd.f32 %v10726, %v10727
    %v10791 = vadd.f32 %v10790, %v10728
    %v10792 = vadd.f32 %v10791, %v10729
    %v10793 = vadd.f32 %v10792, %v10730
    %v10794 = vadd.f32 %v10793, %v10731
    %v10795 = vadd.f32 %v10794, %v10732
    %v10796 = vadd.f32 %v10795, %v10733
    %v10797 = vadd.f32 %v10796, %v10734
    %v10798 = vadd.f32 %v10797, %v10735
    %v10799 = vadd.f32 %v10798, %v10736
    %v10800 = vadd.f32 %v10799, %v10737
    %v10801 = vadd.f32 %v10800, %v10738
    %v10802 = vadd.f32 %v10801, %v10739
    %v10803 = vadd.f32 %v10802, %v10740
    %v10804 = vadd.f32 %v10803, %v10741
    %v10805 = vadd.f32 %v10804, %v10742
    %v10806 = vadd.f32 %v10805, %v10743
    %v10807 = vadd.f32 %v10806, %v10744
    %v10808 = vadd.f32 %v10807, %v10745
    %v10809 = vadd.f32 %v10808, %v10746
    %v10810 = vadd.f32 %v10809, %v10747
    %v10811 = vadd.f32 %v10810, %v10748
    %v10812 = vadd.f32 %v10811, %v10749
    %v10813 = vadd.f32 %v10812, %v10750
    %v10814 = vadd.f32 %v10813, %v10751
    %v10815 = vadd.f32 %v10814, %v10752
    %v10816 = vadd.f32 %v10815, %v10753
    %v10817 = vadd.f32 %v10816, %v10754
    %v10818 = vadd.f32 %v10817, %v10755
    %v10819 = vadd.f32 %v10818, %v10756
    %v10820 = vadd.f32 %v10819, %v10757
    %v10821 = vadd.f32 %v10820, %v10758
    %v10822 = vadd.f32 %v10821, %v10759
    %v10823 = vadd.f32 %v10822, %v10760
    %v10824 = vadd.f32 %v10823, %v10761
    %v10825 = vadd.f32 %v10824, %v10762
    %v10826 = vadd.f32 %v10825, %v10763
    %v10827 = vadd.f32 %v10826, %v10764
    %v10828 = vadd.f32 %v10827, %v10765
    %v10829 = vadd.f32 %v10828, %v10766
    %v10830 = vadd.f32 %v10829, %v10767
    %v10831 = vadd.f32 %v10830, %v10768
    %v10832 = vadd.f32 %v10831, %v10769
    %v10833 = vadd.f32 %v10832, %v10770
    %v10834 = vadd.f32 %v10833, %v10771
    %v10835 = vadd.f32 %v10834, %v10772
    %v10836 = vadd.f32 %v10835, %v10773
    %v10837 = vadd.f32 %v10836, %v10774
    %v10838 = vadd.f32 %v10837, %v10775
    %v10839 = vadd.f32 %v10838, %v10776
    %v10840 = vadd.f32 %v10839, %v10777
    %v10841 = vadd.f32 %v10840, %v10778
    %v10842 = vadd.f32 %v10841, %v10779
    %v10843 = vadd.f32 %v10842, %v10780
    %v10844 = vadd.f32 %v10843, %v10781
    %v10845 = vadd.f32 %v10844, %v10782
    %v10846 = vadd.f32 %v10845, %v10783
    %v10847 = vadd.f32 %v10846, %v10784
    %v10848 = vadd.f32 %v10847, %v10785
    %v10849 = vadd.f32 %v10848, %v10786
    %v10850 = vadd.f32 %v10849, %v10787
    %v10851 = vadd.f32 %v10850, %v10788
    %v10852 = vadd.f32 %v10851, %v10789
    %v10853 = vrot.slane %v10852, 4
    %v10854 = vadd.f32 %v10852, %v10853
    %v10855 = vrot.slane %v10854, 2
    %v10856 = vadd.f32 %v10854, %v10855
    %v10857 = vrot.slane %v10856, 1
    %v10858 = vadd.f32 %v10856, %v10857
    // Predicated region
    $region18: #{tpu_custom_call.1} parent=1 // pred_check
      %p10859 = pneg %p20
    $region19: #{tpu_custom_call.1} parent=1 // pred_check_branch
      %10861 = sbr.rel (%p10859) target = $region21
    $region20: #{tpu_custom_call.1} parent=1 // pred_region
      %10862 = vst [vmem:[#allocation6] sm:$0x1] %v10725
      %10863 = vst [vmem:[#allocation8] sm:$0x1] %v10858
    $region21: #{tpu_custom_call.1} parent=1 // pred_fallthru
      _
    %p10864 = scmp.ne.s32.totalorder 0, 0
    // Predicated region
    $region22: #{tpu_custom_call.1} parent=1 // pred_check
      %p10865 = pneg %p10864
    $region23: #{tpu_custom_call.1} parent=1 // pred_check_branch
      %10867 = sbr.rel (%p10865) target = $region25
    $region24: #{tpu_custom_call.1} parent=1 // pred_region
      %v10868 = vld [vmem:[#allocation6] sm:$0x1]
      %v10869 = vadd.f32 %v10868, %v10725
      %10870 = vst [vmem:[#allocation6] sm:$0x1] %v10869
      %v10871 = vld [vmem:[#allocation8] sm:$0x1]
      %v10872 = vadd.f32 %v10871, %v10858
      %10873 = vst [vmem:[#allocation8] sm:$0x1] %v10872
    $region25: #{tpu_custom_call.1} parent=1 // pred_fallthru
      _
    // Predicated region
    $region26: #{tpu_custom_call.1} parent=1 // pred_check
      _
    $region27: #{tpu_custom_call.1} parent=1 // pred_check_branch
      %10875 = sbr.rel (0) target = $region29
    $region28: #{tpu_custom_call.1} parent=1 // pred_region
      %s10877 = ssub.s32 8192, 8192
      %10878 = vsyncadd [#allocation5], %s10877
      %s10879 = sshll.u32 [#allocation4], 4
      %s10880 = int_to_ptr.vmem [resolvable:$true] %s10879
      %10885 = dma.vmem_to_hbm [thread:$0]  %s10880, 8192, %s3, [#allocation5], 128, 128, 8
    $region29: #{tpu_custom_call.1} parent=1 // pred_fallthru
      _
    // Predicated region
    $region30: #{tpu_custom_call.1} parent=1 // pred_check
      _
    $region31: #{tpu_custom_call.1} parent=1 // pred_check_branch
      %10887 = sbr.rel (0) target = $region33
    $region32: #{tpu_custom_call.1} parent=1 // pred_region
      %s10889 = ssub.s32 16, 16
      %10890 = vsyncadd [#allocation7], %s10889
      %s10892 = sshll.u32 [#allocation6], 4
      %s10893 = int_to_ptr.vmem [resolvable:$true] %s10892
      %10895 = dma.vmem_to_hbm [thread:$0]  %s10893, 16, %s4, [#allocation7]
    $region33: #{tpu_custom_call.1} parent=1 // pred_fallthru
      _
    // Predicated region
    $region34: #{tpu_custom_call.1} parent=1 // pred_check
      _
    $region35: #{tpu_custom_call.1} parent=1 // pred_check_branch
      %10897 = sbr.rel (0) target = $region37
    $region36: #{tpu_custom_call.1} parent=1 // pred_region
      %s10899 = ssub.s32 16, 16
      %10900 = vsyncadd [#allocation7], %s10899
      %s10902 = sshll.u32 [#allocation8], 4
      %s10903 = int_to_ptr.vmem [resolvable:$true] %s10902
      %10905 = dma.vmem_to_hbm [thread:$0]  %s10903, 16, %s5, [#allocation7]
    $region37: #{tpu_custom_call.1} parent=1 // pred_fallthru
      _
    // Predicated region
    $region38: #{tpu_custom_call.1} parent=1 // pred_check
      _
    $region39: #{tpu_custom_call.1} parent=1 // pred_check_branch
      %10907 = sbr.rel (0) target = $region41
    $region40: #{tpu_custom_call.1} parent=1 // pred_region
      %10908 = dma.done [#allocation5], 8192
    $region41: #{tpu_custom_call.1} parent=1 // pred_fallthru
      _
    // Predicated region
    $region42: #{tpu_custom_call.1} parent=1 // pred_check
      _
    $region43: #{tpu_custom_call.1} parent=1 // pred_check_branch
      %10910 = sbr.rel (0) target = $region45
    $region44: #{tpu_custom_call.1} parent=1 // pred_region
      %10911 = dma.done [#allocation7], 16
    $region45: #{tpu_custom_call.1} parent=1 // pred_fallthru
      _
    // Predicated region
    $region46: #{tpu_custom_call.1} parent=1 // pred_check
      _
    $region47: #{tpu_custom_call.1} parent=1 // pred_check_branch
      %10913 = sbr.rel (0) target = $region49
    $region48: #{tpu_custom_call.1} parent=1 // pred_region
      %10914 = dma.done [#allocation7], 16
    $region49: #{tpu_custom_call.1} parent=1 // pred_fallthru
      _
    %10915 = vsyncpa [#allocation5], 1
    %10916 = vsyncpa [#allocation7], 1

</llo_original>
